<compile_context>
chip_gen: v5e
topology: v5e:2x2
jax: 0.10.0
libtpu: 0.0.40
codegen_flags: <defaults>
</compile_context>

<pallas_src>
import math
from functools import partial

import jax
import jax.numpy as jnp
from jax.experimental import pallas as pl
from jax.experimental.pallas import tpu as pltpu

KH = 5  # MoDE conv kernel height (5x5; only the centre column matters, W == 1)


# ----------------------------- in-kernel helpers ----------------------------
def _mish(x):
    # mish(x) = x*tanh(softplus(x)) = x*(1 - 2/((1+e^x)^2 + 1))   (single exp)
    # x -> +inf: e=inf -> term 0 -> mish=x ;  x -> -inf: e=0 -> mish=0.
    e = jnp.exp(x)
    t = 1.0 + e
    return x * (1.0 - 2.0 * pl.reciprocal(t * t + 1.0, approx=True))


def _layernorm(x, g, b, eps=1e-5):
    mu = jnp.mean(x, axis=-1, keepdims=True)
    xc = x - mu
    var = jnp.mean(xc * xc, axis=-1, keepdims=True)
    return xc * jax.lax.rsqrt(var + eps) * g + b


# ----------------------------- the fused kernel -----------------------------
def _cryptor_kernel(
    x_ref,         # (1, B*T, Fin)              B samples' rows for this step
    wconv_bd_ref,  # (B*T, KH*B*T)              block-diag routed MoDE conv
    shifts_ref,    # (KH, H, H)                 precomputed shift matrices
    bias_ref,      # (heads*B*T, B*T)           block-diag (per-sample) bias
    enc_w_ref,     # (Fin, H)
    enc_b_ref,     # (1, H)
    qkv_w_ref,     # (L, H, 3H)                 fused [Q | K | V], heads contig.
    qkv_b_ref,     # (L, 1, 3H)
    out_w_ref,     # (L, H, H)
    out_b_ref,     # (L, 1, H)
    ff1_w_ref,     # (L, H, dff)
    ff1_b_ref,     # (L, 1, dff)
    ff2_w_ref,     # (L, dff, H)
    ff2_b_ref,     # (L, 1, H)
    ln1_g_ref,     # (L, 1, H)
    ln1_b_ref,     # (L, 1, H)
    ln2_g_ref,     # (L, 1, H)
    ln2_b_ref,     # (L, 1, H)
    down_bd_ref,   # (B*P, B*T)                 block-diag down projection
    down_b_ref,    # (B*P, 1)
    fc_w_ref,      # (H, Fin)
    fc_b_ref,      # (1, Fin)
    o_ref,         # (1, B*P, Fin)
    *, layers, heads):

    f32 = jnp.float32
    BT = x_ref.shape[1]
    H = enc_w_ref.shape[1]
    dk = H // heads
    scale = 1.0 / math.sqrt(dk)

    # ---- encoder + Mish (batched over all B samples' rows) ------------------
    xh = _mish(jnp.dot(x_ref[0], enc_w_ref[...], preferred_element_type=f32)
               + enc_b_ref[...])                                      # (BT, H)

    # ---- MoDE conv (1-D along H, channels = T, block-diag over samples) -----
    # shifted copies built with constant shift matrices on the MXU, then one
    # block-diagonal im2col matmul for the whole sample block.
    slabs = [jnp.dot(xh, shifts_ref[kh], preferred_element_type=f32)
             for kh in range(KH)]                                     # KH x (BT, H)
    xcat = jnp.concatenate(slabs, axis=0)                             # (KH*BT, H)
    xj = _mish(jnp.dot(wconv_bd_ref[...], xcat,
                       preferred_element_type=f32))                   # (BT, H)

    # ---- TransformerEncoder (post-LN, ReLU FFN, eval dropout = identity) ----
    bias = bias_ref[...]                                              # (h*BT, BT)
    xc = xj
    for li in range(layers):
        # fused QKV projection: one (BT,H)x(H,3H) matmul per layer
        qkv = (jnp.dot(xc, qkv_w_ref[li], preferred_element_type=f32)
               + qkv_b_ref[li])                                       # (BT, 3H)

        # per-head scores (block-diag over samples), stacked for one softmax
        s_list = []
        for hh in range(heads):
            q = qkv[:, hh * dk:(hh + 1) * dk]                         # (BT, dk)
            k = qkv[:, H + hh * dk:H + (hh + 1) * dk]                 # (BT, dk)
            s_list.append(jax.lax.dot_general(
                q, k, (((1,), (1,)), ((), ())),
                preferred_element_type=f32))                          # (BT, BT)
        s_all = jnp.concatenate(s_list, axis=0) * scale + bias        # (h*BT, BT)
        s_all = s_all - jnp.max(s_all, axis=-1, keepdims=True)
        p_all = jnp.exp(s_all)
        p_all = p_all * pl.reciprocal(
            jnp.sum(p_all, axis=-1, keepdims=True), approx=True)

        # per-head PV, concat heads along lanes, single (H,H) out projection
        o_heads = []
        for hh in range(heads):
            p_h = p_all[hh * BT:(hh + 1) * BT]                        # (BT, BT)
            v_h = qkv[:, 2 * H + hh * dk:2 * H + (hh + 1) * dk]       # (BT, dk)
            o_heads.append(jnp.dot(p_h, v_h, preferred_element_type=f32))
        o_cat = jnp.concatenate(o_heads, axis=1)                      # (BT, H)
        attn = (jnp.dot(o_cat, out_w_ref[li], preferred_element_type=f32)
                + out_b_ref[li])
        x1 = _layernorm(xc + attn, ln1_g_ref[li], ln1_b_ref[li])

        # feed-forward (unchunked; (BT, dff) intermediate stays on-chip)
        h1 = jnp.maximum(
            jnp.dot(x1, ff1_w_ref[li], preferred_element_type=f32)
            + ff1_b_ref[li], 0.0)                                     # (BT, dff)
        ff = (jnp.dot(h1, ff2_w_ref[li], preferred_element_type=f32)
              + ff2_b_ref[li])                                        # (BT, H)
        xc = _layernorm(x1 + ff, ln2_g_ref[li], ln2_b_ref[li])

    # ---- epilogue: mish + 0.2*xj, down(T->P, block-diag), mish, fc ----------
    xm = _mish(xc) + 0.2 * xj                                         # (BT, H)
    xd = _mish(jnp.dot(down_bd_ref[...], xm, preferred_element_type=f32)
               + down_b_ref[...])                                     # (BP, H)
    out = (jnp.dot(xd, fc_w_ref[...], preferred_element_type=f32)
           + fc_b_ref[...])                                           # (BP, Fin)
    o_ref[0] = out.astype(o_ref.dtype)


# ----------------------------- parameters -----------------------------------
def init_params(key, inSize, hidSize, heads, layers, trainWindow, predWindow,
                dff=2048):
    T, H, P, L = trainWindow, hidSize, predWindow, layers
    keys = iter(jax.random.split(key, 64))

    def dense(k, fin, fout):
        lim = 1.0 / math.sqrt(fin)
        kw, kb = jax.random.split(k)
        w = jax.random.uniform(kw, (fin, fout), jnp.float32, -lim, lim)
        b = jax.random.uniform(kb, (fout,), jnp.float32, -lim, lim)
        return w, b

    def conv(k, co, ci, ksz):
        lim = 1.0 / math.sqrt(ci * ksz * ksz)
        return jax.random.uniform(k, (co, ci, ksz, ksz), jnp.float32, -lim, lim)

    p = {}
    enc_w, enc_b = dense(next(keys), inSize, H)
    p["enc_w"], p["enc_b"] = enc_w, enc_b.reshape(1, H)

    # MoDE gate + experts
    gate_w, gate_b = dense(next(keys), 1, 5 * T)
    p["gate_w"], p["gate_b"] = gate_w, gate_b

    conv5 = conv(next(keys), T, T, 5)
    conv3 = conv(next(keys), T, T, 3)
    conv1 = conv(next(keys), T, T, 1)
    avg3c = conv(next(keys), T, T, 1)
    avg5c = conv(next(keys), T, T, 1)

    def pad5(kk):
        pd = (5 - kk.shape[2]) // 2
        return jnp.pad(kk, ((0, 0), (0, 0), (pd, pd), (pd, pd)))

    pool3 = jnp.full((3, 3), 1.0 / 9.0, jnp.float32)
    pool5 = jnp.full((5, 5), 1.0 / 25.0, jnp.float32)
    experts = jnp.stack([
        conv5,
        pad5(conv3),
        pad5(conv1),
        pad5(avg3c * pool3[None, None]),
        avg5c * pool5[None, None],
    ])                                                # (5, Co, Ci, 5, 5)
    # conv input width is 1 ('same' padding) -> only centre column kw=2 is used
    cc = experts[:, :, :, :, 2]                       # (5, Co, Ci, KH)
    p["expert_cc"] = jnp.transpose(cc, (0, 1, 3, 2))  # (5, Co, KH, Ci)

    qkv_w, qkv_b, out_w, out_b = [], [], [], []
    ff1_w, ff1_b, ff2_w, ff2_b = [], [], [], []
    for _ in range(L):
        # fused in-projection: columns [Q | K | V], each head contiguous (dk)
        w_in, b_in = dense(next(keys), H, 3 * H)
        qkv_w.append(w_in)
        qkv_b.append(b_in.reshape(1, 3 * H))
        w_o, b_o = dense(next(keys), H, H)
        out_w.append(w_o)
        out_b.append(b_o.reshape(1, H))
        w1, b1 = dense(next(keys), H, dff)
        w2, b2 = dense(next(keys), dff, H)
        ff1_w.append(w1); ff1_b.append(b1.reshape(1, dff))
        ff2_w.append(w2); ff2_b.append(b2.reshape(1, H))
    p["qkv_w"] = jnp.stack(qkv_w)     # (L, H, 3H)
    p["qkv_b"] = jnp.stack(qkv_b)     # (L, 1, 3H)
    p["out_w"] = jnp.stack(out_w)     # (L, H, H)
    p["out_b"] = jnp.stack(out_b)     # (L, 1, H)
    p["ff1_w"] = jnp.stack(ff1_w)
    p["ff1_b"] = jnp.stack(ff1_b)
    p["ff2_w"] = jnp.stack(ff2_w)
    p["ff2_b"] = jnp.stack(ff2_b)
    p["ln1_g"] = jnp.ones((L, 1, H), jnp.float32)
    p["ln1_b"] = jnp.zeros((L, 1, H), jnp.float32)
    p["ln2_g"] = jnp.ones((L, 1, H), jnp.float32)
    p["ln2_b"] = jnp.zeros((L, 1, H), jnp.float32)

    w_d, b_d = dense(next(keys), T, P)
    p["down_wT"] = w_d.T                              # (P, T)
    p["down_b"] = b_d.reshape(P, 1)
    w_f, b_f = dense(next(keys), H, inSize)
    p["fc_w"], p["fc_b"] = w_f, b_f.reshape(1, inSize)
    return p


# ----------------------------- forward --------------------------------------
def _pick_block_samples(N, max_b):
    """Largest divisor of N <= max_b, preferring a grid length >= 2 (v7x)."""
    cands = [b for b in range(1, min(max_b, N) + 1) if N % b == 0]
    pref = [b for b in cands if N // b >= 2]
    return max(pref) if pref else max(cands)


def cryptor_forward(params, x, t, *, heads, max_samples_per_block=8):
    N, T, Fin = x.shape
    H = params["enc_w"].shape[1]
    L = params["qkv_w"].shape[0]
    dff = params["ff1_w"].shape[2]
    P = params["down_wT"].shape[0]
    dk = H // heads

    B = _pick_block_samples(N, max_samples_per_block)   # samples per grid step
    G = N // B
    BT, BP = B * T, B * P

    # ---- MoDE gate / routing (tiny parameter math; eval mode uses w[0]) -----
    task_emb = jax.nn.one_hot(t, 1, dtype=jnp.float32)               # (N, 1)
    g = task_emb @ params["gate_w"] + params["gate_b"]               # (N, 5T)
    g = jax.nn.softmax(g.reshape(N, 5, T), axis=1)
    g0 = g[0]                                                        # (5, Co)
    wconv = jnp.einsum("eo,eoki->oki", g0, params["expert_cc"])      # (Co,KH,Ci)
    eyeB = jnp.eye(B, dtype=jnp.float32)
    # block-diagonal (over samples) routed conv weight, kh-major columns
    wconv_bd = jnp.concatenate(
        [jnp.kron(eyeB, wconv[:, kh, :]) for kh in range(KH)], axis=1)  # (BT, KH*BT)

    # precomputed shift matrices for the 1-D conv along H (constant input)
    r = jnp.arange(H)[:, None]
    c = jnp.arange(H)[None, :]
    shifts = jnp.stack([(r == c + (kh - KH // 2)).astype(jnp.float32)
                        for kh in range(KH)])                        # (KH, H, H)

    # block-diagonal per-sample attention bias, pre-tiled over heads
    sid = jnp.arange(BT) // T
    bias = jnp.where(sid[:, None] == sid[None, :], 0.0, -1e30).astype(jnp.float32)
    attn_bias = jnp.tile(bias, (heads, 1))                           # (h*BT, BT)

    # block-diagonal down projection (T -> P per sample) + tiled bias
    down_bd = jnp.kron(eyeB, params["down_wT"])                      # (BP, BT)
    down_b = jnp.tile(params["down_b"], (B, 1))                      # (BP, 1)

    kernel = partial(_cryptor_kernel, layers=L, heads=heads)

    def fixed(shape):
        nd = len(shape)
        return pl.BlockSpec(shape, lambda n, _nd=nd: (0,) * _nd)

    in_specs = [
        pl.BlockSpec((1, BT, Fin), lambda n: (n, 0, 0)),  # x (B samples / step)
        fixed((BT, KH * BT)),                             # routed conv (block-diag)
        fixed((KH, H, H)),                                # shift matrices
        fixed((heads * BT, BT)),                          # attention bias
        fixed((Fin, H)), fixed((1, H)),                   # encoder
        fixed((L, H, 3 * H)), fixed((L, 1, 3 * H)),       # fused qkv
        fixed((L, H, H)), fixed((L, 1, H)),               # attn out proj
        fixed((L, H, dff)), fixed((L, 1, dff)),           # ffn 1
        fixed((L, dff, H)), fixed((L, 1, H)),             # ffn 2
        fixed((L, 1, H)), fixed((L, 1, H)),               # ln1
        fixed((L, 1, H)), fixed((L, 1, H)),               # ln2
        fixed((BP, BT)), fixed((BP, 1)),                  # down (block-diag)
        fixed((H, Fin)), fixed((1, Fin)),                 # fc
    ]

    xg = x.reshape(G, BT, Fin)
    args = (xg, wconv_bd, shifts, attn_bias,
            params["enc_w"], params["enc_b"],
            params["qkv_w"], params["qkv_b"], params["out_w"], params["out_b"],
            params["ff1_w"], params["ff1_b"], params["ff2_w"], params["ff2_b"],
            params["ln1_g"], params["ln1_b"], params["ln2_g"], params["ln2_b"],
            down_bd, down_b, params["fc_w"], params["fc_b"])

    flops_step = (
        2 * BT * Fin * H
        + KH * 2 * BT * H * H                 # shift matmuls
        + 2 * BT * (KH * BT) * H              # block-diag conv matmul
        + L * (2 * BT * H * 3 * H             # fused qkv
               + heads * 4 * BT * BT * dk     # scores + pv
               + 2 * BT * H * H               # out projection
               + 4 * BT * H * dff)            # ff1 + ff2
        + 2 * BP * BT * H + 2 * BP * H * Fin
    )
    transc_step = 2 * (3 * BT * H + BP * H) + L * (heads * BT * BT + heads * BT)
    cost = pl.CostEstimate(
        flops=int(G * flops_step),
        transcendentals=int(G * transc_step),
        bytes_accessed=int(4 * (sum(int(a.size) for a in args) + N * P * Fin)),
    )

    out = pl.pallas_call(
        kernel,
        grid=(G,),
        in_specs=in_specs,
        out_specs=pl.BlockSpec((1, BP, Fin), lambda n: (n, 0, 0)),
        out_shape=jax.ShapeDtypeStruct((G, BP, Fin), jnp.float32),
        compiler_params=pltpu.CompilerParams(
            dimension_semantics=("parallel",)),
        cost_estimate=cost,
    )(*args)
    return out.reshape(N, P, Fin)


# ----------------------------- main ------------------------------------------
if __name__ == "__main__":
    inSize, hidSize, heads, layers = 16, 32, 4, 2
    trainWindow, predWindow = 8, 4
    N = 8   # -> B = 4 samples per grid step, grid = (2,) (both v7x cores busy)

    key = jax.random.PRNGKey(0)
    kp, kx = jax.random.split(key)
    params = init_params(kp, inSize, hidSize, heads, layers,
                         trainWindow, predWindow)

    x = jax.random.normal(kx, (N, trainWindow, inSize), jnp.float32)
    t = jnp.zeros((N,), jnp.int32)          # num_tasks = 1 -> task id 0

    fwd = jax.jit(partial(cryptor_forward, heads=heads))
    y = fwd(params, x, t)
    jax.block_until_ready(y)
    assert y.shape == (N, predWindow, inSize)
    assert bool(jnp.all(jnp.isfinite(y)))
    print("KERNEL_OK")
</pallas_src>

<mosaic_0001>
module attributes {stable_mosaic.version = 11 : i64} {
  func.func @_cryptor_kernel(%arg0: i32, %arg1: memref<1x32x16xf32, #tpu.memory_space<vmem>>, %arg2: memref<32x160xf32, #tpu.memory_space<vmem>>, %arg3: memref<5x32x32xf32, #tpu.memory_space<vmem>>, %arg4: memref<128x32xf32, #tpu.memory_space<vmem>>, %arg5: memref<16x32xf32, #tpu.memory_space<vmem>>, %arg6: memref<1x32xf32, #tpu.memory_space<vmem>>, %arg7: memref<2x32x96xf32, #tpu.memory_space<vmem>>, %arg8: memref<2x1x96xf32, #tpu.memory_space<vmem>>, %arg9: memref<2x32x32xf32, #tpu.memory_space<vmem>>, %arg10: memref<2x1x32xf32, #tpu.memory_space<vmem>>, %arg11: memref<2x32x2048xf32, #tpu.memory_space<vmem>>, %arg12: memref<2x1x2048xf32, #tpu.memory_space<vmem>>, %arg13: memref<2x2048x32xf32, #tpu.memory_space<vmem>>, %arg14: memref<2x1x32xf32, #tpu.memory_space<vmem>>, %arg15: memref<2x1x32xf32, #tpu.memory_space<vmem>>, %arg16: memref<2x1x32xf32, #tpu.memory_space<vmem>>, %arg17: memref<2x1x32xf32, #tpu.memory_space<vmem>>, %arg18: memref<2x1x32xf32, #tpu.memory_space<vmem>>, %arg19: memref<16x32xf32, #tpu.memory_space<vmem>>, %arg20: memref<16x1xf32, #tpu.memory_space<vmem>>, %arg21: memref<32x16xf32, #tpu.memory_space<vmem>>, %arg22: memref<1x16xf32, #tpu.memory_space<vmem>>, %arg23: memref<1x16x16xf32, #tpu.memory_space<vmem>>) attributes {dimension_semantics = [#tpu.dimension_semantics<parallel>], iteration_bounds = array<i64: 2>, scalar_prefetch = 0 : i64, scratch_operands = 0 : i64, tpu.core_type = #tpu.core_type<tc>, window_params = [{transform_indices = @transform_0, window_bounds = array<i64: 1, 32, 16>}, {pipeline_mode = #tpu.pipeline_mode<synchronous>, transform_indices = @transform_1, window_bounds = array<i64: 32, 160>}, {pipeline_mode = #tpu.pipeline_mode<synchronous>, transform_indices = @transform_2, window_bounds = array<i64: 5, 32, 32>}, {pipeline_mode = #tpu.pipeline_mode<synchronous>, transform_indices = @transform_3, window_bounds = array<i64: 128, 32>}, {pipeline_mode = #tpu.pipeline_mode<synchronous>, transform_indices = @transform_4, window_bounds = array<i64: 16, 32>}, {pipeline_mode = #tpu.pipeline_mode<synchronous>, transform_indices = @transform_5, window_bounds = array<i64: 1, 32>}, {pipeline_mode = #tpu.pipeline_mode<synchronous>, transform_indices = @transform_6, window_bounds = array<i64: 2, 32, 96>}, {pipeline_mode = #tpu.pipeline_mode<synchronous>, transform_indices = @transform_7, window_bounds = array<i64: 2, 1, 96>}, {pipeline_mode = #tpu.pipeline_mode<synchronous>, transform_indices = @transform_8, window_bounds = array<i64: 2, 32, 32>}, {pipeline_mode = #tpu.pipeline_mode<synchronous>, transform_indices = @transform_9, window_bounds = array<i64: 2, 1, 32>}, {pipeline_mode = #tpu.pipeline_mode<synchronous>, transform_indices = @transform_10, window_bounds = array<i64: 2, 32, 2048>}, {pipeline_mode = #tpu.pipeline_mode<synchronous>, transform_indices = @transform_11, window_bounds = array<i64: 2, 1, 2048>}, {pipeline_mode = #tpu.pipeline_mode<synchronous>, transform_indices = @transform_12, window_bounds = array<i64: 2, 2048, 32>}, {pipeline_mode = #tpu.pipeline_mode<synchronous>, transform_indices = @transform_13, window_bounds = array<i64: 2, 1, 32>}, {pipeline_mode = #tpu.pipeline_mode<synchronous>, transform_indices = @transform_14, window_bounds = array<i64: 2, 1, 32>}, {pipeline_mode = #tpu.pipeline_mode<synchronous>, transform_indices = @transform_15, window_bounds = array<i64: 2, 1, 32>}, {pipeline_mode = #tpu.pipeline_mode<synchronous>, transform_indices = @transform_16, window_bounds = array<i64: 2, 1, 32>}, {pipeline_mode = #tpu.pipeline_mode<synchronous>, transform_indices = @transform_17, window_bounds = array<i64: 2, 1, 32>}, {pipeline_mode = #tpu.pipeline_mode<synchronous>, transform_indices = @transform_18, window_bounds = array<i64: 16, 32>}, {pipeline_mode = #tpu.pipeline_mode<synchronous>, transform_indices = @transform_19, window_bounds = array<i64: 16, 1>}, {pipeline_mode = #tpu.pipeline_mode<synchronous>, transform_indices = @transform_20, window_bounds = array<i64: 32, 16>}, {pipeline_mode = #tpu.pipeline_mode<synchronous>, transform_indices = @transform_21, window_bounds = array<i64: 1, 16>}, {transform_indices = @transform_22, window_bounds = array<i64: 1, 16, 16>}]} {
    %c0 = arith.constant 0 : index
    %c0_0 = arith.constant 0 : index
    %c0_1 = arith.constant 0 : index
    %0 = vector.load %arg1[%c0, %c0_0, %c0_1] : memref<1x32x16xf32, #tpu.memory_space<vmem>>, vector<1x32x16xf32>
    %1 = vector.shape_cast %0 : vector<1x32x16xf32> to vector<32x16xf32>
    %c0_2 = arith.constant 0 : index
    %c0_3 = arith.constant 0 : index
    %2 = vector.load %arg5[%c0_2, %c0_3] : memref<16x32xf32, #tpu.memory_space<vmem>>, vector<16x32xf32>
    %cst = arith.constant dense<0.000000e+00> : vector<32x32xf32>
    %3 = tpu.matmul %1, %2, %cst {dimension_numbers = #tpu.dot_dimension_numbers<[1], [0], [0], [1], [0, 0, 1, 1], [], []>} : vector<32x16xf32>, vector<16x32xf32>, vector<32x32xf32> -> vector<32x32xf32>
    %c0_4 = arith.constant 0 : index
    %c0_5 = arith.constant 0 : index
    %4 = vector.load %arg6[%c0_4, %c0_5] : memref<1x32xf32, #tpu.memory_space<vmem>>, vector<1x32xf32>
    %5 = vector.broadcast %4 : vector<1x32xf32> to vector<32x32xf32>
    %6 = arith.addf %3, %5 : vector<32x32xf32>
    %7 = math.exp %6 : vector<32x32xf32>
    %cst_6 = arith.constant 1.000000e+00 : f32
    %8 = vector.broadcast %cst_6 : f32 to vector<32x32xf32>
    %9 = arith.addf %8, %7 : vector<32x32xf32>
    %10 = arith.mulf %9, %9 : vector<32x32xf32>
    %cst_7 = arith.constant 1.000000e+00 : f32
    %11 = vector.broadcast %cst_7 : f32 to vector<32x32xf32>
    %12 = arith.addf %10, %11 : vector<32x32xf32>
    %13 = tpu.reciprocal %12 {approx = true} : vector<32x32xf32> -> vector<32x32xf32>
    %cst_8 = arith.constant 2.000000e+00 : f32
    %14 = vector.broadcast %cst_8 : f32 to vector<32x32xf32>
    %15 = arith.mulf %14, %13 : vector<32x32xf32>
    %cst_9 = arith.constant 1.000000e+00 : f32
    %16 = vector.broadcast %cst_9 : f32 to vector<32x32xf32>
    %17 = arith.subf %16, %15 : vector<32x32xf32>
    %18 = arith.mulf %6, %17 : vector<32x32xf32>
    %c0_10 = arith.constant 0 : index
    %c0_11 = arith.constant 0 : index
    %c0_12 = arith.constant 0 : index
    %19 = vector.load %arg3[%c0_10, %c0_11, %c0_12] : memref<5x32x32xf32, #tpu.memory_space<vmem>>, vector<1x32x32xf32>
    %20 = vector.shape_cast %19 : vector<1x32x32xf32> to vector<32x32xf32>
    %cst_13 = arith.constant dense<0.000000e+00> : vector<32x32xf32>
    %21 = tpu.matmul %18, %20, %cst_13 {dimension_numbers = #tpu.dot_dimension_numbers<[1], [0], [0], [1], [0, 0, 1, 1], [], []>} : vector<32x32xf32>, vector<32x32xf32>, vector<32x32xf32> -> vector<32x32xf32>
    %c1 = arith.constant 1 : index
    %c0_14 = arith.constant 0 : index
    %c0_15 = arith.constant 0 : index
    %22 = vector.load %arg3[%c1, %c0_14, %c0_15] : memref<5x32x32xf32, #tpu.memory_space<vmem>>, vector<1x32x32xf32>
    %23 = vector.shape_cast %22 : vector<1x32x32xf32> to vector<32x32xf32>
    %cst_16 = arith.constant dense<0.000000e+00> : vector<32x32xf32>
    %24 = tpu.matmul %18, %23, %cst_16 {dimension_numbers = #tpu.dot_dimension_numbers<[1], [0], [0], [1], [0, 0, 1, 1], [], []>} : vector<32x32xf32>, vector<32x32xf32>, vector<32x32xf32> -> vector<32x32xf32>
    %c2 = arith.constant 2 : index
    %c0_17 = arith.constant 0 : index
    %c0_18 = arith.constant 0 : index
    %25 = vector.load %arg3[%c2, %c0_17, %c0_18] : memref<5x32x32xf32, #tpu.memory_space<vmem>>, vector<1x32x32xf32>
    %26 = vector.shape_cast %25 : vector<1x32x32xf32> to vector<32x32xf32>
    %cst_19 = arith.constant dense<0.000000e+00> : vector<32x32xf32>
    %27 = tpu.matmul %18, %26, %cst_19 {dimension_numbers = #tpu.dot_dimension_numbers<[1], [0], [0], [1], [0, 0, 1, 1], [], []>} : vector<32x32xf32>, vector<32x32xf32>, vector<32x32xf32> -> vector<32x32xf32>
    %c3 = arith.constant 3 : index
    %c0_20 = arith.constant 0 : index
    %c0_21 = arith.constant 0 : index
    %28 = vector.load %arg3[%c3, %c0_20, %c0_21] : memref<5x32x32xf32, #tpu.memory_space<vmem>>, vector<1x32x32xf32>
    %29 = vector.shape_cast %28 : vector<1x32x32xf32> to vector<32x32xf32>
    %cst_22 = arith.constant dense<0.000000e+00> : vector<32x32xf32>
    %30 = tpu.matmul %18, %29, %cst_22 {dimension_numbers = #tpu.dot_dimension_numbers<[1], [0], [0], [1], [0, 0, 1, 1], [], []>} : vector<32x32xf32>, vector<32x32xf32>, vector<32x32xf32> -> vector<32x32xf32>
    %c4 = arith.constant 4 : index
    %c0_23 = arith.constant 0 : index
    %c0_24 = arith.constant 0 : index
    %31 = vector.load %arg3[%c4, %c0_23, %c0_24] : memref<5x32x32xf32, #tpu.memory_space<vmem>>, vector<1x32x32xf32>
    %32 = vector.shape_cast %31 : vector<1x32x32xf32> to vector<32x32xf32>
    %cst_25 = arith.constant dense<0.000000e+00> : vector<32x32xf32>
    %33 = tpu.matmul %18, %32, %cst_25 {dimension_numbers = #tpu.dot_dimension_numbers<[1], [0], [0], [1], [0, 0, 1, 1], [], []>} : vector<32x32xf32>, vector<32x32xf32>, vector<32x32xf32> -> vector<32x32xf32>
    %34 = tpu.concatenate %21, %24, %27, %30, %33 in 0 : vector<32x32xf32>, vector<32x32xf32>, vector<32x32xf32>, vector<32x32xf32>, vector<32x32xf32> -> vector<160x32xf32>
    %c0_26 = arith.constant 0 : index
    %c0_27 = arith.constant 0 : index
    %35 = vector.load %arg2[%c0_26, %c0_27] : memref<32x160xf32, #tpu.memory_space<vmem>>, vector<32x160xf32>
    %cst_28 = arith.constant dense<0.000000e+00> : vector<32x32xf32>
    %36 = tpu.matmul %35, %34, %cst_28 {dimension_numbers = #tpu.dot_dimension_numbers<[1], [0], [0], [1], [0, 0, 1, 1], [], []>} : vector<32x160xf32>, vector<160x32xf32>, vector<32x32xf32> -> vector<32x32xf32>
    %37 = math.exp %36 : vector<32x32xf32>
    %cst_29 = arith.constant 1.000000e+00 : f32
    %38 = vector.broadcast %cst_29 : f32 to vector<32x32xf32>
    %39 = arith.addf %38, %37 : vector<32x32xf32>
    %40 = arith.mulf %39, %39 : vector<32x32xf32>
    %cst_30 = arith.constant 1.000000e+00 : f32
    %41 = vector.broadcast %cst_30 : f32 to vector<32x32xf32>
    %42 = arith.addf %40, %41 : vector<32x32xf32>
    %43 = tpu.reciprocal %42 {approx = true} : vector<32x32xf32> -> vector<32x32xf32>
    %cst_31 = arith.constant 2.000000e+00 : f32
    %44 = vector.broadcast %cst_31 : f32 to vector<32x32xf32>
    %45 = arith.mulf %44, %43 : vector<32x32xf32>
    %cst_32 = arith.constant 1.000000e+00 : f32
    %46 = vector.broadcast %cst_32 : f32 to vector<32x32xf32>
    %47 = arith.subf %46, %45 : vector<32x32xf32>
    %48 = arith.mulf %36, %47 : vector<32x32xf32>
    %c0_33 = arith.constant 0 : index
    %c0_34 = arith.constant 0 : index
    %49 = vector.load %arg4[%c0_33, %c0_34] : memref<128x32xf32, #tpu.memory_space<vmem>>, vector<128x32xf32>
    %c0_35 = arith.constant 0 : index
    %c0_36 = arith.constant 0 : index
    %c0_37 = arith.constant 0 : index
    %50 = vector.load %arg7[%c0_35, %c0_36, %c0_37] : memref<2x32x96xf32, #tpu.memory_space<vmem>>, vector<1x32x96xf32>
    %51 = vector.shape_cast %50 : vector<1x32x96xf32> to vector<32x96xf32>
    %cst_38 = arith.constant dense<0.000000e+00> : vector<32x96xf32>
    %52 = tpu.matmul %48, %51, %cst_38 {dimension_numbers = #tpu.dot_dimension_numbers<[1], [0], [0], [1], [0, 0, 1, 1], [], []>} : vector<32x32xf32>, vector<32x96xf32>, vector<32x96xf32> -> vector<32x96xf32>
    %c0_39 = arith.constant 0 : index
    %c0_40 = arith.constant 0 : index
    %c0_41 = arith.constant 0 : index
    %53 = vector.load %arg8[%c0_39, %c0_40, %c0_41] : memref<2x1x96xf32, #tpu.memory_space<vmem>>, vector<1x1x96xf32>
    %54 = vector.shape_cast %53 : vector<1x1x96xf32> to vector<1x96xf32>
    %55 = vector.broadcast %54 : vector<1x96xf32> to vector<32x96xf32>
    %56 = arith.addf %52, %55 : vector<32x96xf32>
    %57 = vector.extract_strided_slice %56 {offsets = [0, 0], sizes = [32, 8], strides = [1, 1]} : vector<32x96xf32> to vector<32x8xf32>
    %58 = vector.extract_strided_slice %56 {offsets = [0, 32], sizes = [32, 8], strides = [1, 1]} : vector<32x96xf32> to vector<32x8xf32>
    %cst_42 = arith.constant dense<0.000000e+00> : vector<32x32xf32>
    %59 = tpu.matmul %57, %58, %cst_42 {dimension_numbers = #tpu.dot_dimension_numbers<[1], [1], [0], [0], [0, 0, 1, 0], [], []>} : vector<32x8xf32>, vector<32x8xf32>, vector<32x32xf32> -> vector<32x32xf32>
    %60 = vector.extract_strided_slice %56 {offsets = [0, 8], sizes = [32, 8], strides = [1, 1]} : vector<32x96xf32> to vector<32x8xf32>
    %61 = vector.extract_strided_slice %56 {offsets = [0, 40], sizes = [32, 8], strides = [1, 1]} : vector<32x96xf32> to vector<32x8xf32>
    %cst_43 = arith.constant dense<0.000000e+00> : vector<32x32xf32>
    %62 = tpu.matmul %60, %61, %cst_43 {dimension_numbers = #tpu.dot_dimension_numbers<[1], [1], [0], [0], [0, 0, 1, 0], [], []>} : vector<32x8xf32>, vector<32x8xf32>, vector<32x32xf32> -> vector<32x32xf32>
    %63 = vector.extract_strided_slice %56 {offsets = [0, 16], sizes = [32, 8], strides = [1, 1]} : vector<32x96xf32> to vector<32x8xf32>
    %64 = vector.extract_strided_slice %56 {offsets = [0, 48], sizes = [32, 8], strides = [1, 1]} : vector<32x96xf32> to vector<32x8xf32>
    %cst_44 = arith.constant dense<0.000000e+00> : vector<32x32xf32>
    %65 = tpu.matmul %63, %64, %cst_44 {dimension_numbers = #tpu.dot_dimension_numbers<[1], [1], [0], [0], [0, 0, 1, 0], [], []>} : vector<32x8xf32>, vector<32x8xf32>, vector<32x32xf32> -> vector<32x32xf32>
    %66 = vector.extract_strided_slice %56 {offsets = [0, 24], sizes = [32, 8], strides = [1, 1]} : vector<32x96xf32> to vector<32x8xf32>
    %67 = vector.extract_strided_slice %56 {offsets = [0, 56], sizes = [32, 8], strides = [1, 1]} : vector<32x96xf32> to vector<32x8xf32>
    %cst_45 = arith.constant dense<0.000000e+00> : vector<32x32xf32>
    %68 = tpu.matmul %66, %67, %cst_45 {dimension_numbers = #tpu.dot_dimension_numbers<[1], [1], [0], [0], [0, 0, 1, 0], [], []>} : vector<32x8xf32>, vector<32x8xf32>, vector<32x32xf32> -> vector<32x32xf32>
    %69 = tpu.concatenate %59, %62, %65, %68 in 0 : vector<32x32xf32>, vector<32x32xf32>, vector<32x32xf32>, vector<32x32xf32> -> vector<128x32xf32>
    %cst_46 = arith.constant 0.353553385 : f32
    %70 = vector.broadcast %cst_46 : f32 to vector<128x32xf32>
    %71 = arith.mulf %69, %70 : vector<128x32xf32>
    %72 = arith.addf %71, %49 : vector<128x32xf32>
    %cst_47 = arith.constant dense<0xFF800000> : vector<128xf32>
    %73 = vector.multi_reduction <maximumf>, %72, %cst_47 [1] : vector<128x32xf32> to vector<128xf32>
    %74 = vector.shape_cast %73 : vector<128xf32> to vector<128x1xf32>
    %75 = vector.broadcast %74 : vector<128x1xf32> to vector<128x32xf32>
    %76 = arith.subf %72, %75 : vector<128x32xf32>
    %77 = math.exp %76 : vector<128x32xf32>
    %cst_48 = arith.constant dense<0.000000e+00> : vector<128xf32>
    %78 = vector.multi_reduction <add>, %77, %cst_48 [1] : vector<128x32xf32> to vector<128xf32>
    %79 = vector.shape_cast %78 : vector<128xf32> to vector<128x1xf32>
    %80 = tpu.reciprocal %79 {approx = true} : vector<128x1xf32> -> vector<128x1xf32>
    %81 = vector.broadcast %80 : vector<128x1xf32> to vector<128x32xf32>
    %82 = arith.mulf %77, %81 : vector<128x32xf32>
    %83 = vector.extract_strided_slice %82 {offsets = [0, 0], sizes = [32, 32], strides = [1, 1]} : vector<128x32xf32> to vector<32x32xf32>
    %84 = vector.extract_strided_slice %56 {offsets = [0, 64], sizes = [32, 8], strides = [1, 1]} : vector<32x96xf32> to vector<32x8xf32>
    %cst_49 = arith.constant dense<0.000000e+00> : vector<32x8xf32>
    %85 = tpu.matmul %83, %84, %cst_49 {dimension_numbers = #tpu.dot_dimension_numbers<[1], [0], [0], [1], [0, 0, 1, 1], [], []>} : vector<32x32xf32>, vector<32x8xf32>, vector<32x8xf32> -> vector<32x8xf32>
    %86 = vector.extract_strided_slice %82 {offsets = [32, 0], sizes = [32, 32], strides = [1, 1]} : vector<128x32xf32> to vector<32x32xf32>
    %87 = vector.extract_strided_slice %56 {offsets = [0, 72], sizes = [32, 8], strides = [1, 1]} : vector<32x96xf32> to vector<32x8xf32>
    %cst_50 = arith.constant dense<0.000000e+00> : vector<32x8xf32>
    %88 = tpu.matmul %86, %87, %cst_50 {dimension_numbers = #tpu.dot_dimension_numbers<[1], [0], [0], [1], [0, 0, 1, 1], [], []>} : vector<32x32xf32>, vector<32x8xf32>, vector<32x8xf32> -> vector<32x8xf32>
    %89 = vector.extract_strided_slice %82 {offsets = [64, 0], sizes = [32, 32], strides = [1, 1]} : vector<128x32xf32> to vector<32x32xf32>
    %90 = vector.extract_strided_slice %56 {offsets = [0, 80], sizes = [32, 8], strides = [1, 1]} : vector<32x96xf32> to vector<32x8xf32>
    %cst_51 = arith.constant dense<0.000000e+00> : vector<32x8xf32>
    %91 = tpu.matmul %89, %90, %cst_51 {dimension_numbers = #tpu.dot_dimension_numbers<[1], [0], [0], [1], [0, 0, 1, 1], [], []>} : vector<32x32xf32>, vector<32x8xf32>, vector<32x8xf32> -> vector<32x8xf32>
    %92 = vector.extract_strided_slice %82 {offsets = [96, 0], sizes = [32, 32], strides = [1, 1]} : vector<128x32xf32> to vector<32x32xf32>
    %93 = vector.extract_strided_slice %56 {offsets = [0, 88], sizes = [32, 8], strides = [1, 1]} : vector<32x96xf32> to vector<32x8xf32>
    %cst_52 = arith.constant dense<0.000000e+00> : vector<32x8xf32>
    %94 = tpu.matmul %92, %93, %cst_52 {dimension_numbers = #tpu.dot_dimension_numbers<[1], [0], [0], [1], [0, 0, 1, 1], [], []>} : vector<32x32xf32>, vector<32x8xf32>, vector<32x8xf32> -> vector<32x8xf32>
    %95 = tpu.concatenate %85, %88, %91, %94 in 1 : vector<32x8xf32>, vector<32x8xf32>, vector<32x8xf32>, vector<32x8xf32> -> vector<32x32xf32>
    %c0_53 = arith.constant 0 : index
    %c0_54 = arith.constant 0 : index
    %c0_55 = arith.constant 0 : index
    %96 = vector.load %arg9[%c0_53, %c0_54, %c0_55] : memref<2x32x32xf32, #tpu.memory_space<vmem>>, vector<1x32x32xf32>
    %97 = vector.shape_cast %96 : vector<1x32x32xf32> to vector<32x32xf32>
    %cst_56 = arith.constant dense<0.000000e+00> : vector<32x32xf32>
    %98 = tpu.matmul %95, %97, %cst_56 {dimension_numbers = #tpu.dot_dimension_numbers<[1], [0], [0], [1], [0, 0, 1, 1], [], []>} : vector<32x32xf32>, vector<32x32xf32>, vector<32x32xf32> -> vector<32x32xf32>
    %c0_57 = arith.constant 0 : index
    %c0_58 = arith.constant 0 : index
    %c0_59 = arith.constant 0 : index
    %99 = vector.load %arg10[%c0_57, %c0_58, %c0_59] : memref<2x1x32xf32, #tpu.memory_space<vmem>>, vector<1x1x32xf32>
    %100 = vector.shape_cast %99 : vector<1x1x32xf32> to vector<1x32xf32>
    %101 = vector.broadcast %100 : vector<1x32xf32> to vector<32x32xf32>
    %102 = arith.addf %98, %101 : vector<32x32xf32>
    %103 = arith.addf %48, %102 : vector<32x32xf32>
    %c0_60 = arith.constant 0 : index
    %c0_61 = arith.constant 0 : index
    %c0_62 = arith.constant 0 : index
    %104 = vector.load %arg15[%c0_60, %c0_61, %c0_62] : memref<2x1x32xf32, #tpu.memory_space<vmem>>, vector<1x1x32xf32>
    %105 = vector.shape_cast %104 : vector<1x1x32xf32> to vector<1x32xf32>
    %c0_63 = arith.constant 0 : index
    %c0_64 = arith.constant 0 : index
    %c0_65 = arith.constant 0 : index
    %106 = vector.load %arg16[%c0_63, %c0_64, %c0_65] : memref<2x1x32xf32, #tpu.memory_space<vmem>>, vector<1x1x32xf32>
    %107 = vector.shape_cast %106 : vector<1x1x32xf32> to vector<1x32xf32>
    %cst_66 = arith.constant dense<0.000000e+00> : vector<32xf32>
    %108 = vector.multi_reduction <add>, %103, %cst_66 [1] : vector<32x32xf32> to vector<32xf32>
    %109 = vector.shape_cast %108 : vector<32xf32> to vector<32x1xf32>
    %cst_67 = arith.constant 3.200000e+01 : f32
    %110 = vector.broadcast %cst_67 : f32 to vector<32x1xf32>
    %111 = arith.divf %109, %110 : vector<32x1xf32>
    %112 = vector.broadcast %111 : vector<32x1xf32> to vector<32x32xf32>
    %113 = arith.subf %103, %112 : vector<32x32xf32>
    %114 = arith.mulf %113, %113 : vector<32x32xf32>
    %cst_68 = arith.constant dense<0.000000e+00> : vector<32xf32>
    %115 = vector.multi_reduction <add>, %114, %cst_68 [1] : vector<32x32xf32> to vector<32xf32>
    %116 = vector.shape_cast %115 : vector<32xf32> to vector<32x1xf32>
    %cst_69 = arith.constant 3.200000e+01 : f32
    %117 = vector.broadcast %cst_69 : f32 to vector<32x1xf32>
    %118 = arith.divf %116, %117 : vector<32x1xf32>
    %cst_70 = arith.constant 9.99999974E-6 : f32
    %119 = vector.broadcast %cst_70 : f32 to vector<32x1xf32>
    %120 = arith.addf %118, %119 : vector<32x1xf32>
    %121 = math.rsqrt %120 : vector<32x1xf32>
    %122 = vector.broadcast %121 : vector<32x1xf32> to vector<32x32xf32>
    %123 = arith.mulf %113, %122 : vector<32x32xf32>
    %124 = vector.broadcast %105 : vector<1x32xf32> to vector<32x32xf32>
    %125 = arith.mulf %123, %124 : vector<32x32xf32>
    %126 = vector.broadcast %107 : vector<1x32xf32> to vector<32x32xf32>
    %127 = arith.addf %125, %126 : vector<32x32xf32>
    %c0_71 = arith.constant 0 : index
    %c0_72 = arith.constant 0 : index
    %c0_73 = arith.constant 0 : index
    %128 = vector.load %arg11[%c0_71, %c0_72, %c0_73] : memref<2x32x2048xf32, #tpu.memory_space<vmem>>, vector<1x32x2048xf32>
    %129 = vector.shape_cast %128 : vector<1x32x2048xf32> to vector<32x2048xf32>
    %cst_74 = arith.constant dense<0.000000e+00> : vector<32x2048xf32>
    %130 = tpu.matmul %127, %129, %cst_74 {dimension_numbers = #tpu.dot_dimension_numbers<[1], [0], [0], [1], [0, 0, 1, 1], [], []>} : vector<32x32xf32>, vector<32x2048xf32>, vector<32x2048xf32> -> vector<32x2048xf32>
    %c0_75 = arith.constant 0 : index
    %c0_76 = arith.constant 0 : index
    %c0_77 = arith.constant 0 : index
    %131 = vector.load %arg12[%c0_75, %c0_76, %c0_77] : memref<2x1x2048xf32, #tpu.memory_space<vmem>>, vector<1x1x2048xf32>
    %132 = vector.shape_cast %131 : vector<1x1x2048xf32> to vector<1x2048xf32>
    %133 = vector.broadcast %132 : vector<1x2048xf32> to vector<32x2048xf32>
    %134 = arith.addf %130, %133 : vector<32x2048xf32>
    %cst_78 = arith.constant 0.000000e+00 : f32
    %135 = vector.broadcast %cst_78 : f32 to vector<32x2048xf32>
    %136 = arith.maximumf %134, %135 : vector<32x2048xf32>
    %c0_79 = arith.constant 0 : index
    %c0_80 = arith.constant 0 : index
    %c0_81 = arith.constant 0 : index
    %137 = vector.load %arg13[%c0_79, %c0_80, %c0_81] : memref<2x2048x32xf32, #tpu.memory_space<vmem>>, vector<1x2048x32xf32>
    %138 = vector.shape_cast %137 : vector<1x2048x32xf32> to vector<2048x32xf32>
    %cst_82 = arith.constant dense<0.000000e+00> : vector<32x32xf32>
    %139 = tpu.matmul %136, %138, %cst_82 {dimension_numbers = #tpu.dot_dimension_numbers<[1], [0], [0], [1], [0, 0, 1, 1], [], []>} : vector<32x2048xf32>, vector<2048x32xf32>, vector<32x32xf32> -> vector<32x32xf32>
    %c0_83 = arith.constant 0 : index
    %c0_84 = arith.constant 0 : index
    %c0_85 = arith.constant 0 : index
    %140 = vector.load %arg14[%c0_83, %c0_84, %c0_85] : memref<2x1x32xf32, #tpu.memory_space<vmem>>, vector<1x1x32xf32>
    %141 = vector.shape_cast %140 : vector<1x1x32xf32> to vector<1x32xf32>
    %142 = vector.broadcast %141 : vector<1x32xf32> to vector<32x32xf32>
    %143 = arith.addf %139, %142 : vector<32x32xf32>
    %144 = arith.addf %127, %143 : vector<32x32xf32>
    %c0_86 = arith.constant 0 : index
    %c0_87 = arith.constant 0 : index
    %c0_88 = arith.constant 0 : index
    %145 = vector.load %arg17[%c0_86, %c0_87, %c0_88] : memref<2x1x32xf32, #tpu.memory_space<vmem>>, vector<1x1x32xf32>
    %146 = vector.shape_cast %145 : vector<1x1x32xf32> to vector<1x32xf32>
    %c0_89 = arith.constant 0 : index
    %c0_90 = arith.constant 0 : index
    %c0_91 = arith.constant 0 : index
    %147 = vector.load %arg18[%c0_89, %c0_90, %c0_91] : memref<2x1x32xf32, #tpu.memory_space<vmem>>, vector<1x1x32xf32>
    %148 = vector.shape_cast %147 : vector<1x1x32xf32> to vector<1x32xf32>
    %cst_92 = arith.constant dense<0.000000e+00> : vector<32xf32>
    %149 = vector.multi_reduction <add>, %144, %cst_92 [1] : vector<32x32xf32> to vector<32xf32>
    %150 = vector.shape_cast %149 : vector<32xf32> to vector<32x1xf32>
    %cst_93 = arith.constant 3.200000e+01 : f32
    %151 = vector.broadcast %cst_93 : f32 to vector<32x1xf32>
    %152 = arith.divf %150, %151 : vector<32x1xf32>
    %153 = vector.broadcast %152 : vector<32x1xf32> to vector<32x32xf32>
    %154 = arith.subf %144, %153 : vector<32x32xf32>
    %155 = arith.mulf %154, %154 : vector<32x32xf32>
    %cst_94 = arith.constant dense<0.000000e+00> : vector<32xf32>
    %156 = vector.multi_reduction <add>, %155, %cst_94 [1] : vector<32x32xf32> to vector<32xf32>
    %157 = vector.shape_cast %156 : vector<32xf32> to vector<32x1xf32>
    %cst_95 = arith.constant 3.200000e+01 : f32
    %158 = vector.broadcast %cst_95 : f32 to vector<32x1xf32>
    %159 = arith.divf %157, %158 : vector<32x1xf32>
    %cst_96 = arith.constant 9.99999974E-6 : f32
    %160 = vector.broadcast %cst_96 : f32 to vector<32x1xf32>
    %161 = arith.addf %159, %160 : vector<32x1xf32>
    %162 = math.rsqrt %161 : vector<32x1xf32>
    %163 = vector.broadcast %162 : vector<32x1xf32> to vector<32x32xf32>
    %164 = arith.mulf %154, %163 : vector<32x32xf32>
    %165 = vector.broadcast %146 : vector<1x32xf32> to vector<32x32xf32>
    %166 = arith.mulf %164, %165 : vector<32x32xf32>
    %167 = vector.broadcast %148 : vector<1x32xf32> to vector<32x32xf32>
    %168 = arith.addf %166, %167 : vector<32x32xf32>
    %c1_97 = arith.constant 1 : index
    %c0_98 = arith.constant 0 : index
    %c0_99 = arith.constant 0 : index
    %169 = vector.load %arg7[%c1_97, %c0_98, %c0_99] : memref<2x32x96xf32, #tpu.memory_space<vmem>>, vector<1x32x96xf32>
    %170 = vector.shape_cast %169 : vector<1x32x96xf32> to vector<32x96xf32>
    %cst_100 = arith.constant dense<0.000000e+00> : vector<32x96xf32>
    %171 = tpu.matmul %168, %170, %cst_100 {dimension_numbers = #tpu.dot_dimension_numbers<[1], [0], [0], [1], [0, 0, 1, 1], [], []>} : vector<32x32xf32>, vector<32x96xf32>, vector<32x96xf32> -> vector<32x96xf32>
    %c1_101 = arith.constant 1 : index
    %c0_102 = arith.constant 0 : index
    %c0_103 = arith.constant 0 : index
    %172 = vector.load %arg8[%c1_101, %c0_102, %c0_103] : memref<2x1x96xf32, #tpu.memory_space<vmem>>, vector<1x1x96xf32>
    %173 = vector.shape_cast %172 : vector<1x1x96xf32> to vector<1x96xf32>
    %174 = vector.broadcast %173 : vector<1x96xf32> to vector<32x96xf32>
    %175 = arith.addf %171, %174 : vector<32x96xf32>
    %176 = vector.extract_strided_slice %175 {offsets = [0, 0], sizes = [32, 8], strides = [1, 1]} : vector<32x96xf32> to vector<32x8xf32>
    %177 = vector.extract_strided_slice %175 {offsets = [0, 32], sizes = [32, 8], strides = [1, 1]} : vector<32x96xf32> to vector<32x8xf32>
    %cst_104 = arith.constant dense<0.000000e+00> : vector<32x32xf32>
    %178 = tpu.matmul %176, %177, %cst_104 {dimension_numbers = #tpu.dot_dimension_numbers<[1], [1], [0], [0], [0, 0, 1, 0], [], []>} : vector<32x8xf32>, vector<32x8xf32>, vector<32x32xf32> -> vector<32x32xf32>
    %179 = vector.extract_strided_slice %175 {offsets = [0, 8], sizes = [32, 8], strides = [1, 1]} : vector<32x96xf32> to vector<32x8xf32>
    %180 = vector.extract_strided_slice %175 {offsets = [0, 40], sizes = [32, 8], strides = [1, 1]} : vector<32x96xf32> to vector<32x8xf32>
    %cst_105 = arith.constant dense<0.000000e+00> : vector<32x32xf32>
    %181 = tpu.matmul %179, %180, %cst_105 {dimension_numbers = #tpu.dot_dimension_numbers<[1], [1], [0], [0], [0, 0, 1, 0], [], []>} : vector<32x8xf32>, vector<32x8xf32>, vector<32x32xf32> -> vector<32x32xf32>
    %182 = vector.extract_strided_slice %175 {offsets = [0, 16], sizes = [32, 8], strides = [1, 1]} : vector<32x96xf32> to vector<32x8xf32>
    %183 = vector.extract_strided_slice %175 {offsets = [0, 48], sizes = [32, 8], strides = [1, 1]} : vector<32x96xf32> to vector<32x8xf32>
    %cst_106 = arith.constant dense<0.000000e+00> : vector<32x32xf32>
    %184 = tpu.matmul %182, %183, %cst_106 {dimension_numbers = #tpu.dot_dimension_numbers<[1], [1], [0], [0], [0, 0, 1, 0], [], []>} : vector<32x8xf32>, vector<32x8xf32>, vector<32x32xf32> -> vector<32x32xf32>
    %185 = vector.extract_strided_slice %175 {offsets = [0, 24], sizes = [32, 8], strides = [1, 1]} : vector<32x96xf32> to vector<32x8xf32>
    %186 = vector.extract_strided_slice %175 {offsets = [0, 56], sizes = [32, 8], strides = [1, 1]} : vector<32x96xf32> to vector<32x8xf32>
    %cst_107 = arith.constant dense<0.000000e+00> : vector<32x32xf32>
    %187 = tpu.matmul %185, %186, %cst_107 {dimension_numbers = #tpu.dot_dimension_numbers<[1], [1], [0], [0], [0, 0, 1, 0], [], []>} : vector<32x8xf32>, vector<32x8xf32>, vector<32x32xf32> -> vector<32x32xf32>
    %188 = tpu.concatenate %178, %181, %184, %187 in 0 : vector<32x32xf32>, vector<32x32xf32>, vector<32x32xf32>, vector<32x32xf32> -> vector<128x32xf32>
    %cst_108 = arith.constant 0.353553385 : f32
    %189 = vector.broadcast %cst_108 : f32 to vector<128x32xf32>
    %190 = arith.mulf %188, %189 : vector<128x32xf32>
    %191 = arith.addf %190, %49 : vector<128x32xf32>
    %cst_109 = arith.constant dense<0xFF800000> : vector<128xf32>
    %192 = vector.multi_reduction <maximumf>, %191, %cst_109 [1] : vector<128x32xf32> to vector<128xf32>
    %193 = vector.shape_cast %192 : vector<128xf32> to vector<128x1xf32>
    %194 = vector.broadcast %193 : vector<128x1xf32> to vector<128x32xf32>
    %195 = arith.subf %191, %194 : vector<128x32xf32>
    %196 = math.exp %195 : vector<128x32xf32>
    %cst_110 = arith.constant dense<0.000000e+00> : vector<128xf32>
    %197 = vector.multi_reduction <add>, %196, %cst_110 [1] : vector<128x32xf32> to vector<128xf32>
    %198 = vector.shape_cast %197 : vector<128xf32> to vector<128x1xf32>
    %199 = tpu.reciprocal %198 {approx = true} : vector<128x1xf32> -> vector<128x1xf32>
    %200 = vector.broadcast %199 : vector<128x1xf32> to vector<128x32xf32>
    %201 = arith.mulf %196, %200 : vector<128x32xf32>
    %202 = vector.extract_strided_slice %201 {offsets = [0, 0], sizes = [32, 32], strides = [1, 1]} : vector<128x32xf32> to vector<32x32xf32>
    %203 = vector.extract_strided_slice %175 {offsets = [0, 64], sizes = [32, 8], strides = [1, 1]} : vector<32x96xf32> to vector<32x8xf32>
    %cst_111 = arith.constant dense<0.000000e+00> : vector<32x8xf32>
    %204 = tpu.matmul %202, %203, %cst_111 {dimension_numbers = #tpu.dot_dimension_numbers<[1], [0], [0], [1], [0, 0, 1, 1], [], []>} : vector<32x32xf32>, vector<32x8xf32>, vector<32x8xf32> -> vector<32x8xf32>
    %205 = vector.extract_strided_slice %201 {offsets = [32, 0], sizes = [32, 32], strides = [1, 1]} : vector<128x32xf32> to vector<32x32xf32>
    %206 = vector.extract_strided_slice %175 {offsets = [0, 72], sizes = [32, 8], strides = [1, 1]} : vector<32x96xf32> to vector<32x8xf32>
    %cst_112 = arith.constant dense<0.000000e+00> : vector<32x8xf32>
    %207 = tpu.matmul %205, %206, %cst_112 {dimension_numbers = #tpu.dot_dimension_numbers<[1], [0], [0], [1], [0, 0, 1, 1], [], []>} : vector<32x32xf32>, vector<32x8xf32>, vector<32x8xf32> -> vector<32x8xf32>
    %208 = vector.extract_strided_slice %201 {offsets = [64, 0], sizes = [32, 32], strides = [1, 1]} : vector<128x32xf32> to vector<32x32xf32>
    %209 = vector.extract_strided_slice %175 {offsets = [0, 80], sizes = [32, 8], strides = [1, 1]} : vector<32x96xf32> to vector<32x8xf32>
    %cst_113 = arith.constant dense<0.000000e+00> : vector<32x8xf32>
    %210 = tpu.matmul %208, %209, %cst_113 {dimension_numbers = #tpu.dot_dimension_numbers<[1], [0], [0], [1], [0, 0, 1, 1], [], []>} : vector<32x32xf32>, vector<32x8xf32>, vector<32x8xf32> -> vector<32x8xf32>
    %211 = vector.extract_strided_slice %201 {offsets = [96, 0], sizes = [32, 32], strides = [1, 1]} : vector<128x32xf32> to vector<32x32xf32>
    %212 = vector.extract_strided_slice %175 {offsets = [0, 88], sizes = [32, 8], strides = [1, 1]} : vector<32x96xf32> to vector<32x8xf32>
    %cst_114 = arith.constant dense<0.000000e+00> : vector<32x8xf32>
    %213 = tpu.matmul %211, %212, %cst_114 {dimension_numbers = #tpu.dot_dimension_numbers<[1], [0], [0], [1], [0, 0, 1, 1], [], []>} : vector<32x32xf32>, vector<32x8xf32>, vector<32x8xf32> -> vector<32x8xf32>
    %214 = tpu.concatenate %204, %207, %210, %213 in 1 : vector<32x8xf32>, vector<32x8xf32>, vector<32x8xf32>, vector<32x8xf32> -> vector<32x32xf32>
    %c1_115 = arith.constant 1 : index
    %c0_116 = arith.constant 0 : index
    %c0_117 = arith.constant 0 : index
    %215 = vector.load %arg9[%c1_115, %c0_116, %c0_117] : memref<2x32x32xf32, #tpu.memory_space<vmem>>, vector<1x32x32xf32>
    %216 = vector.shape_cast %215 : vector<1x32x32xf32> to vector<32x32xf32>
    %cst_118 = arith.constant dense<0.000000e+00> : vector<32x32xf32>
    %217 = tpu.matmul %214, %216, %cst_118 {dimension_numbers = #tpu.dot_dimension_numbers<[1], [0], [0], [1], [0, 0, 1, 1], [], []>} : vector<32x32xf32>, vector<32x32xf32>, vector<32x32xf32> -> vector<32x32xf32>
    %c1_119 = arith.constant 1 : index
    %c0_120 = arith.constant 0 : index
    %c0_121 = arith.constant 0 : index
    %218 = vector.load %arg10[%c1_119, %c0_120, %c0_121] : memref<2x1x32xf32, #tpu.memory_space<vmem>>, vector<1x1x32xf32>
    %219 = vector.shape_cast %218 : vector<1x1x32xf32> to vector<1x32xf32>
    %220 = vector.broadcast %219 : vector<1x32xf32> to vector<32x32xf32>
    %221 = arith.addf %217, %220 : vector<32x32xf32>
    %222 = arith.addf %168, %221 : vector<32x32xf32>
    %c1_122 = arith.constant 1 : index
    %c0_123 = arith.constant 0 : index
    %c0_124 = arith.constant 0 : index
    %223 = vector.load %arg15[%c1_122, %c0_123, %c0_124] : memref<2x1x32xf32, #tpu.memory_space<vmem>>, vector<1x1x32xf32>
    %224 = vector.shape_cast %223 : vector<1x1x32xf32> to vector<1x32xf32>
    %c1_125 = arith.constant 1 : index
    %c0_126 = arith.constant 0 : index
    %c0_127 = arith.constant 0 : index
    %225 = vector.load %arg16[%c1_125, %c0_126, %c0_127] : memref<2x1x32xf32, #tpu.memory_space<vmem>>, vector<1x1x32xf32>
    %226 = vector.shape_cast %225 : vector<1x1x32xf32> to vector<1x32xf32>
    %cst_128 = arith.constant dense<0.000000e+00> : vector<32xf32>
    %227 = vector.multi_reduction <add>, %222, %cst_128 [1] : vector<32x32xf32> to vector<32xf32>
    %228 = vector.shape_cast %227 : vector<32xf32> to vector<32x1xf32>
    %cst_129 = arith.constant 3.200000e+01 : f32
    %229 = vector.broadcast %cst_129 : f32 to vector<32x1xf32>
    %230 = arith.divf %228, %229 : vector<32x1xf32>
    %231 = vector.broadcast %230 : vector<32x1xf32> to vector<32x32xf32>
    %232 = arith.subf %222, %231 : vector<32x32xf32>
    %233 = arith.mulf %232, %232 : vector<32x32xf32>
    %cst_130 = arith.constant dense<0.000000e+00> : vector<32xf32>
    %234 = vector.multi_reduction <add>, %233, %cst_130 [1] : vector<32x32xf32> to vector<32xf32>
    %235 = vector.shape_cast %234 : vector<32xf32> to vector<32x1xf32>
    %cst_131 = arith.constant 3.200000e+01 : f32
    %236 = vector.broadcast %cst_131 : f32 to vector<32x1xf32>
    %237 = arith.divf %235, %236 : vector<32x1xf32>
    %cst_132 = arith.constant 9.99999974E-6 : f32
    %238 = vector.broadcast %cst_132 : f32 to vector<32x1xf32>
    %239 = arith.addf %237, %238 : vector<32x1xf32>
    %240 = math.rsqrt %239 : vector<32x1xf32>
    %241 = vector.broadcast %240 : vector<32x1xf32> to vector<32x32xf32>
    %242 = arith.mulf %232, %241 : vector<32x32xf32>
    %243 = vector.broadcast %224 : vector<1x32xf32> to vector<32x32xf32>
    %244 = arith.mulf %242, %243 : vector<32x32xf32>
    %245 = vector.broadcast %226 : vector<1x32xf32> to vector<32x32xf32>
    %246 = arith.addf %244, %245 : vector<32x32xf32>
    %c1_133 = arith.constant 1 : index
    %c0_134 = arith.constant 0 : index
    %c0_135 = arith.constant 0 : index
    %247 = vector.load %arg11[%c1_133, %c0_134, %c0_135] : memref<2x32x2048xf32, #tpu.memory_space<vmem>>, vector<1x32x2048xf32>
    %248 = vector.shape_cast %247 : vector<1x32x2048xf32> to vector<32x2048xf32>
    %cst_136 = arith.constant dense<0.000000e+00> : vector<32x2048xf32>
    %249 = tpu.matmul %246, %248, %cst_136 {dimension_numbers = #tpu.dot_dimension_numbers<[1], [0], [0], [1], [0, 0, 1, 1], [], []>} : vector<32x32xf32>, vector<32x2048xf32>, vector<32x2048xf32> -> vector<32x2048xf32>
    %c1_137 = arith.constant 1 : index
    %c0_138 = arith.constant 0 : index
    %c0_139 = arith.constant 0 : index
    %250 = vector.load %arg12[%c1_137, %c0_138, %c0_139] : memref<2x1x2048xf32, #tpu.memory_space<vmem>>, vector<1x1x2048xf32>
    %251 = vector.shape_cast %250 : vector<1x1x2048xf32> to vector<1x2048xf32>
    %252 = vector.broadcast %251 : vector<1x2048xf32> to vector<32x2048xf32>
    %253 = arith.addf %249, %252 : vector<32x2048xf32>
    %cst_140 = arith.constant 0.000000e+00 : f32
    %254 = vector.broadcast %cst_140 : f32 to vector<32x2048xf32>
    %255 = arith.maximumf %253, %254 : vector<32x2048xf32>
    %c1_141 = arith.constant 1 : index
    %c0_142 = arith.constant 0 : index
    %c0_143 = arith.constant 0 : index
    %256 = vector.load %arg13[%c1_141, %c0_142, %c0_143] : memref<2x2048x32xf32, #tpu.memory_space<vmem>>, vector<1x2048x32xf32>
    %257 = vector.shape_cast %256 : vector<1x2048x32xf32> to vector<2048x32xf32>
    %cst_144 = arith.constant dense<0.000000e+00> : vector<32x32xf32>
    %258 = tpu.matmul %255, %257, %cst_144 {dimension_numbers = #tpu.dot_dimension_numbers<[1], [0], [0], [1], [0, 0, 1, 1], [], []>} : vector<32x2048xf32>, vector<2048x32xf32>, vector<32x32xf32> -> vector<32x32xf32>
    %c1_145 = arith.constant 1 : index
    %c0_146 = arith.constant 0 : index
    %c0_147 = arith.constant 0 : index
    %259 = vector.load %arg14[%c1_145, %c0_146, %c0_147] : memref<2x1x32xf32, #tpu.memory_space<vmem>>, vector<1x1x32xf32>
    %260 = vector.shape_cast %259 : vector<1x1x32xf32> to vector<1x32xf32>
    %261 = vector.broadcast %260 : vector<1x32xf32> to vector<32x32xf32>
    %262 = arith.addf %258, %261 : vector<32x32xf32>
    %263 = arith.addf %246, %262 : vector<32x32xf32>
    %c1_148 = arith.constant 1 : index
    %c0_149 = arith.constant 0 : index
    %c0_150 = arith.constant 0 : index
    %264 = vector.load %arg17[%c1_148, %c0_149, %c0_150] : memref<2x1x32xf32, #tpu.memory_space<vmem>>, vector<1x1x32xf32>
    %265 = vector.shape_cast %264 : vector<1x1x32xf32> to vector<1x32xf32>
    %c1_151 = arith.constant 1 : index
    %c0_152 = arith.constant 0 : index
    %c0_153 = arith.constant 0 : index
    %266 = vector.load %arg18[%c1_151, %c0_152, %c0_153] : memref<2x1x32xf32, #tpu.memory_space<vmem>>, vector<1x1x32xf32>
    %267 = vector.shape_cast %266 : vector<1x1x32xf32> to vector<1x32xf32>
    %cst_154 = arith.constant dense<0.000000e+00> : vector<32xf32>
    %268 = vector.multi_reduction <add>, %263, %cst_154 [1] : vector<32x32xf32> to vector<32xf32>
    %269 = vector.shape_cast %268 : vector<32xf32> to vector<32x1xf32>
    %cst_155 = arith.constant 3.200000e+01 : f32
    %270 = vector.broadcast %cst_155 : f32 to vector<32x1xf32>
    %271 = arith.divf %269, %270 : vector<32x1xf32>
    %272 = vector.broadcast %271 : vector<32x1xf32> to vector<32x32xf32>
    %273 = arith.subf %263, %272 : vector<32x32xf32>
    %274 = arith.mulf %273, %273 : vector<32x32xf32>
    %cst_156 = arith.constant dense<0.000000e+00> : vector<32xf32>
    %275 = vector.multi_reduction <add>, %274, %cst_156 [1] : vector<32x32xf32> to vector<32xf32>
    %276 = vector.shape_cast %275 : vector<32xf32> to vector<32x1xf32>
    %cst_157 = arith.constant 3.200000e+01 : f32
    %277 = vector.broadcast %cst_157 : f32 to vector<32x1xf32>
    %278 = arith.divf %276, %277 : vector<32x1xf32>
    %cst_158 = arith.constant 9.99999974E-6 : f32
    %279 = vector.broadcast %cst_158 : f32 to vector<32x1xf32>
    %280 = arith.addf %278, %279 : vector<32x1xf32>
    %281 = math.rsqrt %280 : vector<32x1xf32>
    %282 = vector.broadcast %281 : vector<32x1xf32> to vector<32x32xf32>
    %283 = arith.mulf %273, %282 : vector<32x32xf32>
    %284 = vector.broadcast %265 : vector<1x32xf32> to vector<32x32xf32>
    %285 = arith.mulf %283, %284 : vector<32x32xf32>
    %286 = vector.broadcast %267 : vector<1x32xf32> to vector<32x32xf32>
    %287 = arith.addf %285, %286 : vector<32x32xf32>
    %288 = math.exp %287 : vector<32x32xf32>
    %cst_159 = arith.constant 1.000000e+00 : f32
    %289 = vector.broadcast %cst_159 : f32 to vector<32x32xf32>
    %290 = arith.addf %289, %288 : vector<32x32xf32>
    %291 = arith.mulf %290, %290 : vector<32x32xf32>
    %cst_160 = arith.constant 1.000000e+00 : f32
    %292 = vector.broadcast %cst_160 : f32 to vector<32x32xf32>
    %293 = arith.addf %291, %292 : vector<32x32xf32>
    %294 = tpu.reciprocal %293 {approx = true} : vector<32x32xf32> -> vector<32x32xf32>
    %cst_161 = arith.constant 2.000000e+00 : f32
    %295 = vector.broadcast %cst_161 : f32 to vector<32x32xf32>
    %296 = arith.mulf %295, %294 : vector<32x32xf32>
    %cst_162 = arith.constant 1.000000e+00 : f32
    %297 = vector.broadcast %cst_162 : f32 to vector<32x32xf32>
    %298 = arith.subf %297, %296 : vector<32x32xf32>
    %299 = arith.mulf %287, %298 : vector<32x32xf32>
    %cst_163 = arith.constant 2.000000e-01 : f32
    %300 = vector.broadcast %cst_163 : f32 to vector<32x32xf32>
    %301 = arith.mulf %300, %48 : vector<32x32xf32>
    %302 = arith.addf %299, %301 : vector<32x32xf32>
    %c0_164 = arith.constant 0 : index
    %c0_165 = arith.constant 0 : index
    %303 = vector.load %arg19[%c0_164, %c0_165] : memref<16x32xf32, #tpu.memory_space<vmem>>, vector<16x32xf32>
    %cst_166 = arith.constant dense<0.000000e+00> : vector<16x32xf32>
    %304 = tpu.matmul %303, %302, %cst_166 {dimension_numbers = #tpu.dot_dimension_numbers<[1], [0], [0], [1], [0, 0, 1, 1], [], []>} : vector<16x32xf32>, vector<32x32xf32>, vector<16x32xf32> -> vector<16x32xf32>
    %c0_167 = arith.constant 0 : index
    %c0_168 = arith.constant 0 : index
    %305 = vector.load %arg20[%c0_167, %c0_168] : memref<16x1xf32, #tpu.memory_space<vmem>>, vector<16x1xf32>
    %306 = vector.broadcast %305 : vector<16x1xf32> to vector<16x32xf32>
    %307 = arith.addf %304, %306 : vector<16x32xf32>
    %308 = math.exp %307 : vector<16x32xf32>
    %cst_169 = arith.constant 1.000000e+00 : f32
    %309 = vector.broadcast %cst_169 : f32 to vector<16x32xf32>
    %310 = arith.addf %309, %308 : vector<16x32xf32>
    %311 = arith.mulf %310, %310 : vector<16x32xf32>
    %cst_170 = arith.constant 1.000000e+00 : f32
    %312 = vector.broadcast %cst_170 : f32 to vector<16x32xf32>
    %313 = arith.addf %311, %312 : vector<16x32xf32>
    %314 = tpu.reciprocal %313 {approx = true} : vector<16x32xf32> -> vector<16x32xf32>
    %cst_171 = arith.constant 2.000000e+00 : f32
    %315 = vector.broadcast %cst_171 : f32 to vector<16x32xf32>
    %316 = arith.mulf %315, %314 : vector<16x32xf32>
    %cst_172 = arith.constant 1.000000e+00 : f32
    %317 = vector.broadcast %cst_172 : f32 to vector<16x32xf32>
    %318 = arith.subf %317, %316 : vector<16x32xf32>
    %319 = arith.mulf %307, %318 : vector<16x32xf32>
    %c0_173 = arith.constant 0 : index
    %c0_174 = arith.constant 0 : index
    %320 = vector.load %arg21[%c0_173, %c0_174] : memref<32x16xf32, #tpu.memory_space<vmem>>, vector<32x16xf32>
    %cst_175 = arith.constant dense<0.000000e+00> : vector<16x16xf32>
    %321 = tpu.matmul %319, %320, %cst_175 {dimension_numbers = #tpu.dot_dimension_numbers<[1], [0], [0], [1], [0, 0, 1, 1], [], []>} : vector<16x32xf32>, vector<32x16xf32>, vector<16x16xf32> -> vector<16x16xf32>
    %c0_176 = arith.constant 0 : index
    %c0_177 = arith.constant 0 : index
    %322 = vector.load %arg22[%c0_176, %c0_177] : memref<1x16xf32, #tpu.memory_space<vmem>>, vector<1x16xf32>
    %323 = vector.broadcast %322 : vector<1x16xf32> to vector<16x16xf32>
    %324 = arith.addf %321, %323 : vector<16x16xf32>
    %c0_178 = arith.constant 0 : index
    %c0_179 = arith.constant 0 : index
    %c0_180 = arith.constant 0 : index
    %325 = vector.load %arg23[%c0_178, %c0_179, %c0_180] : memref<1x16x16xf32, #tpu.memory_space<vmem>>, vector<1x16x16xf32>
    %326 = vector.shape_cast %325 : vector<1x16x16xf32> to vector<16x16xf32>
    %327 = vector.shape_cast %324 : vector<16x16xf32> to vector<1x16x16xf32>
    tpu.vector_store %arg23[%c0_178, %c0_179, %c0_180], %327 {strides = array<i32>} : memref<1x16x16xf32, #tpu.memory_space<vmem>>, vector<1x16x16xf32>,
    return
  }
  func.func @transform_0(%arg0: i32) -> (i32, i32, i32) {
    %c0_i32 = arith.constant 0 : i32
    %c0_i32_0 = arith.constant 0 : i32
    %c0_i32_1 = arith.constant 0 : i32
    return %arg0, %c0_i32, %c0_i32_0 : i32, i32, i32
  }
  func.func @transform_1(%arg0: i32) -> (i32, i32) {
    %c0_i32 = arith.constant 0 : i32
    %c0_i32_0 = arith.constant 0 : i32
    %c0_i32_1 = arith.constant 0 : i32
    return %c0_i32, %c0_i32_0 : i32, i32
  }
  func.func @transform_2(%arg0: i32) -> (i32, i32, i32) {
    %c0_i32 = arith.constant 0 : i32
    %c0_i32_0 = arith.constant 0 : i32
    %c0_i32_1 = arith.constant 0 : i32
    %c0_i32_2 = arith.constant 0 : i32
    return %c0_i32, %c0_i32_0, %c0_i32_1 : i32, i32, i32
  }
  func.func @transform_3(%arg0: i32) -> (i32, i32) {
    %c0_i32 = arith.constant 0 : i32
    %c0_i32_0 = arith.constant 0 : i32
    %c0_i32_1 = arith.constant 0 : i32
    return %c0_i32, %c0_i32_0 : i32, i32
  }
  func.func @transform_4(%arg0: i32) -> (i32, i32) {
    %c0_i32 = arith.constant 0 : i32
    %c0_i32_0 = arith.constant 0 : i32
    %c0_i32_1 = arith.constant 0 : i32
    return %c0_i32, %c0_i32_0 : i32, i32
  }
  func.func @transform_5(%arg0: i32) -> (i32, i32) {
    %c0_i32 = arith.constant 0 : i32
    %c0_i32_0 = arith.constant 0 : i32
    %c0_i32_1 = arith.constant 0 : i32
    return %c0_i32, %c0_i32_0 : i32, i32
  }
  func.func @transform_6(%arg0: i32) -> (i32, i32, i32) {
    %c0_i32 = arith.constant 0 : i32
    %c0_i32_0 = arith.constant 0 : i32
    %c0_i32_1 = arith.constant 0 : i32
    %c0_i32_2 = arith.constant 0 : i32
    return %c0_i32, %c0_i32_0, %c0_i32_1 : i32, i32, i32
  }
  func.func @transform_7(%arg0: i32) -> (i32, i32, i32) {
    %c0_i32 = arith.constant 0 : i32
    %c0_i32_0 = arith.constant 0 : i32
    %c0_i32_1 = arith.constant 0 : i32
    %c0_i32_2 = arith.constant 0 : i32
    return %c0_i32, %c0_i32_0, %c0_i32_1 : i32, i32, i32
  }
  func.func @transform_8(%arg0: i32) -> (i32, i32, i32) {
    %c0_i32 = arith.constant 0 : i32
    %c0_i32_0 = arith.constant 0 : i32
    %c0_i32_1 = arith.constant 0 : i32
    %c0_i32_2 = arith.constant 0 : i32
    return %c0_i32, %c0_i32_0, %c0_i32_1 : i32, i32, i32
  }
  func.func @transform_9(%arg0: i32) -> (i32, i32, i32) {
    %c0_i32 = arith.constant 0 : i32
    %c0_i32_0 = arith.constant 0 : i32
    %c0_i32_1 = arith.constant 0 : i32
    %c0_i32_2 = arith.constant 0 : i32
    return %c0_i32, %c0_i32_0, %c0_i32_1 : i32, i32, i32
  }
  func.func @transform_10(%arg0: i32) -> (i32, i32, i32) {
    %c0_i32 = arith.constant 0 : i32
    %c0_i32_0 = arith.constant 0 : i32
    %c0_i32_1 = arith.constant 0 : i32
    %c0_i32_2 = arith.constant 0 : i32
    return %c0_i32, %c0_i32_0, %c0_i32_1 : i32, i32, i32
  }
  func.func @transform_11(%arg0: i32) -> (i32, i32, i32) {
    %c0_i32 = arith.constant 0 : i32
    %c0_i32_0 = arith.constant 0 : i32
    %c0_i32_1 = arith.constant 0 : i32
    %c0_i32_2 = arith.constant 0 : i32
    return %c0_i32, %c0_i32_0, %c0_i32_1 : i32, i32, i32
  }
  func.func @transform_12(%arg0: i32) -> (i32, i32, i32) {
    %c0_i32 = arith.constant 0 : i32
    %c0_i32_0 = arith.constant 0 : i32
    %c0_i32_1 = arith.constant 0 : i32
    %c0_i32_2 = arith.constant 0 : i32
    return %c0_i32, %c0_i32_0, %c0_i32_1 : i32, i32, i32
  }
  func.func @transform_13(%arg0: i32) -> (i32, i32, i32) {
    %c0_i32 = arith.constant 0 : i32
    %c0_i32_0 = arith.constant 0 : i32
    %c0_i32_1 = arith.constant 0 : i32
    %c0_i32_2 = arith.constant 0 : i32
    return %c0_i32, %c0_i32_0, %c0_i32_1 : i32, i32, i32
  }
  func.func @transform_14(%arg0: i32) -> (i32, i32, i32) {
    %c0_i32 = arith.constant 0 : i32
    %c0_i32_0 = arith.constant 0 : i32
    %c0_i32_1 = arith.constant 0 : i32
    %c0_i32_2 = arith.constant 0 : i32
    return %c0_i32, %c0_i32_0, %c0_i32_1 : i32, i32, i32
  }
  func.func @transform_15(%arg0: i32) -> (i32, i32, i32) {
    %c0_i32 = arith.constant 0 : i32
    %c0_i32_0 = arith.constant 0 : i32
    %c0_i32_1 = arith.constant 0 : i32
    %c0_i32_2 = arith.constant 0 : i32
    return %c0_i32, %c0_i32_0, %c0_i32_1 : i32, i32, i32
  }
  func.func @transform_16(%arg0: i32) -> (i32, i32, i32) {
    %c0_i32 = arith.constant 0 : i32
    %c0_i32_0 = arith.constant 0 : i32
    %c0_i32_1 = arith.constant 0 : i32
    %c0_i32_2 = arith.constant 0 : i32
    return %c0_i32, %c0_i32_0, %c0_i32_1 : i32, i32, i32
  }
  func.func @transform_17(%arg0: i32) -> (i32, i32, i32) {
    %c0_i32 = arith.constant 0 : i32
    %c0_i32_0 = arith.constant 0 : i32
    %c0_i32_1 = arith.constant 0 : i32
    %c0_i32_2 = arith.constant 0 : i32
    return %c0_i32, %c0_i32_0, %c0_i32_1 : i32, i32, i32
  }
  func.func @transform_18(%arg0: i32) -> (i32, i32) {
    %c0_i32 = arith.constant 0 : i32
    %c0_i32_0 = arith.constant 0 : i32
    %c0_i32_1 = arith.constant 0 : i32
    return %c0_i32, %c0_i32_0 : i32, i32
  }
  func.func @transform_19(%arg0: i32) -> (i32, i32) {
    %c0_i32 = arith.constant 0 : i32
    %c0_i32_0 = arith.constant 0 : i32
    %c0_i32_1 = arith.constant 0 : i32
    return %c0_i32, %c0_i32_0 : i32, i32
  }
  func.func @transform_20(%arg0: i32) -> (i32, i32) {
    %c0_i32 = arith.constant 0 : i32
    %c0_i32_0 = arith.constant 0 : i32
    %c0_i32_1 = arith.constant 0 : i32
    return %c0_i32, %c0_i32_0 : i32, i32
  }
  func.func @transform_21(%arg0: i32) -> (i32, i32) {
    %c0_i32 = arith.constant 0 : i32
    %c0_i32_0 = arith.constant 0 : i32
    %c0_i32_1 = arith.constant 0 : i32
    return %c0_i32, %c0_i32_0 : i32, i32
  }
  func.func @transform_22(%arg0: i32) -> (i32, i32, i32) {
    %c0_i32 = arith.constant 0 : i32
    %c0_i32_0 = arith.constant 0 : i32
    %c0_i32_1 = arith.constant 0 : i32
    return %arg0, %c0_i32, %c0_i32_0 : i32, i32, i32
  }
}

</mosaic_0001>

<llo_original>
// kernel: cryptor_forward.1
$region0: #{cryptor_forward.1}
  #allocation0 [shape = 'u32[]', space=smem, size = 0x4, offset = 0x4, fixed_abs, tag = 'smem constant byte address 0x4 - core index']
  #allocation1 [shape = 'u32[72,128]{1,0:T(1,128)}', space=vmem, size = 0x9000, scoped, tag = 'internal scratch']
  %s0 = inlined_call_operand.vmem [shape: f32[2,32,16], index: 0, kind: input, shape index: {}]
  %s1 = inlined_call_operand.vmem [shape: f32[32,160], index: 1, kind: input, shape index: {}]
  %s2 = inlined_call_operand.vmem [shape: f32[5,32,32], index: 2, kind: input, shape index: {}]
  %s3 = inlined_call_operand.vmem [shape: f32[128,32], index: 3, kind: input, shape index: {}]
  %s4 = inlined_call_operand.vmem [shape: f32[16,32], index: 4, kind: input, shape index: {}]
  %s5 = inlined_call_operand.vmem [shape: f32[1,32], index: 5, kind: input, shape index: {}]
  %s6 = inlined_call_operand.vmem [shape: f32[2,32,96], index: 6, kind: input, shape index: {}]
  %s7 = inlined_call_operand.vmem [shape: f32[2,1,96], index: 7, kind: input, shape index: {}]
  %s8 = inlined_call_operand.vmem [shape: f32[2,32,32], index: 8, kind: input, shape index: {}]
  %s9 = inlined_call_operand.vmem [shape: f32[2,1,32], index: 9, kind: input, shape index: {}]
  %s10 = inlined_call_operand.vmem [shape: f32[2,32,2048], index: 10, kind: input, shape index: {}]
  %s11 = inlined_call_operand.vmem [shape: f32[2,1,2048], index: 11, kind: input, shape index: {}]
  %s12 = inlined_call_operand.vmem [shape: f32[2,2048,32], index: 12, kind: input, shape index: {}]
  %s13 = inlined_call_operand.vmem [shape: f32[2,1,32], index: 13, kind: input, shape index: {}]
  %s14 = inlined_call_operand.vmem [shape: f32[2,1,32], index: 14, kind: input, shape index: {}]
  %s15 = inlined_call_operand.vmem [shape: f32[2,1,32], index: 15, kind: input, shape index: {}]
  %s16 = inlined_call_operand.vmem [shape: f32[2,1,32], index: 16, kind: input, shape index: {}]
  %s17 = inlined_call_operand.vmem [shape: f32[2,1,32], index: 17, kind: input, shape index: {}]
  %s18 = inlined_call_operand.vmem [shape: f32[16,32], index: 18, kind: input, shape index: {}]
  %s19 = inlined_call_operand.vmem [shape: f32[16,1], index: 19, kind: input, shape index: {}]
  %s20 = inlined_call_operand.vmem [shape: f32[32,16], index: 20, kind: input, shape index: {}]
  %s21 = inlined_call_operand.vmem [shape: f32[1,16], index: 21, kind: input, shape index: {}]
  %s22 = inlined_call_operand.hbm [shape: f32[2,16,16], index: 22, kind: output, shape index: {}]
  %s23 = sld [smem:[#allocation0]]
  $region121: #{cryptor_forward.1} parent=0
    _
  %s25 = ssub.s32 1, %s23
  %s26 = scalar_select 0, %s25, %s23
  $region1: #{cryptor_forward.1} parent=0
    #allocation2 [shape = 'u8[16384]{0}', space=vmem, size = 0x4000, scoped, tag = 'output window, operand 0']
    #allocation3 [shape = 's32[2]{0}', space=sflag, size = 0x8, scoped, tag = 'scoped memory for cryptor_forward.1']
    %27 = vsyncpa [#allocation3], 0
    %s28 = scalar_lea.sflag [#allocation3], 1
    %29 = vsyncpa %s28, 0
    loop: start=0, step=1, limit=4
    $region2: #{cryptor_forward.1} parent=1 // loop_pre_header
      _
    $region3: #{cryptor_forward.1} parent=1 // loop_header
      %s31 = sphi 0, %s35
      %p32 = scmp.ge.s32.totalorder %s31, 4
      %s41 = sphi 0, %s43
      %s44 = sphi 0, %s41
      %s45 = sphi 0, %s44
      %s61 = sphi 0, %s45
      %s65 = sphi 0, %s65
      %s67 = sphi 0, %s65
      %s68 = sphi 0, %s67
      %s82 = sphi 0, %s68
      %s86 = sphi 0, %s86
      %s88 = sphi 0, %s86
      %s89 = sphi 0, %s88
      %s103 = sphi 0, %s89
      %s107 = sphi 0, %s107
      %s109 = sphi 0, %s107
      %s110 = sphi 0, %s109
      %s124 = sphi 0, %s110
      %s128 = sphi 0, %s128
      %s130 = sphi 0, %s128
      %s131 = sphi 0, %s130
      %s145 = sphi 0, %s131
      %s149 = sphi 0, %s149
      %s151 = sphi 0, %s149
      %s152 = sphi 0, %s151
      %s166 = sphi 0, %s152
      %s170 = sphi 0, %s170
      %s172 = sphi 0, %s170
      %s173 = sphi 0, %s172
      %s187 = sphi 0, %s173
      %s191 = sphi 0, %s191
      %s193 = sphi 0, %s191
      %s194 = sphi 0, %s193
      %s208 = sphi 0, %s194
      %s212 = sphi 0, %s212
      %s214 = sphi 0, %s212
      %s215 = sphi 0, %s214
      %s229 = sphi 0, %s215
      %s233 = sphi 0, %s233
      %s235 = sphi 0, %s233
      %s236 = sphi 0, %s235
      %s250 = sphi 0, %s236
      %s254 = sphi 0, %s254
      %s256 = sphi 0, %s254
      %s257 = sphi 0, %s256
      %s271 = sphi 0, %s257
      %s275 = sphi 0, %s275
      %s277 = sphi 0, %s275
      %s278 = sphi 0, %s277
      %s292 = sphi 0, %s278
      %s296 = sphi 0, %s296
      %s298 = sphi 0, %s296
      %s299 = sphi 0, %s298
      %s313 = sphi 0, %s299
      %s317 = sphi 0, %s317
      %s319 = sphi 0, %s317
      %s320 = sphi 0, %s319
      %s334 = sphi 0, %s320
      %s338 = sphi 0, %s338
      %s340 = sphi 0, %s338
      %s341 = sphi 0, %s340
      %s355 = sphi 0, %s341
      %s359 = sphi 0, %s359
      %s361 = sphi 0, %s359
      %s362 = sphi 0, %s361
      %s376 = sphi 0, %s362
      %s380 = sphi 0, %s380
      %s382 = sphi 0, %s380
      %s383 = sphi 0, %s382
      %s397 = sphi 0, %s383
      %s401 = sphi 0, %s401
      %s403 = sphi 0, %s401
      %s404 = sphi 0, %s403
      %s418 = sphi 0, %s404
      %s422 = sphi 0, %s422
      %s424 = sphi 0, %s422
      %s425 = sphi 0, %s424
      %s439 = sphi 0, %s425
      %s443 = sphi 0, %s443
      %s445 = sphi 0, %s443
      %s446 = sphi 0, %s445
      %s460 = sphi 0, %s446
      %s464 = sphi 0, %s464
      %s466 = sphi 0, %s464
      %s467 = sphi 0, %s466
      %s481 = sphi 0, %s467
      %s485 = sphi 0, %s485
      %s487 = sphi 0, %s485
      %s488 = sphi 0, %s487
      %s502 = sphi 0, %s488
      %s508 = sphi 0, %s510
      %s511 = sphi 0, %s508
      %s512 = sphi 0, %s511
      %s528 = sphi 0, %s512
    $region4: #{cryptor_forward.1} parent=1 // loop_header_branch
      %34 = sbr.rel (%p32) target = $region8
    $region5: #{cryptor_forward.1} parent=1 // loop_body
      %s36 = ssub.s32 %s31, 1
      %s37 = ssub.s32 %s31, 2
      %s38 = sadd.s32 %s31, 1
      %s39 = ssub.s32 %s31, %s38
      %p40 = scmp.eq.s32.totalorder %s39, 0
      %s42 = sadd.s32 %s41, 1
      %s43 = scalar_select %p40, %s41, %s42
      %p46 = pneg %p40
      %p47 = scmp.eq.s32.totalorder %s31, 1
      %p48 = por %p46, %p47
      %p49 = scmp.ne.s32.totalorder %s41, %s44
      %p50 = scmp.eq.s32.totalorder %s31, 0
      %p51 = por %p49, %p50
      %p52 = scmp.ne.s32.totalorder %s41, %s44
      %p53 = scmp.eq.s32.totalorder %s36, 1
      %p54 = por %p52, %p53
      %p55 = scmp.ne.s32.totalorder %s44, %s45
      %p56 = scmp.eq.s32.totalorder %s36, 0
      %p57 = por %p55, %p56
      %p58 = scmp.ne.s32.totalorder %s44, %s45
      %p59 = scmp.eq.s32.totalorder %s37, 1
      %p60 = por %p58, %p59
      %p62 = scmp.ne.s32.totalorder %s45, %s61
      %p63 = scmp.eq.s32.totalorder %s37, 0
      %p64 = por %p62, %p63
      %s66 = sadd.s32 %s65, 1
      %p69 = scmp.eq.s32.totalorder %s31, 1
      %p70 = scmp.ne.s32.totalorder %s65, %s67
      %p71 = scmp.eq.s32.totalorder %s31, 0
      %p72 = por %p70, %p71
      %p73 = scmp.ne.s32.totalorder %s65, %s67
      %p74 = scmp.eq.s32.totalorder %s36, 1
      %p75 = por %p73, %p74
      %p76 = scmp.ne.s32.totalorder %s67, %s68
      %p77 = scmp.eq.s32.totalorder %s36, 0
      %p78 = por %p76, %p77
      %p79 = scmp.ne.s32.totalorder %s67, %s68
      %p80 = scmp.eq.s32.totalorder %s37, 1
      %p81 = por %p79, %p80
      %p83 = scmp.ne.s32.totalorder %s68, %s82
      %p84 = scmp.eq.s32.totalorder %s37, 0
      %p85 = por %p83, %p84
      %s87 = sadd.s32 %s86, 1
      %p90 = scmp.eq.s32.totalorder %s31, 1
      %p91 = scmp.ne.s32.totalorder %s86, %s88
      %p92 = scmp.eq.s32.totalorder %s31, 0
      %p93 = por %p91, %p92
      %p94 = scmp.ne.s32.totalorder %s86, %s88
      %p95 = scmp.eq.s32.totalorder %s36, 1
      %p96 = por %p94, %p95
      %p97 = scmp.ne.s32.totalorder %s88, %s89
      %p98 = scmp.eq.s32.totalorder %s36, 0
      %p99 = por %p97, %p98
      %p100 = scmp.ne.s32.totalorder %s88, %s89
      %p101 = scmp.eq.s32.totalorder %s37, 1
      %p102 = por %p100, %p101
      %p104 = scmp.ne.s32.totalorder %s89, %s103
      %p105 = scmp.eq.s32.totalorder %s37, 0
      %p106 = por %p104, %p105
      %s108 = sadd.s32 %s107, 1
      %p111 = scmp.eq.s32.totalorder %s31, 1
      %p112 = scmp.ne.s32.totalorder %s107, %s109
      %p113 = scmp.eq.s32.totalorder %s31, 0
      %p114 = por %p112, %p113
      %p115 = scmp.ne.s32.totalorder %s107, %s109
      %p116 = scmp.eq.s32.totalorder %s36, 1
      %p117 = por %p115, %p116
      %p118 = scmp.ne.s32.totalorder %s109, %s110
      %p119 = scmp.eq.s32.totalorder %s36, 0
      %p120 = por %p118, %p119
      %p121 = scmp.ne.s32.totalorder %s109, %s110
      %p122 = scmp.eq.s32.totalorder %s37, 1
      %p123 = por %p121, %p122
      %p125 = scmp.ne.s32.totalorder %s110, %s124
      %p126 = scmp.eq.s32.totalorder %s37, 0
      %p127 = por %p125, %p126
      %s129 = sadd.s32 %s128, 1
      %p132 = scmp.eq.s32.totalorder %s31, 1
      %p133 = scmp.ne.s32.totalorder %s128, %s130
      %p134 = scmp.eq.s32.totalorder %s31, 0
      %p135 = por %p133, %p134
      %p136 = scmp.ne.s32.totalorder %s128, %s130
      %p137 = scmp.eq.s32.totalorder %s36, 1
      %p138 = por %p136, %p137
      %p139 = scmp.ne.s32.totalorder %s130, %s131
      %p140 = scmp.eq.s32.totalorder %s36, 0
      %p141 = por %p139, %p140
      %p142 = scmp.ne.s32.totalorder %s130, %s131
      %p143 = scmp.eq.s32.totalorder %s37, 1
      %p144 = por %p142, %p143
      %p146 = scmp.ne.s32.totalorder %s131, %s145
      %p147 = scmp.eq.s32.totalorder %s37, 0
      %p148 = por %p146, %p147
      %s150 = sadd.s32 %s149, 1
      %p153 = scmp.eq.s32.totalorder %s31, 1
      %p154 = scmp.ne.s32.totalorder %s149, %s151
      %p155 = scmp.eq.s32.totalorder %s31, 0
      %p156 = por %p154, %p155
      %p157 = scmp.ne.s32.totalorder %s149, %s151
      %p158 = scmp.eq.s32.totalorder %s36, 1
      %p159 = por %p157, %p158
      %p160 = scmp.ne.s32.totalorder %s151, %s152
      %p161 = scmp.eq.s32.totalorder %s36, 0
      %p162 = por %p160, %p161
      %p163 = scmp.ne.s32.totalorder %s151, %s152
      %p164 = scmp.eq.s32.totalorder %s37, 1
      %p165 = por %p163, %p164
      %p167 = scmp.ne.s32.totalorder %s152, %s166
      %p168 = scmp.eq.s32.totalorder %s37, 0
      %p169 = por %p167, %p168
      %s171 = sadd.s32 %s170, 1
      %p174 = scmp.eq.s32.totalorder %s31, 1
      %p175 = scmp.ne.s32.totalorder %s170, %s172
      %p176 = scmp.eq.s32.totalorder %s31, 0
      %p177 = por %p175, %p176
      %p178 = scmp.ne.s32.totalorder %s170, %s172
      %p179 = scmp.eq.s32.totalorder %s36, 1
      %p180 = por %p178, %p179
      %p181 = scmp.ne.s32.totalorder %s172, %s173
      %p182 = scmp.eq.s32.totalorder %s36, 0
      %p183 = por %p181, %p182
      %p184 = scmp.ne.s32.totalorder %s172, %s173
      %p185 = scmp.eq.s32.totalorder %s37, 1
      %p186 = por %p184, %p185
      %p188 = scmp.ne.s32.totalorder %s173, %s187
      %p189 = scmp.eq.s32.totalorder %s37, 0
      %p190 = por %p188, %p189
      %s192 = sadd.s32 %s191, 1
      %p195 = scmp.eq.s32.totalorder %s31, 1
      %p196 = scmp.ne.s32.totalorder %s191, %s193
      %p197 = scmp.eq.s32.totalorder %s31, 0
      %p198 = por %p196, %p197
      %p199 = scmp.ne.s32.totalorder %s191, %s193
      %p200 = scmp.eq.s32.totalorder %s36, 1
      %p201 = por %p199, %p200
      %p202 = scmp.ne.s32.totalorder %s193, %s194
      %p203 = scmp.eq.s32.totalorder %s36, 0
      %p204 = por %p202, %p203
      %p205 = scmp.ne.s32.totalorder %s193, %s194
      %p206 = scmp.eq.s32.totalorder %s37, 1
      %p207 = por %p205, %p206
      %p209 = scmp.ne.s32.totalorder %s194, %s208
      %p210 = scmp.eq.s32.totalorder %s37, 0
      %p211 = por %p209, %p210
      %s213 = sadd.s32 %s212, 1
      %p216 = scmp.eq.s32.totalorder %s31, 1
      %p217 = scmp.ne.s32.totalorder %s212, %s214
      %p218 = scmp.eq.s32.totalorder %s31, 0
      %p219 = por %p217, %p218
      %p220 = scmp.ne.s32.totalorder %s212, %s214
      %p221 = scmp.eq.s32.totalorder %s36, 1
      %p222 = por %p220, %p221
      %p223 = scmp.ne.s32.totalorder %s214, %s215
      %p224 = scmp.eq.s32.totalorder %s36, 0
      %p225 = por %p223, %p224
      %p226 = scmp.ne.s32.totalorder %s214, %s215
      %p227 = scmp.eq.s32.totalorder %s37, 1
      %p228 = por %p226, %p227
      %p230 = scmp.ne.s32.totalorder %s215, %s229
      %p231 = scmp.eq.s32.totalorder %s37, 0
      %p232 = por %p230, %p231
      %s234 = sadd.s32 %s233, 1
      %p237 = scmp.eq.s32.totalorder %s31, 1
      %p238 = scmp.ne.s32.totalorder %s233, %s235
      %p239 = scmp.eq.s32.totalorder %s31, 0
      %p240 = por %p238, %p239
      %p241 = scmp.ne.s32.totalorder %s233, %s235
      %p242 = scmp.eq.s32.totalorder %s36, 1
      %p243 = por %p241, %p242
      %p244 = scmp.ne.s32.totalorder %s235, %s236
      %p245 = scmp.eq.s32.totalorder %s36, 0
      %p246 = por %p244, %p245
      %p247 = scmp.ne.s32.totalorder %s235, %s236
      %p248 = scmp.eq.s32.totalorder %s37, 1
      %p249 = por %p247, %p248
      %p251 = scmp.ne.s32.totalorder %s236, %s250
      %p252 = scmp.eq.s32.totalorder %s37, 0
      %p253 = por %p251, %p252
      %s255 = sadd.s32 %s254, 1
      %p258 = scmp.eq.s32.totalorder %s31, 1
      %p259 = scmp.ne.s32.totalorder %s254, %s256
      %p260 = scmp.eq.s32.totalorder %s31, 0
      %p261 = por %p259, %p260
      %p262 = scmp.ne.s32.totalorder %s254, %s256
      %p263 = scmp.eq.s32.totalorder %s36, 1
      %p264 = por %p262, %p263
      %p265 = scmp.ne.s32.totalorder %s256, %s257
      %p266 = scmp.eq.s32.totalorder %s36, 0
      %p267 = por %p265, %p266
      %p268 = scmp.ne.s32.totalorder %s256, %s257
      %p269 = scmp.eq.s32.totalorder %s37, 1
      %p270 = por %p268, %p269
      %p272 = scmp.ne.s32.totalorder %s257, %s271
      %p273 = scmp.eq.s32.totalorder %s37, 0
      %p274 = por %p272, %p273
      %s276 = sadd.s32 %s275, 1
      %p279 = scmp.eq.s32.totalorder %s31, 1
      %p280 = scmp.ne.s32.totalorder %s275, %s277
      %p281 = scmp.eq.s32.totalorder %s31, 0
      %p282 = por %p280, %p281
      %p283 = scmp.ne.s32.totalorder %s275, %s277
      %p284 = scmp.eq.s32.totalorder %s36, 1
      %p285 = por %p283, %p284
      %p286 = scmp.ne.s32.totalorder %s277, %s278
      %p287 = scmp.eq.s32.totalorder %s36, 0
      %p288 = por %p286, %p287
      %p289 = scmp.ne.s32.totalorder %s277, %s278
      %p290 = scmp.eq.s32.totalorder %s37, 1
      %p291 = por %p289, %p290
      %p293 = scmp.ne.s32.totalorder %s278, %s292
      %p294 = scmp.eq.s32.totalorder %s37, 0
      %p295 = por %p293, %p294
      %s297 = sadd.s32 %s296, 1
      %p300 = scmp.eq.s32.totalorder %s31, 1
      %p301 = scmp.ne.s32.totalorder %s296, %s298
      %p302 = scmp.eq.s32.totalorder %s31, 0
      %p303 = por %p301, %p302
      %p304 = scmp.ne.s32.totalorder %s296, %s298
      %p305 = scmp.eq.s32.totalorder %s36, 1
      %p306 = por %p304, %p305
      %p307 = scmp.ne.s32.totalorder %s298, %s299
      %p308 = scmp.eq.s32.totalorder %s36, 0
      %p309 = por %p307, %p308
      %p310 = scmp.ne.s32.totalorder %s298, %s299
      %p311 = scmp.eq.s32.totalorder %s37, 1
      %p312 = por %p310, %p311
      %p314 = scmp.ne.s32.totalorder %s299, %s313
      %p315 = scmp.eq.s32.totalorder %s37, 0
      %p316 = por %p314, %p315
      %s318 = sadd.s32 %s317, 1
      %p321 = scmp.eq.s32.totalorder %s31, 1
      %p322 = scmp.ne.s32.totalorder %s317, %s319
      %p323 = scmp.eq.s32.totalorder %s31, 0
      %p324 = por %p322, %p323
      %p325 = scmp.ne.s32.totalorder %s317, %s319
      %p326 = scmp.eq.s32.totalorder %s36, 1
      %p327 = por %p325, %p326
      %p328 = scmp.ne.s32.totalorder %s319, %s320
      %p329 = scmp.eq.s32.totalorder %s36, 0
      %p330 = por %p328, %p329
      %p331 = scmp.ne.s32.totalorder %s319, %s320
      %p332 = scmp.eq.s32.totalorder %s37, 1
      %p333 = por %p331, %p332
      %p335 = scmp.ne.s32.totalorder %s320, %s334
      %p336 = scmp.eq.s32.totalorder %s37, 0
      %p337 = por %p335, %p336
      %s339 = sadd.s32 %s338, 1
      %p342 = scmp.eq.s32.totalorder %s31, 1
      %p343 = scmp.ne.s32.totalorder %s338, %s340
      %p344 = scmp.eq.s32.totalorder %s31, 0
      %p345 = por %p343, %p344
      %p346 = scmp.ne.s32.totalorder %s338, %s340
      %p347 = scmp.eq.s32.totalorder %s36, 1
      %p348 = por %p346, %p347
      %p349 = scmp.ne.s32.totalorder %s340, %s341
      %p350 = scmp.eq.s32.totalorder %s36, 0
      %p351 = por %p349, %p350
      %p352 = scmp.ne.s32.totalorder %s340, %s341
      %p353 = scmp.eq.s32.totalorder %s37, 1
      %p354 = por %p352, %p353
      %p356 = scmp.ne.s32.totalorder %s341, %s355
      %p357 = scmp.eq.s32.totalorder %s37, 0
      %p358 = por %p356, %p357
      %s360 = sadd.s32 %s359, 1
      %p363 = scmp.eq.s32.totalorder %s31, 1
      %p364 = scmp.ne.s32.totalorder %s359, %s361
      %p365 = scmp.eq.s32.totalorder %s31, 0
      %p366 = por %p364, %p365
      %p367 = scmp.ne.s32.totalorder %s359, %s361
      %p368 = scmp.eq.s32.totalorder %s36, 1
      %p369 = por %p367, %p368
      %p370 = scmp.ne.s32.totalorder %s361, %s362
      %p371 = scmp.eq.s32.totalorder %s36, 0
      %p372 = por %p370, %p371
      %p373 = scmp.ne.s32.totalorder %s361, %s362
      %p374 = scmp.eq.s32.totalorder %s37, 1
      %p375 = por %p373, %p374
      %p377 = scmp.ne.s32.totalorder %s362, %s376
      %p378 = scmp.eq.s32.totalorder %s37, 0
      %p379 = por %p377, %p378
      %s381 = sadd.s32 %s380, 1
      %p384 = scmp.eq.s32.totalorder %s31, 1
      %p385 = scmp.ne.s32.totalorder %s380, %s382
      %p386 = scmp.eq.s32.totalorder %s31, 0
      %p387 = por %p385, %p386
      %p388 = scmp.ne.s32.totalorder %s380, %s382
      %p389 = scmp.eq.s32.totalorder %s36, 1
      %p390 = por %p388, %p389
      %p391 = scmp.ne.s32.totalorder %s382, %s383
      %p392 = scmp.eq.s32.totalorder %s36, 0
      %p393 = por %p391, %p392
      %p394 = scmp.ne.s32.totalorder %s382, %s383
      %p395 = scmp.eq.s32.totalorder %s37, 1
      %p396 = por %p394, %p395
      %p398 = scmp.ne.s32.totalorder %s383, %s397
      %p399 = scmp.eq.s32.totalorder %s37, 0
      %p400 = por %p398, %p399
      %s402 = sadd.s32 %s401, 1
      %p405 = scmp.eq.s32.totalorder %s31, 1
      %p406 = scmp.ne.s32.totalorder %s401, %s403
      %p407 = scmp.eq.s32.totalorder %s31, 0
      %p408 = por %p406, %p407
      %p409 = scmp.ne.s32.totalorder %s401, %s403
      %p410 = scmp.eq.s32.totalorder %s36, 1
      %p411 = por %p409, %p410
      %p412 = scmp.ne.s32.totalorder %s403, %s404
      %p413 = scmp.eq.s32.totalorder %s36, 0
      %p414 = por %p412, %p413
      %p415 = scmp.ne.s32.totalorder %s403, %s404
      %p416 = scmp.eq.s32.totalorder %s37, 1
      %p417 = por %p415, %p416
      %p419 = scmp.ne.s32.totalorder %s404, %s418
      %p420 = scmp.eq.s32.totalorder %s37, 0
      %p421 = por %p419, %p420
      %s423 = sadd.s32 %s422, 1
      %p426 = scmp.eq.s32.totalorder %s31, 1
      %p427 = scmp.ne.s32.totalorder %s422, %s424
      %p428 = scmp.eq.s32.totalorder %s31, 0
      %p429 = por %p427, %p428
      %p430 = scmp.ne.s32.totalorder %s422, %s424
      %p431 = scmp.eq.s32.totalorder %s36, 1
      %p432 = por %p430, %p431
      %p433 = scmp.ne.s32.totalorder %s424, %s425
      %p434 = scmp.eq.s32.totalorder %s36, 0
      %p435 = por %p433, %p434
      %p436 = scmp.ne.s32.totalorder %s424, %s425
      %p437 = scmp.eq.s32.totalorder %s37, 1
      %p438 = por %p436, %p437
      %p440 = scmp.ne.s32.totalorder %s425, %s439
      %p441 = scmp.eq.s32.totalorder %s37, 0
      %p442 = por %p440, %p441
      %s444 = sadd.s32 %s443, 1
      %p447 = scmp.eq.s32.totalorder %s31, 1
      %p448 = scmp.ne.s32.totalorder %s443, %s445
      %p449 = scmp.eq.s32.totalorder %s31, 0
      %p450 = por %p448, %p449
      %p451 = scmp.ne.s32.totalorder %s443, %s445
      %p452 = scmp.eq.s32.totalorder %s36, 1
      %p453 = por %p451, %p452
      %p454 = scmp.ne.s32.totalorder %s445, %s446
      %p455 = scmp.eq.s32.totalorder %s36, 0
      %p456 = por %p454, %p455
      %p457 = scmp.ne.s32.totalorder %s445, %s446
      %p458 = scmp.eq.s32.totalorder %s37, 1
      %p459 = por %p457, %p458
      %p461 = scmp.ne.s32.totalorder %s446, %s460
      %p462 = scmp.eq.s32.totalorder %s37, 0
      %p463 = por %p461, %p462
      %s465 = sadd.s32 %s464, 1
      %p468 = scmp.eq.s32.totalorder %s31, 1
      %p469 = scmp.ne.s32.totalorder %s464, %s466
      %p470 = scmp.eq.s32.totalorder %s31, 0
      %p471 = por %p469, %p470
      %p472 = scmp.ne.s32.totalorder %s464, %s466
      %p473 = scmp.eq.s32.totalorder %s36, 1
      %p474 = por %p472, %p473
      %p475 = scmp.ne.s32.totalorder %s466, %s467
      %p476 = scmp.eq.s32.totalorder %s36, 0
      %p477 = por %p475, %p476
      %p478 = scmp.ne.s32.totalorder %s466, %s467
      %p479 = scmp.eq.s32.totalorder %s37, 1
      %p480 = por %p478, %p479
      %p482 = scmp.ne.s32.totalorder %s467, %s481
      %p483 = scmp.eq.s32.totalorder %s37, 0
      %p484 = por %p482, %p483
      %s486 = sadd.s32 %s485, 1
      %p489 = scmp.eq.s32.totalorder %s31, 1
      %p490 = scmp.ne.s32.totalorder %s485, %s487
      %p491 = scmp.eq.s32.totalorder %s31, 0
      %p492 = por %p490, %p491
      %p493 = scmp.ne.s32.totalorder %s485, %s487
      %p494 = scmp.eq.s32.totalorder %s36, 1
      %p495 = por %p493, %p494
      %p496 = scmp.ne.s32.totalorder %s487, %s488
      %p497 = scmp.eq.s32.totalorder %s36, 0
      %p498 = por %p496, %p497
      %p499 = scmp.ne.s32.totalorder %s487, %s488
      %p500 = scmp.eq.s32.totalorder %s37, 1
      %p501 = por %p499, %p500
      %p503 = scmp.ne.s32.totalorder %s488, %s502
      %p504 = scmp.eq.s32.totalorder %s37, 0
      %p505 = por %p503, %p504
      %s506 = ssub.s32 %s31, %s38
      %p507 = scmp.eq.s32.totalorder %s506, 0
      %s509 = sadd.s32 %s508, 1
      %s510 = scalar_select %p507, %s508, %s509
      %p513 = pneg %p507
      %p514 = scmp.eq.s32.totalorder %s31, 1
      %p515 = por %p513, %p514
      %p516 = scmp.ne.s32.totalorder %s508, %s511
      %p517 = scmp.eq.s32.totalorder %s31, 0
      %p518 = por %p516, %p517
      %p519 = scmp.ne.s32.totalorder %s508, %s511
      %p520 = scmp.eq.s32.totalorder %s36, 1
      %p521 = por %p519, %p520
      %p522 = scmp.ne.s32.totalorder %s511, %s512
      %p523 = scmp.eq.s32.totalorder %s36, 0
      %p524 = por %p522, %p523
      %p525 = scmp.ne.s32.totalorder %s511, %s512
      %p526 = scmp.eq.s32.totalorder %s37, 1
      %p527 = por %p525, %p526
      %p529 = scmp.ne.s32.totalorder %s512, %s528
      %p530 = scmp.eq.s32.totalorder %s37, 0
      %p531 = por %p529, %p530
      %p532 = scmp.le.s32.totalorder 1, %s31
      %p533 = scmp.lt.s32.totalorder %s31, 3
      %p534 = pnand %p532, %p533
      %p535 = pneg %p534
      // Predicated region
      $region9: #{cryptor_forward.1} parent=5 // pred_check
        _
      $region10: #{cryptor_forward.1} parent=5 // pred_check_branch
        %537 = sbr.rel (%p534) target = $region12
      $region11: #{cryptor_forward.1} parent=5 // pred_region
        %s538 = ssub.s32 %s31, 1
        // Predicated region
        $region13: #{cryptor_forward.1} parent=11 // pred_check
          %p539 = pneg %p78
        $region14: #{cryptor_forward.1} parent=11 // pred_check_branch
          %541 = sbr.rel (%p539) target = $region16
        $region15: #{cryptor_forward.1} parent=11 // pred_region
          _
        $region16: #{cryptor_forward.1} parent=11 // pred_fallthru
          _
        // Predicated region
        $region17: #{cryptor_forward.1} parent=11 // pred_check
          %p542 = pneg %p99
        $region18: #{cryptor_forward.1} parent=11 // pred_check_branch
          %544 = sbr.rel (%p542) target = $region20
        $region19: #{cryptor_forward.1} parent=11 // pred_region
          _
        $region20: #{cryptor_forward.1} parent=11 // pred_fallthru
          _
        // Predicated region
        $region21: #{cryptor_forward.1} parent=11 // pred_check
          %p545 = pneg %p120
        $region22: #{cryptor_forward.1} parent=11 // pred_check_branch
          %547 = sbr.rel (%p545) target = $region24
        $region23: #{cryptor_forward.1} parent=11 // pred_region
          _
        $region24: #{cryptor_forward.1} parent=11 // pred_fallthru
          _
        // Predicated region
        $region25: #{cryptor_forward.1} parent=11 // pred_check
          %p548 = pneg %p141
        $region26: #{cryptor_forward.1} parent=11 // pred_check_branch
          %550 = sbr.rel (%p548) target = $region28
        $region27: #{cryptor_forward.1} parent=11 // pred_region
          _
        $region28: #{cryptor_forward.1} parent=11 // pred_fallthru
          _
        // Predicated region
        $region29: #{cryptor_forward.1} parent=11 // pred_check
          %p551 = pneg %p162
        $region30: #{cryptor_forward.1} parent=11 // pred_check_branch
          %553 = sbr.rel (%p551) target = $region32
        $region31: #{cryptor_forward.1} parent=11 // pred_region
          _
        $region32: #{cryptor_forward.1} parent=11 // pred_fallthru
          _
        // Predicated region
        $region33: #{cryptor_forward.1} parent=11 // pred_check
          %p554 = pneg %p183
        $region34: #{cryptor_forward.1} parent=11 // pred_check_branch
          %556 = sbr.rel (%p554) target = $region36
        $region35: #{cryptor_forward.1} parent=11 // pred_region
          _
        $region36: #{cryptor_forward.1} parent=11 // pred_fallthru
          _
        // Predicated region
        $region37: #{cryptor_forward.1} parent=11 // pred_check
          %p557 = pneg %p204
        $region38: #{cryptor_forward.1} parent=11 // pred_check_branch
          %559 = sbr.rel (%p557) target = $region40
        $region39: #{cryptor_forward.1} parent=11 // pred_region
          _
        $region40: #{cryptor_forward.1} parent=11 // pred_fallthru
          _
        // Predicated region
        $region41: #{cryptor_forward.1} parent=11 // pred_check
          %p560 = pneg %p225
        $region42: #{cryptor_forward.1} parent=11 // pred_check_branch
          %562 = sbr.rel (%p560) target = $region44
        $region43: #{cryptor_forward.1} parent=11 // pred_region
          _
        $region44: #{cryptor_forward.1} parent=11 // pred_fallthru
          _
        // Predicated region
        $region45: #{cryptor_forward.1} parent=11 // pred_check
          %p563 = pneg %p246
        $region46: #{cryptor_forward.1} parent=11 // pred_check_branch
          %565 = sbr.rel (%p563) target = $region48
        $region47: #{cryptor_forward.1} parent=11 // pred_region
          _
        $region48: #{cryptor_forward.1} parent=11 // pred_fallthru
          _
        // Predicated region
        $region49: #{cryptor_forward.1} parent=11 // pred_check
          %p566 = pneg %p267
        $region50: #{cryptor_forward.1} parent=11 // pred_check_branch
          %568 = sbr.rel (%p566) target = $region52
        $region51: #{cryptor_forward.1} parent=11 // pred_region
          _
        $region52: #{cryptor_forward.1} parent=11 // pred_fallthru
          _
        // Predicated region
        $region53: #{cryptor_forward.1} parent=11 // pred_check
          %p569 = pneg %p288
        $region54: #{cryptor_forward.1} parent=11 // pred_check_branch
          %571 = sbr.rel (%p569) target = $region56
        $region55: #{cryptor_forward.1} parent=11 // pred_region
          _
        $region56: #{cryptor_forward.1} parent=11 // pred_fallthru
          _
        // Predicated region
        $region57: #{cryptor_forward.1} parent=11 // pred_check
          %p572 = pneg %p309
        $region58: #{cryptor_forward.1} parent=11 // pred_check_branch
          %574 = sbr.rel (%p572) target = $region60
        $region59: #{cryptor_forward.1} parent=11 // pred_region
          _
        $region60: #{cryptor_forward.1} parent=11 // pred_fallthru
          _
        // Predicated region
        $region61: #{cryptor_forward.1} parent=11 // pred_check
          %p575 = pneg %p330
        $region62: #{cryptor_forward.1} parent=11 // pred_check_branch
          %577 = sbr.rel (%p575) target = $region64
        $region63: #{cryptor_forward.1} parent=11 // pred_region
          _
        $region64: #{cryptor_forward.1} parent=11 // pred_fallthru
          _
        // Predicated region
        $region65: #{cryptor_forward.1} parent=11 // pred_check
          %p578 = pneg %p351
        $region66: #{cryptor_forward.1} parent=11 // pred_check_branch
          %580 = sbr.rel (%p578) target = $region68
        $region67: #{cryptor_forward.1} parent=11 // pred_region
          _
        $region68: #{cryptor_forward.1} parent=11 // pred_fallthru
          _
        // Predicated region
        $region69: #{cryptor_forward.1} parent=11 // pred_check
          %p581 = pneg %p372
        $region70: #{cryptor_forward.1} parent=11 // pred_check_branch
          %583 = sbr.rel (%p581) target = $region72
        $region71: #{cryptor_forward.1} parent=11 // pred_region
          _
        $region72: #{cryptor_forward.1} parent=11 // pred_fallthru
          _
        // Predicated region
        $region73: #{cryptor_forward.1} parent=11 // pred_check
          %p584 = pneg %p393
        $region74: #{cryptor_forward.1} parent=11 // pred_check_branch
          %586 = sbr.rel (%p584) target = $region76
        $region75: #{cryptor_forward.1} parent=11 // pred_region
          _
        $region76: #{cryptor_forward.1} parent=11 // pred_fallthru
          _
        // Predicated region
        $region77: #{cryptor_forward.1} parent=11 // pred_check
          %p587 = pneg %p414
        $region78: #{cryptor_forward.1} parent=11 // pred_check_branch
          %589 = sbr.rel (%p587) target = $region80
        $region79: #{cryptor_forward.1} parent=11 // pred_region
          _
        $region80: #{cryptor_forward.1} parent=11 // pred_fallthru
          _
        // Predicated region
        $region81: #{cryptor_forward.1} parent=11 // pred_check
          %p590 = pneg %p435
        $region82: #{cryptor_forward.1} parent=11 // pred_check_branch
          %592 = sbr.rel (%p590) target = $region84
        $region83: #{cryptor_forward.1} parent=11 // pred_region
          _
        $region84: #{cryptor_forward.1} parent=11 // pred_fallthru
          _
        // Predicated region
        $region85: #{cryptor_forward.1} parent=11 // pred_check
          %p593 = pneg %p456
        $region86: #{cryptor_forward.1} parent=11 // pred_check_branch
          %595 = sbr.rel (%p593) target = $region88
        $region87: #{cryptor_forward.1} parent=11 // pred_region
          _
        $region88: #{cryptor_forward.1} parent=11 // pred_fallthru
          _
        // Predicated region
        $region89: #{cryptor_forward.1} parent=11 // pred_check
          %p596 = pneg %p477
        $region90: #{cryptor_forward.1} parent=11 // pred_check_branch
          %598 = sbr.rel (%p596) target = $region92
        $region91: #{cryptor_forward.1} parent=11 // pred_region
          _
        $region92: #{cryptor_forward.1} parent=11 // pred_fallthru
          _
        // Predicated region
        $region93: #{cryptor_forward.1} parent=11 // pred_check
          %p599 = pneg %p498
        $region94: #{cryptor_forward.1} parent=11 // pred_check_branch
          %601 = sbr.rel (%p599) target = $region96
        $region95: #{cryptor_forward.1} parent=11 // pred_region
          _
        $region96: #{cryptor_forward.1} parent=11 // pred_fallthru
          _
      $region12: #{cryptor_forward.1} parent=5 // pred_fallthru
        _
      %p602 = scmp.lt.s32.totalorder %s31, 2
      // Predicated region
      $region97: #{cryptor_forward.1} parent=5 // pred_check
        %p603 = pneg %p602
      $region98: #{cryptor_forward.1} parent=5 // pred_check_branch
        %605 = sbr.rel (%p603) target = $region100
      $region99: #{cryptor_forward.1} parent=5 // pred_region
        // Predicated region
        $region101: #{cryptor_forward.1} parent=99 // pred_check
          %p606 = pneg %p51
        $region102: #{cryptor_forward.1} parent=99 // pred_check_branch
          %608 = sbr.rel (%p606) target = $region104
        $region103: #{cryptor_forward.1} parent=99 // pred_region
          %p609 = scmp.lt.s32.totalorder %s31, 1
          %s610 = scalar_select %p609, %s31, 1
          %s611 = smul.addr %s610, 4
          %s612 = smul.addr %s611, 8
          %s613 = scalar_lea.vmem %s0, %s612
        $region104: #{cryptor_forward.1} parent=99 // pred_fallthru
          _
      $region100: #{cryptor_forward.1} parent=5 // pred_fallthru
        _
      %p614 = scmp.le.s32.totalorder 1, %s31
      %p615 = scmp.lt.s32.totalorder %s31, 3
      %p616 = pnand %p614, %p615
      %p617 = pneg %p616
      // Predicated region
      $region105: #{cryptor_forward.1} parent=5 // pred_check
        _
      $region106: #{cryptor_forward.1} parent=5 // pred_check_branch
        %619 = sbr.rel (%p616) target = $region108
      $region107: #{cryptor_forward.1} parent=5 // pred_region
        %s620 = ssub.s32 %s31, 1
        %p621 = scmp.lt.s32.totalorder %s36, 1
        %s622 = scalar_select %p621, %s36, 1
        %s623 = smul.addr %s622, 4
        %s624 = smul.addr %s623, 8
        %s625 = scalar_lea.vmem %s0, %s624
        %p626 = pneg %p57
        %p627 = pneg %p54
        %p628 = pneg %p78
        %p629 = pneg %p75
        %p630 = pneg %p99
        %p631 = pneg %p96
        %p632 = pneg %p120
        %p633 = pneg %p117
        %p634 = pneg %p141
        %p635 = pneg %p138
        %p636 = pneg %p162
        %p637 = pneg %p159
        %p638 = pneg %p183
        %p639 = pneg %p180
        %p640 = pneg %p204
        %p641 = pneg %p201
        %p642 = pneg %p225
        %p643 = pneg %p222
        %p644 = pneg %p246
        %p645 = pneg %p243
        %p646 = pneg %p267
        %p647 = pneg %p264
        %p648 = pneg %p288
        %p649 = pneg %p285
        %p650 = pneg %p309
        %p651 = pneg %p306
        %p652 = pneg %p330
        %p653 = pneg %p327
        %p654 = pneg %p351
        %p655 = pneg %p348
        %p656 = pneg %p372
        %p657 = pneg %p369
        %p658 = pneg %p393
        %p659 = pneg %p390
        %p660 = pneg %p414
        %p661 = pneg %p411
        %p662 = pneg %p435
        %p663 = pneg %p432
        %p664 = pneg %p456
        %p665 = pneg %p453
        %p666 = pneg %p477
        %p667 = pneg %p474
        %p668 = pneg %p498
        %p669 = pneg %p495
        %p670 = pneg %p524
        %p671 = pneg %p521
        %s672 = sand.u32 %s511, 1
        %s673 = scalar_lea.sflag [#allocation3], %s672
        %s674 = sand.u32 %s511, 1
        %s675 = smul.addr %s674, 16
        %s676 = scalar_lea.vmem [#allocation2], %s675
        %p677 = scmp.lt.s32.totalorder %s36, 1
        %s678 = scalar_select %p677, %s36, 1
        %s679 = smul.addr %s678, 4
        %s680 = smul.addr %s679, 8
        %s681 = scalar_lea.vmem %s0, %s680
        %v682 = vld [vmem:[%s681] sm:$0xff]
        %v683 = vld [vmem:[%s681 + $0x8] sm:$0xff]
        %v684 = vld [vmem:[%s681 + $0x10] sm:$0xff]
        %v685 = vld [vmem:[%s681 + $0x18] sm:$0xff]
        %v686 = vld [vmem:[%s4] sm:$0xff]
        %v687 = vld [vmem:[%s4 + $0x8] sm:$0xff]
        %v688 = vld [vmem:[%s5] sm:$0x1]
        %v690 = vperm.slane %v688, 0
        %vm692 = vcmask 130048
        %v694 = vsel %vm692, %v682, 0
        %v697 = vsel %vm692, %v683, 0
        %v700 = vsel %vm692, %v684, 0
        %v703 = vsel %vm692, %v685, 0
        %705 = vmatpush.msra.mxu0 0.0
        %706 = vmatpush.msra.mxu0 0.0
        %707 = vmatpush.msra.mxu0 0.0
        %708 = vmatpush.msra.mxu0 0.0
        %709 = vmatpush.msra.mxu0 0.0
        %710 = vmatpush.msra.mxu0 0.0
        %711 = vmatpush.msra.mxu0 0.0
        %712 = vmatpush.msra.mxu0 0.0
        %713 = vmatpush.msra.mxu0 0.0
        %714 = vmatpush.msra.mxu0 0.0
        %715 = vmatpush.msra.mxu0 0.0
        %716 = vmatpush.msra.mxu0 0.0
        %717 = vmatpush.msra.mxu0 0.0
        %718 = vmatpush.msra.mxu0 0.0
        %719 = vmatpush.msra.mxu0 %v687
        %720 = vmatpush.msra.mxu0 %v686
        %721 = vmatmul.f32.gmra.mxu0 %v694
        %v722 = vpop.f32.mrf.mxu0
        %v723 = vadd.f32 %v690, %v722
        %724 = vmatmul.f32.gmra.mxu0 %v697
        %v725 = vpop.f32.mrf.mxu0
        %v726 = vadd.f32 %v690, %v725
        %727 = vmatmul.f32.gmra.mxu0 %v700
        %v728 = vpop.f32.mrf.mxu0
        %v729 = vadd.f32 %v690, %v728
        %730 = vmatmul.f32.gmra.mxu0 %v703
        %v731 = vpop.f32.mrf.mxu0
        %v732 = vadd.f32 %v690, %v731
        %733 = vdwg.mxu0
        %v734 = vmul.f32 %v723, 1.442695
        %v735 = vpow.pop %v734
        %v736 = vmul.f32 %v726, 1.442695
        %v737 = vpow.pop %v736
        %v738 = vmul.f32 %v729, 1.442695
        %v739 = vpow.pop %v738
        %v740 = vmul.f32 %v732, 1.442695
        %v741 = vpow.pop %v740
        %v742 = vadd.f32 %v735, 1.0
        %v743 = vadd.f32 %v737, 1.0
        %v744 = vadd.f32 %v739, 1.0
        %v745 = vadd.f32 %v741, 1.0
        %v746 = vmul.f32 %v742, %v742
        %v747 = vmul.f32 %v743, %v743
        %v748 = vmul.f32 %v744, %v744
        %v749 = vmul.f32 %v745, %v745
        %v750 = vadd.f32 %v746, 1.0
        %v751 = vadd.f32 %v747, 1.0
        %v752 = vadd.f32 %v748, 1.0
        %v753 = vadd.f32 %v749, 1.0
        %v754 = vrcp.pop %v750
        %v755 = vrcp.pop %v751
        %v756 = vrcp.pop %v752
        %v757 = vrcp.pop %v753
        %v758 = vmul.f32 %v754, 2.0
        %v759 = vmul.f32 %v755, 2.0
        %v760 = vmul.f32 %v756, 2.0
        %v761 = vmul.f32 %v757, 2.0
        %v762 = vsub.f32 1.0, %v758
        %v763 = vsub.f32 1.0, %v759
        %v764 = vsub.f32 1.0, %v760
        %v765 = vsub.f32 1.0, %v761
        %v766 = vmul.f32 %v723, %v762
        %v767 = vmul.f32 %v726, %v763
        %v768 = vmul.f32 %v729, %v764
        %v769 = vmul.f32 %v732, %v765
        %v770 = vld [vmem:[%s2] sm:$0xff]
        %v771 = vld [vmem:[%s2 + $0x8] sm:$0xff]
        %v772 = vld [vmem:[%s2 + $0x10] sm:$0xff]
        %v773 = vld [vmem:[%s2 + $0x18] sm:$0xff]
        %vm774 = vcmask 261120
        %v776 = vsel %vm774, %v766, 0
        %v779 = vsel %vm774, %v767, 0
        %v782 = vsel %vm774, %v768, 0
        %v785 = vsel %vm774, %v769, 0
        %787 = vmatpush.msra.mxu0 0.0
        %788 = vmatpush.msra.mxu0 0.0
        %789 = vmatpush.msra.mxu0 0.0
        %790 = vmatpush.msra.mxu0 0.0
        %791 = vmatpush.msra.mxu0 0.0
        %792 = vmatpush.msra.mxu0 0.0
        %793 = vmatpush.msra.mxu0 0.0
        %794 = vmatpush.msra.mxu0 0.0
        %795 = vmatpush.msra.mxu0 0.0
        %796 = vmatpush.msra.mxu0 0.0
        %797 = vmatpush.msra.mxu0 0.0
        %798 = vmatpush.msra.mxu0 0.0
        %799 = vmatpush.msra.mxu0 %v773
        %800 = vmatpush.msra.mxu0 %v772
        %801 = vmatpush.msra.mxu0 %v771
        %802 = vmatpush.msra.mxu0 %v770
        %803 = vmatmul.f32.gmra.mxu0 %v776
        %v804 = vpop.f32.mrf.mxu0
        %v805 = vadd.f32 0.0, %v804
        %806 = vmatmul.f32.gmra.mxu0 %v779
        %v807 = vpop.f32.mrf.mxu0
        %v808 = vadd.f32 0.0, %v807
        %809 = vmatmul.f32.gmra.mxu0 %v782
        %v810 = vpop.f32.mrf.mxu0
        %v811 = vadd.f32 0.0, %v810
        %812 = vmatmul.f32.gmra.mxu0 %v785
        %v813 = vpop.f32.mrf.mxu0
        %v814 = vadd.f32 0.0, %v813
        %815 = vdwg.mxu0
        %s816 = scalar_lea.vmem %s2, 32
        %v817 = vld [vmem:[%s816] sm:$0xff]
        %v818 = vld [vmem:[%s816 + $0x8] sm:$0xff]
        %v819 = vld [vmem:[%s816 + $0x10] sm:$0xff]
        %v820 = vld [vmem:[%s816 + $0x18] sm:$0xff]
        %821 = vmatpush.msra.mxu0 0.0
        %822 = vmatpush.msra.mxu0 0.0
        %823 = vmatpush.msra.mxu0 0.0
        %824 = vmatpush.msra.mxu0 0.0
        %825 = vmatpush.msra.mxu0 0.0
        %826 = vmatpush.msra.mxu0 0.0
        %827 = vmatpush.msra.mxu0 0.0
        %828 = vmatpush.msra.mxu0 0.0
        %829 = vmatpush.msra.mxu0 0.0
        %830 = vmatpush.msra.mxu0 0.0
        %831 = vmatpush.msra.mxu0 0.0
        %832 = vmatpush.msra.mxu0 0.0
        %833 = vmatpush.msra.mxu0 %v820
        %834 = vmatpush.msra.mxu0 %v819
        %835 = vmatpush.msra.mxu0 %v818
        %836 = vmatpush.msra.mxu0 %v817
        %837 = vmatmul.f32.gmra.mxu0 %v776
        %v838 = vpop.f32.mrf.mxu0
        %v839 = vadd.f32 0.0, %v838
        %840 = vmatmul.f32.gmra.mxu0 %v779
        %v841 = vpop.f32.mrf.mxu0
        %v842 = vadd.f32 0.0, %v841
        %843 = vmatmul.f32.gmra.mxu0 %v782
        %v844 = vpop.f32.mrf.mxu0
        %v845 = vadd.f32 0.0, %v844
        %846 = vmatmul.f32.gmra.mxu0 %v785
        %v847 = vpop.f32.mrf.mxu0
        %v848 = vadd.f32 0.0, %v847
        %849 = vdwg.mxu0
        %s850 = scalar_lea.vmem %s2, 64
        %v851 = vld [vmem:[%s850] sm:$0xff]
        %v852 = vld [vmem:[%s850 + $0x8] sm:$0xff]
        %v853 = vld [vmem:[%s850 + $0x10] sm:$0xff]
        %v854 = vld [vmem:[%s850 + $0x18] sm:$0xff]
        %855 = vmatpush.msra.mxu0 0.0
        %856 = vmatpush.msra.mxu0 0.0
        %857 = vmatpush.msra.mxu0 0.0
        %858 = vmatpush.msra.mxu0 0.0
        %859 = vmatpush.msra.mxu0 0.0
        %860 = vmatpush.msra.mxu0 0.0
        %861 = vmatpush.msra.mxu0 0.0
        %862 = vmatpush.msra.mxu0 0.0
        %863 = vmatpush.msra.mxu0 0.0
        %864 = vmatpush.msra.mxu0 0.0
        %865 = vmatpush.msra.mxu0 0.0
        %866 = vmatpush.msra.mxu0 0.0
        %867 = vmatpush.msra.mxu0 %v854
        %868 = vmatpush.msra.mxu0 %v853
        %869 = vmatpush.msra.mxu0 %v852
        %870 = vmatpush.msra.mxu0 %v851
        %871 = vmatmul.f32.gmra.mxu0 %v776
        %v872 = vpop.f32.mrf.mxu0
        %v873 = vadd.f32 0.0, %v872
        %874 = vmatmul.f32.gmra.mxu0 %v779
        %v875 = vpop.f32.mrf.mxu0
        %v876 = vadd.f32 0.0, %v875
        %877 = vmatmul.f32.gmra.mxu0 %v782
        %v878 = vpop.f32.mrf.mxu0
        %v879 = vadd.f32 0.0, %v878
        %880 = vmatmul.f32.gmra.mxu0 %v785
        %v881 = vpop.f32.mrf.mxu0
        %v882 = vadd.f32 0.0, %v881
        %883 = vdwg.mxu0
        %s884 = scalar_lea.vmem %s2, 96
        %v885 = vld [vmem:[%s884] sm:$0xff]
        %v886 = vld [vmem:[%s884 + $0x8] sm:$0xff]
        %v887 = vld [vmem:[%s884 + $0x10] sm:$0xff]
        %v888 = vld [vmem:[%s884 + $0x18] sm:$0xff]
        %889 = vmatpush.msra.mxu0 0.0
        %890 = vmatpush.msra.mxu0 0.0
        %891 = vmatpush.msra.mxu0 0.0
        %892 = vmatpush.msra.mxu0 0.0
        %893 = vmatpush.msra.mxu0 0.0
        %894 = vmatpush.msra.mxu0 0.0
        %895 = vmatpush.msra.mxu0 0.0
        %896 = vmatpush.msra.mxu0 0.0
        %897 = vmatpush.msra.mxu0 0.0
        %898 = vmatpush.msra.mxu0 0.0
        %899 = vmatpush.msra.mxu0 0.0
        %900 = vmatpush.msra.mxu0 0.0
        %901 = vmatpush.msra.mxu0 %v888
        %902 = vmatpush.msra.mxu0 %v887
        %903 = vmatpush.msra.mxu0 %v886
        %904 = vmatpush.msra.mxu0 %v885
        %905 = vmatmul.f32.gmra.mxu0 %v776
        %v906 = vpop.f32.mrf.mxu0
        %v907 = vadd.f32 0.0, %v906
        %908 = vmatmul.f32.gmra.mxu0 %v779
        %v909 = vpop.f32.mrf.mxu0
        %v910 = vadd.f32 0.0, %v909
        %911 = vmatmul.f32.gmra.mxu0 %v782
        %v912 = vpop.f32.mrf.mxu0
        %v913 = vadd.f32 0.0, %v912
        %914 = vmatmul.f32.gmra.mxu0 %v785
        %v915 = vpop.f32.mrf.mxu0
        %v916 = vadd.f32 0.0, %v915
        %917 = vdwg.mxu0
        %s918 = scalar_lea.vmem %s2, 128
        %v919 = vld [vmem:[%s918] sm:$0xff]
        %v920 = vld [vmem:[%s918 + $0x8] sm:$0xff]
        %v921 = vld [vmem:[%s918 + $0x10] sm:$0xff]
        %v922 = vld [vmem:[%s918 + $0x18] sm:$0xff]
        %923 = vmatpush.msra.mxu0 0.0
        %924 = vmatpush.msra.mxu0 0.0
        %925 = vmatpush.msra.mxu0 0.0
        %926 = vmatpush.msra.mxu0 0.0
        %927 = vmatpush.msra.mxu0 0.0
        %928 = vmatpush.msra.mxu0 0.0
        %929 = vmatpush.msra.mxu0 0.0
        %930 = vmatpush.msra.mxu0 0.0
        %931 = vmatpush.msra.mxu0 0.0
        %932 = vmatpush.msra.mxu0 0.0
        %933 = vmatpush.msra.mxu0 0.0
        %934 = vmatpush.msra.mxu0 0.0
        %935 = vmatpush.msra.mxu0 %v922
        %936 = vmatpush.msra.mxu0 %v921
        %937 = vmatpush.msra.mxu0 %v920
        %938 = vmatpush.msra.mxu0 %v919
        %939 = vmatmul.f32.gmra.mxu0 %v776
        %v940 = vpop.f32.mrf.mxu0
        %v941 = vadd.f32 0.0, %v940
        %942 = vmatmul.f32.gmra.mxu0 %v779
        %v943 = vpop.f32.mrf.mxu0
        %v944 = vadd.f32 0.0, %v943
        %945 = vmatmul.f32.gmra.mxu0 %v782
        %v946 = vpop.f32.mrf.mxu0
        %v947 = vadd.f32 0.0, %v946
        %948 = vmatmul.f32.gmra.mxu0 %v785
        %v949 = vpop.f32.mrf.mxu0
        %v950 = vadd.f32 0.0, %v949
        %951 = vdwg.mxu0
        %v952 = vld [vmem:[%s1] sm:$0xff]
        %v953 = vld [vmem:[%s1 + $0x8] sm:$0xff]
        %v954 = vld [vmem:[%s1 + $0x10] sm:$0xff]
        %v955 = vld [vmem:[%s1 + $0x18] sm:$0xff]
        %v956 = vld [vmem:[%s1 + $0x20] sm:$0xff]
        %v957 = vld [vmem:[%s1 + $0x28] sm:$0xff]
        %v958 = vld [vmem:[%s1 + $0x30] sm:$0xff]
        %v959 = vld [vmem:[%s1 + $0x38] sm:$0xff]
        %v961 = vsel %vm774, %v953, 0
        %v964 = vsel %vm774, %v955, 0
        %v967 = vsel %vm774, %v957, 0
        %v970 = vsel %vm774, %v959, 0
        %972 = vmatpush.msra.mxu0 %v916
        %973 = vmatpush.msra.mxu0 %v913
        %974 = vmatpush.msra.mxu0 %v910
        %975 = vmatpush.msra.mxu0 %v907
        %976 = vmatpush.msra.mxu0 %v882
        %977 = vmatpush.msra.mxu0 %v879
        %978 = vmatpush.msra.mxu0 %v876
        %979 = vmatpush.msra.mxu0 %v873
        %980 = vmatpush.msra.mxu0 %v848
        %981 = vmatpush.msra.mxu0 %v845
        %982 = vmatpush.msra.mxu0 %v842
        %983 = vmatpush.msra.mxu0 %v839
        %984 = vmatpush.msra.mxu0 %v814
        %985 = vmatpush.msra.mxu0 %v811
        %986 = vmatpush.msra.mxu0 %v808
        %987 = vmatpush.msra.mxu0 %v805
        %988 = vmatmul.f32.gmra.mxu0 %v952
        %v989 = vpop.f32.mrf.mxu0
        %v990 = vadd.f32 0.0, %v989
        %991 = vmatmul.f32.gmra.mxu0 %v954
        %v992 = vpop.f32.mrf.mxu0
        %v993 = vadd.f32 0.0, %v992
        %994 = vmatmul.f32.gmra.mxu0 %v956
        %v995 = vpop.f32.mrf.mxu0
        %v996 = vadd.f32 0.0, %v995
        %997 = vmatmul.f32.gmra.mxu0 %v958
        %v998 = vpop.f32.mrf.mxu0
        %v999 = vadd.f32 0.0, %v998
        %1000 = vdwg.mxu0
        %1001 = vmatpush.msra.mxu0 0.0
        %1002 = vmatpush.msra.mxu0 0.0
        %1003 = vmatpush.msra.mxu0 0.0
        %1004 = vmatpush.msra.mxu0 0.0
        %1005 = vmatpush.msra.mxu0 0.0
        %1006 = vmatpush.msra.mxu0 0.0
        %1007 = vmatpush.msra.mxu0 0.0
        %1008 = vmatpush.msra.mxu0 0.0
        %1009 = vmatpush.msra.mxu0 0.0
        %1010 = vmatpush.msra.mxu0 0.0
        %1011 = vmatpush.msra.mxu0 0.0
        %1012 = vmatpush.msra.mxu0 0.0
        %1013 = vmatpush.msra.mxu0 %v950
        %1014 = vmatpush.msra.mxu0 %v947
        %1015 = vmatpush.msra.mxu0 %v944
        %1016 = vmatpush.msra.mxu0 %v941
        %1017 = vmatmul.f32.gmra.mxu0 %v961
        %v1018 = vpop.f32.mrf.mxu0
        %v1019 = vadd.f32 %v990, %v1018
        %1020 = vmatmul.f32.gmra.mxu0 %v964
        %v1021 = vpop.f32.mrf.mxu0
        %v1022 = vadd.f32 %v993, %v1021
        %1023 = vmatmul.f32.gmra.mxu0 %v967
        %v1024 = vpop.f32.mrf.mxu0
        %v1025 = vadd.f32 %v996, %v1024
        %1026 = vmatmul.f32.gmra.mxu0 %v970
        %v1027 = vpop.f32.mrf.mxu0
        %v1028 = vadd.f32 %v999, %v1027
        %1029 = vdwg.mxu0
        %v1030 = vmul.f32 %v1019, 1.442695
        %v1031 = vpow.pop %v1030
        %v1032 = vmul.f32 %v1022, 1.442695
        %v1033 = vpow.pop %v1032
        %v1034 = vmul.f32 %v1025, 1.442695
        %v1035 = vpow.pop %v1034
        %v1036 = vmul.f32 %v1028, 1.442695
        %v1037 = vpow.pop %v1036
        %v1038 = vadd.f32 %v1031, 1.0
        %v1039 = vadd.f32 %v1033, 1.0
        %v1040 = vadd.f32 %v1035, 1.0
        %v1041 = vadd.f32 %v1037, 1.0
        %v1042 = vmul.f32 %v1038, %v1038
        %v1043 = vmul.f32 %v1039, %v1039
        %v1044 = vmul.f32 %v1040, %v1040
        %v1045 = vmul.f32 %v1041, %v1041
        %v1046 = vadd.f32 %v1042, 1.0
        %v1047 = vadd.f32 %v1043, 1.0
        %v1048 = vadd.f32 %v1044, 1.0
        %v1049 = vadd.f32 %v1045, 1.0
        %v1050 = vrcp.pop %v1046
        %v1051 = vrcp.pop %v1047
        %v1052 = vrcp.pop %v1048
        %v1053 = vrcp.pop %v1049
        %v1054 = vmul.f32 %v1050, 2.0
        %v1055 = vmul.f32 %v1051, 2.0
        %v1056 = vmul.f32 %v1052, 2.0
        %v1057 = vmul.f32 %v1053, 2.0
        %v1058 = vsub.f32 1.0, %v1054
        %v1059 = vsub.f32 1.0, %v1055
        %v1060 = vsub.f32 1.0, %v1056
        %v1061 = vsub.f32 1.0, %v1057
        %v1062 = vmul.f32 %v1019, %v1058
        %v1063 = vmul.f32 %v1022, %v1059
        %v1064 = vmul.f32 %v1025, %v1060
        %v1065 = vmul.f32 %v1028, %v1061
        %v1066 = vld [vmem:[%s3] sm:$0xff]
        %v1067 = vld [vmem:[%s3 + $0x8] sm:$0xff]
        %v1068 = vld [vmem:[%s3 + $0x10] sm:$0xff]
        %v1069 = vld [vmem:[%s3 + $0x18] sm:$0xff]
        %v1070 = vld [vmem:[%s3 + $0x20] sm:$0xff]
        %v1071 = vld [vmem:[%s3 + $0x28] sm:$0xff]
        %v1072 = vld [vmem:[%s3 + $0x30] sm:$0xff]
        %v1073 = vld [vmem:[%s3 + $0x38] sm:$0xff]
        %v1074 = vld [vmem:[%s3 + $0x40] sm:$0xff]
        %v1075 = vld [vmem:[%s3 + $0x48] sm:$0xff]
        %v1076 = vld [vmem:[%s3 + $0x50] sm:$0xff]
        %v1077 = vld [vmem:[%s3 + $0x58] sm:$0xff]
        %v1078 = vld [vmem:[%s3 + $0x60] sm:$0xff]
        %v1079 = vld [vmem:[%s3 + $0x68] sm:$0xff]
        %v1080 = vld [vmem:[%s3 + $0x70] sm:$0xff]
        %v1081 = vld [vmem:[%s3 + $0x78] sm:$0xff]
        %v1082 = vld [vmem:[%s6] sm:$0xff]
        %v1083 = vld [vmem:[%s6 + $0x8] sm:$0xff]
        %v1084 = vld [vmem:[%s6 + $0x10] sm:$0xff]
        %v1085 = vld [vmem:[%s6 + $0x18] sm:$0xff]
        %v1086 = vld [vmem:[%s7] sm:$0x1]
        %v1088 = vperm.slane %v1086, 0
        %v1091 = vsel %vm774, %v1062, 0
        %v1094 = vsel %vm774, %v1063, 0
        %v1097 = vsel %vm774, %v1064, 0
        %v1100 = vsel %vm774, %v1065, 0
        %1102 = vmatpush.msra.mxu0 0.0
        %1103 = vmatpush.msra.mxu0 0.0
        %1104 = vmatpush.msra.mxu0 0.0
        %1105 = vmatpush.msra.mxu0 0.0
        %1106 = vmatpush.msra.mxu0 0.0
        %1107 = vmatpush.msra.mxu0 0.0
        %1108 = vmatpush.msra.mxu0 0.0
        %1109 = vmatpush.msra.mxu0 0.0
        %1110 = vmatpush.msra.mxu0 0.0
        %1111 = vmatpush.msra.mxu0 0.0
        %1112 = vmatpush.msra.mxu0 0.0
        %1113 = vmatpush.msra.mxu0 0.0
        %1114 = vmatpush.msra.mxu0 %v1085
        %1115 = vmatpush.msra.mxu0 %v1084
        %1116 = vmatpush.msra.mxu0 %v1083
        %1117 = vmatpush.msra.mxu0 %v1082
        %1118 = vmatmul.f32.gmra.mxu0 %v1091
        %v1119 = vpop.f32.mrf.mxu0
        %v1120 = vadd.f32 %v1088, %v1119
        %1121 = vmatmul.f32.gmra.mxu0 %v1094
        %v1122 = vpop.f32.mrf.mxu0
        %v1123 = vadd.f32 %v1088, %v1122
        %1124 = vmatmul.f32.gmra.mxu0 %v1097
        %v1125 = vpop.f32.mrf.mxu0
        %v1126 = vadd.f32 %v1088, %v1125
        %1127 = vmatmul.f32.gmra.mxu0 %v1100
        %v1128 = vpop.f32.mrf.mxu0
        %v1129 = vadd.f32 %v1088, %v1128
        %1130 = vdwg.mxu0
        %1135 = vrot.lane.b32.xlu0 %v1120, 96
        %v1136 = vpop.permute.xlu0 %1135
        %1137 = vrot.lane.b32.xlu0 %v1123, 96
        %v1138 = vpop.permute.xlu0 %1137
        %1139 = vrot.lane.b32.xlu0 %v1126, 96
        %v1140 = vpop.permute.xlu0 %1139
        %1141 = vrot.lane.b32.xlu0 %v1129, 96
        %v1142 = vpop.permute.xlu0 %1141
        %vm1143 = vcmask 64512
        %v1144 = vsel %vm1143, %v1120, 0
        %v1146 = vsel %vm1143, %v1123, 0
        %v1148 = vsel %vm1143, %v1126, 0
        %v1150 = vsel %vm1143, %v1129, 0
        %v1152 = vsel %vm1143, %v1136, 0
        %v1154 = vsel %vm1143, %v1138, 0
        %v1156 = vsel %vm1143, %v1140, 0
        %v1158 = vsel %vm1143, %v1142, 0
        %1160 = vmatpush.xpose.msra.mxu0 0.0
        %1161 = vmatpush.xpose.msra.mxu0 0.0
        %1162 = vmatpush.xpose.msra.mxu0 0.0
        %1163 = vmatpush.xpose.msra.mxu0 0.0
        %1164 = vmatpush.xpose.msra.mxu0 0.0
        %1165 = vmatpush.xpose.msra.mxu0 0.0
        %1166 = vmatpush.xpose.msra.mxu0 0.0
        %1167 = vmatpush.xpose.msra.mxu0 0.0
        %1168 = vmatpush.xpose.msra.mxu0 0.0
        %1169 = vmatpush.xpose.msra.mxu0 0.0
        %1170 = vmatpush.xpose.msra.mxu0 0.0
        %1171 = vmatpush.xpose.msra.mxu0 0.0
        %1172 = vmatpush.xpose.msra.mxu0 %v1158
        %1173 = vmatpush.xpose.msra.mxu0 %v1156
        %1174 = vmatpush.xpose.msra.mxu0 %v1154
        %1175 = vmatpush.xpose.msra.mxu0 %v1152
        %1176 = vmatmul.f32.gmra.mxu0 %v1144
        %v1177 = vpop.f32.mrf.mxu0
        %v1178 = vadd.f32 0.0, %v1177
        %1179 = vmatmul.f32.gmra.mxu0 %v1146
        %v1180 = vpop.f32.mrf.mxu0
        %v1181 = vadd.f32 0.0, %v1180
        %1182 = vmatmul.f32.gmra.mxu0 %v1148
        %v1183 = vpop.f32.mrf.mxu0
        %v1184 = vadd.f32 0.0, %v1183
        %1185 = vmatmul.f32.gmra.mxu0 %v1150
        %v1186 = vpop.f32.mrf.mxu0
        %v1187 = vadd.f32 0.0, %v1186
        %1188 = vdwg.mxu0
        %1189 = vrot.lane.b32.xlu0 %v1120, 120
        %v1190 = vpop.permute.xlu0 %1189
        %1191 = vrot.lane.b32.xlu0 %v1123, 120
        %v1192 = vpop.permute.xlu0 %1191
        %1193 = vrot.lane.b32.xlu0 %v1126, 120
        %v1194 = vpop.permute.xlu0 %1193
        %1195 = vrot.lane.b32.xlu0 %v1129, 120
        %v1196 = vpop.permute.xlu0 %1195
        %1197 = vrot.lane.b32.xlu0 %v1120, 88
        %v1198 = vpop.permute.xlu0 %1197
        %1199 = vrot.lane.b32.xlu0 %v1123, 88
        %v1200 = vpop.permute.xlu0 %1199
        %1201 = vrot.lane.b32.xlu0 %v1126, 88
        %v1202 = vpop.permute.xlu0 %1201
        %1203 = vrot.lane.b32.xlu0 %v1129, 88
        %v1204 = vpop.permute.xlu0 %1203
        %v1205 = vsel %vm1143, %v1190, 0
        %v1207 = vsel %vm1143, %v1192, 0
        %v1209 = vsel %vm1143, %v1194, 0
        %v1211 = vsel %vm1143, %v1196, 0
        %v1213 = vsel %vm1143, %v1198, 0
        %v1215 = vsel %vm1143, %v1200, 0
        %v1217 = vsel %vm1143, %v1202, 0
        %v1219 = vsel %vm1143, %v1204, 0
        %1221 = vmatpush.xpose.msra.mxu0 0.0
        %1222 = vmatpush.xpose.msra.mxu0 0.0
        %1223 = vmatpush.xpose.msra.mxu0 0.0
        %1224 = vmatpush.xpose.msra.mxu0 0.0
        %1225 = vmatpush.xpose.msra.mxu0 0.0
        %1226 = vmatpush.xpose.msra.mxu0 0.0
        %1227 = vmatpush.xpose.msra.mxu0 0.0
        %1228 = vmatpush.xpose.msra.mxu0 0.0
        %1229 = vmatpush.xpose.msra.mxu0 0.0
        %1230 = vmatpush.xpose.msra.mxu0 0.0
        %1231 = vmatpush.xpose.msra.mxu0 0.0
        %1232 = vmatpush.xpose.msra.mxu0 0.0
        %1233 = vmatpush.xpose.msra.mxu0 %v1219
        %1234 = vmatpush.xpose.msra.mxu0 %v1217
        %1235 = vmatpush.xpose.msra.mxu0 %v1215
        %1236 = vmatpush.xpose.msra.mxu0 %v1213
        %1237 = vmatmul.f32.gmra.mxu0 %v1205
        %v1238 = vpop.f32.mrf.mxu0
        %v1239 = vadd.f32 0.0, %v1238
        %1240 = vmatmul.f32.gmra.mxu0 %v1207
        %v1241 = vpop.f32.mrf.mxu0
        %v1242 = vadd.f32 0.0, %v1241
        %1243 = vmatmul.f32.gmra.mxu0 %v1209
        %v1244 = vpop.f32.mrf.mxu0
        %v1245 = vadd.f32 0.0, %v1244
        %1246 = vmatmul.f32.gmra.mxu0 %v1211
        %v1247 = vpop.f32.mrf.mxu0
        %v1248 = vadd.f32 0.0, %v1247
        %1249 = vdwg.mxu0
        %1250 = vrot.lane.b32.xlu0 %v1120, 112
        %v1251 = vpop.permute.xlu0 %1250
        %1252 = vrot.lane.b32.xlu0 %v1123, 112
        %v1253 = vpop.permute.xlu0 %1252
        %1254 = vrot.lane.b32.xlu0 %v1126, 112
        %v1255 = vpop.permute.xlu0 %1254
        %1256 = vrot.lane.b32.xlu0 %v1129, 112
        %v1257 = vpop.permute.xlu0 %1256
        %1258 = vrot.lane.b32.xlu0 %v1120, 80
        %v1259 = vpop.permute.xlu0 %1258
        %1260 = vrot.lane.b32.xlu0 %v1123, 80
        %v1261 = vpop.permute.xlu0 %1260
        %1262 = vrot.lane.b32.xlu0 %v1126, 80
        %v1263 = vpop.permute.xlu0 %1262
        %1264 = vrot.lane.b32.xlu0 %v1129, 80
        %v1265 = vpop.permute.xlu0 %1264
        %v1266 = vsel %vm1143, %v1251, 0
        %v1268 = vsel %vm1143, %v1253, 0
        %v1270 = vsel %vm1143, %v1255, 0
        %v1272 = vsel %vm1143, %v1257, 0
        %v1274 = vsel %vm1143, %v1259, 0
        %v1276 = vsel %vm1143, %v1261, 0
        %v1278 = vsel %vm1143, %v1263, 0
        %v1280 = vsel %vm1143, %v1265, 0
        %1282 = vmatpush.xpose.msra.mxu0 0.0
        %1283 = vmatpush.xpose.msra.mxu0 0.0
        %1284 = vmatpush.xpose.msra.mxu0 0.0
        %1285 = vmatpush.xpose.msra.mxu0 0.0
        %1286 = vmatpush.xpose.msra.mxu0 0.0
        %1287 = vmatpush.xpose.msra.mxu0 0.0
        %1288 = vmatpush.xpose.msra.mxu0 0.0
        %1289 = vmatpush.xpose.msra.mxu0 0.0
        %1290 = vmatpush.xpose.msra.mxu0 0.0
        %1291 = vmatpush.xpose.msra.mxu0 0.0
        %1292 = vmatpush.xpose.msra.mxu0 0.0
        %1293 = vmatpush.xpose.msra.mxu0 0.0
        %1294 = vmatpush.xpose.msra.mxu0 %v1280
        %1295 = vmatpush.xpose.msra.mxu0 %v1278
        %1296 = vmatpush.xpose.msra.mxu0 %v1276
        %1297 = vmatpush.xpose.msra.mxu0 %v1274
        %1298 = vmatmul.f32.gmra.mxu0 %v1266
        %v1299 = vpop.f32.mrf.mxu0
        %v1300 = vadd.f32 0.0, %v1299
        %1301 = vmatmul.f32.gmra.mxu0 %v1268
        %v1302 = vpop.f32.mrf.mxu0
        %v1303 = vadd.f32 0.0, %v1302
        %1304 = vmatmul.f32.gmra.mxu0 %v1270
        %v1305 = vpop.f32.mrf.mxu0
        %v1306 = vadd.f32 0.0, %v1305
        %1307 = vmatmul.f32.gmra.mxu0 %v1272
        %v1308 = vpop.f32.mrf.mxu0
        %v1309 = vadd.f32 0.0, %v1308
        %1310 = vdwg.mxu0
        %1311 = vrot.lane.b32.xlu0 %v1120, 104
        %v1312 = vpop.permute.xlu0 %1311
        %1313 = vrot.lane.b32.xlu0 %v1123, 104
        %v1314 = vpop.permute.xlu0 %1313
        %1315 = vrot.lane.b32.xlu0 %v1126, 104
        %v1316 = vpop.permute.xlu0 %1315
        %1317 = vrot.lane.b32.xlu0 %v1129, 104
        %v1318 = vpop.permute.xlu0 %1317
        %1319 = vrot.lane.b32.xlu0 %v1120, 72
        %v1320 = vpop.permute.xlu0 %1319
        %1321 = vrot.lane.b32.xlu0 %v1123, 72
        %v1322 = vpop.permute.xlu0 %1321
        %1323 = vrot.lane.b32.xlu0 %v1126, 72
        %v1324 = vpop.permute.xlu0 %1323
        %1325 = vrot.lane.b32.xlu0 %v1129, 72
        %v1326 = vpop.permute.xlu0 %1325
        %v1327 = vsel %vm1143, %v1312, 0
        %v1329 = vsel %vm1143, %v1314, 0
        %v1331 = vsel %vm1143, %v1316, 0
        %v1333 = vsel %vm1143, %v1318, 0
        %v1335 = vsel %vm1143, %v1320, 0
        %v1337 = vsel %vm1143, %v1322, 0
        %v1339 = vsel %vm1143, %v1324, 0
        %v1341 = vsel %vm1143, %v1326, 0
        %1343 = vmatpush.xpose.msra.mxu0 0.0
        %1344 = vmatpush.xpose.msra.mxu0 0.0
        %1345 = vmatpush.xpose.msra.mxu0 0.0
        %1346 = vmatpush.xpose.msra.mxu0 0.0
        %1347 = vmatpush.xpose.msra.mxu0 0.0
        %1348 = vmatpush.xpose.msra.mxu0 0.0
        %1349 = vmatpush.xpose.msra.mxu0 0.0
        %1350 = vmatpush.xpose.msra.mxu0 0.0
        %1351 = vmatpush.xpose.msra.mxu0 0.0
        %1352 = vmatpush.xpose.msra.mxu0 0.0
        %1353 = vmatpush.xpose.msra.mxu0 0.0
        %1354 = vmatpush.xpose.msra.mxu0 0.0
        %1355 = vmatpush.xpose.msra.mxu0 %v1341
        %1356 = vmatpush.xpose.msra.mxu0 %v1339
        %1357 = vmatpush.xpose.msra.mxu0 %v1337
        %1358 = vmatpush.xpose.msra.mxu0 %v1335
        %1359 = vmatmul.f32.gmra.mxu0 %v1327
        %v1360 = vpop.f32.mrf.mxu0
        %v1361 = vadd.f32 0.0, %v1360
        %1362 = vmatmul.f32.gmra.mxu0 %v1329
        %v1363 = vpop.f32.mrf.mxu0
        %v1364 = vadd.f32 0.0, %v1363
        %1365 = vmatmul.f32.gmra.mxu0 %v1331
        %v1366 = vpop.f32.mrf.mxu0
        %v1367 = vadd.f32 0.0, %v1366
        %1368 = vmatmul.f32.gmra.mxu0 %v1333
        %v1369 = vpop.f32.mrf.mxu0
        %v1370 = vadd.f32 0.0, %v1369
        %1371 = vdwg.mxu0
        %v1372 = vmul.f32 %v1178, 0.35355338
        %v1373 = vmul.f32 %v1181, 0.35355338
        %v1374 = vmul.f32 %v1184, 0.35355338
        %v1375 = vmul.f32 %v1187, 0.35355338
        %v1376 = vmul.f32 %v1239, 0.35355338
        %v1377 = vmul.f32 %v1242, 0.35355338
        %v1378 = vmul.f32 %v1245, 0.35355338
        %v1379 = vmul.f32 %v1248, 0.35355338
        %v1380 = vmul.f32 %v1300, 0.35355338
        %v1381 = vmul.f32 %v1303, 0.35355338
        %v1382 = vmul.f32 %v1306, 0.35355338
        %v1383 = vmul.f32 %v1309, 0.35355338
        %v1384 = vmul.f32 %v1361, 0.35355338
        %v1385 = vmul.f32 %v1364, 0.35355338
        %v1386 = vmul.f32 %v1367, 0.35355338
        %v1387 = vmul.f32 %v1370, 0.35355338
        %v1388 = vadd.f32 %v1372, %v1066
        %v1389 = vadd.f32 %v1373, %v1067
        %v1390 = vadd.f32 %v1374, %v1068
        %v1391 = vadd.f32 %v1375, %v1069
        %v1392 = vadd.f32 %v1376, %v1070
        %v1393 = vadd.f32 %v1377, %v1071
        %v1394 = vadd.f32 %v1378, %v1072
        %v1395 = vadd.f32 %v1379, %v1073
        %v1396 = vadd.f32 %v1380, %v1074
        %v1397 = vadd.f32 %v1381, %v1075
        %v1398 = vadd.f32 %v1382, %v1076
        %v1399 = vadd.f32 %v1383, %v1077
        %v1400 = vadd.f32 %v1384, %v1078
        %v1401 = vadd.f32 %v1385, %v1079
        %v1402 = vadd.f32 %v1386, %v1080
        %v1403 = vadd.f32 %v1387, %v1081
        %v1404 = vsel %vm774, %v1388, -inf
        %1405 = vmax.xlane.f32.xlu0 %v1404
        %v1406 = vpop.xlane.xlu0 %1405
        %v1407 = vsel %vm774, %v1389, -inf
        %1408 = vmax.xlane.f32.xlu0 %v1407
        %v1409 = vpop.xlane.xlu0 %1408
        %v1410 = vsel %vm774, %v1390, -inf
        %1411 = vmax.xlane.f32.xlu0 %v1410
        %v1412 = vpop.xlane.xlu0 %1411
        %v1413 = vsel %vm774, %v1391, -inf
        %1414 = vmax.xlane.f32.xlu0 %v1413
        %v1415 = vpop.xlane.xlu0 %1414
        %v1416 = vsel %vm774, %v1392, -inf
        %1417 = vmax.xlane.f32.xlu0 %v1416
        %v1418 = vpop.xlane.xlu0 %1417
        %v1419 = vsel %vm774, %v1393, -inf
        %1420 = vmax.xlane.f32.xlu0 %v1419
        %v1421 = vpop.xlane.xlu0 %1420
        %v1422 = vsel %vm774, %v1394, -inf
        %1423 = vmax.xlane.f32.xlu0 %v1422
        %v1424 = vpop.xlane.xlu0 %1423
        %v1425 = vsel %vm774, %v1395, -inf
        %1426 = vmax.xlane.f32.xlu0 %v1425
        %v1427 = vpop.xlane.xlu0 %1426
        %v1428 = vsel %vm774, %v1396, -inf
        %1429 = vmax.xlane.f32.xlu0 %v1428
        %v1430 = vpop.xlane.xlu0 %1429
        %v1431 = vsel %vm774, %v1397, -inf
        %1432 = vmax.xlane.f32.xlu0 %v1431
        %v1433 = vpop.xlane.xlu0 %1432
        %v1434 = vsel %vm774, %v1398, -inf
        %1435 = vmax.xlane.f32.xlu0 %v1434
        %v1436 = vpop.xlane.xlu0 %1435
        %v1437 = vsel %vm774, %v1399, -inf
        %1438 = vmax.xlane.f32.xlu0 %v1437
        %v1439 = vpop.xlane.xlu0 %1438
        %v1440 = vsel %vm774, %v1400, -inf
        %1441 = vmax.xlane.f32.xlu0 %v1440
        %v1442 = vpop.xlane.xlu0 %1441
        %v1443 = vsel %vm774, %v1401, -inf
        %1444 = vmax.xlane.f32.xlu0 %v1443
        %v1445 = vpop.xlane.xlu0 %1444
        %v1446 = vsel %vm774, %v1402, -inf
        %1447 = vmax.xlane.f32.xlu0 %v1446
        %v1448 = vpop.xlane.xlu0 %1447
        %v1449 = vsel %vm774, %v1403, -inf
        %1450 = vmax.xlane.f32.xlu0 %v1449
        %v1451 = vpop.xlane.xlu0 %1450
        %v1452 = vsub.f32 %v1388, %v1406
        %v1453 = vsub.f32 %v1389, %v1409
        %v1454 = vsub.f32 %v1390, %v1412
        %v1455 = vsub.f32 %v1391, %v1415
        %v1456 = vsub.f32 %v1392, %v1418
        %v1457 = vsub.f32 %v1393, %v1421
        %v1458 = vsub.f32 %v1394, %v1424
        %v1459 = vsub.f32 %v1395, %v1427
        %v1460 = vsub.f32 %v1396, %v1430
        %v1461 = vsub.f32 %v1397, %v1433
        %v1462 = vsub.f32 %v1398, %v1436
        %v1463 = vsub.f32 %v1399, %v1439
        %v1464 = vsub.f32 %v1400, %v1442
        %v1465 = vsub.f32 %v1401, %v1445
        %v1466 = vsub.f32 %v1402, %v1448
        %v1467 = vsub.f32 %v1403, %v1451
        %v1468 = vmul.f32 %v1452, 1.442695
        %v1469 = vpow.pop %v1468
        %v1470 = vmul.f32 %v1453, 1.442695
        %v1471 = vpow.pop %v1470
        %v1472 = vmul.f32 %v1454, 1.442695
        %v1473 = vpow.pop %v1472
        %v1474 = vmul.f32 %v1455, 1.442695
        %v1475 = vpow.pop %v1474
        %v1476 = vmul.f32 %v1456, 1.442695
        %v1477 = vpow.pop %v1476
        %v1478 = vmul.f32 %v1457, 1.442695
        %v1479 = vpow.pop %v1478
        %v1480 = vmul.f32 %v1458, 1.442695
        %v1481 = vpow.pop %v1480
        %v1482 = vmul.f32 %v1459, 1.442695
        %v1483 = vpow.pop %v1482
        %v1484 = vmul.f32 %v1460, 1.442695
        %v1485 = vpow.pop %v1484
        %v1486 = vmul.f32 %v1461, 1.442695
        %v1487 = vpow.pop %v1486
        %v1488 = vmul.f32 %v1462, 1.442695
        %v1489 = vpow.pop %v1488
        %v1490 = vmul.f32 %v1463, 1.442695
        %v1491 = vpow.pop %v1490
        %v1492 = vmul.f32 %v1464, 1.442695
        %v1493 = vpow.pop %v1492
        %v1494 = vmul.f32 %v1465, 1.442695
        %v1495 = vpow.pop %v1494
        %v1496 = vmul.f32 %v1466, 1.442695
        %v1497 = vpow.pop %v1496
        %v1498 = vmul.f32 %v1467, 1.442695
        %v1499 = vpow.pop %v1498
        %v1500 = vsel %vm774, %v1469, 0.0
        %1501 = vadd.xlane.f32.xlu0 %v1500
        %v1502 = vpop.xlane.xlu0 %1501
        %v1503 = vsel %vm774, %v1471, 0.0
        %1504 = vadd.xlane.f32.xlu0 %v1503
        %v1505 = vpop.xlane.xlu0 %1504
        %v1506 = vsel %vm774, %v1473, 0.0
        %1507 = vadd.xlane.f32.xlu0 %v1506
        %v1508 = vpop.xlane.xlu0 %1507
        %v1509 = vsel %vm774, %v1475, 0.0
        %1510 = vadd.xlane.f32.xlu0 %v1509
        %v1511 = vpop.xlane.xlu0 %1510
        %v1512 = vsel %vm774, %v1477, 0.0
        %1513 = vadd.xlane.f32.xlu0 %v1512
        %v1514 = vpop.xlane.xlu0 %1513
        %v1515 = vsel %vm774, %v1479, 0.0
        %1516 = vadd.xlane.f32.xlu0 %v1515
        %v1517 = vpop.xlane.xlu0 %1516
        %v1518 = vsel %vm774, %v1481, 0.0
        %1519 = vadd.xlane.f32.xlu0 %v1518
        %v1520 = vpop.xlane.xlu0 %1519
        %v1521 = vsel %vm774, %v1483, 0.0
        %1522 = vadd.xlane.f32.xlu0 %v1521
        %v1523 = vpop.xlane.xlu0 %1522
        %v1524 = vsel %vm774, %v1485, 0.0
        %1525 = vadd.xlane.f32.xlu0 %v1524
        %v1526 = vpop.xlane.xlu0 %1525
        %v1527 = vsel %vm774, %v1487, 0.0
        %1528 = vadd.xlane.f32.xlu0 %v1527
        %v1529 = vpop.xlane.xlu0 %1528
        %v1530 = vsel %vm774, %v1489, 0.0
        %1531 = vadd.xlane.f32.xlu0 %v1530
        %v1532 = vpop.xlane.xlu0 %1531
        %v1533 = vsel %vm774, %v1491, 0.0
        %1534 = vadd.xlane.f32.xlu0 %v1533
        %v1535 = vpop.xlane.xlu0 %1534
        %v1536 = vsel %vm774, %v1493, 0.0
        %1537 = vadd.xlane.f32.xlu0 %v1536
        %v1538 = vpop.xlane.xlu0 %1537
        %v1539 = vsel %vm774, %v1495, 0.0
        %1540 = vadd.xlane.f32.xlu0 %v1539
        %v1541 = vpop.xlane.xlu0 %1540
        %v1542 = vsel %vm774, %v1497, 0.0
        %1543 = vadd.xlane.f32.xlu0 %v1542
        %v1544 = vpop.xlane.xlu0 %1543
        %v1545 = vsel %vm774, %v1499, 0.0
        %1546 = vadd.xlane.f32.xlu0 %v1545
        %v1547 = vpop.xlane.xlu0 %1546
        %v1548 = vrcp.pop %v1502
        %v1549 = vrcp.pop %v1505
        %v1550 = vrcp.pop %v1508
        %v1551 = vrcp.pop %v1511
        %v1552 = vrcp.pop %v1514
        %v1553 = vrcp.pop %v1517
        %v1554 = vrcp.pop %v1520
        %v1555 = vrcp.pop %v1523
        %v1556 = vrcp.pop %v1526
        %v1557 = vrcp.pop %v1529
        %v1558 = vrcp.pop %v1532
        %v1559 = vrcp.pop %v1535
        %v1560 = vrcp.pop %v1538
        %v1561 = vrcp.pop %v1541
        %v1562 = vrcp.pop %v1544
        %v1563 = vrcp.pop %v1547
        %v1564 = vmul.f32 %v1469, %v1548
        %v1565 = vmul.f32 %v1471, %v1549
        %v1566 = vmul.f32 %v1473, %v1550
        %v1567 = vmul.f32 %v1475, %v1551
        %v1568 = vmul.f32 %v1477, %v1552
        %v1569 = vmul.f32 %v1479, %v1553
        %v1570 = vmul.f32 %v1481, %v1554
        %v1571 = vmul.f32 %v1483, %v1555
        %v1572 = vmul.f32 %v1485, %v1556
        %v1573 = vmul.f32 %v1487, %v1557
        %v1574 = vmul.f32 %v1489, %v1558
        %v1575 = vmul.f32 %v1491, %v1559
        %v1576 = vmul.f32 %v1493, %v1560
        %v1577 = vmul.f32 %v1495, %v1561
        %v1578 = vmul.f32 %v1497, %v1562
        %v1579 = vmul.f32 %v1499, %v1563
        %1580 = vrot.lane.b32.xlu0 %v1120, 64
        %v1581 = vpop.permute.xlu0 %1580
        %1582 = vrot.lane.b32.xlu0 %v1123, 64
        %v1583 = vpop.permute.xlu0 %1582
        %1584 = vrot.lane.b32.xlu0 %v1126, 64
        %v1585 = vpop.permute.xlu0 %1584
        %1586 = vrot.lane.b32.xlu0 %v1129, 64
        %v1587 = vpop.permute.xlu0 %1586
        %v1593 = vsel %vm774, %v1564, 0
        %v1596 = vsel %vm774, %v1565, 0
        %v1599 = vsel %vm774, %v1566, 0
        %v1602 = vsel %vm774, %v1567, 0
        %1604 = vmatpush.msra.mxu0 0.0
        %1605 = vmatpush.msra.mxu0 0.0
        %1606 = vmatpush.msra.mxu0 0.0
        %1607 = vmatpush.msra.mxu0 0.0
        %1608 = vmatpush.msra.mxu0 0.0
        %1609 = vmatpush.msra.mxu0 0.0
        %1610 = vmatpush.msra.mxu0 0.0
        %1611 = vmatpush.msra.mxu0 0.0
        %1612 = vmatpush.msra.mxu0 0.0
        %1613 = vmatpush.msra.mxu0 0.0
        %1614 = vmatpush.msra.mxu0 0.0
        %1615 = vmatpush.msra.mxu0 0.0
        %1616 = vmatpush.msra.mxu0 %v1587
        %1617 = vmatpush.msra.mxu0 %v1585
        %1618 = vmatpush.msra.mxu0 %v1583
        %1619 = vmatpush.msra.mxu0 %v1581
        %1620 = vmatmul.f32.gmra.mxu0 %v1593
        %v1621 = vpop.f32.mrf.mxu0
        %v1622 = vadd.f32 0.0, %v1621
        %1623 = vmatmul.f32.gmra.mxu0 %v1596
        %v1624 = vpop.f32.mrf.mxu0
        %v1625 = vadd.f32 0.0, %v1624
        %1626 = vmatmul.f32.gmra.mxu0 %v1599
        %v1627 = vpop.f32.mrf.mxu0
        %v1628 = vadd.f32 0.0, %v1627
        %1629 = vmatmul.f32.gmra.mxu0 %v1602
        %v1630 = vpop.f32.mrf.mxu0
        %v1631 = vadd.f32 0.0, %v1630
        %1632 = vdwg.mxu0
        %1633 = vrot.lane.b32.xlu0 %v1120, 56
        %v1634 = vpop.permute.xlu0 %1633
        %1635 = vrot.lane.b32.xlu0 %v1123, 56
        %v1636 = vpop.permute.xlu0 %1635
        %1637 = vrot.lane.b32.xlu0 %v1126, 56
        %v1638 = vpop.permute.xlu0 %1637
        %1639 = vrot.lane.b32.xlu0 %v1129, 56
        %v1640 = vpop.permute.xlu0 %1639
        %v1646 = vsel %vm774, %v1568, 0
        %v1649 = vsel %vm774, %v1569, 0
        %v1652 = vsel %vm774, %v1570, 0
        %v1655 = vsel %vm774, %v1571, 0
        %1657 = vmatpush.msra.mxu0 0.0
        %1658 = vmatpush.msra.mxu0 0.0
        %1659 = vmatpush.msra.mxu0 0.0
        %1660 = vmatpush.msra.mxu0 0.0
        %1661 = vmatpush.msra.mxu0 0.0
        %1662 = vmatpush.msra.mxu0 0.0
        %1663 = vmatpush.msra.mxu0 0.0
        %1664 = vmatpush.msra.mxu0 0.0
        %1665 = vmatpush.msra.mxu0 0.0
        %1666 = vmatpush.msra.mxu0 0.0
        %1667 = vmatpush.msra.mxu0 0.0
        %1668 = vmatpush.msra.mxu0 0.0
        %1669 = vmatpush.msra.mxu0 %v1640
        %1670 = vmatpush.msra.mxu0 %v1638
        %1671 = vmatpush.msra.mxu0 %v1636
        %1672 = vmatpush.msra.mxu0 %v1634
        %1673 = vmatmul.f32.gmra.mxu0 %v1646
        %v1674 = vpop.f32.mrf.mxu0
        %v1675 = vadd.f32 0.0, %v1674
        %1676 = vmatmul.f32.gmra.mxu0 %v1649
        %v1677 = vpop.f32.mrf.mxu0
        %v1678 = vadd.f32 0.0, %v1677
        %1679 = vmatmul.f32.gmra.mxu0 %v1652
        %v1680 = vpop.f32.mrf.mxu0
        %v1681 = vadd.f32 0.0, %v1680
        %1682 = vmatmul.f32.gmra.mxu0 %v1655
        %v1683 = vpop.f32.mrf.mxu0
        %v1684 = vadd.f32 0.0, %v1683
        %1685 = vdwg.mxu0
        %1686 = vrot.lane.b32.xlu0 %v1120, 48
        %v1687 = vpop.permute.xlu0 %1686
        %1688 = vrot.lane.b32.xlu0 %v1123, 48
        %v1689 = vpop.permute.xlu0 %1688
        %1690 = vrot.lane.b32.xlu0 %v1126, 48
        %v1691 = vpop.permute.xlu0 %1690
        %1692 = vrot.lane.b32.xlu0 %v1129, 48
        %v1693 = vpop.permute.xlu0 %1692
        %v1699 = vsel %vm774, %v1572, 0
        %v1702 = vsel %vm774, %v1573, 0
        %v1705 = vsel %vm774, %v1574, 0
        %v1708 = vsel %vm774, %v1575, 0
        %1710 = vmatpush.msra.mxu0 0.0
        %1711 = vmatpush.msra.mxu0 0.0
        %1712 = vmatpush.msra.mxu0 0.0
        %1713 = vmatpush.msra.mxu0 0.0
        %1714 = vmatpush.msra.mxu0 0.0
        %1715 = vmatpush.msra.mxu0 0.0
        %1716 = vmatpush.msra.mxu0 0.0
        %1717 = vmatpush.msra.mxu0 0.0
        %1718 = vmatpush.msra.mxu0 0.0
        %1719 = vmatpush.msra.mxu0 0.0
        %1720 = vmatpush.msra.mxu0 0.0
        %1721 = vmatpush.msra.mxu0 0.0
        %1722 = vmatpush.msra.mxu0 %v1693
        %1723 = vmatpush.msra.mxu0 %v1691
        %1724 = vmatpush.msra.mxu0 %v1689
        %1725 = vmatpush.msra.mxu0 %v1687
        %1726 = vmatmul.f32.gmra.mxu0 %v1699
        %v1727 = vpop.f32.mrf.mxu0
        %v1728 = vadd.f32 0.0, %v1727
        %1729 = vmatmul.f32.gmra.mxu0 %v1702
        %v1730 = vpop.f32.mrf.mxu0
        %v1731 = vadd.f32 0.0, %v1730
        %1732 = vmatmul.f32.gmra.mxu0 %v1705
        %v1733 = vpop.f32.mrf.mxu0
        %v1734 = vadd.f32 0.0, %v1733
        %1735 = vmatmul.f32.gmra.mxu0 %v1708
        %v1736 = vpop.f32.mrf.mxu0
        %v1737 = vadd.f32 0.0, %v1736
        %1738 = vdwg.mxu0
        %1739 = vrot.lane.b32.xlu0 %v1120, 40
        %v1740 = vpop.permute.xlu0 %1739
        %1741 = vrot.lane.b32.xlu0 %v1123, 40
        %v1742 = vpop.permute.xlu0 %1741
        %1743 = vrot.lane.b32.xlu0 %v1126, 40
        %v1744 = vpop.permute.xlu0 %1743
        %1745 = vrot.lane.b32.xlu0 %v1129, 40
        %v1746 = vpop.permute.xlu0 %1745
        %v1752 = vsel %vm774, %v1576, 0
        %v1755 = vsel %vm774, %v1577, 0
        %v1758 = vsel %vm774, %v1578, 0
        %v1761 = vsel %vm774, %v1579, 0
        %1763 = vmatpush.msra.mxu0 0.0
        %1764 = vmatpush.msra.mxu0 0.0
        %1765 = vmatpush.msra.mxu0 0.0
        %1766 = vmatpush.msra.mxu0 0.0
        %1767 = vmatpush.msra.mxu0 0.0
        %1768 = vmatpush.msra.mxu0 0.0
        %1769 = vmatpush.msra.mxu0 0.0
        %1770 = vmatpush.msra.mxu0 0.0
        %1771 = vmatpush.msra.mxu0 0.0
        %1772 = vmatpush.msra.mxu0 0.0
        %1773 = vmatpush.msra.mxu0 0.0
        %1774 = vmatpush.msra.mxu0 0.0
        %1775 = vmatpush.msra.mxu0 %v1746
        %1776 = vmatpush.msra.mxu0 %v1744
        %1777 = vmatpush.msra.mxu0 %v1742
        %1778 = vmatpush.msra.mxu0 %v1740
        %1779 = vmatmul.f32.gmra.mxu0 %v1752
        %v1780 = vpop.f32.mrf.mxu0
        %v1781 = vadd.f32 0.0, %v1780
        %1782 = vmatmul.f32.gmra.mxu0 %v1755
        %v1783 = vpop.f32.mrf.mxu0
        %v1784 = vadd.f32 0.0, %v1783
        %1785 = vmatmul.f32.gmra.mxu0 %v1758
        %v1786 = vpop.f32.mrf.mxu0
        %v1787 = vadd.f32 0.0, %v1786
        %1788 = vmatmul.f32.gmra.mxu0 %v1761
        %v1789 = vpop.f32.mrf.mxu0
        %v1790 = vadd.f32 0.0, %v1789
        %1791 = vdwg.mxu0
        %1796 = vrot.lane.b32.xlu0 %v1675, 8
        %v1797 = vpop.permute.xlu0 %1796
        %1798 = vrot.lane.b32.xlu0 %v1678, 8
        %v1799 = vpop.permute.xlu0 %1798
        %1800 = vrot.lane.b32.xlu0 %v1681, 8
        %v1801 = vpop.permute.xlu0 %1800
        %1802 = vrot.lane.b32.xlu0 %v1684, 8
        %v1803 = vpop.permute.xlu0 %1802
        %1812 = vrot.lane.b32.xlu0 %v1728, 16
        %v1813 = vpop.permute.xlu0 %1812
        %1814 = vrot.lane.b32.xlu0 %v1731, 16
        %v1815 = vpop.permute.xlu0 %1814
        %1816 = vrot.lane.b32.xlu0 %v1734, 16
        %v1817 = vpop.permute.xlu0 %1816
        %1818 = vrot.lane.b32.xlu0 %v1737, 16
        %v1819 = vpop.permute.xlu0 %1818
        %1828 = vrot.lane.b32.xlu0 %v1781, 24
        %v1829 = vpop.permute.xlu0 %1828
        %1830 = vrot.lane.b32.xlu0 %v1784, 24
        %v1831 = vpop.permute.xlu0 %1830
        %1832 = vrot.lane.b32.xlu0 %v1787, 24
        %v1833 = vpop.permute.xlu0 %1832
        %1834 = vrot.lane.b32.xlu0 %v1790, 24
        %v1835 = vpop.permute.xlu0 %1834
        %v1840 = vsel %vm1143, %v1622, %v1797
        %v1841 = vsel %vm1143, %v1625, %v1799
        %v1842 = vsel %vm1143, %v1628, %v1801
        %v1843 = vsel %vm1143, %v1631, %v1803
        %v1844 = vsel %vm692, %v1840, %v1813
        %v1845 = vsel %vm692, %v1841, %v1815
        %v1846 = vsel %vm692, %v1842, %v1817
        %v1847 = vsel %vm692, %v1843, %v1819
        %vm1848 = vcmask 195584
        %v1849 = vsel %vm1848, %v1844, %v1829
        %v1850 = vsel %vm1848, %v1845, %v1831
        %v1851 = vsel %vm1848, %v1846, %v1833
        %v1852 = vsel %vm1848, %v1847, %v1835
        %v1853 = vld [vmem:[%s8] sm:$0xff]
        %v1854 = vld [vmem:[%s8 + $0x8] sm:$0xff]
        %v1855 = vld [vmem:[%s8 + $0x10] sm:$0xff]
        %v1856 = vld [vmem:[%s8 + $0x18] sm:$0xff]
        %v1857 = vld [vmem:[%s9] sm:$0x1]
        %v1859 = vperm.slane %v1857, 0
        %v1862 = vsel %vm774, %v1849, 0
        %v1865 = vsel %vm774, %v1850, 0
        %v1868 = vsel %vm774, %v1851, 0
        %v1871 = vsel %vm774, %v1852, 0
        %1873 = vmatpush.msra.mxu0 0.0
        %1874 = vmatpush.msra.mxu0 0.0
        %1875 = vmatpush.msra.mxu0 0.0
        %1876 = vmatpush.msra.mxu0 0.0
        %1877 = vmatpush.msra.mxu0 0.0
        %1878 = vmatpush.msra.mxu0 0.0
        %1879 = vmatpush.msra.mxu0 0.0
        %1880 = vmatpush.msra.mxu0 0.0
        %1881 = vmatpush.msra.mxu0 0.0
        %1882 = vmatpush.msra.mxu0 0.0
        %1883 = vmatpush.msra.mxu0 0.0
        %1884 = vmatpush.msra.mxu0 0.0
        %1885 = vmatpush.msra.mxu0 %v1856
        %1886 = vmatpush.msra.mxu0 %v1855
        %1887 = vmatpush.msra.mxu0 %v1854
        %1888 = vmatpush.msra.mxu0 %v1853
        %1889 = vmatmul.f32.gmra.mxu0 %v1862
        %v1890 = vpop.f32.mrf.mxu0
        %v1891 = vadd.f32 %v1859, %v1890
        %1892 = vmatmul.f32.gmra.mxu0 %v1865
        %v1893 = vpop.f32.mrf.mxu0
        %v1894 = vadd.f32 %v1859, %v1893
        %1895 = vmatmul.f32.gmra.mxu0 %v1868
        %v1896 = vpop.f32.mrf.mxu0
        %v1897 = vadd.f32 %v1859, %v1896
        %1898 = vmatmul.f32.gmra.mxu0 %v1871
        %v1899 = vpop.f32.mrf.mxu0
        %v1900 = vadd.f32 %v1859, %v1899
        %1901 = vdwg.mxu0
        %v1902 = vadd.f32 %v1062, %v1891
        %v1903 = vadd.f32 %v1063, %v1894
        %v1904 = vadd.f32 %v1064, %v1897
        %v1905 = vadd.f32 %v1065, %v1900
        %v1906 = vld [vmem:[%s14] sm:$0x1]
        %v1907 = vld [vmem:[%s15] sm:$0x1]
        %v1908 = vsel %vm774, %v1902, 0.0
        %1909 = vadd.xlane.f32.xlu0 %v1908
        %v1910 = vpop.xlane.xlu0 %1909
        %v1911 = vsel %vm774, %v1903, 0.0
        %1912 = vadd.xlane.f32.xlu0 %v1911
        %v1913 = vpop.xlane.xlu0 %1912
        %v1914 = vsel %vm774, %v1904, 0.0
        %1915 = vadd.xlane.f32.xlu0 %v1914
        %v1916 = vpop.xlane.xlu0 %1915
        %v1917 = vsel %vm774, %v1905, 0.0
        %1918 = vadd.xlane.f32.xlu0 %v1917
        %v1919 = vpop.xlane.xlu0 %1918
        %v1920 = vrcp.pop 32.0
        %v1921 = vmul.f32 32.0, %v1920
        %v1922 = vsub.f32 1.0, %v1921
        %v1923 = vmul.f32 %v1920, %v1922
        %v1924 = vadd.f32 %v1920, %v1923
        %vm1925 = vweird.f32 %v1920
        %v1926 = vsel %vm1925, %v1920, %v1924
        %v1927 = vmul.f32 %v1910, %v1926
        %v1928 = vmul.f32 %v1913, %v1926
        %v1929 = vmul.f32 %v1916, %v1926
        %v1930 = vmul.f32 %v1919, %v1926
        %v1931 = vsub.f32 %v1902, %v1927
        %v1932 = vsub.f32 %v1903, %v1928
        %v1933 = vsub.f32 %v1904, %v1929
        %v1934 = vsub.f32 %v1905, %v1930
        %v1935 = vmul.f32 %v1931, %v1931
        %v1936 = vmul.f32 %v1932, %v1932
        %v1937 = vmul.f32 %v1933, %v1933
        %v1938 = vmul.f32 %v1934, %v1934
        %v1939 = vsel %vm774, %v1935, 0.0
        %1940 = vadd.xlane.f32.xlu0 %v1939
        %v1941 = vpop.xlane.xlu0 %1940
        %v1942 = vsel %vm774, %v1936, 0.0
        %1943 = vadd.xlane.f32.xlu0 %v1942
        %v1944 = vpop.xlane.xlu0 %1943
        %v1945 = vsel %vm774, %v1937, 0.0
        %1946 = vadd.xlane.f32.xlu0 %v1945
        %v1947 = vpop.xlane.xlu0 %1946
        %v1948 = vsel %vm774, %v1938, 0.0
        %1949 = vadd.xlane.f32.xlu0 %v1948
        %v1950 = vpop.xlane.xlu0 %1949
        %v1951 = vmul.f32 %v1941, %v1926
        %v1952 = vmul.f32 %v1944, %v1926
        %v1953 = vmul.f32 %v1947, %v1926
        %v1954 = vmul.f32 %v1950, %v1926
        %v1955 = vadd.f32 %v1951, 1e-05
        %v1956 = vadd.f32 %v1952, 1e-05
        %v1957 = vadd.f32 %v1953, 1e-05
        %v1958 = vadd.f32 %v1954, 1e-05
        %v1959 = vrsqrt.pop %v1955
        %v1960 = vmul.f32 %v1959, %v1955
        %v1961 = vmul.f32 %v1960, %v1959
        %v1962 = vmul.f32 0.5, %v1961
        %v1963 = vsub.f32 1.5, %v1962
        %v1964 = vmul.f32 %v1959, %v1963
        %vm1965 = vweird.f32 %v1955
        %vm1966 = vweird.f32 %v1959
        %vm1967 = vmor %vm1965, %vm1966
        %v1968 = vsel %vm1967, %v1959, %v1964
        %v1969 = vrsqrt.pop %v1956
        %v1970 = vmul.f32 %v1969, %v1956
        %v1971 = vmul.f32 %v1970, %v1969
        %v1972 = vmul.f32 0.5, %v1971
        %v1973 = vsub.f32 1.5, %v1972
        %v1974 = vmul.f32 %v1969, %v1973
        %vm1975 = vweird.f32 %v1956
        %vm1976 = vweird.f32 %v1969
        %vm1977 = vmor %vm1975, %vm1976
        %v1978 = vsel %vm1977, %v1969, %v1974
        %v1979 = vrsqrt.pop %v1957
        %v1980 = vmul.f32 %v1979, %v1957
        %v1981 = vmul.f32 %v1980, %v1979
        %v1982 = vmul.f32 0.5, %v1981
        %v1983 = vsub.f32 1.5, %v1982
        %v1984 = vmul.f32 %v1979, %v1983
        %vm1985 = vweird.f32 %v1957
        %vm1986 = vweird.f32 %v1979
        %vm1987 = vmor %vm1985, %vm1986
        %v1988 = vsel %vm1987, %v1979, %v1984
        %v1989 = vrsqrt.pop %v1958
        %v1990 = vmul.f32 %v1989, %v1958
        %v1991 = vmul.f32 %v1990, %v1989
        %v1992 = vmul.f32 0.5, %v1991
        %v1993 = vsub.f32 1.5, %v1992
        %v1994 = vmul.f32 %v1989, %v1993
        %vm1995 = vweird.f32 %v1958
        %vm1996 = vweird.f32 %v1989
        %vm1997 = vmor %vm1995, %vm1996
        %v1998 = vsel %vm1997, %v1989, %v1994
        %v1999 = vmul.f32 %v1931, %v1968
        %v2000 = vmul.f32 %v1932, %v1978
        %v2001 = vmul.f32 %v1933, %v1988
        %v2002 = vmul.f32 %v1934, %v1998
        %v2004 = vperm.slane %v1906, 0
        %v2006 = vmul.f32 %v1999, %v2004
        %v2007 = vmul.f32 %v2000, %v2004
        %v2008 = vmul.f32 %v2001, %v2004
        %v2009 = vmul.f32 %v2002, %v2004
        %v2011 = vperm.slane %v1907, 0
        %v2013 = vadd.f32 %v2006, %v2011
        %v2014 = vadd.f32 %v2007, %v2011
        %v2015 = vadd.f32 %v2008, %v2011
        %v2016 = vadd.f32 %v2009, %v2011
        %v2017 = vld [vmem:[%s10] sm:$0xff]
        %v2018 = vld [vmem:[%s10 + $0x8] sm:$0xff]
        %v2019 = vld [vmem:[%s10 + $0x10] sm:$0xff]
        %v2020 = vld [vmem:[%s10 + $0x18] sm:$0xff]
        %v2021 = vld [vmem:[%s10 + $0x20] sm:$0xff]
        %v2022 = vld [vmem:[%s10 + $0x28] sm:$0xff]
        %v2023 = vld [vmem:[%s10 + $0x30] sm:$0xff]
        %v2024 = vld [vmem:[%s10 + $0x38] sm:$0xff]
        %v2025 = vld [vmem:[%s10 + $0x40] sm:$0xff]
        %v2026 = vld [vmem:[%s10 + $0x48] sm:$0xff]
        %v2027 = vld [vmem:[%s10 + $0x50] sm:$0xff]
        %v2028 = vld [vmem:[%s10 + $0x58] sm:$0xff]
        %v2029 = vld [vmem:[%s10 + $0x60] sm:$0xff]
        %v2030 = vld [vmem:[%s10 + $0x68] sm:$0xff]
        %v2031 = vld [vmem:[%s10 + $0x70] sm:$0xff]
        %v2032 = vld [vmem:[%s10 + $0x78] sm:$0xff]
        %v2033 = vld [vmem:[%s10 + $0x80] sm:$0xff]
        %v2034 = vld [vmem:[%s10 + $0x88] sm:$0xff]
        %v2035 = vld [vmem:[%s10 + $0x90] sm:$0xff]
        %v2036 = vld [vmem:[%s10 + $0x98] sm:$0xff]
        %v2037 = vld [vmem:[%s10 + $0xa0] sm:$0xff]
        %v2038 = vld [vmem:[%s10 + $0xa8] sm:$0xff]
        %v2039 = vld [vmem:[%s10 + $0xb0] sm:$0xff]
        %v2040 = vld [vmem:[%s10 + $0xb8] sm:$0xff]
        %v2041 = vld [vmem:[%s10 + $0xc0] sm:$0xff]
        %v2042 = vld [vmem:[%s10 + $0xc8] sm:$0xff]
        %v2043 = vld [vmem:[%s10 + $0xd0] sm:$0xff]
        %v2044 = vld [vmem:[%s10 + $0xd8] sm:$0xff]
        %v2045 = vld [vmem:[%s10 + $0xe0] sm:$0xff]
        %v2046 = vld [vmem:[%s10 + $0xe8] sm:$0xff]
        %v2047 = vld [vmem:[%s10 + $0xf0] sm:$0xff]
        %v2048 = vld [vmem:[%s10 + $0xf8] sm:$0xff]
        %v2049 = vld [vmem:[%s10 + $0x100] sm:$0xff]
        %v2050 = vld [vmem:[%s10 + $0x108] sm:$0xff]
        %v2051 = vld [vmem:[%s10 + $0x110] sm:$0xff]
        %v2052 = vld [vmem:[%s10 + $0x118] sm:$0xff]
        %v2053 = vld [vmem:[%s10 + $0x120] sm:$0xff]
        %v2054 = vld [vmem:[%s10 + $0x128] sm:$0xff]
        %v2055 = vld [vmem:[%s10 + $0x130] sm:$0xff]
        %v2056 = vld [vmem:[%s10 + $0x138] sm:$0xff]
        %v2057 = vld [vmem:[%s10 + $0x140] sm:$0xff]
        %v2058 = vld [vmem:[%s10 + $0x148] sm:$0xff]
        %v2059 = vld [vmem:[%s10 + $0x150] sm:$0xff]
        %v2060 = vld [vmem:[%s10 + $0x158] sm:$0xff]
        %v2061 = vld [vmem:[%s10 + $0x160] sm:$0xff]
        %v2062 = vld [vmem:[%s10 + $0x168] sm:$0xff]
        %v2063 = vld [vmem:[%s10 + $0x170] sm:$0xff]
        %v2064 = vld [vmem:[%s10 + $0x178] sm:$0xff]
        %v2065 = vld [vmem:[%s10 + $0x180] sm:$0xff]
        %v2066 = vld [vmem:[%s10 + $0x188] sm:$0xff]
        %v2067 = vld [vmem:[%s10 + $0x190] sm:$0xff]
        %v2068 = vld [vmem:[%s10 + $0x198] sm:$0xff]
        %v2069 = vld [vmem:[%s10 + $0x1a0] sm:$0xff]
        %v2070 = vld [vmem:[%s10 + $0x1a8] sm:$0xff]
        %v2071 = vld [vmem:[%s10 + $0x1b0] sm:$0xff]
        %v2072 = vld [vmem:[%s10 + $0x1b8] sm:$0xff]
        %v2073 = vld [vmem:[%s10 + $0x1c0] sm:$0xff]
        %v2074 = vld [vmem:[%s10 + $0x1c8] sm:$0xff]
        %v2075 = vld [vmem:[%s10 + $0x1d0] sm:$0xff]
        %v2076 = vld [vmem:[%s10 + $0x1d8] sm:$0xff]
        %v2077 = vld [vmem:[%s10 + $0x1e0] sm:$0xff]
        %v2078 = vld [vmem:[%s10 + $0x1e8] sm:$0xff]
        %v2079 = vld [vmem:[%s10 + $0x1f0] sm:$0xff]
        %v2080 = vld [vmem:[%s10 + $0x1f8] sm:$0xff]
        %v2081 = vld [vmem:[%s11] sm:$0xff]
        %v2082 = vld [vmem:[%s11 + $0x8] sm:$0xff]
        %v2085 = vperm.slane %v2081, 0
        %v2086 = vperm.slane %v2081, 1
        %v2087 = vperm.slane %v2081, 2
        %v2088 = vperm.slane %v2081, 3
        %v2089 = vperm.slane %v2081, 4
        %v2090 = vperm.slane %v2081, 5
        %v2091 = vperm.slane %v2081, 6
        %v2092 = vperm.slane %v2081, 7
        %v2093 = vperm.slane %v2082, 0
        %v2094 = vperm.slane %v2082, 1
        %v2095 = vperm.slane %v2082, 2
        %v2096 = vperm.slane %v2082, 3
        %v2097 = vperm.slane %v2082, 4
        %v2098 = vperm.slane %v2082, 5
        %v2099 = vperm.slane %v2082, 6
        %v2100 = vperm.slane %v2082, 7
        %v2118 = vsel %vm774, %v2013, 0
        %v2121 = vsel %vm774, %v2014, 0
        %v2124 = vsel %vm774, %v2015, 0
        %v2127 = vsel %vm774, %v2016, 0
        %2129 = vmatpush.msra.mxu0 0.0
        %2130 = vmatpush.msra.mxu0 0.0
        %2131 = vmatpush.msra.mxu0 0.0
        %2132 = vmatpush.msra.mxu0 0.0
        %2133 = vmatpush.msra.mxu0 0.0
        %2134 = vmatpush.msra.mxu0 0.0
        %2135 = vmatpush.msra.mxu0 0.0
        %2136 = vmatpush.msra.mxu0 0.0
        %2137 = vmatpush.msra.mxu0 0.0
        %2138 = vmatpush.msra.mxu0 0.0
        %2139 = vmatpush.msra.mxu0 0.0
        %2140 = vmatpush.msra.mxu0 0.0
        %2141 = vmatpush.msra.mxu0 %v2065
        %2142 = vmatpush.msra.mxu0 %v2049
        %2143 = vmatpush.msra.mxu0 %v2033
        %2144 = vmatpush.msra.mxu0 %v2017
        %2145 = vmatmul.f32.gmra.mxu0 %v2118
        %v2146 = vpop.f32.mrf.mxu0
        %v2147 = vadd.f32 %v2085, %v2146
        %2148 = vmatmul.f32.gmra.mxu0 %v2121
        %v2149 = vpop.f32.mrf.mxu0
        %v2150 = vadd.f32 %v2085, %v2149
        %2151 = vmatmul.f32.gmra.mxu0 %v2124
        %v2152 = vpop.f32.mrf.mxu0
        %v2153 = vadd.f32 %v2085, %v2152
        %2154 = vmatmul.f32.gmra.mxu0 %v2127
        %v2155 = vpop.f32.mrf.mxu0
        %v2156 = vadd.f32 %v2085, %v2155
        %2157 = vdwg.mxu0
        %2158 = vmatpush.msra.mxu0 0.0
        %2159 = vmatpush.msra.mxu0 0.0
        %2160 = vmatpush.msra.mxu0 0.0
        %2161 = vmatpush.msra.mxu0 0.0
        %2162 = vmatpush.msra.mxu0 0.0
        %2163 = vmatpush.msra.mxu0 0.0
        %2164 = vmatpush.msra.mxu0 0.0
        %2165 = vmatpush.msra.mxu0 0.0
        %2166 = vmatpush.msra.mxu0 0.0
        %2167 = vmatpush.msra.mxu0 0.0
        %2168 = vmatpush.msra.mxu0 0.0
        %2169 = vmatpush.msra.mxu0 0.0
        %2170 = vmatpush.msra.mxu0 %v2066
        %2171 = vmatpush.msra.mxu0 %v2050
        %2172 = vmatpush.msra.mxu0 %v2034
        %2173 = vmatpush.msra.mxu0 %v2018
        %2174 = vmatmul.f32.gmra.mxu0 %v2118
        %v2175 = vpop.f32.mrf.mxu0
        %v2176 = vadd.f32 %v2086, %v2175
        %2177 = vmatmul.f32.gmra.mxu0 %v2121
        %v2178 = vpop.f32.mrf.mxu0
        %v2179 = vadd.f32 %v2086, %v2178
        %2180 = vmatmul.f32.gmra.mxu0 %v2124
        %v2181 = vpop.f32.mrf.mxu0
        %v2182 = vadd.f32 %v2086, %v2181
        %2183 = vmatmul.f32.gmra.mxu0 %v2127
        %v2184 = vpop.f32.mrf.mxu0
        %v2185 = vadd.f32 %v2086, %v2184
        %2186 = vdwg.mxu0
        %2187 = vmatpush.msra.mxu0 0.0
        %2188 = vmatpush.msra.mxu0 0.0
        %2189 = vmatpush.msra.mxu0 0.0
        %2190 = vmatpush.msra.mxu0 0.0
        %2191 = vmatpush.msra.mxu0 0.0
        %2192 = vmatpush.msra.mxu0 0.0
        %2193 = vmatpush.msra.mxu0 0.0
        %2194 = vmatpush.msra.mxu0 0.0
        %2195 = vmatpush.msra.mxu0 0.0
        %2196 = vmatpush.msra.mxu0 0.0
        %2197 = vmatpush.msra.mxu0 0.0
        %2198 = vmatpush.msra.mxu0 0.0
        %2199 = vmatpush.msra.mxu0 %v2067
        %2200 = vmatpush.msra.mxu0 %v2051
        %2201 = vmatpush.msra.mxu0 %v2035
        %2202 = vmatpush.msra.mxu0 %v2019
        %2203 = vmatmul.f32.gmra.mxu0 %v2118
        %v2204 = vpop.f32.mrf.mxu0
        %v2205 = vadd.f32 %v2087, %v2204
        %2206 = vmatmul.f32.gmra.mxu0 %v2121
        %v2207 = vpop.f32.mrf.mxu0
        %v2208 = vadd.f32 %v2087, %v2207
        %2209 = vmatmul.f32.gmra.mxu0 %v2124
        %v2210 = vpop.f32.mrf.mxu0
        %v2211 = vadd.f32 %v2087, %v2210
        %2212 = vmatmul.f32.gmra.mxu0 %v2127
        %v2213 = vpop.f32.mrf.mxu0
        %v2214 = vadd.f32 %v2087, %v2213
        %2215 = vdwg.mxu0
        %2216 = vmatpush.msra.mxu0 0.0
        %2217 = vmatpush.msra.mxu0 0.0
        %2218 = vmatpush.msra.mxu0 0.0
        %2219 = vmatpush.msra.mxu0 0.0
        %2220 = vmatpush.msra.mxu0 0.0
        %2221 = vmatpush.msra.mxu0 0.0
        %2222 = vmatpush.msra.mxu0 0.0
        %2223 = vmatpush.msra.mxu0 0.0
        %2224 = vmatpush.msra.mxu0 0.0
        %2225 = vmatpush.msra.mxu0 0.0
        %2226 = vmatpush.msra.mxu0 0.0
        %2227 = vmatpush.msra.mxu0 0.0
        %2228 = vmatpush.msra.mxu0 %v2068
        %2229 = vmatpush.msra.mxu0 %v2052
        %2230 = vmatpush.msra.mxu0 %v2036
        %2231 = vmatpush.msra.mxu0 %v2020
        %2232 = vmatmul.f32.gmra.mxu0 %v2118
        %v2233 = vpop.f32.mrf.mxu0
        %v2234 = vadd.f32 %v2088, %v2233
        %2235 = vmatmul.f32.gmra.mxu0 %v2121
        %v2236 = vpop.f32.mrf.mxu0
        %v2237 = vadd.f32 %v2088, %v2236
        %2238 = vmatmul.f32.gmra.mxu0 %v2124
        %v2239 = vpop.f32.mrf.mxu0
        %v2240 = vadd.f32 %v2088, %v2239
        %2241 = vmatmul.f32.gmra.mxu0 %v2127
        %v2242 = vpop.f32.mrf.mxu0
        %v2243 = vadd.f32 %v2088, %v2242
        %2244 = vdwg.mxu0
        %2245 = vmatpush.msra.mxu0 0.0
        %2246 = vmatpush.msra.mxu0 0.0
        %2247 = vmatpush.msra.mxu0 0.0
        %2248 = vmatpush.msra.mxu0 0.0
        %2249 = vmatpush.msra.mxu0 0.0
        %2250 = vmatpush.msra.mxu0 0.0
        %2251 = vmatpush.msra.mxu0 0.0
        %2252 = vmatpush.msra.mxu0 0.0
        %2253 = vmatpush.msra.mxu0 0.0
        %2254 = vmatpush.msra.mxu0 0.0
        %2255 = vmatpush.msra.mxu0 0.0
        %2256 = vmatpush.msra.mxu0 0.0
        %2257 = vmatpush.msra.mxu0 %v2069
        %2258 = vmatpush.msra.mxu0 %v2053
        %2259 = vmatpush.msra.mxu0 %v2037
        %2260 = vmatpush.msra.mxu0 %v2021
        %2261 = vmatmul.f32.gmra.mxu0 %v2118
        %v2262 = vpop.f32.mrf.mxu0
        %v2263 = vadd.f32 %v2089, %v2262
        %2264 = vmatmul.f32.gmra.mxu0 %v2121
        %v2265 = vpop.f32.mrf.mxu0
        %v2266 = vadd.f32 %v2089, %v2265
        %2267 = vmatmul.f32.gmra.mxu0 %v2124
        %v2268 = vpop.f32.mrf.mxu0
        %v2269 = vadd.f32 %v2089, %v2268
        %2270 = vmatmul.f32.gmra.mxu0 %v2127
        %v2271 = vpop.f32.mrf.mxu0
        %v2272 = vadd.f32 %v2089, %v2271
        %2273 = vdwg.mxu0
        %2274 = vmatpush.msra.mxu0 0.0
        %2275 = vmatpush.msra.mxu0 0.0
        %2276 = vmatpush.msra.mxu0 0.0
        %2277 = vmatpush.msra.mxu0 0.0
        %2278 = vmatpush.msra.mxu0 0.0
        %2279 = vmatpush.msra.mxu0 0.0
        %2280 = vmatpush.msra.mxu0 0.0
        %2281 = vmatpush.msra.mxu0 0.0
        %2282 = vmatpush.msra.mxu0 0.0
        %2283 = vmatpush.msra.mxu0 0.0
        %2284 = vmatpush.msra.mxu0 0.0
        %2285 = vmatpush.msra.mxu0 0.0
        %2286 = vmatpush.msra.mxu0 %v2070
        %2287 = vmatpush.msra.mxu0 %v2054
        %2288 = vmatpush.msra.mxu0 %v2038
        %2289 = vmatpush.msra.mxu0 %v2022
        %2290 = vmatmul.f32.gmra.mxu0 %v2118
        %v2291 = vpop.f32.mrf.mxu0
        %v2292 = vadd.f32 %v2090, %v2291
        %2293 = vmatmul.f32.gmra.mxu0 %v2121
        %v2294 = vpop.f32.mrf.mxu0
        %v2295 = vadd.f32 %v2090, %v2294
        %2296 = vmatmul.f32.gmra.mxu0 %v2124
        %v2297 = vpop.f32.mrf.mxu0
        %v2298 = vadd.f32 %v2090, %v2297
        %2299 = vmatmul.f32.gmra.mxu0 %v2127
        %v2300 = vpop.f32.mrf.mxu0
        %v2301 = vadd.f32 %v2090, %v2300
        %2302 = vdwg.mxu0
        %2303 = vmatpush.msra.mxu0 0.0
        %2304 = vmatpush.msra.mxu0 0.0
        %2305 = vmatpush.msra.mxu0 0.0
        %2306 = vmatpush.msra.mxu0 0.0
        %2307 = vmatpush.msra.mxu0 0.0
        %2308 = vmatpush.msra.mxu0 0.0
        %2309 = vmatpush.msra.mxu0 0.0
        %2310 = vmatpush.msra.mxu0 0.0
        %2311 = vmatpush.msra.mxu0 0.0
        %2312 = vmatpush.msra.mxu0 0.0
        %2313 = vmatpush.msra.mxu0 0.0
        %2314 = vmatpush.msra.mxu0 0.0
        %2315 = vmatpush.msra.mxu0 %v2071
        %2316 = vmatpush.msra.mxu0 %v2055
        %2317 = vmatpush.msra.mxu0 %v2039
        %2318 = vmatpush.msra.mxu0 %v2023
        %2319 = vmatmul.f32.gmra.mxu0 %v2118
        %v2320 = vpop.f32.mrf.mxu0
        %v2321 = vadd.f32 %v2091, %v2320
        %2322 = vmatmul.f32.gmra.mxu0 %v2121
        %v2323 = vpop.f32.mrf.mxu0
        %v2324 = vadd.f32 %v2091, %v2323
        %2325 = vmatmul.f32.gmra.mxu0 %v2124
        %v2326 = vpop.f32.mrf.mxu0
        %v2327 = vadd.f32 %v2091, %v2326
        %2328 = vmatmul.f32.gmra.mxu0 %v2127
        %v2329 = vpop.f32.mrf.mxu0
        %v2330 = vadd.f32 %v2091, %v2329
        %2331 = vdwg.mxu0
        %2332 = vmatpush.msra.mxu0 0.0
        %2333 = vmatpush.msra.mxu0 0.0
        %2334 = vmatpush.msra.mxu0 0.0
        %2335 = vmatpush.msra.mxu0 0.0
        %2336 = vmatpush.msra.mxu0 0.0
        %2337 = vmatpush.msra.mxu0 0.0
        %2338 = vmatpush.msra.mxu0 0.0
        %2339 = vmatpush.msra.mxu0 0.0
        %2340 = vmatpush.msra.mxu0 0.0
        %2341 = vmatpush.msra.mxu0 0.0
        %2342 = vmatpush.msra.mxu0 0.0
        %2343 = vmatpush.msra.mxu0 0.0
        %2344 = vmatpush.msra.mxu0 %v2072
        %2345 = vmatpush.msra.mxu0 %v2056
        %2346 = vmatpush.msra.mxu0 %v2040
        %2347 = vmatpush.msra.mxu0 %v2024
        %2348 = vmatmul.f32.gmra.mxu0 %v2118
        %v2349 = vpop.f32.mrf.mxu0
        %v2350 = vadd.f32 %v2092, %v2349
        %2351 = vmatmul.f32.gmra.mxu0 %v2121
        %v2352 = vpop.f32.mrf.mxu0
        %v2353 = vadd.f32 %v2092, %v2352
        %2354 = vmatmul.f32.gmra.mxu0 %v2124
        %v2355 = vpop.f32.mrf.mxu0
        %v2356 = vadd.f32 %v2092, %v2355
        %2357 = vmatmul.f32.gmra.mxu0 %v2127
        %v2358 = vpop.f32.mrf.mxu0
        %v2359 = vadd.f32 %v2092, %v2358
        %2360 = vdwg.mxu0
        %2361 = vmatpush.msra.mxu0 0.0
        %2362 = vmatpush.msra.mxu0 0.0
        %2363 = vmatpush.msra.mxu0 0.0
        %2364 = vmatpush.msra.mxu0 0.0
        %2365 = vmatpush.msra.mxu0 0.0
        %2366 = vmatpush.msra.mxu0 0.0
        %2367 = vmatpush.msra.mxu0 0.0
        %2368 = vmatpush.msra.mxu0 0.0
        %2369 = vmatpush.msra.mxu0 0.0
        %2370 = vmatpush.msra.mxu0 0.0
        %2371 = vmatpush.msra.mxu0 0.0
        %2372 = vmatpush.msra.mxu0 0.0
        %2373 = vmatpush.msra.mxu0 %v2073
        %2374 = vmatpush.msra.mxu0 %v2057
        %2375 = vmatpush.msra.mxu0 %v2041
        %2376 = vmatpush.msra.mxu0 %v2025
        %2377 = vmatmul.f32.gmra.mxu0 %v2118
        %v2378 = vpop.f32.mrf.mxu0
        %v2379 = vadd.f32 %v2093, %v2378
        %2380 = vmatmul.f32.gmra.mxu0 %v2121
        %v2381 = vpop.f32.mrf.mxu0
        %v2382 = vadd.f32 %v2093, %v2381
        %2383 = vmatmul.f32.gmra.mxu0 %v2124
        %v2384 = vpop.f32.mrf.mxu0
        %v2385 = vadd.f32 %v2093, %v2384
        %2386 = vmatmul.f32.gmra.mxu0 %v2127
        %v2387 = vpop.f32.mrf.mxu0
        %v2388 = vadd.f32 %v2093, %v2387
        %2389 = vdwg.mxu0
        %2390 = vmatpush.msra.mxu0 0.0
        %2391 = vmatpush.msra.mxu0 0.0
        %2392 = vmatpush.msra.mxu0 0.0
        %2393 = vmatpush.msra.mxu0 0.0
        %2394 = vmatpush.msra.mxu0 0.0
        %2395 = vmatpush.msra.mxu0 0.0
        %2396 = vmatpush.msra.mxu0 0.0
        %2397 = vmatpush.msra.mxu0 0.0
        %2398 = vmatpush.msra.mxu0 0.0
        %2399 = vmatpush.msra.mxu0 0.0
        %2400 = vmatpush.msra.mxu0 0.0
        %2401 = vmatpush.msra.mxu0 0.0
        %2402 = vmatpush.msra.mxu0 %v2074
        %2403 = vmatpush.msra.mxu0 %v2058
        %2404 = vmatpush.msra.mxu0 %v2042
        %2405 = vmatpush.msra.mxu0 %v2026
        %2406 = vmatmul.f32.gmra.mxu0 %v2118
        %v2407 = vpop.f32.mrf.mxu0
        %v2408 = vadd.f32 %v2094, %v2407
        %2409 = vmatmul.f32.gmra.mxu0 %v2121
        %v2410 = vpop.f32.mrf.mxu0
        %v2411 = vadd.f32 %v2094, %v2410
        %2412 = vmatmul.f32.gmra.mxu0 %v2124
        %v2413 = vpop.f32.mrf.mxu0
        %v2414 = vadd.f32 %v2094, %v2413
        %2415 = vmatmul.f32.gmra.mxu0 %v2127
        %v2416 = vpop.f32.mrf.mxu0
        %v2417 = vadd.f32 %v2094, %v2416
        %2418 = vdwg.mxu0
        %2419 = vmatpush.msra.mxu0 0.0
        %2420 = vmatpush.msra.mxu0 0.0
        %2421 = vmatpush.msra.mxu0 0.0
        %2422 = vmatpush.msra.mxu0 0.0
        %2423 = vmatpush.msra.mxu0 0.0
        %2424 = vmatpush.msra.mxu0 0.0
        %2425 = vmatpush.msra.mxu0 0.0
        %2426 = vmatpush.msra.mxu0 0.0
        %2427 = vmatpush.msra.mxu0 0.0
        %2428 = vmatpush.msra.mxu0 0.0
        %2429 = vmatpush.msra.mxu0 0.0
        %2430 = vmatpush.msra.mxu0 0.0
        %2431 = vmatpush.msra.mxu0 %v2075
        %2432 = vmatpush.msra.mxu0 %v2059
        %2433 = vmatpush.msra.mxu0 %v2043
        %2434 = vmatpush.msra.mxu0 %v2027
        %2435 = vmatmul.f32.gmra.mxu0 %v2118
        %v2436 = vpop.f32.mrf.mxu0
        %v2437 = vadd.f32 %v2095, %v2436
        %2438 = vmatmul.f32.gmra.mxu0 %v2121
        %v2439 = vpop.f32.mrf.mxu0
        %v2440 = vadd.f32 %v2095, %v2439
        %2441 = vmatmul.f32.gmra.mxu0 %v2124
        %v2442 = vpop.f32.mrf.mxu0
        %v2443 = vadd.f32 %v2095, %v2442
        %2444 = vmatmul.f32.gmra.mxu0 %v2127
        %v2445 = vpop.f32.mrf.mxu0
        %v2446 = vadd.f32 %v2095, %v2445
        %2447 = vdwg.mxu0
        %2448 = vmatpush.msra.mxu0 0.0
        %2449 = vmatpush.msra.mxu0 0.0
        %2450 = vmatpush.msra.mxu0 0.0
        %2451 = vmatpush.msra.mxu0 0.0
        %2452 = vmatpush.msra.mxu0 0.0
        %2453 = vmatpush.msra.mxu0 0.0
        %2454 = vmatpush.msra.mxu0 0.0
        %2455 = vmatpush.msra.mxu0 0.0
        %2456 = vmatpush.msra.mxu0 0.0
        %2457 = vmatpush.msra.mxu0 0.0
        %2458 = vmatpush.msra.mxu0 0.0
        %2459 = vmatpush.msra.mxu0 0.0
        %2460 = vmatpush.msra.mxu0 %v2076
        %2461 = vmatpush.msra.mxu0 %v2060
        %2462 = vmatpush.msra.mxu0 %v2044
        %2463 = vmatpush.msra.mxu0 %v2028
        %2464 = vmatmul.f32.gmra.mxu0 %v2118
        %v2465 = vpop.f32.mrf.mxu0
        %v2466 = vadd.f32 %v2096, %v2465
        %2467 = vmatmul.f32.gmra.mxu0 %v2121
        %v2468 = vpop.f32.mrf.mxu0
        %v2469 = vadd.f32 %v2096, %v2468
        %2470 = vmatmul.f32.gmra.mxu0 %v2124
        %v2471 = vpop.f32.mrf.mxu0
        %v2472 = vadd.f32 %v2096, %v2471
        %2473 = vmatmul.f32.gmra.mxu0 %v2127
        %v2474 = vpop.f32.mrf.mxu0
        %v2475 = vadd.f32 %v2096, %v2474
        %2476 = vdwg.mxu0
        %2477 = vmatpush.msra.mxu0 0.0
        %2478 = vmatpush.msra.mxu0 0.0
        %2479 = vmatpush.msra.mxu0 0.0
        %2480 = vmatpush.msra.mxu0 0.0
        %2481 = vmatpush.msra.mxu0 0.0
        %2482 = vmatpush.msra.mxu0 0.0
        %2483 = vmatpush.msra.mxu0 0.0
        %2484 = vmatpush.msra.mxu0 0.0
        %2485 = vmatpush.msra.mxu0 0.0
        %2486 = vmatpush.msra.mxu0 0.0
        %2487 = vmatpush.msra.mxu0 0.0
        %2488 = vmatpush.msra.mxu0 0.0
        %2489 = vmatpush.msra.mxu0 %v2077
        %2490 = vmatpush.msra.mxu0 %v2061
        %2491 = vmatpush.msra.mxu0 %v2045
        %2492 = vmatpush.msra.mxu0 %v2029
        %2493 = vmatmul.f32.gmra.mxu0 %v2118
        %v2494 = vpop.f32.mrf.mxu0
        %v2495 = vadd.f32 %v2097, %v2494
        %2496 = vmatmul.f32.gmra.mxu0 %v2121
        %v2497 = vpop.f32.mrf.mxu0
        %v2498 = vadd.f32 %v2097, %v2497
        %2499 = vmatmul.f32.gmra.mxu0 %v2124
        %v2500 = vpop.f32.mrf.mxu0
        %v2501 = vadd.f32 %v2097, %v2500
        %2502 = vmatmul.f32.gmra.mxu0 %v2127
        %v2503 = vpop.f32.mrf.mxu0
        %v2504 = vadd.f32 %v2097, %v2503
        %2505 = vdwg.mxu0
        %2506 = vmatpush.msra.mxu0 0.0
        %2507 = vmatpush.msra.mxu0 0.0
        %2508 = vmatpush.msra.mxu0 0.0
        %2509 = vmatpush.msra.mxu0 0.0
        %2510 = vmatpush.msra.mxu0 0.0
        %2511 = vmatpush.msra.mxu0 0.0
        %2512 = vmatpush.msra.mxu0 0.0
        %2513 = vmatpush.msra.mxu0 0.0
        %2514 = vmatpush.msra.mxu0 0.0
        %2515 = vmatpush.msra.mxu0 0.0
        %2516 = vmatpush.msra.mxu0 0.0
        %2517 = vmatpush.msra.mxu0 0.0
        %2518 = vmatpush.msra.mxu0 %v2078
        %2519 = vmatpush.msra.mxu0 %v2062
        %2520 = vmatpush.msra.mxu0 %v2046
        %2521 = vmatpush.msra.mxu0 %v2030
        %2522 = vmatmul.f32.gmra.mxu0 %v2118
        %v2523 = vpop.f32.mrf.mxu0
        %v2524 = vadd.f32 %v2098, %v2523
        %2525 = vmatmul.f32.gmra.mxu0 %v2121
        %v2526 = vpop.f32.mrf.mxu0
        %v2527 = vadd.f32 %v2098, %v2526
        %2528 = vmatmul.f32.gmra.mxu0 %v2124
        %v2529 = vpop.f32.mrf.mxu0
        %v2530 = vadd.f32 %v2098, %v2529
        %2531 = vmatmul.f32.gmra.mxu0 %v2127
        %v2532 = vpop.f32.mrf.mxu0
        %v2533 = vadd.f32 %v2098, %v2532
        %2534 = vdwg.mxu0
        %2535 = vmatpush.msra.mxu0 0.0
        %2536 = vmatpush.msra.mxu0 0.0
        %2537 = vmatpush.msra.mxu0 0.0
        %2538 = vmatpush.msra.mxu0 0.0
        %2539 = vmatpush.msra.mxu0 0.0
        %2540 = vmatpush.msra.mxu0 0.0
        %2541 = vmatpush.msra.mxu0 0.0
        %2542 = vmatpush.msra.mxu0 0.0
        %2543 = vmatpush.msra.mxu0 0.0
        %2544 = vmatpush.msra.mxu0 0.0
        %2545 = vmatpush.msra.mxu0 0.0
        %2546 = vmatpush.msra.mxu0 0.0
        %2547 = vmatpush.msra.mxu0 %v2079
        %2548 = vmatpush.msra.mxu0 %v2063
        %2549 = vmatpush.msra.mxu0 %v2047
        %2550 = vmatpush.msra.mxu0 %v2031
        %2551 = vmatmul.f32.gmra.mxu0 %v2118
        %v2552 = vpop.f32.mrf.mxu0
        %v2553 = vadd.f32 %v2099, %v2552
        %2554 = vmatmul.f32.gmra.mxu0 %v2121
        %v2555 = vpop.f32.mrf.mxu0
        %v2556 = vadd.f32 %v2099, %v2555
        %2557 = vmatmul.f32.gmra.mxu0 %v2124
        %v2558 = vpop.f32.mrf.mxu0
        %v2559 = vadd.f32 %v2099, %v2558
        %2560 = vmatmul.f32.gmra.mxu0 %v2127
        %v2561 = vpop.f32.mrf.mxu0
        %v2562 = vadd.f32 %v2099, %v2561
        %2563 = vdwg.mxu0
        %2564 = vmatpush.msra.mxu0 0.0
        %2565 = vmatpush.msra.mxu0 0.0
        %2566 = vmatpush.msra.mxu0 0.0
        %2567 = vmatpush.msra.mxu0 0.0
        %2568 = vmatpush.msra.mxu0 0.0
        %2569 = vmatpush.msra.mxu0 0.0
        %2570 = vmatpush.msra.mxu0 0.0
        %2571 = vmatpush.msra.mxu0 0.0
        %2572 = vmatpush.msra.mxu0 0.0
        %2573 = vmatpush.msra.mxu0 0.0
        %2574 = vmatpush.msra.mxu0 0.0
        %2575 = vmatpush.msra.mxu0 0.0
        %2576 = vmatpush.msra.mxu0 %v2080
        %2577 = vmatpush.msra.mxu0 %v2064
        %2578 = vmatpush.msra.mxu0 %v2048
        %2579 = vmatpush.msra.mxu0 %v2032
        %2580 = vmatmul.f32.gmra.mxu0 %v2118
        %v2581 = vpop.f32.mrf.mxu0
        %v2582 = vadd.f32 %v2100, %v2581
        %2583 = vmatmul.f32.gmra.mxu0 %v2121
        %v2584 = vpop.f32.mrf.mxu0
        %v2585 = vadd.f32 %v2100, %v2584
        %2586 = vmatmul.f32.gmra.mxu0 %v2124
        %v2587 = vpop.f32.mrf.mxu0
        %v2588 = vadd.f32 %v2100, %v2587
        %2589 = vmatmul.f32.gmra.mxu0 %v2127
        %v2590 = vpop.f32.mrf.mxu0
        %v2591 = vadd.f32 %v2100, %v2590
        %2592 = vdwg.mxu0
        %v2593 = vmax.f32 %v2147, 0.0
        %v2594 = vmax.f32 %v2176, 0.0
        %v2595 = vmax.f32 %v2205, 0.0
        %v2596 = vmax.f32 %v2234, 0.0
        %v2597 = vmax.f32 %v2263, 0.0
        %v2598 = vmax.f32 %v2292, 0.0
        %v2599 = vmax.f32 %v2321, 0.0
        %v2600 = vmax.f32 %v2350, 0.0
        %v2601 = vmax.f32 %v2379, 0.0
        %v2602 = vmax.f32 %v2408, 0.0
        %v2603 = vmax.f32 %v2437, 0.0
        %v2604 = vmax.f32 %v2466, 0.0
        %v2605 = vmax.f32 %v2495, 0.0
        %v2606 = vmax.f32 %v2524, 0.0
        %v2607 = vmax.f32 %v2553, 0.0
        %v2608 = vmax.f32 %v2582, 0.0
        %v2609 = vmax.f32 %v2150, 0.0
        %v2610 = vmax.f32 %v2179, 0.0
        %v2611 = vmax.f32 %v2208, 0.0
        %v2612 = vmax.f32 %v2237, 0.0
        %v2613 = vmax.f32 %v2266, 0.0
        %v2614 = vmax.f32 %v2295, 0.0
        %v2615 = vmax.f32 %v2324, 0.0
        %v2616 = vmax.f32 %v2353, 0.0
        %v2617 = vmax.f32 %v2382, 0.0
        %v2618 = vmax.f32 %v2411, 0.0
        %v2619 = vmax.f32 %v2440, 0.0
        %v2620 = vmax.f32 %v2469, 0.0
        %v2621 = vmax.f32 %v2498, 0.0
        %v2622 = vmax.f32 %v2527, 0.0
        %v2623 = vmax.f32 %v2556, 0.0
        %v2624 = vmax.f32 %v2585, 0.0
        %v2625 = vmax.f32 %v2153, 0.0
        %v2626 = vmax.f32 %v2182, 0.0
        %v2627 = vmax.f32 %v2211, 0.0
        %v2628 = vmax.f32 %v2240, 0.0
        %v2629 = vmax.f32 %v2269, 0.0
        %v2630 = vmax.f32 %v2298, 0.0
        %v2631 = vmax.f32 %v2327, 0.0
        %v2632 = vmax.f32 %v2356, 0.0
        %v2633 = vmax.f32 %v2385, 0.0
        %v2634 = vmax.f32 %v2414, 0.0
        %v2635 = vmax.f32 %v2443, 0.0
        %v2636 = vmax.f32 %v2472, 0.0
        %v2637 = vmax.f32 %v2501, 0.0
        %v2638 = vmax.f32 %v2530, 0.0
        %v2639 = vmax.f32 %v2559, 0.0
        %v2640 = vmax.f32 %v2588, 0.0
        %v2641 = vmax.f32 %v2156, 0.0
        %v2642 = vmax.f32 %v2185, 0.0
        %v2643 = vmax.f32 %v2214, 0.0
        %v2644 = vmax.f32 %v2243, 0.0
        %v2645 = vmax.f32 %v2272, 0.0
        %v2646 = vmax.f32 %v2301, 0.0
        %v2647 = vmax.f32 %v2330, 0.0
        %v2648 = vmax.f32 %v2359, 0.0
        %v2649 = vmax.f32 %v2388, 0.0
        %v2650 = vmax.f32 %v2417, 0.0
        %v2651 = vmax.f32 %v2446, 0.0
        %v2652 = vmax.f32 %v2475, 0.0
        %v2653 = vmax.f32 %v2504, 0.0
        %v2654 = vmax.f32 %v2533, 0.0
        %v2655 = vmax.f32 %v2562, 0.0
        %v2656 = vmax.f32 %v2591, 0.0
        %v2657 = vld [vmem:[%s12] sm:$0xff]
        %v2658 = vld [vmem:[%s12 + $0x8] sm:$0xff]
        %v2659 = vld [vmem:[%s12 + $0x10] sm:$0xff]
        %v2660 = vld [vmem:[%s12 + $0x18] sm:$0xff]
        %v2661 = vld [vmem:[%s12 + $0x20] sm:$0xff]
        %v2662 = vld [vmem:[%s12 + $0x28] sm:$0xff]
        %v2663 = vld [vmem:[%s12 + $0x30] sm:$0xff]
        %v2664 = vld [vmem:[%s12 + $0x38] sm:$0xff]
        %v2665 = vld [vmem:[%s12 + $0x40] sm:$0xff]
        %v2666 = vld [vmem:[%s12 + $0x48] sm:$0xff]
        %v2667 = vld [vmem:[%s12 + $0x50] sm:$0xff]
        %v2668 = vld [vmem:[%s12 + $0x58] sm:$0xff]
        %v2669 = vld [vmem:[%s12 + $0x60] sm:$0xff]
        %v2670 = vld [vmem:[%s12 + $0x68] sm:$0xff]
        %v2671 = vld [vmem:[%s12 + $0x70] sm:$0xff]
        %v2672 = vld [vmem:[%s12 + $0x78] sm:$0xff]
        %v2673 = vld [vmem:[%s12 + $0x80] sm:$0xff]
        %v2674 = vld [vmem:[%s12 + $0x88] sm:$0xff]
        %v2675 = vld [vmem:[%s12 + $0x90] sm:$0xff]
        %v2676 = vld [vmem:[%s12 + $0x98] sm:$0xff]
        %v2677 = vld [vmem:[%s12 + $0xa0] sm:$0xff]
        %v2678 = vld [vmem:[%s12 + $0xa8] sm:$0xff]
        %v2679 = vld [vmem:[%s12 + $0xb0] sm:$0xff]
        %v2680 = vld [vmem:[%s12 + $0xb8] sm:$0xff]
        %v2681 = vld [vmem:[%s12 + $0xc0] sm:$0xff]
        %v2682 = vld [vmem:[%s12 + $0xc8] sm:$0xff]
        %v2683 = vld [vmem:[%s12 + $0xd0] sm:$0xff]
        %v2684 = vld [vmem:[%s12 + $0xd8] sm:$0xff]
        %v2685 = vld [vmem:[%s12 + $0xe0] sm:$0xff]
        %v2686 = vld [vmem:[%s12 + $0xe8] sm:$0xff]
        %v2687 = vld [vmem:[%s12 + $0xf0] sm:$0xff]
        %v2688 = vld [vmem:[%s12 + $0xf8] sm:$0xff]
        %v2689 = vld [vmem:[%s12 + $0x100] sm:$0xff]
        %v2690 = vld [vmem:[%s12 + $0x108] sm:$0xff]
        %v2691 = vld [vmem:[%s12 + $0x110] sm:$0xff]
        %v2692 = vld [vmem:[%s12 + $0x118] sm:$0xff]
        %v2693 = vld [vmem:[%s12 + $0x120] sm:$0xff]
        %v2694 = vld [vmem:[%s12 + $0x128] sm:$0xff]
        %v2695 = vld [vmem:[%s12 + $0x130] sm:$0xff]
        %v2696 = vld [vmem:[%s12 + $0x138] sm:$0xff]
        %v2697 = vld [vmem:[%s12 + $0x140] sm:$0xff]
        %v2698 = vld [vmem:[%s12 + $0x148] sm:$0xff]
        %v2699 = vld [vmem:[%s12 + $0x150] sm:$0xff]
        %v2700 = vld [vmem:[%s12 + $0x158] sm:$0xff]
        %v2701 = vld [vmem:[%s12 + $0x160] sm:$0xff]
        %v2702 = vld [vmem:[%s12 + $0x168] sm:$0xff]
        %v2703 = vld [vmem:[%s12 + $0x170] sm:$0xff]
        %v2704 = vld [vmem:[%s12 + $0x178] sm:$0xff]
        %v2705 = vld [vmem:[%s12 + $0x180] sm:$0xff]
        %v2706 = vld [vmem:[%s12 + $0x188] sm:$0xff]
        %v2707 = vld [vmem:[%s12 + $0x190] sm:$0xff]
        %v2708 = vld [vmem:[%s12 + $0x198] sm:$0xff]
        %v2709 = vld [vmem:[%s12 + $0x1a0] sm:$0xff]
        %v2710 = vld [vmem:[%s12 + $0x1a8] sm:$0xff]
        %v2711 = vld [vmem:[%s12 + $0x1b0] sm:$0xff]
        %v2712 = vld [vmem:[%s12 + $0x1b8] sm:$0xff]
        %v2713 = vld [vmem:[%s12 + $0x1c0] sm:$0xff]
        %v2714 = vld [vmem:[%s12 + $0x1c8] sm:$0xff]
        %v2715 = vld [vmem:[%s12 + $0x1d0] sm:$0xff]
        %v2716 = vld [vmem:[%s12 + $0x1d8] sm:$0xff]
        %v2717 = vld [vmem:[%s12 + $0x1e0] sm:$0xff]
        %v2718 = vld [vmem:[%s12 + $0x1e8] sm:$0xff]
        %v2719 = vld [vmem:[%s12 + $0x1f0] sm:$0xff]
        %v2720 = vld [vmem:[%s12 + $0x1f8] sm:$0xff]
        %v2721 = vld [vmem:[%s12 + $0x200] sm:$0xff]
        %v2722 = vld [vmem:[%s12 + $0x208] sm:$0xff]
        %v2723 = vld [vmem:[%s12 + $0x210] sm:$0xff]
        %v2724 = vld [vmem:[%s12 + $0x218] sm:$0xff]
        %v2725 = vld [vmem:[%s12 + $0x220] sm:$0xff]
        %v2726 = vld [vmem:[%s12 + $0x228] sm:$0xff]
        %v2727 = vld [vmem:[%s12 + $0x230] sm:$0xff]
        %v2728 = vld [vmem:[%s12 + $0x238] sm:$0xff]
        %v2729 = vld [vmem:[%s12 + $0x240] sm:$0xff]
        %v2730 = vld [vmem:[%s12 + $0x248] sm:$0xff]
        %v2731 = vld [vmem:[%s12 + $0x250] sm:$0xff]
        %v2732 = vld [vmem:[%s12 + $0x258] sm:$0xff]
        %v2733 = vld [vmem:[%s12 + $0x260] sm:$0xff]
        %v2734 = vld [vmem:[%s12 + $0x268] sm:$0xff]
        %v2735 = vld [vmem:[%s12 + $0x270] sm:$0xff]
        %v2736 = vld [vmem:[%s12 + $0x278] sm:$0xff]
        %v2737 = vld [vmem:[%s12 + $0x280] sm:$0xff]
        %v2738 = vld [vmem:[%s12 + $0x288] sm:$0xff]
        %v2739 = vld [vmem:[%s12 + $0x290] sm:$0xff]
        %v2740 = vld [vmem:[%s12 + $0x298] sm:$0xff]
        %v2741 = vld [vmem:[%s12 + $0x2a0] sm:$0xff]
        %v2742 = vld [vmem:[%s12 + $0x2a8] sm:$0xff]
        %v2743 = vld [vmem:[%s12 + $0x2b0] sm:$0xff]
        %v2744 = vld [vmem:[%s12 + $0x2b8] sm:$0xff]
        %v2745 = vld [vmem:[%s12 + $0x2c0] sm:$0xff]
        %v2746 = vld [vmem:[%s12 + $0x2c8] sm:$0xff]
        %v2747 = vld [vmem:[%s12 + $0x2d0] sm:$0xff]
        %v2748 = vld [vmem:[%s12 + $0x2d8] sm:$0xff]
        %v2749 = vld [vmem:[%s12 + $0x2e0] sm:$0xff]
        %v2750 = vld [vmem:[%s12 + $0x2e8] sm:$0xff]
        %v2751 = vld [vmem:[%s12 + $0x2f0] sm:$0xff]
        %v2752 = vld [vmem:[%s12 + $0x2f8] sm:$0xff]
        %v2753 = vld [vmem:[%s12 + $0x300] sm:$0xff]
        %v2754 = vld [vmem:[%s12 + $0x308] sm:$0xff]
        %v2755 = vld [vmem:[%s12 + $0x310] sm:$0xff]
        %v2756 = vld [vmem:[%s12 + $0x318] sm:$0xff]
        %v2757 = vld [vmem:[%s12 + $0x320] sm:$0xff]
        %v2758 = vld [vmem:[%s12 + $0x328] sm:$0xff]
        %v2759 = vld [vmem:[%s12 + $0x330] sm:$0xff]
        %v2760 = vld [vmem:[%s12 + $0x338] sm:$0xff]
        %v2761 = vld [vmem:[%s12 + $0x340] sm:$0xff]
        %v2762 = vld [vmem:[%s12 + $0x348] sm:$0xff]
        %v2763 = vld [vmem:[%s12 + $0x350] sm:$0xff]
        %v2764 = vld [vmem:[%s12 + $0x358] sm:$0xff]
        %v2765 = vld [vmem:[%s12 + $0x360] sm:$0xff]
        %v2766 = vld [vmem:[%s12 + $0x368] sm:$0xff]
        %v2767 = vld [vmem:[%s12 + $0x370] sm:$0xff]
        %v2768 = vld [vmem:[%s12 + $0x378] sm:$0xff]
        %v2769 = vld [vmem:[%s12 + $0x380] sm:$0xff]
        %v2770 = vld [vmem:[%s12 + $0x388] sm:$0xff]
        %v2771 = vld [vmem:[%s12 + $0x390] sm:$0xff]
        %v2772 = vld [vmem:[%s12 + $0x398] sm:$0xff]
        %v2773 = vld [vmem:[%s12 + $0x3a0] sm:$0xff]
        %v2774 = vld [vmem:[%s12 + $0x3a8] sm:$0xff]
        %v2775 = vld [vmem:[%s12 + $0x3b0] sm:$0xff]
        %v2776 = vld [vmem:[%s12 + $0x3b8] sm:$0xff]
        %v2777 = vld [vmem:[%s12 + $0x3c0] sm:$0xff]
        %v2778 = vld [vmem:[%s12 + $0x3c8] sm:$0xff]
        %v2779 = vld [vmem:[%s12 + $0x3d0] sm:$0xff]
        %v2780 = vld [vmem:[%s12 + $0x3d8] sm:$0xff]
        %v2781 = vld [vmem:[%s12 + $0x3e0] sm:$0xff]
        %v2782 = vld [vmem:[%s12 + $0x3e8] sm:$0xff]
        %v2783 = vld [vmem:[%s12 + $0x3f0] sm:$0xff]
        %v2784 = vld [vmem:[%s12 + $0x3f8] sm:$0xff]
        %v2785 = vld [vmem:[%s12 + $0x400] sm:$0xff]
        %v2786 = vld [vmem:[%s12 + $0x408] sm:$0xff]
        %v2787 = vld [vmem:[%s12 + $0x410] sm:$0xff]
        %v2788 = vld [vmem:[%s12 + $0x418] sm:$0xff]
        %v2789 = vld [vmem:[%s12 + $0x420] sm:$0xff]
        %v2790 = vld [vmem:[%s12 + $0x428] sm:$0xff]
        %v2791 = vld [vmem:[%s12 + $0x430] sm:$0xff]
        %v2792 = vld [vmem:[%s12 + $0x438] sm:$0xff]
        %v2793 = vld [vmem:[%s12 + $0x440] sm:$0xff]
        %v2794 = vld [vmem:[%s12 + $0x448] sm:$0xff]
        %v2795 = vld [vmem:[%s12 + $0x450] sm:$0xff]
        %v2796 = vld [vmem:[%s12 + $0x458] sm:$0xff]
        %v2797 = vld [vmem:[%s12 + $0x460] sm:$0xff]
        %v2798 = vld [vmem:[%s12 + $0x468] sm:$0xff]
        %v2799 = vld [vmem:[%s12 + $0x470] sm:$0xff]
        %v2800 = vld [vmem:[%s12 + $0x478] sm:$0xff]
        %v2801 = vld [vmem:[%s12 + $0x480] sm:$0xff]
        %v2802 = vld [vmem:[%s12 + $0x488] sm:$0xff]
        %v2803 = vld [vmem:[%s12 + $0x490] sm:$0xff]
        %v2804 = vld [vmem:[%s12 + $0x498] sm:$0xff]
        %v2805 = vld [vmem:[%s12 + $0x4a0] sm:$0xff]
        %v2806 = vld [vmem:[%s12 + $0x4a8] sm:$0xff]
        %v2807 = vld [vmem:[%s12 + $0x4b0] sm:$0xff]
        %v2808 = vld [vmem:[%s12 + $0x4b8] sm:$0xff]
        %v2809 = vld [vmem:[%s12 + $0x4c0] sm:$0xff]
        %v2810 = vld [vmem:[%s12 + $0x4c8] sm:$0xff]
        %v2811 = vld [vmem:[%s12 + $0x4d0] sm:$0xff]
        %v2812 = vld [vmem:[%s12 + $0x4d8] sm:$0xff]
        %v2813 = vld [vmem:[%s12 + $0x4e0] sm:$0xff]
        %v2814 = vld [vmem:[%s12 + $0x4e8] sm:$0xff]
        %v2815 = vld [vmem:[%s12 + $0x4f0] sm:$0xff]
        %v2816 = vld [vmem:[%s12 + $0x4f8] sm:$0xff]
        %v2817 = vld [vmem:[%s12 + $0x500] sm:$0xff]
        %v2818 = vld [vmem:[%s12 + $0x508] sm:$0xff]
        %v2819 = vld [vmem:[%s12 + $0x510] sm:$0xff]
        %v2820 = vld [vmem:[%s12 + $0x518] sm:$0xff]
        %v2821 = vld [vmem:[%s12 + $0x520] sm:$0xff]
        %v2822 = vld [vmem:[%s12 + $0x528] sm:$0xff]
        %v2823 = vld [vmem:[%s12 + $0x530] sm:$0xff]
        %v2824 = vld [vmem:[%s12 + $0x538] sm:$0xff]
        %v2825 = vld [vmem:[%s12 + $0x540] sm:$0xff]
        %v2826 = vld [vmem:[%s12 + $0x548] sm:$0xff]
        %v2827 = vld [vmem:[%s12 + $0x550] sm:$0xff]
        %v2828 = vld [vmem:[%s12 + $0x558] sm:$0xff]
        %v2829 = vld [vmem:[%s12 + $0x560] sm:$0xff]
        %v2830 = vld [vmem:[%s12 + $0x568] sm:$0xff]
        %v2831 = vld [vmem:[%s12 + $0x570] sm:$0xff]
        %v2832 = vld [vmem:[%s12 + $0x578] sm:$0xff]
        %v2833 = vld [vmem:[%s12 + $0x580] sm:$0xff]
        %v2834 = vld [vmem:[%s12 + $0x588] sm:$0xff]
        %v2835 = vld [vmem:[%s12 + $0x590] sm:$0xff]
        %v2836 = vld [vmem:[%s12 + $0x598] sm:$0xff]
        %v2837 = vld [vmem:[%s12 + $0x5a0] sm:$0xff]
        %v2838 = vld [vmem:[%s12 + $0x5a8] sm:$0xff]
        %v2839 = vld [vmem:[%s12 + $0x5b0] sm:$0xff]
        %v2840 = vld [vmem:[%s12 + $0x5b8] sm:$0xff]
        %v2841 = vld [vmem:[%s12 + $0x5c0] sm:$0xff]
        %v2842 = vld [vmem:[%s12 + $0x5c8] sm:$0xff]
        %v2843 = vld [vmem:[%s12 + $0x5d0] sm:$0xff]
        %v2844 = vld [vmem:[%s12 + $0x5d8] sm:$0xff]
        %v2845 = vld [vmem:[%s12 + $0x5e0] sm:$0xff]
        %v2846 = vld [vmem:[%s12 + $0x5e8] sm:$0xff]
        %v2847 = vld [vmem:[%s12 + $0x5f0] sm:$0xff]
        %v2848 = vld [vmem:[%s12 + $0x5f8] sm:$0xff]
        %v2849 = vld [vmem:[%s12 + $0x600] sm:$0xff]
        %v2850 = vld [vmem:[%s12 + $0x608] sm:$0xff]
        %v2851 = vld [vmem:[%s12 + $0x610] sm:$0xff]
        %v2852 = vld [vmem:[%s12 + $0x618] sm:$0xff]
        %v2853 = vld [vmem:[%s12 + $0x620] sm:$0xff]
        %v2854 = vld [vmem:[%s12 + $0x628] sm:$0xff]
        %v2855 = vld [vmem:[%s12 + $0x630] sm:$0xff]
        %v2856 = vld [vmem:[%s12 + $0x638] sm:$0xff]
        %v2857 = vld [vmem:[%s12 + $0x640] sm:$0xff]
        %v2858 = vld [vmem:[%s12 + $0x648] sm:$0xff]
        %v2859 = vld [vmem:[%s12 + $0x650] sm:$0xff]
        %v2860 = vld [vmem:[%s12 + $0x658] sm:$0xff]
        %v2861 = vld [vmem:[%s12 + $0x660] sm:$0xff]
        %v2862 = vld [vmem:[%s12 + $0x668] sm:$0xff]
        %v2863 = vld [vmem:[%s12 + $0x670] sm:$0xff]
        %v2864 = vld [vmem:[%s12 + $0x678] sm:$0xff]
        %v2865 = vld [vmem:[%s12 + $0x680] sm:$0xff]
        %v2866 = vld [vmem:[%s12 + $0x688] sm:$0xff]
        %v2867 = vld [vmem:[%s12 + $0x690] sm:$0xff]
        %v2868 = vld [vmem:[%s12 + $0x698] sm:$0xff]
        %v2869 = vld [vmem:[%s12 + $0x6a0] sm:$0xff]
        %v2870 = vld [vmem:[%s12 + $0x6a8] sm:$0xff]
        %v2871 = vld [vmem:[%s12 + $0x6b0] sm:$0xff]
        %v2872 = vld [vmem:[%s12 + $0x6b8] sm:$0xff]
        %v2873 = vld [vmem:[%s12 + $0x6c0] sm:$0xff]
        %v2874 = vld [vmem:[%s12 + $0x6c8] sm:$0xff]
        %v2875 = vld [vmem:[%s12 + $0x6d0] sm:$0xff]
        %v2876 = vld [vmem:[%s12 + $0x6d8] sm:$0xff]
        %v2877 = vld [vmem:[%s12 + $0x6e0] sm:$0xff]
        %v2878 = vld [vmem:[%s12 + $0x6e8] sm:$0xff]
        %v2879 = vld [vmem:[%s12 + $0x6f0] sm:$0xff]
        %v2880 = vld [vmem:[%s12 + $0x6f8] sm:$0xff]
        %v2881 = vld [vmem:[%s12 + $0x700] sm:$0xff]
        %v2882 = vld [vmem:[%s12 + $0x708] sm:$0xff]
        %v2883 = vld [vmem:[%s12 + $0x710] sm:$0xff]
        %v2884 = vld [vmem:[%s12 + $0x718] sm:$0xff]
        %v2885 = vld [vmem:[%s12 + $0x720] sm:$0xff]
        %v2886 = vld [vmem:[%s12 + $0x728] sm:$0xff]
        %v2887 = vld [vmem:[%s12 + $0x730] sm:$0xff]
        %v2888 = vld [vmem:[%s12 + $0x738] sm:$0xff]
        %v2889 = vld [vmem:[%s12 + $0x740] sm:$0xff]
        %v2890 = vld [vmem:[%s12 + $0x748] sm:$0xff]
        %v2891 = vld [vmem:[%s12 + $0x750] sm:$0xff]
        %v2892 = vld [vmem:[%s12 + $0x758] sm:$0xff]
        %v2893 = vld [vmem:[%s12 + $0x760] sm:$0xff]
        %v2894 = vld [vmem:[%s12 + $0x768] sm:$0xff]
        %v2895 = vld [vmem:[%s12 + $0x770] sm:$0xff]
        %v2896 = vld [vmem:[%s12 + $0x778] sm:$0xff]
        %v2897 = vld [vmem:[%s12 + $0x780] sm:$0xff]
        %v2898 = vld [vmem:[%s12 + $0x788] sm:$0xff]
        %v2899 = vld [vmem:[%s12 + $0x790] sm:$0xff]
        %v2900 = vld [vmem:[%s12 + $0x798] sm:$0xff]
        %v2901 = vld [vmem:[%s12 + $0x7a0] sm:$0xff]
        %v2902 = vld [vmem:[%s12 + $0x7a8] sm:$0xff]
        %v2903 = vld [vmem:[%s12 + $0x7b0] sm:$0xff]
        %v2904 = vld [vmem:[%s12 + $0x7b8] sm:$0xff]
        %v2905 = vld [vmem:[%s12 + $0x7c0] sm:$0xff]
        %v2906 = vld [vmem:[%s12 + $0x7c8] sm:$0xff]
        %v2907 = vld [vmem:[%s12 + $0x7d0] sm:$0xff]
        %v2908 = vld [vmem:[%s12 + $0x7d8] sm:$0xff]
        %v2909 = vld [vmem:[%s12 + $0x7e0] sm:$0xff]
        %v2910 = vld [vmem:[%s12 + $0x7e8] sm:$0xff]
        %v2911 = vld [vmem:[%s12 + $0x7f0] sm:$0xff]
        %v2912 = vld [vmem:[%s12 + $0x7f8] sm:$0xff]
        %v2913 = vld [vmem:[%s13] sm:$0x1]
        %v2915 = vperm.slane %v2913, 0
        %2917 = vmatpush.msra.mxu0 %v2672
        %2918 = vmatpush.msra.mxu0 %v2671
        %2919 = vmatpush.msra.mxu0 %v2670
        %2920 = vmatpush.msra.mxu0 %v2669
        %2921 = vmatpush.msra.mxu0 %v2668
        %2922 = vmatpush.msra.mxu0 %v2667
        %2923 = vmatpush.msra.mxu0 %v2666
        %2924 = vmatpush.msra.mxu0 %v2665
        %2925 = vmatpush.msra.mxu0 %v2664
        %2926 = vmatpush.msra.mxu0 %v2663
        %2927 = vmatpush.msra.mxu0 %v2662
        %2928 = vmatpush.msra.mxu0 %v2661
        %2929 = vmatpush.msra.mxu0 %v2660
        %2930 = vmatpush.msra.mxu0 %v2659
        %2931 = vmatpush.msra.mxu0 %v2658
        %2932 = vmatpush.msra.mxu0 %v2657
        %2933 = vmatmul.f32.gmra.mxu0 %v2593
        %v2934 = vpop.f32.mrf.mxu0
        %v2935 = vadd.f32 %v2915, %v2934
        %2936 = vmatmul.f32.gmra.mxu0 %v2609
        %v2937 = vpop.f32.mrf.mxu0
        %v2938 = vadd.f32 %v2915, %v2937
        %2939 = vmatmul.f32.gmra.mxu0 %v2625
        %v2940 = vpop.f32.mrf.mxu0
        %v2941 = vadd.f32 %v2915, %v2940
        %2942 = vmatmul.f32.gmra.mxu0 %v2641
        %v2943 = vpop.f32.mrf.mxu0
        %v2944 = vadd.f32 %v2915, %v2943
        %2945 = vdwg.mxu0
        %2946 = vmatpush.msra.mxu0 %v2688
        %2947 = vmatpush.msra.mxu0 %v2687
        %2948 = vmatpush.msra.mxu0 %v2686
        %2949 = vmatpush.msra.mxu0 %v2685
        %2950 = vmatpush.msra.mxu0 %v2684
        %2951 = vmatpush.msra.mxu0 %v2683
        %2952 = vmatpush.msra.mxu0 %v2682
        %2953 = vmatpush.msra.mxu0 %v2681
        %2954 = vmatpush.msra.mxu0 %v2680
        %2955 = vmatpush.msra.mxu0 %v2679
        %2956 = vmatpush.msra.mxu0 %v2678
        %2957 = vmatpush.msra.mxu0 %v2677
        %2958 = vmatpush.msra.mxu0 %v2676
        %2959 = vmatpush.msra.mxu0 %v2675
        %2960 = vmatpush.msra.mxu0 %v2674
        %2961 = vmatpush.msra.mxu0 %v2673
        %2962 = vmatmul.f32.gmra.mxu0 %v2594
        %v2963 = vpop.f32.mrf.mxu0
        %v2964 = vadd.f32 %v2935, %v2963
        %2965 = vmatmul.f32.gmra.mxu0 %v2610
        %v2966 = vpop.f32.mrf.mxu0
        %v2967 = vadd.f32 %v2938, %v2966
        %2968 = vmatmul.f32.gmra.mxu0 %v2626
        %v2969 = vpop.f32.mrf.mxu0
        %v2970 = vadd.f32 %v2941, %v2969
        %2971 = vmatmul.f32.gmra.mxu0 %v2642
        %v2972 = vpop.f32.mrf.mxu0
        %v2973 = vadd.f32 %v2944, %v2972
        %2974 = vdwg.mxu0
        %2975 = vmatpush.msra.mxu0 %v2704
        %2976 = vmatpush.msra.mxu0 %v2703
        %2977 = vmatpush.msra.mxu0 %v2702
        %2978 = vmatpush.msra.mxu0 %v2701
        %2979 = vmatpush.msra.mxu0 %v2700
        %2980 = vmatpush.msra.mxu0 %v2699
        %2981 = vmatpush.msra.mxu0 %v2698
        %2982 = vmatpush.msra.mxu0 %v2697
        %2983 = vmatpush.msra.mxu0 %v2696
        %2984 = vmatpush.msra.mxu0 %v2695
        %2985 = vmatpush.msra.mxu0 %v2694
        %2986 = vmatpush.msra.mxu0 %v2693
        %2987 = vmatpush.msra.mxu0 %v2692
        %2988 = vmatpush.msra.mxu0 %v2691
        %2989 = vmatpush.msra.mxu0 %v2690
        %2990 = vmatpush.msra.mxu0 %v2689
        %2991 = vmatmul.f32.gmra.mxu0 %v2595
        %v2992 = vpop.f32.mrf.mxu0
        %v2993 = vadd.f32 %v2964, %v2992
        %2994 = vmatmul.f32.gmra.mxu0 %v2611
        %v2995 = vpop.f32.mrf.mxu0
        %v2996 = vadd.f32 %v2967, %v2995
        %2997 = vmatmul.f32.gmra.mxu0 %v2627
        %v2998 = vpop.f32.mrf.mxu0
        %v2999 = vadd.f32 %v2970, %v2998
        %3000 = vmatmul.f32.gmra.mxu0 %v2643
        %v3001 = vpop.f32.mrf.mxu0
        %v3002 = vadd.f32 %v2973, %v3001
        %3003 = vdwg.mxu0
        %3004 = vmatpush.msra.mxu0 %v2720
        %3005 = vmatpush.msra.mxu0 %v2719
        %3006 = vmatpush.msra.mxu0 %v2718
        %3007 = vmatpush.msra.mxu0 %v2717
        %3008 = vmatpush.msra.mxu0 %v2716
        %3009 = vmatpush.msra.mxu0 %v2715
        %3010 = vmatpush.msra.mxu0 %v2714
        %3011 = vmatpush.msra.mxu0 %v2713
        %3012 = vmatpush.msra.mxu0 %v2712
        %3013 = vmatpush.msra.mxu0 %v2711
        %3014 = vmatpush.msra.mxu0 %v2710
        %3015 = vmatpush.msra.mxu0 %v2709
        %3016 = vmatpush.msra.mxu0 %v2708
        %3017 = vmatpush.msra.mxu0 %v2707
        %3018 = vmatpush.msra.mxu0 %v2706
        %3019 = vmatpush.msra.mxu0 %v2705
        %3020 = vmatmul.f32.gmra.mxu0 %v2596
        %v3021 = vpop.f32.mrf.mxu0
        %v3022 = vadd.f32 %v2993, %v3021
        %3023 = vmatmul.f32.gmra.mxu0 %v2612
        %v3024 = vpop.f32.mrf.mxu0
        %v3025 = vadd.f32 %v2996, %v3024
        %3026 = vmatmul.f32.gmra.mxu0 %v2628
        %v3027 = vpop.f32.mrf.mxu0
        %v3028 = vadd.f32 %v2999, %v3027
        %3029 = vmatmul.f32.gmra.mxu0 %v2644
        %v3030 = vpop.f32.mrf.mxu0
        %v3031 = vadd.f32 %v3002, %v3030
        %3032 = vdwg.mxu0
        %3033 = vmatpush.msra.mxu0 %v2736
        %3034 = vmatpush.msra.mxu0 %v2735
        %3035 = vmatpush.msra.mxu0 %v2734
        %3036 = vmatpush.msra.mxu0 %v2733
        %3037 = vmatpush.msra.mxu0 %v2732
        %3038 = vmatpush.msra.mxu0 %v2731
        %3039 = vmatpush.msra.mxu0 %v2730
        %3040 = vmatpush.msra.mxu0 %v2729
        %3041 = vmatpush.msra.mxu0 %v2728
        %3042 = vmatpush.msra.mxu0 %v2727
        %3043 = vmatpush.msra.mxu0 %v2726
        %3044 = vmatpush.msra.mxu0 %v2725
        %3045 = vmatpush.msra.mxu0 %v2724
        %3046 = vmatpush.msra.mxu0 %v2723
        %3047 = vmatpush.msra.mxu0 %v2722
        %3048 = vmatpush.msra.mxu0 %v2721
        %3049 = vmatmul.f32.gmra.mxu0 %v2597
        %v3050 = vpop.f32.mrf.mxu0
        %v3051 = vadd.f32 %v3022, %v3050
        %3052 = vmatmul.f32.gmra.mxu0 %v2613
        %v3053 = vpop.f32.mrf.mxu0
        %v3054 = vadd.f32 %v3025, %v3053
        %3055 = vmatmul.f32.gmra.mxu0 %v2629
        %v3056 = vpop.f32.mrf.mxu0
        %v3057 = vadd.f32 %v3028, %v3056
        %3058 = vmatmul.f32.gmra.mxu0 %v2645
        %v3059 = vpop.f32.mrf.mxu0
        %v3060 = vadd.f32 %v3031, %v3059
        %3061 = vdwg.mxu0
        %3062 = vmatpush.msra.mxu0 %v2752
        %3063 = vmatpush.msra.mxu0 %v2751
        %3064 = vmatpush.msra.mxu0 %v2750
        %3065 = vmatpush.msra.mxu0 %v2749
        %3066 = vmatpush.msra.mxu0 %v2748
        %3067 = vmatpush.msra.mxu0 %v2747
        %3068 = vmatpush.msra.mxu0 %v2746
        %3069 = vmatpush.msra.mxu0 %v2745
        %3070 = vmatpush.msra.mxu0 %v2744
        %3071 = vmatpush.msra.mxu0 %v2743
        %3072 = vmatpush.msra.mxu0 %v2742
        %3073 = vmatpush.msra.mxu0 %v2741
        %3074 = vmatpush.msra.mxu0 %v2740
        %3075 = vmatpush.msra.mxu0 %v2739
        %3076 = vmatpush.msra.mxu0 %v2738
        %3077 = vmatpush.msra.mxu0 %v2737
        %3078 = vmatmul.f32.gmra.mxu0 %v2598
        %v3079 = vpop.f32.mrf.mxu0
        %v3080 = vadd.f32 %v3051, %v3079
        %3081 = vmatmul.f32.gmra.mxu0 %v2614
        %v3082 = vpop.f32.mrf.mxu0
        %v3083 = vadd.f32 %v3054, %v3082
        %3084 = vmatmul.f32.gmra.mxu0 %v2630
        %v3085 = vpop.f32.mrf.mxu0
        %v3086 = vadd.f32 %v3057, %v3085
        %3087 = vmatmul.f32.gmra.mxu0 %v2646
        %v3088 = vpop.f32.mrf.mxu0
        %v3089 = vadd.f32 %v3060, %v3088
        %3090 = vdwg.mxu0
        %3091 = vmatpush.msra.mxu0 %v2768
        %3092 = vmatpush.msra.mxu0 %v2767
        %3093 = vmatpush.msra.mxu0 %v2766
        %3094 = vmatpush.msra.mxu0 %v2765
        %3095 = vmatpush.msra.mxu0 %v2764
        %3096 = vmatpush.msra.mxu0 %v2763
        %3097 = vmatpush.msra.mxu0 %v2762
        %3098 = vmatpush.msra.mxu0 %v2761
        %3099 = vmatpush.msra.mxu0 %v2760
        %3100 = vmatpush.msra.mxu0 %v2759
        %3101 = vmatpush.msra.mxu0 %v2758
        %3102 = vmatpush.msra.mxu0 %v2757
        %3103 = vmatpush.msra.mxu0 %v2756
        %3104 = vmatpush.msra.mxu0 %v2755
        %3105 = vmatpush.msra.mxu0 %v2754
        %3106 = vmatpush.msra.mxu0 %v2753
        %3107 = vmatmul.f32.gmra.mxu0 %v2599
        %v3108 = vpop.f32.mrf.mxu0
        %v3109 = vadd.f32 %v3080, %v3108
        %3110 = vmatmul.f32.gmra.mxu0 %v2615
        %v3111 = vpop.f32.mrf.mxu0
        %v3112 = vadd.f32 %v3083, %v3111
        %3113 = vmatmul.f32.gmra.mxu0 %v2631
        %v3114 = vpop.f32.mrf.mxu0
        %v3115 = vadd.f32 %v3086, %v3114
        %3116 = vmatmul.f32.gmra.mxu0 %v2647
        %v3117 = vpop.f32.mrf.mxu0
        %v3118 = vadd.f32 %v3089, %v3117
        %3119 = vdwg.mxu0
        %3120 = vmatpush.msra.mxu0 %v2784
        %3121 = vmatpush.msra.mxu0 %v2783
        %3122 = vmatpush.msra.mxu0 %v2782
        %3123 = vmatpush.msra.mxu0 %v2781
        %3124 = vmatpush.msra.mxu0 %v2780
        %3125 = vmatpush.msra.mxu0 %v2779
        %3126 = vmatpush.msra.mxu0 %v2778
        %3127 = vmatpush.msra.mxu0 %v2777
        %3128 = vmatpush.msra.mxu0 %v2776
        %3129 = vmatpush.msra.mxu0 %v2775
        %3130 = vmatpush.msra.mxu0 %v2774
        %3131 = vmatpush.msra.mxu0 %v2773
        %3132 = vmatpush.msra.mxu0 %v2772
        %3133 = vmatpush.msra.mxu0 %v2771
        %3134 = vmatpush.msra.mxu0 %v2770
        %3135 = vmatpush.msra.mxu0 %v2769
        %3136 = vmatmul.f32.gmra.mxu0 %v2600
        %v3137 = vpop.f32.mrf.mxu0
        %v3138 = vadd.f32 %v3109, %v3137
        %3139 = vmatmul.f32.gmra.mxu0 %v2616
        %v3140 = vpop.f32.mrf.mxu0
        %v3141 = vadd.f32 %v3112, %v3140
        %3142 = vmatmul.f32.gmra.mxu0 %v2632
        %v3143 = vpop.f32.mrf.mxu0
        %v3144 = vadd.f32 %v3115, %v3143
        %3145 = vmatmul.f32.gmra.mxu0 %v2648
        %v3146 = vpop.f32.mrf.mxu0
        %v3147 = vadd.f32 %v3118, %v3146
        %3148 = vdwg.mxu0
        %3149 = vmatpush.msra.mxu0 %v2800
        %3150 = vmatpush.msra.mxu0 %v2799
        %3151 = vmatpush.msra.mxu0 %v2798
        %3152 = vmatpush.msra.mxu0 %v2797
        %3153 = vmatpush.msra.mxu0 %v2796
        %3154 = vmatpush.msra.mxu0 %v2795
        %3155 = vmatpush.msra.mxu0 %v2794
        %3156 = vmatpush.msra.mxu0 %v2793
        %3157 = vmatpush.msra.mxu0 %v2792
        %3158 = vmatpush.msra.mxu0 %v2791
        %3159 = vmatpush.msra.mxu0 %v2790
        %3160 = vmatpush.msra.mxu0 %v2789
        %3161 = vmatpush.msra.mxu0 %v2788
        %3162 = vmatpush.msra.mxu0 %v2787
        %3163 = vmatpush.msra.mxu0 %v2786
        %3164 = vmatpush.msra.mxu0 %v2785
        %3165 = vmatmul.f32.gmra.mxu0 %v2601
        %v3166 = vpop.f32.mrf.mxu0
        %v3167 = vadd.f32 %v3138, %v3166
        %3168 = vmatmul.f32.gmra.mxu0 %v2617
        %v3169 = vpop.f32.mrf.mxu0
        %v3170 = vadd.f32 %v3141, %v3169
        %3171 = vmatmul.f32.gmra.mxu0 %v2633
        %v3172 = vpop.f32.mrf.mxu0
        %v3173 = vadd.f32 %v3144, %v3172
        %3174 = vmatmul.f32.gmra.mxu0 %v2649
        %v3175 = vpop.f32.mrf.mxu0
        %v3176 = vadd.f32 %v3147, %v3175
        %3177 = vdwg.mxu0
        %3178 = vmatpush.msra.mxu0 %v2816
        %3179 = vmatpush.msra.mxu0 %v2815
        %3180 = vmatpush.msra.mxu0 %v2814
        %3181 = vmatpush.msra.mxu0 %v2813
        %3182 = vmatpush.msra.mxu0 %v2812
        %3183 = vmatpush.msra.mxu0 %v2811
        %3184 = vmatpush.msra.mxu0 %v2810
        %3185 = vmatpush.msra.mxu0 %v2809
        %3186 = vmatpush.msra.mxu0 %v2808
        %3187 = vmatpush.msra.mxu0 %v2807
        %3188 = vmatpush.msra.mxu0 %v2806
        %3189 = vmatpush.msra.mxu0 %v2805
        %3190 = vmatpush.msra.mxu0 %v2804
        %3191 = vmatpush.msra.mxu0 %v2803
        %3192 = vmatpush.msra.mxu0 %v2802
        %3193 = vmatpush.msra.mxu0 %v2801
        %3194 = vmatmul.f32.gmra.mxu0 %v2602
        %v3195 = vpop.f32.mrf.mxu0
        %v3196 = vadd.f32 %v3167, %v3195
        %3197 = vmatmul.f32.gmra.mxu0 %v2618
        %v3198 = vpop.f32.mrf.mxu0
        %v3199 = vadd.f32 %v3170, %v3198
        %3200 = vmatmul.f32.gmra.mxu0 %v2634
        %v3201 = vpop.f32.mrf.mxu0
        %v3202 = vadd.f32 %v3173, %v3201
        %3203 = vmatmul.f32.gmra.mxu0 %v2650
        %v3204 = vpop.f32.mrf.mxu0
        %v3205 = vadd.f32 %v3176, %v3204
        %3206 = vdwg.mxu0
        %3207 = vmatpush.msra.mxu0 %v2832
        %3208 = vmatpush.msra.mxu0 %v2831
        %3209 = vmatpush.msra.mxu0 %v2830
        %3210 = vmatpush.msra.mxu0 %v2829
        %3211 = vmatpush.msra.mxu0 %v2828
        %3212 = vmatpush.msra.mxu0 %v2827
        %3213 = vmatpush.msra.mxu0 %v2826
        %3214 = vmatpush.msra.mxu0 %v2825
        %3215 = vmatpush.msra.mxu0 %v2824
        %3216 = vmatpush.msra.mxu0 %v2823
        %3217 = vmatpush.msra.mxu0 %v2822
        %3218 = vmatpush.msra.mxu0 %v2821
        %3219 = vmatpush.msra.mxu0 %v2820
        %3220 = vmatpush.msra.mxu0 %v2819
        %3221 = vmatpush.msra.mxu0 %v2818
        %3222 = vmatpush.msra.mxu0 %v2817
        %3223 = vmatmul.f32.gmra.mxu0 %v2603
        %v3224 = vpop.f32.mrf.mxu0
        %v3225 = vadd.f32 %v3196, %v3224
        %3226 = vmatmul.f32.gmra.mxu0 %v2619
        %v3227 = vpop.f32.mrf.mxu0
        %v3228 = vadd.f32 %v3199, %v3227
        %3229 = vmatmul.f32.gmra.mxu0 %v2635
        %v3230 = vpop.f32.mrf.mxu0
        %v3231 = vadd.f32 %v3202, %v3230
        %3232 = vmatmul.f32.gmra.mxu0 %v2651
        %v3233 = vpop.f32.mrf.mxu0
        %v3234 = vadd.f32 %v3205, %v3233
        %3235 = vdwg.mxu0
        %3236 = vmatpush.msra.mxu0 %v2848
        %3237 = vmatpush.msra.mxu0 %v2847
        %3238 = vmatpush.msra.mxu0 %v2846
        %3239 = vmatpush.msra.mxu0 %v2845
        %3240 = vmatpush.msra.mxu0 %v2844
        %3241 = vmatpush.msra.mxu0 %v2843
        %3242 = vmatpush.msra.mxu0 %v2842
        %3243 = vmatpush.msra.mxu0 %v2841
        %3244 = vmatpush.msra.mxu0 %v2840
        %3245 = vmatpush.msra.mxu0 %v2839
        %3246 = vmatpush.msra.mxu0 %v2838
        %3247 = vmatpush.msra.mxu0 %v2837
        %3248 = vmatpush.msra.mxu0 %v2836
        %3249 = vmatpush.msra.mxu0 %v2835
        %3250 = vmatpush.msra.mxu0 %v2834
        %3251 = vmatpush.msra.mxu0 %v2833
        %3252 = vmatmul.f32.gmra.mxu0 %v2604
        %v3253 = vpop.f32.mrf.mxu0
        %v3254 = vadd.f32 %v3225, %v3253
        %3255 = vmatmul.f32.gmra.mxu0 %v2620
        %v3256 = vpop.f32.mrf.mxu0
        %v3257 = vadd.f32 %v3228, %v3256
        %3258 = vmatmul.f32.gmra.mxu0 %v2636
        %v3259 = vpop.f32.mrf.mxu0
        %v3260 = vadd.f32 %v3231, %v3259
        %3261 = vmatmul.f32.gmra.mxu0 %v2652
        %v3262 = vpop.f32.mrf.mxu0
        %v3263 = vadd.f32 %v3234, %v3262
        %3264 = vdwg.mxu0
        %3265 = vmatpush.msra.mxu0 %v2864
        %3266 = vmatpush.msra.mxu0 %v2863
        %3267 = vmatpush.msra.mxu0 %v2862
        %3268 = vmatpush.msra.mxu0 %v2861
        %3269 = vmatpush.msra.mxu0 %v2860
        %3270 = vmatpush.msra.mxu0 %v2859
        %3271 = vmatpush.msra.mxu0 %v2858
        %3272 = vmatpush.msra.mxu0 %v2857
        %3273 = vmatpush.msra.mxu0 %v2856
        %3274 = vmatpush.msra.mxu0 %v2855
        %3275 = vmatpush.msra.mxu0 %v2854
        %3276 = vmatpush.msra.mxu0 %v2853
        %3277 = vmatpush.msra.mxu0 %v2852
        %3278 = vmatpush.msra.mxu0 %v2851
        %3279 = vmatpush.msra.mxu0 %v2850
        %3280 = vmatpush.msra.mxu0 %v2849
        %3281 = vmatmul.f32.gmra.mxu0 %v2605
        %v3282 = vpop.f32.mrf.mxu0
        %v3283 = vadd.f32 %v3254, %v3282
        %3284 = vmatmul.f32.gmra.mxu0 %v2621
        %v3285 = vpop.f32.mrf.mxu0
        %v3286 = vadd.f32 %v3257, %v3285
        %3287 = vmatmul.f32.gmra.mxu0 %v2637
        %v3288 = vpop.f32.mrf.mxu0
        %v3289 = vadd.f32 %v3260, %v3288
        %3290 = vmatmul.f32.gmra.mxu0 %v2653
        %v3291 = vpop.f32.mrf.mxu0
        %v3292 = vadd.f32 %v3263, %v3291
        %3293 = vdwg.mxu0
        %3294 = vmatpush.msra.mxu0 %v2880
        %3295 = vmatpush.msra.mxu0 %v2879
        %3296 = vmatpush.msra.mxu0 %v2878
        %3297 = vmatpush.msra.mxu0 %v2877
        %3298 = vmatpush.msra.mxu0 %v2876
        %3299 = vmatpush.msra.mxu0 %v2875
        %3300 = vmatpush.msra.mxu0 %v2874
        %3301 = vmatpush.msra.mxu0 %v2873
        %3302 = vmatpush.msra.mxu0 %v2872
        %3303 = vmatpush.msra.mxu0 %v2871
        %3304 = vmatpush.msra.mxu0 %v2870
        %3305 = vmatpush.msra.mxu0 %v2869
        %3306 = vmatpush.msra.mxu0 %v2868
        %3307 = vmatpush.msra.mxu0 %v2867
        %3308 = vmatpush.msra.mxu0 %v2866
        %3309 = vmatpush.msra.mxu0 %v2865
        %3310 = vmatmul.f32.gmra.mxu0 %v2606
        %v3311 = vpop.f32.mrf.mxu0
        %v3312 = vadd.f32 %v3283, %v3311
        %3313 = vmatmul.f32.gmra.mxu0 %v2622
        %v3314 = vpop.f32.mrf.mxu0
        %v3315 = vadd.f32 %v3286, %v3314
        %3316 = vmatmul.f32.gmra.mxu0 %v2638
        %v3317 = vpop.f32.mrf.mxu0
        %v3318 = vadd.f32 %v3289, %v3317
        %3319 = vmatmul.f32.gmra.mxu0 %v2654
        %v3320 = vpop.f32.mrf.mxu0
        %v3321 = vadd.f32 %v3292, %v3320
        %3322 = vdwg.mxu0
        %3323 = vmatpush.msra.mxu0 %v2896
        %3324 = vmatpush.msra.mxu0 %v2895
        %3325 = vmatpush.msra.mxu0 %v2894
        %3326 = vmatpush.msra.mxu0 %v2893
        %3327 = vmatpush.msra.mxu0 %v2892
        %3328 = vmatpush.msra.mxu0 %v2891
        %3329 = vmatpush.msra.mxu0 %v2890
        %3330 = vmatpush.msra.mxu0 %v2889
        %3331 = vmatpush.msra.mxu0 %v2888
        %3332 = vmatpush.msra.mxu0 %v2887
        %3333 = vmatpush.msra.mxu0 %v2886
        %3334 = vmatpush.msra.mxu0 %v2885
        %3335 = vmatpush.msra.mxu0 %v2884
        %3336 = vmatpush.msra.mxu0 %v2883
        %3337 = vmatpush.msra.mxu0 %v2882
        %3338 = vmatpush.msra.mxu0 %v2881
        %3339 = vmatmul.f32.gmra.mxu0 %v2607
        %v3340 = vpop.f32.mrf.mxu0
        %v3341 = vadd.f32 %v3312, %v3340
        %3342 = vmatmul.f32.gmra.mxu0 %v2623
        %v3343 = vpop.f32.mrf.mxu0
        %v3344 = vadd.f32 %v3315, %v3343
        %3345 = vmatmul.f32.gmra.mxu0 %v2639
        %v3346 = vpop.f32.mrf.mxu0
        %v3347 = vadd.f32 %v3318, %v3346
        %3348 = vmatmul.f32.gmra.mxu0 %v2655
        %v3349 = vpop.f32.mrf.mxu0
        %v3350 = vadd.f32 %v3321, %v3349
        %3351 = vdwg.mxu0
        %3352 = vmatpush.msra.mxu0 %v2912
        %3353 = vmatpush.msra.mxu0 %v2911
        %3354 = vmatpush.msra.mxu0 %v2910
        %3355 = vmatpush.msra.mxu0 %v2909
        %3356 = vmatpush.msra.mxu0 %v2908
        %3357 = vmatpush.msra.mxu0 %v2907
        %3358 = vmatpush.msra.mxu0 %v2906
        %3359 = vmatpush.msra.mxu0 %v2905
        %3360 = vmatpush.msra.mxu0 %v2904
        %3361 = vmatpush.msra.mxu0 %v2903
        %3362 = vmatpush.msra.mxu0 %v2902
        %3363 = vmatpush.msra.mxu0 %v2901
        %3364 = vmatpush.msra.mxu0 %v2900
        %3365 = vmatpush.msra.mxu0 %v2899
        %3366 = vmatpush.msra.mxu0 %v2898
        %3367 = vmatpush.msra.mxu0 %v2897
        %3368 = vmatmul.f32.gmra.mxu0 %v2608
        %v3369 = vpop.f32.mrf.mxu0
        %v3370 = vadd.f32 %v3341, %v3369
        %3371 = vmatmul.f32.gmra.mxu0 %v2624
        %v3372 = vpop.f32.mrf.mxu0
        %v3373 = vadd.f32 %v3344, %v3372
        %3374 = vmatmul.f32.gmra.mxu0 %v2640
        %v3375 = vpop.f32.mrf.mxu0
        %v3376 = vadd.f32 %v3347, %v3375
        %3377 = vmatmul.f32.gmra.mxu0 %v2656
        %v3378 = vpop.f32.mrf.mxu0
        %v3379 = vadd.f32 %v3350, %v3378
        %3380 = vdwg.mxu0
        %v3381 = vadd.f32 %v2013, %v3370
        %v3382 = vadd.f32 %v2014, %v3373
        %v3383 = vadd.f32 %v2015, %v3376
        %v3384 = vadd.f32 %v2016, %v3379
        %v3385 = vld [vmem:[%s16] sm:$0x1]
        %v3386 = vld [vmem:[%s17] sm:$0x1]
        %v3387 = vsel %vm774, %v3381, 0.0
        %3388 = vadd.xlane.f32.xlu0 %v3387
        %v3389 = vpop.xlane.xlu0 %3388
        %v3390 = vsel %vm774, %v3382, 0.0
        %3391 = vadd.xlane.f32.xlu0 %v3390
        %v3392 = vpop.xlane.xlu0 %3391
        %v3393 = vsel %vm774, %v3383, 0.0
        %3394 = vadd.xlane.f32.xlu0 %v3393
        %v3395 = vpop.xlane.xlu0 %3394
        %v3396 = vsel %vm774, %v3384, 0.0
        %3397 = vadd.xlane.f32.xlu0 %v3396
        %v3398 = vpop.xlane.xlu0 %3397
        %v3399 = vmul.f32 %v3389, %v1926
        %v3400 = vmul.f32 %v3392, %v1926
        %v3401 = vmul.f32 %v3395, %v1926
        %v3402 = vmul.f32 %v3398, %v1926
        %v3403 = vsub.f32 %v3381, %v3399
        %v3404 = vsub.f32 %v3382, %v3400
        %v3405 = vsub.f32 %v3383, %v3401
        %v3406 = vsub.f32 %v3384, %v3402
        %v3407 = vmul.f32 %v3403, %v3403
        %v3408 = vmul.f32 %v3404, %v3404
        %v3409 = vmul.f32 %v3405, %v3405
        %v3410 = vmul.f32 %v3406, %v3406
        %v3411 = vsel %vm774, %v3407, 0.0
        %3412 = vadd.xlane.f32.xlu0 %v3411
        %v3413 = vpop.xlane.xlu0 %3412
        %v3414 = vsel %vm774, %v3408, 0.0
        %3415 = vadd.xlane.f32.xlu0 %v3414
        %v3416 = vpop.xlane.xlu0 %3415
        %v3417 = vsel %vm774, %v3409, 0.0
        %3418 = vadd.xlane.f32.xlu0 %v3417
        %v3419 = vpop.xlane.xlu0 %3418
        %v3420 = vsel %vm774, %v3410, 0.0
        %3421 = vadd.xlane.f32.xlu0 %v3420
        %v3422 = vpop.xlane.xlu0 %3421
        %v3423 = vmul.f32 %v3413, %v1926
        %v3424 = vmul.f32 %v3416, %v1926
        %v3425 = vmul.f32 %v3419, %v1926
        %v3426 = vmul.f32 %v3422, %v1926
        %v3427 = vadd.f32 %v3423, 1e-05
        %v3428 = vadd.f32 %v3424, 1e-05
        %v3429 = vadd.f32 %v3425, 1e-05
        %v3430 = vadd.f32 %v3426, 1e-05
        %v3431 = vrsqrt.pop %v3427
        %v3432 = vmul.f32 %v3431, %v3427
        %v3433 = vmul.f32 %v3432, %v3431
        %v3434 = vmul.f32 0.5, %v3433
        %v3435 = vsub.f32 1.5, %v3434
        %v3436 = vmul.f32 %v3431, %v3435
        %vm3437 = vweird.f32 %v3427
        %vm3438 = vweird.f32 %v3431
        %vm3439 = vmor %vm3437, %vm3438
        %v3440 = vsel %vm3439, %v3431, %v3436
        %v3441 = vrsqrt.pop %v3428
        %v3442 = vmul.f32 %v3441, %v3428
        %v3443 = vmul.f32 %v3442, %v3441
        %v3444 = vmul.f32 0.5, %v3443
        %v3445 = vsub.f32 1.5, %v3444
        %v3446 = vmul.f32 %v3441, %v3445
        %vm3447 = vweird.f32 %v3428
        %vm3448 = vweird.f32 %v3441
        %vm3449 = vmor %vm3447, %vm3448
        %v3450 = vsel %vm3449, %v3441, %v3446
        %v3451 = vrsqrt.pop %v3429
        %v3452 = vmul.f32 %v3451, %v3429
        %v3453 = vmul.f32 %v3452, %v3451
        %v3454 = vmul.f32 0.5, %v3453
        %v3455 = vsub.f32 1.5, %v3454
        %v3456 = vmul.f32 %v3451, %v3455
        %vm3457 = vweird.f32 %v3429
        %vm3458 = vweird.f32 %v3451
        %vm3459 = vmor %vm3457, %vm3458
        %v3460 = vsel %vm3459, %v3451, %v3456
        %v3461 = vrsqrt.pop %v3430
        %v3462 = vmul.f32 %v3461, %v3430
        %v3463 = vmul.f32 %v3462, %v3461
        %v3464 = vmul.f32 0.5, %v3463
        %v3465 = vsub.f32 1.5, %v3464
        %v3466 = vmul.f32 %v3461, %v3465
        %vm3467 = vweird.f32 %v3430
        %vm3468 = vweird.f32 %v3461
        %vm3469 = vmor %vm3467, %vm3468
        %v3470 = vsel %vm3469, %v3461, %v3466
        %v3471 = vmul.f32 %v3403, %v3440
        %v3472 = vmul.f32 %v3404, %v3450
        %v3473 = vmul.f32 %v3405, %v3460
        %v3474 = vmul.f32 %v3406, %v3470
        %v3476 = vperm.slane %v3385, 0
        %v3478 = vmul.f32 %v3471, %v3476
        %v3479 = vmul.f32 %v3472, %v3476
        %v3480 = vmul.f32 %v3473, %v3476
        %v3481 = vmul.f32 %v3474, %v3476
        %v3483 = vperm.slane %v3386, 0
        %v3485 = vadd.f32 %v3478, %v3483
        %v3486 = vadd.f32 %v3479, %v3483
        %v3487 = vadd.f32 %v3480, %v3483
        %v3488 = vadd.f32 %v3481, %v3483
        %s3489 = scalar_lea.vmem %s6, 32
        %v3490 = vld [vmem:[%s3489] sm:$0xff]
        %v3491 = vld [vmem:[%s3489 + $0x8] sm:$0xff]
        %v3492 = vld [vmem:[%s3489 + $0x10] sm:$0xff]
        %v3493 = vld [vmem:[%s3489 + $0x18] sm:$0xff]
        %s3494 = scalar_lea.vmem %s7, 1
        %v3495 = vld [vmem:[%s3494] sm:$0x1]
        %v3497 = vperm.slane %v3495, 0
        %v3500 = vsel %vm774, %v3485, 0
        %v3503 = vsel %vm774, %v3486, 0
        %v3506 = vsel %vm774, %v3487, 0
        %v3509 = vsel %vm774, %v3488, 0
        %3511 = vmatpush.msra.mxu0 0.0
        %3512 = vmatpush.msra.mxu0 0.0
        %3513 = vmatpush.msra.mxu0 0.0
        %3514 = vmatpush.msra.mxu0 0.0
        %3515 = vmatpush.msra.mxu0 0.0
        %3516 = vmatpush.msra.mxu0 0.0
        %3517 = vmatpush.msra.mxu0 0.0
        %3518 = vmatpush.msra.mxu0 0.0
        %3519 = vmatpush.msra.mxu0 0.0
        %3520 = vmatpush.msra.mxu0 0.0
        %3521 = vmatpush.msra.mxu0 0.0
        %3522 = vmatpush.msra.mxu0 0.0
        %3523 = vmatpush.msra.mxu0 %v3493
        %3524 = vmatpush.msra.mxu0 %v3492
        %3525 = vmatpush.msra.mxu0 %v3491
        %3526 = vmatpush.msra.mxu0 %v3490
        %3527 = vmatmul.f32.gmra.mxu0 %v3500
        %v3528 = vpop.f32.mrf.mxu0
        %v3529 = vadd.f32 %v3497, %v3528
        %3530 = vmatmul.f32.gmra.mxu0 %v3503
        %v3531 = vpop.f32.mrf.mxu0
        %v3532 = vadd.f32 %v3497, %v3531
        %3533 = vmatmul.f32.gmra.mxu0 %v3506
        %v3534 = vpop.f32.mrf.mxu0
        %v3535 = vadd.f32 %v3497, %v3534
        %3536 = vmatmul.f32.gmra.mxu0 %v3509
        %v3537 = vpop.f32.mrf.mxu0
        %v3538 = vadd.f32 %v3497, %v3537
        %3539 = vdwg.mxu0
        %3544 = vrot.lane.b32.xlu0 %v3529, 96
        %v3545 = vpop.permute.xlu0 %3544
        %3546 = vrot.lane.b32.xlu0 %v3532, 96
        %v3547 = vpop.permute.xlu0 %3546
        %3548 = vrot.lane.b32.xlu0 %v3535, 96
        %v3549 = vpop.permute.xlu0 %3548
        %3550 = vrot.lane.b32.xlu0 %v3538, 96
        %v3551 = vpop.permute.xlu0 %3550
        %v3552 = vsel %vm1143, %v3529, 0
        %v3554 = vsel %vm1143, %v3532, 0
        %v3556 = vsel %vm1143, %v3535, 0
        %v3558 = vsel %vm1143, %v3538, 0
        %v3560 = vsel %vm1143, %v3545, 0
        %v3562 = vsel %vm1143, %v3547, 0
        %v3564 = vsel %vm1143, %v3549, 0
        %v3566 = vsel %vm1143, %v3551, 0
        %3568 = vmatpush.xpose.msra.mxu0 0.0
        %3569 = vmatpush.xpose.msra.mxu0 0.0
        %3570 = vmatpush.xpose.msra.mxu0 0.0
        %3571 = vmatpush.xpose.msra.mxu0 0.0
        %3572 = vmatpush.xpose.msra.mxu0 0.0
        %3573 = vmatpush.xpose.msra.mxu0 0.0
        %3574 = vmatpush.xpose.msra.mxu0 0.0
        %3575 = vmatpush.xpose.msra.mxu0 0.0
        %3576 = vmatpush.xpose.msra.mxu0 0.0
        %3577 = vmatpush.xpose.msra.mxu0 0.0
        %3578 = vmatpush.xpose.msra.mxu0 0.0
        %3579 = vmatpush.xpose.msra.mxu0 0.0
        %3580 = vmatpush.xpose.msra.mxu0 %v3566
        %3581 = vmatpush.xpose.msra.mxu0 %v3564
        %3582 = vmatpush.xpose.msra.mxu0 %v3562
        %3583 = vmatpush.xpose.msra.mxu0 %v3560
        %3584 = vmatmul.f32.gmra.mxu0 %v3552
        %v3585 = vpop.f32.mrf.mxu0
        %v3586 = vadd.f32 0.0, %v3585
        %3587 = vmatmul.f32.gmra.mxu0 %v3554
        %v3588 = vpop.f32.mrf.mxu0
        %v3589 = vadd.f32 0.0, %v3588
        %3590 = vmatmul.f32.gmra.mxu0 %v3556
        %v3591 = vpop.f32.mrf.mxu0
        %v3592 = vadd.f32 0.0, %v3591
        %3593 = vmatmul.f32.gmra.mxu0 %v3558
        %v3594 = vpop.f32.mrf.mxu0
        %v3595 = vadd.f32 0.0, %v3594
        %3596 = vdwg.mxu0
        %3597 = vrot.lane.b32.xlu0 %v3529, 120
        %v3598 = vpop.permute.xlu0 %3597
        %3599 = vrot.lane.b32.xlu0 %v3532, 120
        %v3600 = vpop.permute.xlu0 %3599
        %3601 = vrot.lane.b32.xlu0 %v3535, 120
        %v3602 = vpop.permute.xlu0 %3601
        %3603 = vrot.lane.b32.xlu0 %v3538, 120
        %v3604 = vpop.permute.xlu0 %3603
        %3605 = vrot.lane.b32.xlu0 %v3529, 88
        %v3606 = vpop.permute.xlu0 %3605
        %3607 = vrot.lane.b32.xlu0 %v3532, 88
        %v3608 = vpop.permute.xlu0 %3607
        %3609 = vrot.lane.b32.xlu0 %v3535, 88
        %v3610 = vpop.permute.xlu0 %3609
        %3611 = vrot.lane.b32.xlu0 %v3538, 88
        %v3612 = vpop.permute.xlu0 %3611
        %v3613 = vsel %vm1143, %v3598, 0
        %v3615 = vsel %vm1143, %v3600, 0
        %v3617 = vsel %vm1143, %v3602, 0
        %v3619 = vsel %vm1143, %v3604, 0
        %v3621 = vsel %vm1143, %v3606, 0
        %v3623 = vsel %vm1143, %v3608, 0
        %v3625 = vsel %vm1143, %v3610, 0
        %v3627 = vsel %vm1143, %v3612, 0
        %3629 = vmatpush.xpose.msra.mxu0 0.0
        %3630 = vmatpush.xpose.msra.mxu0 0.0
        %3631 = vmatpush.xpose.msra.mxu0 0.0
        %3632 = vmatpush.xpose.msra.mxu0 0.0
        %3633 = vmatpush.xpose.msra.mxu0 0.0
        %3634 = vmatpush.xpose.msra.mxu0 0.0
        %3635 = vmatpush.xpose.msra.mxu0 0.0
        %3636 = vmatpush.xpose.msra.mxu0 0.0
        %3637 = vmatpush.xpose.msra.mxu0 0.0
        %3638 = vmatpush.xpose.msra.mxu0 0.0
        %3639 = vmatpush.xpose.msra.mxu0 0.0
        %3640 = vmatpush.xpose.msra.mxu0 0.0
        %3641 = vmatpush.xpose.msra.mxu0 %v3627
        %3642 = vmatpush.xpose.msra.mxu0 %v3625
        %3643 = vmatpush.xpose.msra.mxu0 %v3623
        %3644 = vmatpush.xpose.msra.mxu0 %v3621
        %3645 = vmatmul.f32.gmra.mxu0 %v3613
        %v3646 = vpop.f32.mrf.mxu0
        %v3647 = vadd.f32 0.0, %v3646
        %3648 = vmatmul.f32.gmra.mxu0 %v3615
        %v3649 = vpop.f32.mrf.mxu0
        %v3650 = vadd.f32 0.0, %v3649
        %3651 = vmatmul.f32.gmra.mxu0 %v3617
        %v3652 = vpop.f32.mrf.mxu0
        %v3653 = vadd.f32 0.0, %v3652
        %3654 = vmatmul.f32.gmra.mxu0 %v3619
        %v3655 = vpop.f32.mrf.mxu0
        %v3656 = vadd.f32 0.0, %v3655
        %3657 = vdwg.mxu0
        %3658 = vrot.lane.b32.xlu0 %v3529, 112
        %v3659 = vpop.permute.xlu0 %3658
        %3660 = vrot.lane.b32.xlu0 %v3532, 112
        %v3661 = vpop.permute.xlu0 %3660
        %3662 = vrot.lane.b32.xlu0 %v3535, 112
        %v3663 = vpop.permute.xlu0 %3662
        %3664 = vrot.lane.b32.xlu0 %v3538, 112
        %v3665 = vpop.permute.xlu0 %3664
        %3666 = vrot.lane.b32.xlu0 %v3529, 80
        %v3667 = vpop.permute.xlu0 %3666
        %3668 = vrot.lane.b32.xlu0 %v3532, 80
        %v3669 = vpop.permute.xlu0 %3668
        %3670 = vrot.lane.b32.xlu0 %v3535, 80
        %v3671 = vpop.permute.xlu0 %3670
        %3672 = vrot.lane.b32.xlu0 %v3538, 80
        %v3673 = vpop.permute.xlu0 %3672
        %v3674 = vsel %vm1143, %v3659, 0
        %v3676 = vsel %vm1143, %v3661, 0
        %v3678 = vsel %vm1143, %v3663, 0
        %v3680 = vsel %vm1143, %v3665, 0
        %v3682 = vsel %vm1143, %v3667, 0
        %v3684 = vsel %vm1143, %v3669, 0
        %v3686 = vsel %vm1143, %v3671, 0
        %v3688 = vsel %vm1143, %v3673, 0
        %3690 = vmatpush.xpose.msra.mxu0 0.0
        %3691 = vmatpush.xpose.msra.mxu0 0.0
        %3692 = vmatpush.xpose.msra.mxu0 0.0
        %3693 = vmatpush.xpose.msra.mxu0 0.0
        %3694 = vmatpush.xpose.msra.mxu0 0.0
        %3695 = vmatpush.xpose.msra.mxu0 0.0
        %3696 = vmatpush.xpose.msra.mxu0 0.0
        %3697 = vmatpush.xpose.msra.mxu0 0.0
        %3698 = vmatpush.xpose.msra.mxu0 0.0
        %3699 = vmatpush.xpose.msra.mxu0 0.0
        %3700 = vmatpush.xpose.msra.mxu0 0.0
        %3701 = vmatpush.xpose.msra.mxu0 0.0
        %3702 = vmatpush.xpose.msra.mxu0 %v3688
        %3703 = vmatpush.xpose.msra.mxu0 %v3686
        %3704 = vmatpush.xpose.msra.mxu0 %v3684
        %3705 = vmatpush.xpose.msra.mxu0 %v3682
        %3706 = vmatmul.f32.gmra.mxu0 %v3674
        %v3707 = vpop.f32.mrf.mxu0
        %v3708 = vadd.f32 0.0, %v3707
        %3709 = vmatmul.f32.gmra.mxu0 %v3676
        %v3710 = vpop.f32.mrf.mxu0
        %v3711 = vadd.f32 0.0, %v3710
        %3712 = vmatmul.f32.gmra.mxu0 %v3678
        %v3713 = vpop.f32.mrf.mxu0
        %v3714 = vadd.f32 0.0, %v3713
        %3715 = vmatmul.f32.gmra.mxu0 %v3680
        %v3716 = vpop.f32.mrf.mxu0
        %v3717 = vadd.f32 0.0, %v3716
        %3718 = vdwg.mxu0
        %3719 = vrot.lane.b32.xlu0 %v3529, 104
        %v3720 = vpop.permute.xlu0 %3719
        %3721 = vrot.lane.b32.xlu0 %v3532, 104
        %v3722 = vpop.permute.xlu0 %3721
        %3723 = vrot.lane.b32.xlu0 %v3535, 104
        %v3724 = vpop.permute.xlu0 %3723
        %3725 = vrot.lane.b32.xlu0 %v3538, 104
        %v3726 = vpop.permute.xlu0 %3725
        %3727 = vrot.lane.b32.xlu0 %v3529, 72
        %v3728 = vpop.permute.xlu0 %3727
        %3729 = vrot.lane.b32.xlu0 %v3532, 72
        %v3730 = vpop.permute.xlu0 %3729
        %3731 = vrot.lane.b32.xlu0 %v3535, 72
        %v3732 = vpop.permute.xlu0 %3731
        %3733 = vrot.lane.b32.xlu0 %v3538, 72
        %v3734 = vpop.permute.xlu0 %3733
        %v3735 = vsel %vm1143, %v3720, 0
        %v3737 = vsel %vm1143, %v3722, 0
        %v3739 = vsel %vm1143, %v3724, 0
        %v3741 = vsel %vm1143, %v3726, 0
        %v3743 = vsel %vm1143, %v3728, 0
        %v3745 = vsel %vm1143, %v3730, 0
        %v3747 = vsel %vm1143, %v3732, 0
        %v3749 = vsel %vm1143, %v3734, 0
        %3751 = vmatpush.xpose.msra.mxu0 0.0
        %3752 = vmatpush.xpose.msra.mxu0 0.0
        %3753 = vmatpush.xpose.msra.mxu0 0.0
        %3754 = vmatpush.xpose.msra.mxu0 0.0
        %3755 = vmatpush.xpose.msra.mxu0 0.0
        %3756 = vmatpush.xpose.msra.mxu0 0.0
        %3757 = vmatpush.xpose.msra.mxu0 0.0
        %3758 = vmatpush.xpose.msra.mxu0 0.0
        %3759 = vmatpush.xpose.msra.mxu0 0.0
        %3760 = vmatpush.xpose.msra.mxu0 0.0
        %3761 = vmatpush.xpose.msra.mxu0 0.0
        %3762 = vmatpush.xpose.msra.mxu0 0.0
        %3763 = vmatpush.xpose.msra.mxu0 %v3749
        %3764 = vmatpush.xpose.msra.mxu0 %v3747
        %3765 = vmatpush.xpose.msra.mxu0 %v3745
        %3766 = vmatpush.xpose.msra.mxu0 %v3743
        %3767 = vmatmul.f32.gmra.mxu0 %v3735
        %v3768 = vpop.f32.mrf.mxu0
        %v3769 = vadd.f32 0.0, %v3768
        %3770 = vmatmul.f32.gmra.mxu0 %v3737
        %v3771 = vpop.f32.mrf.mxu0
        %v3772 = vadd.f32 0.0, %v3771
        %3773 = vmatmul.f32.gmra.mxu0 %v3739
        %v3774 = vpop.f32.mrf.mxu0
        %v3775 = vadd.f32 0.0, %v3774
        %3776 = vmatmul.f32.gmra.mxu0 %v3741
        %v3777 = vpop.f32.mrf.mxu0
        %v3778 = vadd.f32 0.0, %v3777
        %3779 = vdwg.mxu0
        %v3780 = vmul.f32 %v3586, 0.35355338
        %v3781 = vmul.f32 %v3589, 0.35355338
        %v3782 = vmul.f32 %v3592, 0.35355338
        %v3783 = vmul.f32 %v3595, 0.35355338
        %v3784 = vmul.f32 %v3647, 0.35355338
        %v3785 = vmul.f32 %v3650, 0.35355338
        %v3786 = vmul.f32 %v3653, 0.35355338
        %v3787 = vmul.f32 %v3656, 0.35355338
        %v3788 = vmul.f32 %v3708, 0.35355338
        %v3789 = vmul.f32 %v3711, 0.35355338
        %v3790 = vmul.f32 %v3714, 0.35355338
        %v3791 = vmul.f32 %v3717, 0.35355338
        %v3792 = vmul.f32 %v3769, 0.35355338
        %v3793 = vmul.f32 %v3772, 0.35355338
        %v3794 = vmul.f32 %v3775, 0.35355338
        %v3795 = vmul.f32 %v3778, 0.35355338
        %v3796 = vadd.f32 %v3780, %v1066
        %v3797 = vadd.f32 %v3781, %v1067
        %v3798 = vadd.f32 %v3782, %v1068
        %v3799 = vadd.f32 %v3783, %v1069
        %v3800 = vadd.f32 %v3784, %v1070
        %v3801 = vadd.f32 %v3785, %v1071
        %v3802 = vadd.f32 %v3786, %v1072
        %v3803 = vadd.f32 %v3787, %v1073
        %v3804 = vadd.f32 %v3788, %v1074
        %v3805 = vadd.f32 %v3789, %v1075
        %v3806 = vadd.f32 %v3790, %v1076
        %v3807 = vadd.f32 %v3791, %v1077
        %v3808 = vadd.f32 %v3792, %v1078
        %v3809 = vadd.f32 %v3793, %v1079
        %v3810 = vadd.f32 %v3794, %v1080
        %v3811 = vadd.f32 %v3795, %v1081
        %v3812 = vsel %vm774, %v3796, -inf
        %3813 = vmax.xlane.f32.xlu0 %v3812
        %v3814 = vpop.xlane.xlu0 %3813
        %v3815 = vsel %vm774, %v3797, -inf
        %3816 = vmax.xlane.f32.xlu0 %v3815
        %v3817 = vpop.xlane.xlu0 %3816
        %v3818 = vsel %vm774, %v3798, -inf
        %3819 = vmax.xlane.f32.xlu0 %v3818
        %v3820 = vpop.xlane.xlu0 %3819
        %v3821 = vsel %vm774, %v3799, -inf
        %3822 = vmax.xlane.f32.xlu0 %v3821
        %v3823 = vpop.xlane.xlu0 %3822
        %v3824 = vsel %vm774, %v3800, -inf
        %3825 = vmax.xlane.f32.xlu0 %v3824
        %v3826 = vpop.xlane.xlu0 %3825
        %v3827 = vsel %vm774, %v3801, -inf
        %3828 = vmax.xlane.f32.xlu0 %v3827
        %v3829 = vpop.xlane.xlu0 %3828
        %v3830 = vsel %vm774, %v3802, -inf
        %3831 = vmax.xlane.f32.xlu0 %v3830
        %v3832 = vpop.xlane.xlu0 %3831
        %v3833 = vsel %vm774, %v3803, -inf
        %3834 = vmax.xlane.f32.xlu0 %v3833
        %v3835 = vpop.xlane.xlu0 %3834
        %v3836 = vsel %vm774, %v3804, -inf
        %3837 = vmax.xlane.f32.xlu0 %v3836
        %v3838 = vpop.xlane.xlu0 %3837
        %v3839 = vsel %vm774, %v3805, -inf
        %3840 = vmax.xlane.f32.xlu0 %v3839
        %v3841 = vpop.xlane.xlu0 %3840
        %v3842 = vsel %vm774, %v3806, -inf
        %3843 = vmax.xlane.f32.xlu0 %v3842
        %v3844 = vpop.xlane.xlu0 %3843
        %v3845 = vsel %vm774, %v3807, -inf
        %3846 = vmax.xlane.f32.xlu0 %v3845
        %v3847 = vpop.xlane.xlu0 %3846
        %v3848 = vsel %vm774, %v3808, -inf
        %3849 = vmax.xlane.f32.xlu0 %v3848
        %v3850 = vpop.xlane.xlu0 %3849
        %v3851 = vsel %vm774, %v3809, -inf
        %3852 = vmax.xlane.f32.xlu0 %v3851
        %v3853 = vpop.xlane.xlu0 %3852
        %v3854 = vsel %vm774, %v3810, -inf
        %3855 = vmax.xlane.f32.xlu0 %v3854
        %v3856 = vpop.xlane.xlu0 %3855
        %v3857 = vsel %vm774, %v3811, -inf
        %3858 = vmax.xlane.f32.xlu0 %v3857
        %v3859 = vpop.xlane.xlu0 %3858
        %v3860 = vsub.f32 %v3796, %v3814
        %v3861 = vsub.f32 %v3797, %v3817
        %v3862 = vsub.f32 %v3798, %v3820
        %v3863 = vsub.f32 %v3799, %v3823
        %v3864 = vsub.f32 %v3800, %v3826
        %v3865 = vsub.f32 %v3801, %v3829
        %v3866 = vsub.f32 %v3802, %v3832
        %v3867 = vsub.f32 %v3803, %v3835
        %v3868 = vsub.f32 %v3804, %v3838
        %v3869 = vsub.f32 %v3805, %v3841
        %v3870 = vsub.f32 %v3806, %v3844
        %v3871 = vsub.f32 %v3807, %v3847
        %v3872 = vsub.f32 %v3808, %v3850
        %v3873 = vsub.f32 %v3809, %v3853
        %v3874 = vsub.f32 %v3810, %v3856
        %v3875 = vsub.f32 %v3811, %v3859
        %v3876 = vmul.f32 %v3860, 1.442695
        %v3877 = vpow.pop %v3876
        %v3878 = vmul.f32 %v3861, 1.442695
        %v3879 = vpow.pop %v3878
        %v3880 = vmul.f32 %v3862, 1.442695
        %v3881 = vpow.pop %v3880
        %v3882 = vmul.f32 %v3863, 1.442695
        %v3883 = vpow.pop %v3882
        %v3884 = vmul.f32 %v3864, 1.442695
        %v3885 = vpow.pop %v3884
        %v3886 = vmul.f32 %v3865, 1.442695
        %v3887 = vpow.pop %v3886
        %v3888 = vmul.f32 %v3866, 1.442695
        %v3889 = vpow.pop %v3888
        %v3890 = vmul.f32 %v3867, 1.442695
        %v3891 = vpow.pop %v3890
        %v3892 = vmul.f32 %v3868, 1.442695
        %v3893 = vpow.pop %v3892
        %v3894 = vmul.f32 %v3869, 1.442695
        %v3895 = vpow.pop %v3894
        %v3896 = vmul.f32 %v3870, 1.442695
        %v3897 = vpow.pop %v3896
        %v3898 = vmul.f32 %v3871, 1.442695
        %v3899 = vpow.pop %v3898
        %v3900 = vmul.f32 %v3872, 1.442695
        %v3901 = vpow.pop %v3900
        %v3902 = vmul.f32 %v3873, 1.442695
        %v3903 = vpow.pop %v3902
        %v3904 = vmul.f32 %v3874, 1.442695
        %v3905 = vpow.pop %v3904
        %v3906 = vmul.f32 %v3875, 1.442695
        %v3907 = vpow.pop %v3906
        %v3908 = vsel %vm774, %v3877, 0.0
        %3909 = vadd.xlane.f32.xlu0 %v3908
        %v3910 = vpop.xlane.xlu0 %3909
        %v3911 = vsel %vm774, %v3879, 0.0
        %3912 = vadd.xlane.f32.xlu0 %v3911
        %v3913 = vpop.xlane.xlu0 %3912
        %v3914 = vsel %vm774, %v3881, 0.0
        %3915 = vadd.xlane.f32.xlu0 %v3914
        %v3916 = vpop.xlane.xlu0 %3915
        %v3917 = vsel %vm774, %v3883, 0.0
        %3918 = vadd.xlane.f32.xlu0 %v3917
        %v3919 = vpop.xlane.xlu0 %3918
        %v3920 = vsel %vm774, %v3885, 0.0
        %3921 = vadd.xlane.f32.xlu0 %v3920
        %v3922 = vpop.xlane.xlu0 %3921
        %v3923 = vsel %vm774, %v3887, 0.0
        %3924 = vadd.xlane.f32.xlu0 %v3923
        %v3925 = vpop.xlane.xlu0 %3924
        %v3926 = vsel %vm774, %v3889, 0.0
        %3927 = vadd.xlane.f32.xlu0 %v3926
        %v3928 = vpop.xlane.xlu0 %3927
        %v3929 = vsel %vm774, %v3891, 0.0
        %3930 = vadd.xlane.f32.xlu0 %v3929
        %v3931 = vpop.xlane.xlu0 %3930
        %v3932 = vsel %vm774, %v3893, 0.0
        %3933 = vadd.xlane.f32.xlu0 %v3932
        %v3934 = vpop.xlane.xlu0 %3933
        %v3935 = vsel %vm774, %v3895, 0.0
        %3936 = vadd.xlane.f32.xlu0 %v3935
        %v3937 = vpop.xlane.xlu0 %3936
        %v3938 = vsel %vm774, %v3897, 0.0
        %3939 = vadd.xlane.f32.xlu0 %v3938
        %v3940 = vpop.xlane.xlu0 %3939
        %v3941 = vsel %vm774, %v3899, 0.0
        %3942 = vadd.xlane.f32.xlu0 %v3941
        %v3943 = vpop.xlane.xlu0 %3942
        %v3944 = vsel %vm774, %v3901, 0.0
        %3945 = vadd.xlane.f32.xlu0 %v3944
        %v3946 = vpop.xlane.xlu0 %3945
        %v3947 = vsel %vm774, %v3903, 0.0
        %3948 = vadd.xlane.f32.xlu0 %v3947
        %v3949 = vpop.xlane.xlu0 %3948
        %v3950 = vsel %vm774, %v3905, 0.0
        %3951 = vadd.xlane.f32.xlu0 %v3950
        %v3952 = vpop.xlane.xlu0 %3951
        %v3953 = vsel %vm774, %v3907, 0.0
        %3954 = vadd.xlane.f32.xlu0 %v3953
        %v3955 = vpop.xlane.xlu0 %3954
        %v3956 = vrcp.pop %v3910
        %v3957 = vrcp.pop %v3913
        %v3958 = vrcp.pop %v3916
        %v3959 = vrcp.pop %v3919
        %v3960 = vrcp.pop %v3922
        %v3961 = vrcp.pop %v3925
        %v3962 = vrcp.pop %v3928
        %v3963 = vrcp.pop %v3931
        %v3964 = vrcp.pop %v3934
        %v3965 = vrcp.pop %v3937
        %v3966 = vrcp.pop %v3940
        %v3967 = vrcp.pop %v3943
        %v3968 = vrcp.pop %v3946
        %v3969 = vrcp.pop %v3949
        %v3970 = vrcp.pop %v3952
        %v3971 = vrcp.pop %v3955
        %v3972 = vmul.f32 %v3877, %v3956
        %v3973 = vmul.f32 %v3879, %v3957
        %v3974 = vmul.f32 %v3881, %v3958
        %v3975 = vmul.f32 %v3883, %v3959
        %v3976 = vmul.f32 %v3885, %v3960
        %v3977 = vmul.f32 %v3887, %v3961
        %v3978 = vmul.f32 %v3889, %v3962
        %v3979 = vmul.f32 %v3891, %v3963
        %v3980 = vmul.f32 %v3893, %v3964
        %v3981 = vmul.f32 %v3895, %v3965
        %v3982 = vmul.f32 %v3897, %v3966
        %v3983 = vmul.f32 %v3899, %v3967
        %v3984 = vmul.f32 %v3901, %v3968
        %v3985 = vmul.f32 %v3903, %v3969
        %v3986 = vmul.f32 %v3905, %v3970
        %v3987 = vmul.f32 %v3907, %v3971
        %3988 = vrot.lane.b32.xlu0 %v3529, 64
        %v3989 = vpop.permute.xlu0 %3988
        %3990 = vrot.lane.b32.xlu0 %v3532, 64
        %v3991 = vpop.permute.xlu0 %3990
        %3992 = vrot.lane.b32.xlu0 %v3535, 64
        %v3993 = vpop.permute.xlu0 %3992
        %3994 = vrot.lane.b32.xlu0 %v3538, 64
        %v3995 = vpop.permute.xlu0 %3994
        %v4001 = vsel %vm774, %v3972, 0
        %v4004 = vsel %vm774, %v3973, 0
        %v4007 = vsel %vm774, %v3974, 0
        %v4010 = vsel %vm774, %v3975, 0
        %4012 = vmatpush.msra.mxu0 0.0
        %4013 = vmatpush.msra.mxu0 0.0
        %4014 = vmatpush.msra.mxu0 0.0
        %4015 = vmatpush.msra.mxu0 0.0
        %4016 = vmatpush.msra.mxu0 0.0
        %4017 = vmatpush.msra.mxu0 0.0
        %4018 = vmatpush.msra.mxu0 0.0
        %4019 = vmatpush.msra.mxu0 0.0
        %4020 = vmatpush.msra.mxu0 0.0
        %4021 = vmatpush.msra.mxu0 0.0
        %4022 = vmatpush.msra.mxu0 0.0
        %4023 = vmatpush.msra.mxu0 0.0
        %4024 = vmatpush.msra.mxu0 %v3995
        %4025 = vmatpush.msra.mxu0 %v3993
        %4026 = vmatpush.msra.mxu0 %v3991
        %4027 = vmatpush.msra.mxu0 %v3989
        %4028 = vmatmul.f32.gmra.mxu0 %v4001
        %v4029 = vpop.f32.mrf.mxu0
        %v4030 = vadd.f32 0.0, %v4029
        %4031 = vmatmul.f32.gmra.mxu0 %v4004
        %v4032 = vpop.f32.mrf.mxu0
        %v4033 = vadd.f32 0.0, %v4032
        %4034 = vmatmul.f32.gmra.mxu0 %v4007
        %v4035 = vpop.f32.mrf.mxu0
        %v4036 = vadd.f32 0.0, %v4035
        %4037 = vmatmul.f32.gmra.mxu0 %v4010
        %v4038 = vpop.f32.mrf.mxu0
        %v4039 = vadd.f32 0.0, %v4038
        %4040 = vdwg.mxu0
        %4041 = vrot.lane.b32.xlu0 %v3529, 56
        %v4042 = vpop.permute.xlu0 %4041
        %4043 = vrot.lane.b32.xlu0 %v3532, 56
        %v4044 = vpop.permute.xlu0 %4043
        %4045 = vrot.lane.b32.xlu0 %v3535, 56
        %v4046 = vpop.permute.xlu0 %4045
        %4047 = vrot.lane.b32.xlu0 %v3538, 56
        %v4048 = vpop.permute.xlu0 %4047
        %v4054 = vsel %vm774, %v3976, 0
        %v4057 = vsel %vm774, %v3977, 0
        %v4060 = vsel %vm774, %v3978, 0
        %v4063 = vsel %vm774, %v3979, 0
        %4065 = vmatpush.msra.mxu0 0.0
        %4066 = vmatpush.msra.mxu0 0.0
        %4067 = vmatpush.msra.mxu0 0.0
        %4068 = vmatpush.msra.mxu0 0.0
        %4069 = vmatpush.msra.mxu0 0.0
        %4070 = vmatpush.msra.mxu0 0.0
        %4071 = vmatpush.msra.mxu0 0.0
        %4072 = vmatpush.msra.mxu0 0.0
        %4073 = vmatpush.msra.mxu0 0.0
        %4074 = vmatpush.msra.mxu0 0.0
        %4075 = vmatpush.msra.mxu0 0.0
        %4076 = vmatpush.msra.mxu0 0.0
        %4077 = vmatpush.msra.mxu0 %v4048
        %4078 = vmatpush.msra.mxu0 %v4046
        %4079 = vmatpush.msra.mxu0 %v4044
        %4080 = vmatpush.msra.mxu0 %v4042
        %4081 = vmatmul.f32.gmra.mxu0 %v4054
        %v4082 = vpop.f32.mrf.mxu0
        %v4083 = vadd.f32 0.0, %v4082
        %4084 = vmatmul.f32.gmra.mxu0 %v4057
        %v4085 = vpop.f32.mrf.mxu0
        %v4086 = vadd.f32 0.0, %v4085
        %4087 = vmatmul.f32.gmra.mxu0 %v4060
        %v4088 = vpop.f32.mrf.mxu0
        %v4089 = vadd.f32 0.0, %v4088
        %4090 = vmatmul.f32.gmra.mxu0 %v4063
        %v4091 = vpop.f32.mrf.mxu0
        %v4092 = vadd.f32 0.0, %v4091
        %4093 = vdwg.mxu0
        %4094 = vrot.lane.b32.xlu0 %v3529, 48
        %v4095 = vpop.permute.xlu0 %4094
        %4096 = vrot.lane.b32.xlu0 %v3532, 48
        %v4097 = vpop.permute.xlu0 %4096
        %4098 = vrot.lane.b32.xlu0 %v3535, 48
        %v4099 = vpop.permute.xlu0 %4098
        %4100 = vrot.lane.b32.xlu0 %v3538, 48
        %v4101 = vpop.permute.xlu0 %4100
        %v4107 = vsel %vm774, %v3980, 0
        %v4110 = vsel %vm774, %v3981, 0
        %v4113 = vsel %vm774, %v3982, 0
        %v4116 = vsel %vm774, %v3983, 0
        %4118 = vmatpush.msra.mxu0 0.0
        %4119 = vmatpush.msra.mxu0 0.0
        %4120 = vmatpush.msra.mxu0 0.0
        %4121 = vmatpush.msra.mxu0 0.0
        %4122 = vmatpush.msra.mxu0 0.0
        %4123 = vmatpush.msra.mxu0 0.0
        %4124 = vmatpush.msra.mxu0 0.0
        %4125 = vmatpush.msra.mxu0 0.0
        %4126 = vmatpush.msra.mxu0 0.0
        %4127 = vmatpush.msra.mxu0 0.0
        %4128 = vmatpush.msra.mxu0 0.0
        %4129 = vmatpush.msra.mxu0 0.0
        %4130 = vmatpush.msra.mxu0 %v4101
        %4131 = vmatpush.msra.mxu0 %v4099
        %4132 = vmatpush.msra.mxu0 %v4097
        %4133 = vmatpush.msra.mxu0 %v4095
        %4134 = vmatmul.f32.gmra.mxu0 %v4107
        %v4135 = vpop.f32.mrf.mxu0
        %v4136 = vadd.f32 0.0, %v4135
        %4137 = vmatmul.f32.gmra.mxu0 %v4110
        %v4138 = vpop.f32.mrf.mxu0
        %v4139 = vadd.f32 0.0, %v4138
        %4140 = vmatmul.f32.gmra.mxu0 %v4113
        %v4141 = vpop.f32.mrf.mxu0
        %v4142 = vadd.f32 0.0, %v4141
        %4143 = vmatmul.f32.gmra.mxu0 %v4116
        %v4144 = vpop.f32.mrf.mxu0
        %v4145 = vadd.f32 0.0, %v4144
        %4146 = vdwg.mxu0
        %4147 = vrot.lane.b32.xlu0 %v3529, 40
        %v4148 = vpop.permute.xlu0 %4147
        %4149 = vrot.lane.b32.xlu0 %v3532, 40
        %v4150 = vpop.permute.xlu0 %4149
        %4151 = vrot.lane.b32.xlu0 %v3535, 40
        %v4152 = vpop.permute.xlu0 %4151
        %4153 = vrot.lane.b32.xlu0 %v3538, 40
        %v4154 = vpop.permute.xlu0 %4153
        %v4160 = vsel %vm774, %v3984, 0
        %v4163 = vsel %vm774, %v3985, 0
        %v4166 = vsel %vm774, %v3986, 0
        %v4169 = vsel %vm774, %v3987, 0
        %4171 = vmatpush.msra.mxu0 0.0
        %4172 = vmatpush.msra.mxu0 0.0
        %4173 = vmatpush.msra.mxu0 0.0
        %4174 = vmatpush.msra.mxu0 0.0
        %4175 = vmatpush.msra.mxu0 0.0
        %4176 = vmatpush.msra.mxu0 0.0
        %4177 = vmatpush.msra.mxu0 0.0
        %4178 = vmatpush.msra.mxu0 0.0
        %4179 = vmatpush.msra.mxu0 0.0
        %4180 = vmatpush.msra.mxu0 0.0
        %4181 = vmatpush.msra.mxu0 0.0
        %4182 = vmatpush.msra.mxu0 0.0
        %4183 = vmatpush.msra.mxu0 %v4154
        %4184 = vmatpush.msra.mxu0 %v4152
        %4185 = vmatpush.msra.mxu0 %v4150
        %4186 = vmatpush.msra.mxu0 %v4148
        %4187 = vmatmul.f32.gmra.mxu0 %v4160
        %v4188 = vpop.f32.mrf.mxu0
        %v4189 = vadd.f32 0.0, %v4188
        %4190 = vmatmul.f32.gmra.mxu0 %v4163
        %v4191 = vpop.f32.mrf.mxu0
        %v4192 = vadd.f32 0.0, %v4191
        %4193 = vmatmul.f32.gmra.mxu0 %v4166
        %v4194 = vpop.f32.mrf.mxu0
        %v4195 = vadd.f32 0.0, %v4194
        %4196 = vmatmul.f32.gmra.mxu0 %v4169
        %v4197 = vpop.f32.mrf.mxu0
        %v4198 = vadd.f32 0.0, %v4197
        %4199 = vdwg.mxu0
        %4204 = vrot.lane.b32.xlu0 %v4083, 8
        %v4205 = vpop.permute.xlu0 %4204
        %4206 = vrot.lane.b32.xlu0 %v4086, 8
        %v4207 = vpop.permute.xlu0 %4206
        %4208 = vrot.lane.b32.xlu0 %v4089, 8
        %v4209 = vpop.permute.xlu0 %4208
        %4210 = vrot.lane.b32.xlu0 %v4092, 8
        %v4211 = vpop.permute.xlu0 %4210
        %4220 = vrot.lane.b32.xlu0 %v4136, 16
        %v4221 = vpop.permute.xlu0 %4220
        %4222 = vrot.lane.b32.xlu0 %v4139, 16
        %v4223 = vpop.permute.xlu0 %4222
        %4224 = vrot.lane.b32.xlu0 %v4142, 16
        %v4225 = vpop.permute.xlu0 %4224
        %4226 = vrot.lane.b32.xlu0 %v4145, 16
        %v4227 = vpop.permute.xlu0 %4226
        %4236 = vrot.lane.b32.xlu0 %v4189, 24
        %v4237 = vpop.permute.xlu0 %4236
        %4238 = vrot.lane.b32.xlu0 %v4192, 24
        %v4239 = vpop.permute.xlu0 %4238
        %4240 = vrot.lane.b32.xlu0 %v4195, 24
        %v4241 = vpop.permute.xlu0 %4240
        %4242 = vrot.lane.b32.xlu0 %v4198, 24
        %v4243 = vpop.permute.xlu0 %4242
        %v4248 = vsel %vm1143, %v4030, %v4205
        %v4249 = vsel %vm1143, %v4033, %v4207
        %v4250 = vsel %vm1143, %v4036, %v4209
        %v4251 = vsel %vm1143, %v4039, %v4211
        %v4252 = vsel %vm692, %v4248, %v4221
        %v4253 = vsel %vm692, %v4249, %v4223
        %v4254 = vsel %vm692, %v4250, %v4225
        %v4255 = vsel %vm692, %v4251, %v4227
        %v4256 = vsel %vm1848, %v4252, %v4237
        %v4257 = vsel %vm1848, %v4253, %v4239
        %v4258 = vsel %vm1848, %v4254, %v4241
        %v4259 = vsel %vm1848, %v4255, %v4243
        %s4260 = scalar_lea.vmem %s8, 32
        %v4261 = vld [vmem:[%s4260] sm:$0xff]
        %v4262 = vld [vmem:[%s4260 + $0x8] sm:$0xff]
        %v4263 = vld [vmem:[%s4260 + $0x10] sm:$0xff]
        %v4264 = vld [vmem:[%s4260 + $0x18] sm:$0xff]
        %s4265 = scalar_lea.vmem %s9, 1
        %v4266 = vld [vmem:[%s4265] sm:$0x1]
        %v4268 = vperm.slane %v4266, 0
        %v4271 = vsel %vm774, %v4256, 0
        %v4274 = vsel %vm774, %v4257, 0
        %v4277 = vsel %vm774, %v4258, 0
        %v4280 = vsel %vm774, %v4259, 0
        %4282 = vmatpush.msra.mxu0 0.0
        %4283 = vmatpush.msra.mxu0 0.0
        %4284 = vmatpush.msra.mxu0 0.0
        %4285 = vmatpush.msra.mxu0 0.0
        %4286 = vmatpush.msra.mxu0 0.0
        %4287 = vmatpush.msra.mxu0 0.0
        %4288 = vmatpush.msra.mxu0 0.0
        %4289 = vmatpush.msra.mxu0 0.0
        %4290 = vmatpush.msra.mxu0 0.0
        %4291 = vmatpush.msra.mxu0 0.0
        %4292 = vmatpush.msra.mxu0 0.0
        %4293 = vmatpush.msra.mxu0 0.0
        %4294 = vmatpush.msra.mxu0 %v4264
        %4295 = vmatpush.msra.mxu0 %v4263
        %4296 = vmatpush.msra.mxu0 %v4262
        %4297 = vmatpush.msra.mxu0 %v4261
        %4298 = vmatmul.f32.gmra.mxu0 %v4271
        %v4299 = vpop.f32.mrf.mxu0
        %v4300 = vadd.f32 %v4268, %v4299
        %4301 = vmatmul.f32.gmra.mxu0 %v4274
        %v4302 = vpop.f32.mrf.mxu0
        %v4303 = vadd.f32 %v4268, %v4302
        %4304 = vmatmul.f32.gmra.mxu0 %v4277
        %v4305 = vpop.f32.mrf.mxu0
        %v4306 = vadd.f32 %v4268, %v4305
        %4307 = vmatmul.f32.gmra.mxu0 %v4280
        %v4308 = vpop.f32.mrf.mxu0
        %v4309 = vadd.f32 %v4268, %v4308
        %4310 = vdwg.mxu0
        %v4311 = vadd.f32 %v3485, %v4300
        %v4312 = vadd.f32 %v3486, %v4303
        %v4313 = vadd.f32 %v3487, %v4306
        %v4314 = vadd.f32 %v3488, %v4309
        %s4315 = scalar_lea.vmem %s14, 1
        %v4316 = vld [vmem:[%s4315] sm:$0x1]
        %s4317 = scalar_lea.vmem %s15, 1
        %v4318 = vld [vmem:[%s4317] sm:$0x1]
        %v4319 = vsel %vm774, %v4311, 0.0
        %4320 = vadd.xlane.f32.xlu0 %v4319
        %v4321 = vpop.xlane.xlu0 %4320
        %v4322 = vsel %vm774, %v4312, 0.0
        %4323 = vadd.xlane.f32.xlu0 %v4322
        %v4324 = vpop.xlane.xlu0 %4323
        %v4325 = vsel %vm774, %v4313, 0.0
        %4326 = vadd.xlane.f32.xlu0 %v4325
        %v4327 = vpop.xlane.xlu0 %4326
        %v4328 = vsel %vm774, %v4314, 0.0
        %4329 = vadd.xlane.f32.xlu0 %v4328
        %v4330 = vpop.xlane.xlu0 %4329
        %v4331 = vmul.f32 %v4321, %v1926
        %v4332 = vmul.f32 %v4324, %v1926
        %v4333 = vmul.f32 %v4327, %v1926
        %v4334 = vmul.f32 %v4330, %v1926
        %v4335 = vsub.f32 %v4311, %v4331
        %v4336 = vsub.f32 %v4312, %v4332
        %v4337 = vsub.f32 %v4313, %v4333
        %v4338 = vsub.f32 %v4314, %v4334
        %v4339 = vmul.f32 %v4335, %v4335
        %v4340 = vmul.f32 %v4336, %v4336
        %v4341 = vmul.f32 %v4337, %v4337
        %v4342 = vmul.f32 %v4338, %v4338
        %v4343 = vsel %vm774, %v4339, 0.0
        %4344 = vadd.xlane.f32.xlu0 %v4343
        %v4345 = vpop.xlane.xlu0 %4344
        %v4346 = vsel %vm774, %v4340, 0.0
        %4347 = vadd.xlane.f32.xlu0 %v4346
        %v4348 = vpop.xlane.xlu0 %4347
        %v4349 = vsel %vm774, %v4341, 0.0
        %4350 = vadd.xlane.f32.xlu0 %v4349
        %v4351 = vpop.xlane.xlu0 %4350
        %v4352 = vsel %vm774, %v4342, 0.0
        %4353 = vadd.xlane.f32.xlu0 %v4352
        %v4354 = vpop.xlane.xlu0 %4353
        %v4355 = vmul.f32 %v4345, %v1926
        %v4356 = vmul.f32 %v4348, %v1926
        %v4357 = vmul.f32 %v4351, %v1926
        %v4358 = vmul.f32 %v4354, %v1926
        %v4359 = vadd.f32 %v4355, 1e-05
        %v4360 = vadd.f32 %v4356, 1e-05
        %v4361 = vadd.f32 %v4357, 1e-05
        %v4362 = vadd.f32 %v4358, 1e-05
        %v4363 = vrsqrt.pop %v4359
        %v4364 = vmul.f32 %v4363, %v4359
        %v4365 = vmul.f32 %v4364, %v4363
        %v4366 = vmul.f32 0.5, %v4365
        %v4367 = vsub.f32 1.5, %v4366
        %v4368 = vmul.f32 %v4363, %v4367
        %vm4369 = vweird.f32 %v4359
        %vm4370 = vweird.f32 %v4363
        %vm4371 = vmor %vm4369, %vm4370
        %v4372 = vsel %vm4371, %v4363, %v4368
        %v4373 = vrsqrt.pop %v4360
        %v4374 = vmul.f32 %v4373, %v4360
        %v4375 = vmul.f32 %v4374, %v4373
        %v4376 = vmul.f32 0.5, %v4375
        %v4377 = vsub.f32 1.5, %v4376
        %v4378 = vmul.f32 %v4373, %v4377
        %vm4379 = vweird.f32 %v4360
        %vm4380 = vweird.f32 %v4373
        %vm4381 = vmor %vm4379, %vm4380
        %v4382 = vsel %vm4381, %v4373, %v4378
        %v4383 = vrsqrt.pop %v4361
        %v4384 = vmul.f32 %v4383, %v4361
        %v4385 = vmul.f32 %v4384, %v4383
        %v4386 = vmul.f32 0.5, %v4385
        %v4387 = vsub.f32 1.5, %v4386
        %v4388 = vmul.f32 %v4383, %v4387
        %vm4389 = vweird.f32 %v4361
        %vm4390 = vweird.f32 %v4383
        %vm4391 = vmor %vm4389, %vm4390
        %v4392 = vsel %vm4391, %v4383, %v4388
        %v4393 = vrsqrt.pop %v4362
        %v4394 = vmul.f32 %v4393, %v4362
        %v4395 = vmul.f32 %v4394, %v4393
        %v4396 = vmul.f32 0.5, %v4395
        %v4397 = vsub.f32 1.5, %v4396
        %v4398 = vmul.f32 %v4393, %v4397
        %vm4399 = vweird.f32 %v4362
        %vm4400 = vweird.f32 %v4393
        %vm4401 = vmor %vm4399, %vm4400
        %v4402 = vsel %vm4401, %v4393, %v4398
        %v4403 = vmul.f32 %v4335, %v4372
        %v4404 = vmul.f32 %v4336, %v4382
        %v4405 = vmul.f32 %v4337, %v4392
        %v4406 = vmul.f32 %v4338, %v4402
        %v4408 = vperm.slane %v4316, 0
        %v4410 = vmul.f32 %v4403, %v4408
        %v4411 = vmul.f32 %v4404, %v4408
        %v4412 = vmul.f32 %v4405, %v4408
        %v4413 = vmul.f32 %v4406, %v4408
        %v4415 = vperm.slane %v4318, 0
        %v4417 = vadd.f32 %v4410, %v4415
        %v4418 = vadd.f32 %v4411, %v4415
        %v4419 = vadd.f32 %v4412, %v4415
        %v4420 = vadd.f32 %v4413, %v4415
        %s4421 = scalar_lea.vmem %s10, 512
        %v4422 = vld [vmem:[%s4421] sm:$0xff]
        %v4423 = vld [vmem:[%s4421 + $0x8] sm:$0xff]
        %v4424 = vld [vmem:[%s4421 + $0x10] sm:$0xff]
        %v4425 = vld [vmem:[%s4421 + $0x18] sm:$0xff]
        %v4426 = vld [vmem:[%s4421 + $0x20] sm:$0xff]
        %v4427 = vld [vmem:[%s4421 + $0x28] sm:$0xff]
        %v4428 = vld [vmem:[%s4421 + $0x30] sm:$0xff]
        %v4429 = vld [vmem:[%s4421 + $0x38] sm:$0xff]
        %v4430 = vld [vmem:[%s4421 + $0x40] sm:$0xff]
        %v4431 = vld [vmem:[%s4421 + $0x48] sm:$0xff]
        %v4432 = vld [vmem:[%s4421 + $0x50] sm:$0xff]
        %v4433 = vld [vmem:[%s4421 + $0x58] sm:$0xff]
        %v4434 = vld [vmem:[%s4421 + $0x60] sm:$0xff]
        %v4435 = vld [vmem:[%s4421 + $0x68] sm:$0xff]
        %v4436 = vld [vmem:[%s4421 + $0x70] sm:$0xff]
        %v4437 = vld [vmem:[%s4421 + $0x78] sm:$0xff]
        %v4438 = vld [vmem:[%s4421 + $0x80] sm:$0xff]
        %v4439 = vld [vmem:[%s4421 + $0x88] sm:$0xff]
        %v4440 = vld [vmem:[%s4421 + $0x90] sm:$0xff]
        %v4441 = vld [vmem:[%s4421 + $0x98] sm:$0xff]
        %v4442 = vld [vmem:[%s4421 + $0xa0] sm:$0xff]
        %v4443 = vld [vmem:[%s4421 + $0xa8] sm:$0xff]
        %v4444 = vld [vmem:[%s4421 + $0xb0] sm:$0xff]
        %v4445 = vld [vmem:[%s4421 + $0xb8] sm:$0xff]
        %v4446 = vld [vmem:[%s4421 + $0xc0] sm:$0xff]
        %v4447 = vld [vmem:[%s4421 + $0xc8] sm:$0xff]
        %v4448 = vld [vmem:[%s4421 + $0xd0] sm:$0xff]
        %v4449 = vld [vmem:[%s4421 + $0xd8] sm:$0xff]
        %v4450 = vld [vmem:[%s4421 + $0xe0] sm:$0xff]
        %v4451 = vld [vmem:[%s4421 + $0xe8] sm:$0xff]
        %v4452 = vld [vmem:[%s4421 + $0xf0] sm:$0xff]
        %v4453 = vld [vmem:[%s4421 + $0xf8] sm:$0xff]
        %v4454 = vld [vmem:[%s4421 + $0x100] sm:$0xff]
        %v4455 = vld [vmem:[%s4421 + $0x108] sm:$0xff]
        %v4456 = vld [vmem:[%s4421 + $0x110] sm:$0xff]
        %v4457 = vld [vmem:[%s4421 + $0x118] sm:$0xff]
        %v4458 = vld [vmem:[%s4421 + $0x120] sm:$0xff]
        %v4459 = vld [vmem:[%s4421 + $0x128] sm:$0xff]
        %v4460 = vld [vmem:[%s4421 + $0x130] sm:$0xff]
        %v4461 = vld [vmem:[%s4421 + $0x138] sm:$0xff]
        %v4462 = vld [vmem:[%s4421 + $0x140] sm:$0xff]
        %v4463 = vld [vmem:[%s4421 + $0x148] sm:$0xff]
        %v4464 = vld [vmem:[%s4421 + $0x150] sm:$0xff]
        %v4465 = vld [vmem:[%s4421 + $0x158] sm:$0xff]
        %v4466 = vld [vmem:[%s4421 + $0x160] sm:$0xff]
        %v4467 = vld [vmem:[%s4421 + $0x168] sm:$0xff]
        %v4468 = vld [vmem:[%s4421 + $0x170] sm:$0xff]
        %v4469 = vld [vmem:[%s4421 + $0x178] sm:$0xff]
        %v4470 = vld [vmem:[%s4421 + $0x180] sm:$0xff]
        %v4471 = vld [vmem:[%s4421 + $0x188] sm:$0xff]
        %v4472 = vld [vmem:[%s4421 + $0x190] sm:$0xff]
        %v4473 = vld [vmem:[%s4421 + $0x198] sm:$0xff]
        %v4474 = vld [vmem:[%s4421 + $0x1a0] sm:$0xff]
        %v4475 = vld [vmem:[%s4421 + $0x1a8] sm:$0xff]
        %v4476 = vld [vmem:[%s4421 + $0x1b0] sm:$0xff]
        %v4477 = vld [vmem:[%s4421 + $0x1b8] sm:$0xff]
        %v4478 = vld [vmem:[%s4421 + $0x1c0] sm:$0xff]
        %v4479 = vld [vmem:[%s4421 + $0x1c8] sm:$0xff]
        %v4480 = vld [vmem:[%s4421 + $0x1d0] sm:$0xff]
        %v4481 = vld [vmem:[%s4421 + $0x1d8] sm:$0xff]
        %v4482 = vld [vmem:[%s4421 + $0x1e0] sm:$0xff]
        %v4483 = vld [vmem:[%s4421 + $0x1e8] sm:$0xff]
        %v4484 = vld [vmem:[%s4421 + $0x1f0] sm:$0xff]
        %v4485 = vld [vmem:[%s4421 + $0x1f8] sm:$0xff]
        %s4486 = scalar_lea.vmem %s11, 16
        %v4487 = vld [vmem:[%s4486] sm:$0xff]
        %v4488 = vld [vmem:[%s4486 + $0x8] sm:$0xff]
        %v4491 = vperm.slane %v4487, 0
        %v4492 = vperm.slane %v4487, 1
        %v4493 = vperm.slane %v4487, 2
        %v4494 = vperm.slane %v4487, 3
        %v4495 = vperm.slane %v4487, 4
        %v4496 = vperm.slane %v4487, 5
        %v4497 = vperm.slane %v4487, 6
        %v4498 = vperm.slane %v4487, 7
        %v4499 = vperm.slane %v4488, 0
        %v4500 = vperm.slane %v4488, 1
        %v4501 = vperm.slane %v4488, 2
        %v4502 = vperm.slane %v4488, 3
        %v4503 = vperm.slane %v4488, 4
        %v4504 = vperm.slane %v4488, 5
        %v4505 = vperm.slane %v4488, 6
        %v4506 = vperm.slane %v4488, 7
        %v4524 = vsel %vm774, %v4417, 0
        %v4527 = vsel %vm774, %v4418, 0
        %v4530 = vsel %vm774, %v4419, 0
        %v4533 = vsel %vm774, %v4420, 0
        %4535 = vmatpush.msra.mxu0 0.0
        %4536 = vmatpush.msra.mxu0 0.0
        %4537 = vmatpush.msra.mxu0 0.0
        %4538 = vmatpush.msra.mxu0 0.0
        %4539 = vmatpush.msra.mxu0 0.0
        %4540 = vmatpush.msra.mxu0 0.0
        %4541 = vmatpush.msra.mxu0 0.0
        %4542 = vmatpush.msra.mxu0 0.0
        %4543 = vmatpush.msra.mxu0 0.0
        %4544 = vmatpush.msra.mxu0 0.0
        %4545 = vmatpush.msra.mxu0 0.0
        %4546 = vmatpush.msra.mxu0 0.0
        %4547 = vmatpush.msra.mxu0 %v4470
        %4548 = vmatpush.msra.mxu0 %v4454
        %4549 = vmatpush.msra.mxu0 %v4438
        %4550 = vmatpush.msra.mxu0 %v4422
        %4551 = vmatmul.f32.gmra.mxu0 %v4524
        %v4552 = vpop.f32.mrf.mxu0
        %v4553 = vadd.f32 %v4491, %v4552
        %4554 = vmatmul.f32.gmra.mxu0 %v4527
        %v4555 = vpop.f32.mrf.mxu0
        %v4556 = vadd.f32 %v4491, %v4555
        %4557 = vmatmul.f32.gmra.mxu0 %v4530
        %v4558 = vpop.f32.mrf.mxu0
        %v4559 = vadd.f32 %v4491, %v4558
        %4560 = vmatmul.f32.gmra.mxu0 %v4533
        %v4561 = vpop.f32.mrf.mxu0
        %v4562 = vadd.f32 %v4491, %v4561
        %4563 = vdwg.mxu0
        %4564 = vmatpush.msra.mxu0 0.0
        %4565 = vmatpush.msra.mxu0 0.0
        %4566 = vmatpush.msra.mxu0 0.0
        %4567 = vmatpush.msra.mxu0 0.0
        %4568 = vmatpush.msra.mxu0 0.0
        %4569 = vmatpush.msra.mxu0 0.0
        %4570 = vmatpush.msra.mxu0 0.0
        %4571 = vmatpush.msra.mxu0 0.0
        %4572 = vmatpush.msra.mxu0 0.0
        %4573 = vmatpush.msra.mxu0 0.0
        %4574 = vmatpush.msra.mxu0 0.0
        %4575 = vmatpush.msra.mxu0 0.0
        %4576 = vmatpush.msra.mxu0 %v4471
        %4577 = vmatpush.msra.mxu0 %v4455
        %4578 = vmatpush.msra.mxu0 %v4439
        %4579 = vmatpush.msra.mxu0 %v4423
        %4580 = vmatmul.f32.gmra.mxu0 %v4524
        %v4581 = vpop.f32.mrf.mxu0
        %v4582 = vadd.f32 %v4492, %v4581
        %4583 = vmatmul.f32.gmra.mxu0 %v4527
        %v4584 = vpop.f32.mrf.mxu0
        %v4585 = vadd.f32 %v4492, %v4584
        %4586 = vmatmul.f32.gmra.mxu0 %v4530
        %v4587 = vpop.f32.mrf.mxu0
        %v4588 = vadd.f32 %v4492, %v4587
        %4589 = vmatmul.f32.gmra.mxu0 %v4533
        %v4590 = vpop.f32.mrf.mxu0
        %v4591 = vadd.f32 %v4492, %v4590
        %4592 = vdwg.mxu0
        %4593 = vmatpush.msra.mxu0 0.0
        %4594 = vmatpush.msra.mxu0 0.0
        %4595 = vmatpush.msra.mxu0 0.0
        %4596 = vmatpush.msra.mxu0 0.0
        %4597 = vmatpush.msra.mxu0 0.0
        %4598 = vmatpush.msra.mxu0 0.0
        %4599 = vmatpush.msra.mxu0 0.0
        %4600 = vmatpush.msra.mxu0 0.0
        %4601 = vmatpush.msra.mxu0 0.0
        %4602 = vmatpush.msra.mxu0 0.0
        %4603 = vmatpush.msra.mxu0 0.0
        %4604 = vmatpush.msra.mxu0 0.0
        %4605 = vmatpush.msra.mxu0 %v4472
        %4606 = vmatpush.msra.mxu0 %v4456
        %4607 = vmatpush.msra.mxu0 %v4440
        %4608 = vmatpush.msra.mxu0 %v4424
        %4609 = vmatmul.f32.gmra.mxu0 %v4524
        %v4610 = vpop.f32.mrf.mxu0
        %v4611 = vadd.f32 %v4493, %v4610
        %4612 = vmatmul.f32.gmra.mxu0 %v4527
        %v4613 = vpop.f32.mrf.mxu0
        %v4614 = vadd.f32 %v4493, %v4613
        %4615 = vmatmul.f32.gmra.mxu0 %v4530
        %v4616 = vpop.f32.mrf.mxu0
        %v4617 = vadd.f32 %v4493, %v4616
        %4618 = vmatmul.f32.gmra.mxu0 %v4533
        %v4619 = vpop.f32.mrf.mxu0
        %v4620 = vadd.f32 %v4493, %v4619
        %4621 = vdwg.mxu0
        %4622 = vmatpush.msra.mxu0 0.0
        %4623 = vmatpush.msra.mxu0 0.0
        %4624 = vmatpush.msra.mxu0 0.0
        %4625 = vmatpush.msra.mxu0 0.0
        %4626 = vmatpush.msra.mxu0 0.0
        %4627 = vmatpush.msra.mxu0 0.0
        %4628 = vmatpush.msra.mxu0 0.0
        %4629 = vmatpush.msra.mxu0 0.0
        %4630 = vmatpush.msra.mxu0 0.0
        %4631 = vmatpush.msra.mxu0 0.0
        %4632 = vmatpush.msra.mxu0 0.0
        %4633 = vmatpush.msra.mxu0 0.0
        %4634 = vmatpush.msra.mxu0 %v4473
        %4635 = vmatpush.msra.mxu0 %v4457
        %4636 = vmatpush.msra.mxu0 %v4441
        %4637 = vmatpush.msra.mxu0 %v4425
        %4638 = vmatmul.f32.gmra.mxu0 %v4524
        %v4639 = vpop.f32.mrf.mxu0
        %v4640 = vadd.f32 %v4494, %v4639
        %4641 = vmatmul.f32.gmra.mxu0 %v4527
        %v4642 = vpop.f32.mrf.mxu0
        %v4643 = vadd.f32 %v4494, %v4642
        %4644 = vmatmul.f32.gmra.mxu0 %v4530
        %v4645 = vpop.f32.mrf.mxu0
        %v4646 = vadd.f32 %v4494, %v4645
        %4647 = vmatmul.f32.gmra.mxu0 %v4533
        %v4648 = vpop.f32.mrf.mxu0
        %v4649 = vadd.f32 %v4494, %v4648
        %4650 = vdwg.mxu0
        %4651 = vmatpush.msra.mxu0 0.0
        %4652 = vmatpush.msra.mxu0 0.0
        %4653 = vmatpush.msra.mxu0 0.0
        %4654 = vmatpush.msra.mxu0 0.0
        %4655 = vmatpush.msra.mxu0 0.0
        %4656 = vmatpush.msra.mxu0 0.0
        %4657 = vmatpush.msra.mxu0 0.0
        %4658 = vmatpush.msra.mxu0 0.0
        %4659 = vmatpush.msra.mxu0 0.0
        %4660 = vmatpush.msra.mxu0 0.0
        %4661 = vmatpush.msra.mxu0 0.0
        %4662 = vmatpush.msra.mxu0 0.0
        %4663 = vmatpush.msra.mxu0 %v4474
        %4664 = vmatpush.msra.mxu0 %v4458
        %4665 = vmatpush.msra.mxu0 %v4442
        %4666 = vmatpush.msra.mxu0 %v4426
        %4667 = vmatmul.f32.gmra.mxu0 %v4524
        %v4668 = vpop.f32.mrf.mxu0
        %v4669 = vadd.f32 %v4495, %v4668
        %4670 = vmatmul.f32.gmra.mxu0 %v4527
        %v4671 = vpop.f32.mrf.mxu0
        %v4672 = vadd.f32 %v4495, %v4671
        %4673 = vmatmul.f32.gmra.mxu0 %v4530
        %v4674 = vpop.f32.mrf.mxu0
        %v4675 = vadd.f32 %v4495, %v4674
        %4676 = vmatmul.f32.gmra.mxu0 %v4533
        %v4677 = vpop.f32.mrf.mxu0
        %v4678 = vadd.f32 %v4495, %v4677
        %4679 = vdwg.mxu0
        %4680 = vmatpush.msra.mxu0 0.0
        %4681 = vmatpush.msra.mxu0 0.0
        %4682 = vmatpush.msra.mxu0 0.0
        %4683 = vmatpush.msra.mxu0 0.0
        %4684 = vmatpush.msra.mxu0 0.0
        %4685 = vmatpush.msra.mxu0 0.0
        %4686 = vmatpush.msra.mxu0 0.0
        %4687 = vmatpush.msra.mxu0 0.0
        %4688 = vmatpush.msra.mxu0 0.0
        %4689 = vmatpush.msra.mxu0 0.0
        %4690 = vmatpush.msra.mxu0 0.0
        %4691 = vmatpush.msra.mxu0 0.0
        %4692 = vmatpush.msra.mxu0 %v4475
        %4693 = vmatpush.msra.mxu0 %v4459
        %4694 = vmatpush.msra.mxu0 %v4443
        %4695 = vmatpush.msra.mxu0 %v4427
        %4696 = vmatmul.f32.gmra.mxu0 %v4524
        %v4697 = vpop.f32.mrf.mxu0
        %v4698 = vadd.f32 %v4496, %v4697
        %4699 = vmatmul.f32.gmra.mxu0 %v4527
        %v4700 = vpop.f32.mrf.mxu0
        %v4701 = vadd.f32 %v4496, %v4700
        %4702 = vmatmul.f32.gmra.mxu0 %v4530
        %v4703 = vpop.f32.mrf.mxu0
        %v4704 = vadd.f32 %v4496, %v4703
        %4705 = vmatmul.f32.gmra.mxu0 %v4533
        %v4706 = vpop.f32.mrf.mxu0
        %v4707 = vadd.f32 %v4496, %v4706
        %4708 = vdwg.mxu0
        %4709 = vmatpush.msra.mxu0 0.0
        %4710 = vmatpush.msra.mxu0 0.0
        %4711 = vmatpush.msra.mxu0 0.0
        %4712 = vmatpush.msra.mxu0 0.0
        %4713 = vmatpush.msra.mxu0 0.0
        %4714 = vmatpush.msra.mxu0 0.0
        %4715 = vmatpush.msra.mxu0 0.0
        %4716 = vmatpush.msra.mxu0 0.0
        %4717 = vmatpush.msra.mxu0 0.0
        %4718 = vmatpush.msra.mxu0 0.0
        %4719 = vmatpush.msra.mxu0 0.0
        %4720 = vmatpush.msra.mxu0 0.0
        %4721 = vmatpush.msra.mxu0 %v4476
        %4722 = vmatpush.msra.mxu0 %v4460
        %4723 = vmatpush.msra.mxu0 %v4444
        %4724 = vmatpush.msra.mxu0 %v4428
        %4725 = vmatmul.f32.gmra.mxu0 %v4524
        %v4726 = vpop.f32.mrf.mxu0
        %v4727 = vadd.f32 %v4497, %v4726
        %4728 = vmatmul.f32.gmra.mxu0 %v4527
        %v4729 = vpop.f32.mrf.mxu0
        %v4730 = vadd.f32 %v4497, %v4729
        %4731 = vmatmul.f32.gmra.mxu0 %v4530
        %v4732 = vpop.f32.mrf.mxu0
        %v4733 = vadd.f32 %v4497, %v4732
        %4734 = vmatmul.f32.gmra.mxu0 %v4533
        %v4735 = vpop.f32.mrf.mxu0
        %v4736 = vadd.f32 %v4497, %v4735
        %4737 = vdwg.mxu0
        %4738 = vmatpush.msra.mxu0 0.0
        %4739 = vmatpush.msra.mxu0 0.0
        %4740 = vmatpush.msra.mxu0 0.0
        %4741 = vmatpush.msra.mxu0 0.0
        %4742 = vmatpush.msra.mxu0 0.0
        %4743 = vmatpush.msra.mxu0 0.0
        %4744 = vmatpush.msra.mxu0 0.0
        %4745 = vmatpush.msra.mxu0 0.0
        %4746 = vmatpush.msra.mxu0 0.0
        %4747 = vmatpush.msra.mxu0 0.0
        %4748 = vmatpush.msra.mxu0 0.0
        %4749 = vmatpush.msra.mxu0 0.0
        %4750 = vmatpush.msra.mxu0 %v4477
        %4751 = vmatpush.msra.mxu0 %v4461
        %4752 = vmatpush.msra.mxu0 %v4445
        %4753 = vmatpush.msra.mxu0 %v4429
        %4754 = vmatmul.f32.gmra.mxu0 %v4524
        %v4755 = vpop.f32.mrf.mxu0
        %v4756 = vadd.f32 %v4498, %v4755
        %4757 = vmatmul.f32.gmra.mxu0 %v4527
        %v4758 = vpop.f32.mrf.mxu0
        %v4759 = vadd.f32 %v4498, %v4758
        %4760 = vmatmul.f32.gmra.mxu0 %v4530
        %v4761 = vpop.f32.mrf.mxu0
        %v4762 = vadd.f32 %v4498, %v4761
        %4763 = vmatmul.f32.gmra.mxu0 %v4533
        %v4764 = vpop.f32.mrf.mxu0
        %v4765 = vadd.f32 %v4498, %v4764
        %4766 = vdwg.mxu0
        %4767 = vmatpush.msra.mxu0 0.0
        %4768 = vmatpush.msra.mxu0 0.0
        %4769 = vmatpush.msra.mxu0 0.0
        %4770 = vmatpush.msra.mxu0 0.0
        %4771 = vmatpush.msra.mxu0 0.0
        %4772 = vmatpush.msra.mxu0 0.0
        %4773 = vmatpush.msra.mxu0 0.0
        %4774 = vmatpush.msra.mxu0 0.0
        %4775 = vmatpush.msra.mxu0 0.0
        %4776 = vmatpush.msra.mxu0 0.0
        %4777 = vmatpush.msra.mxu0 0.0
        %4778 = vmatpush.msra.mxu0 0.0
        %4779 = vmatpush.msra.mxu0 %v4478
        %4780 = vmatpush.msra.mxu0 %v4462
        %4781 = vmatpush.msra.mxu0 %v4446
        %4782 = vmatpush.msra.mxu0 %v4430
        %4783 = vmatmul.f32.gmra.mxu0 %v4524
        %v4784 = vpop.f32.mrf.mxu0
        %v4785 = vadd.f32 %v4499, %v4784
        %4786 = vmatmul.f32.gmra.mxu0 %v4527
        %v4787 = vpop.f32.mrf.mxu0
        %v4788 = vadd.f32 %v4499, %v4787
        %4789 = vmatmul.f32.gmra.mxu0 %v4530
        %v4790 = vpop.f32.mrf.mxu0
        %v4791 = vadd.f32 %v4499, %v4790
        %4792 = vmatmul.f32.gmra.mxu0 %v4533
        %v4793 = vpop.f32.mrf.mxu0
        %v4794 = vadd.f32 %v4499, %v4793
        %4795 = vdwg.mxu0
        %4796 = vmatpush.msra.mxu0 0.0
        %4797 = vmatpush.msra.mxu0 0.0
        %4798 = vmatpush.msra.mxu0 0.0
        %4799 = vmatpush.msra.mxu0 0.0
        %4800 = vmatpush.msra.mxu0 0.0
        %4801 = vmatpush.msra.mxu0 0.0
        %4802 = vmatpush.msra.mxu0 0.0
        %4803 = vmatpush.msra.mxu0 0.0
        %4804 = vmatpush.msra.mxu0 0.0
        %4805 = vmatpush.msra.mxu0 0.0
        %4806 = vmatpush.msra.mxu0 0.0
        %4807 = vmatpush.msra.mxu0 0.0
        %4808 = vmatpush.msra.mxu0 %v4479
        %4809 = vmatpush.msra.mxu0 %v4463
        %4810 = vmatpush.msra.mxu0 %v4447
        %4811 = vmatpush.msra.mxu0 %v4431
        %4812 = vmatmul.f32.gmra.mxu0 %v4524
        %v4813 = vpop.f32.mrf.mxu0
        %v4814 = vadd.f32 %v4500, %v4813
        %4815 = vmatmul.f32.gmra.mxu0 %v4527
        %v4816 = vpop.f32.mrf.mxu0
        %v4817 = vadd.f32 %v4500, %v4816
        %4818 = vmatmul.f32.gmra.mxu0 %v4530
        %v4819 = vpop.f32.mrf.mxu0
        %v4820 = vadd.f32 %v4500, %v4819
        %4821 = vmatmul.f32.gmra.mxu0 %v4533
        %v4822 = vpop.f32.mrf.mxu0
        %v4823 = vadd.f32 %v4500, %v4822
        %4824 = vdwg.mxu0
        %4825 = vmatpush.msra.mxu0 0.0
        %4826 = vmatpush.msra.mxu0 0.0
        %4827 = vmatpush.msra.mxu0 0.0
        %4828 = vmatpush.msra.mxu0 0.0
        %4829 = vmatpush.msra.mxu0 0.0
        %4830 = vmatpush.msra.mxu0 0.0
        %4831 = vmatpush.msra.mxu0 0.0
        %4832 = vmatpush.msra.mxu0 0.0
        %4833 = vmatpush.msra.mxu0 0.0
        %4834 = vmatpush.msra.mxu0 0.0
        %4835 = vmatpush.msra.mxu0 0.0
        %4836 = vmatpush.msra.mxu0 0.0
        %4837 = vmatpush.msra.mxu0 %v4480
        %4838 = vmatpush.msra.mxu0 %v4464
        %4839 = vmatpush.msra.mxu0 %v4448
        %4840 = vmatpush.msra.mxu0 %v4432
        %4841 = vmatmul.f32.gmra.mxu0 %v4524
        %v4842 = vpop.f32.mrf.mxu0
        %v4843 = vadd.f32 %v4501, %v4842
        %4844 = vmatmul.f32.gmra.mxu0 %v4527
        %v4845 = vpop.f32.mrf.mxu0
        %v4846 = vadd.f32 %v4501, %v4845
        %4847 = vmatmul.f32.gmra.mxu0 %v4530
        %v4848 = vpop.f32.mrf.mxu0
        %v4849 = vadd.f32 %v4501, %v4848
        %4850 = vmatmul.f32.gmra.mxu0 %v4533
        %v4851 = vpop.f32.mrf.mxu0
        %v4852 = vadd.f32 %v4501, %v4851
        %4853 = vdwg.mxu0
        %4854 = vmatpush.msra.mxu0 0.0
        %4855 = vmatpush.msra.mxu0 0.0
        %4856 = vmatpush.msra.mxu0 0.0
        %4857 = vmatpush.msra.mxu0 0.0
        %4858 = vmatpush.msra.mxu0 0.0
        %4859 = vmatpush.msra.mxu0 0.0
        %4860 = vmatpush.msra.mxu0 0.0
        %4861 = vmatpush.msra.mxu0 0.0
        %4862 = vmatpush.msra.mxu0 0.0
        %4863 = vmatpush.msra.mxu0 0.0
        %4864 = vmatpush.msra.mxu0 0.0
        %4865 = vmatpush.msra.mxu0 0.0
        %4866 = vmatpush.msra.mxu0 %v4481
        %4867 = vmatpush.msra.mxu0 %v4465
        %4868 = vmatpush.msra.mxu0 %v4449
        %4869 = vmatpush.msra.mxu0 %v4433
        %4870 = vmatmul.f32.gmra.mxu0 %v4524
        %v4871 = vpop.f32.mrf.mxu0
        %v4872 = vadd.f32 %v4502, %v4871
        %4873 = vmatmul.f32.gmra.mxu0 %v4527
        %v4874 = vpop.f32.mrf.mxu0
        %v4875 = vadd.f32 %v4502, %v4874
        %4876 = vmatmul.f32.gmra.mxu0 %v4530
        %v4877 = vpop.f32.mrf.mxu0
        %v4878 = vadd.f32 %v4502, %v4877
        %4879 = vmatmul.f32.gmra.mxu0 %v4533
        %v4880 = vpop.f32.mrf.mxu0
        %v4881 = vadd.f32 %v4502, %v4880
        %4882 = vdwg.mxu0
        %4883 = vmatpush.msra.mxu0 0.0
        %4884 = vmatpush.msra.mxu0 0.0
        %4885 = vmatpush.msra.mxu0 0.0
        %4886 = vmatpush.msra.mxu0 0.0
        %4887 = vmatpush.msra.mxu0 0.0
        %4888 = vmatpush.msra.mxu0 0.0
        %4889 = vmatpush.msra.mxu0 0.0
        %4890 = vmatpush.msra.mxu0 0.0
        %4891 = vmatpush.msra.mxu0 0.0
        %4892 = vmatpush.msra.mxu0 0.0
        %4893 = vmatpush.msra.mxu0 0.0
        %4894 = vmatpush.msra.mxu0 0.0
        %4895 = vmatpush.msra.mxu0 %v4482
        %4896 = vmatpush.msra.mxu0 %v4466
        %4897 = vmatpush.msra.mxu0 %v4450
        %4898 = vmatpush.msra.mxu0 %v4434
        %4899 = vmatmul.f32.gmra.mxu0 %v4524
        %v4900 = vpop.f32.mrf.mxu0
        %v4901 = vadd.f32 %v4503, %v4900
        %4902 = vmatmul.f32.gmra.mxu0 %v4527
        %v4903 = vpop.f32.mrf.mxu0
        %v4904 = vadd.f32 %v4503, %v4903
        %4905 = vmatmul.f32.gmra.mxu0 %v4530
        %v4906 = vpop.f32.mrf.mxu0
        %v4907 = vadd.f32 %v4503, %v4906
        %4908 = vmatmul.f32.gmra.mxu0 %v4533
        %v4909 = vpop.f32.mrf.mxu0
        %v4910 = vadd.f32 %v4503, %v4909
        %4911 = vdwg.mxu0
        %4912 = vmatpush.msra.mxu0 0.0
        %4913 = vmatpush.msra.mxu0 0.0
        %4914 = vmatpush.msra.mxu0 0.0
        %4915 = vmatpush.msra.mxu0 0.0
        %4916 = vmatpush.msra.mxu0 0.0
        %4917 = vmatpush.msra.mxu0 0.0
        %4918 = vmatpush.msra.mxu0 0.0
        %4919 = vmatpush.msra.mxu0 0.0
        %4920 = vmatpush.msra.mxu0 0.0
        %4921 = vmatpush.msra.mxu0 0.0
        %4922 = vmatpush.msra.mxu0 0.0
        %4923 = vmatpush.msra.mxu0 0.0
        %4924 = vmatpush.msra.mxu0 %v4483
        %4925 = vmatpush.msra.mxu0 %v4467
        %4926 = vmatpush.msra.mxu0 %v4451
        %4927 = vmatpush.msra.mxu0 %v4435
        %4928 = vmatmul.f32.gmra.mxu0 %v4524
        %v4929 = vpop.f32.mrf.mxu0
        %v4930 = vadd.f32 %v4504, %v4929
        %4931 = vmatmul.f32.gmra.mxu0 %v4527
        %v4932 = vpop.f32.mrf.mxu0
        %v4933 = vadd.f32 %v4504, %v4932
        %4934 = vmatmul.f32.gmra.mxu0 %v4530
        %v4935 = vpop.f32.mrf.mxu0
        %v4936 = vadd.f32 %v4504, %v4935
        %4937 = vmatmul.f32.gmra.mxu0 %v4533
        %v4938 = vpop.f32.mrf.mxu0
        %v4939 = vadd.f32 %v4504, %v4938
        %4940 = vdwg.mxu0
        %4941 = vmatpush.msra.mxu0 0.0
        %4942 = vmatpush.msra.mxu0 0.0
        %4943 = vmatpush.msra.mxu0 0.0
        %4944 = vmatpush.msra.mxu0 0.0
        %4945 = vmatpush.msra.mxu0 0.0
        %4946 = vmatpush.msra.mxu0 0.0
        %4947 = vmatpush.msra.mxu0 0.0
        %4948 = vmatpush.msra.mxu0 0.0
        %4949 = vmatpush.msra.mxu0 0.0
        %4950 = vmatpush.msra.mxu0 0.0
        %4951 = vmatpush.msra.mxu0 0.0
        %4952 = vmatpush.msra.mxu0 0.0
        %4953 = vmatpush.msra.mxu0 %v4484
        %4954 = vmatpush.msra.mxu0 %v4468
        %4955 = vmatpush.msra.mxu0 %v4452
        %4956 = vmatpush.msra.mxu0 %v4436
        %4957 = vmatmul.f32.gmra.mxu0 %v4524
        %v4958 = vpop.f32.mrf.mxu0
        %v4959 = vadd.f32 %v4505, %v4958
        %4960 = vmatmul.f32.gmra.mxu0 %v4527
        %v4961 = vpop.f32.mrf.mxu0
        %v4962 = vadd.f32 %v4505, %v4961
        %4963 = vmatmul.f32.gmra.mxu0 %v4530
        %v4964 = vpop.f32.mrf.mxu0
        %v4965 = vadd.f32 %v4505, %v4964
        %4966 = vmatmul.f32.gmra.mxu0 %v4533
        %v4967 = vpop.f32.mrf.mxu0
        %v4968 = vadd.f32 %v4505, %v4967
        %4969 = vdwg.mxu0
        %4970 = vmatpush.msra.mxu0 0.0
        %4971 = vmatpush.msra.mxu0 0.0
        %4972 = vmatpush.msra.mxu0 0.0
        %4973 = vmatpush.msra.mxu0 0.0
        %4974 = vmatpush.msra.mxu0 0.0
        %4975 = vmatpush.msra.mxu0 0.0
        %4976 = vmatpush.msra.mxu0 0.0
        %4977 = vmatpush.msra.mxu0 0.0
        %4978 = vmatpush.msra.mxu0 0.0
        %4979 = vmatpush.msra.mxu0 0.0
        %4980 = vmatpush.msra.mxu0 0.0
        %4981 = vmatpush.msra.mxu0 0.0
        %4982 = vmatpush.msra.mxu0 %v4485
        %4983 = vmatpush.msra.mxu0 %v4469
        %4984 = vmatpush.msra.mxu0 %v4453
        %4985 = vmatpush.msra.mxu0 %v4437
        %4986 = vmatmul.f32.gmra.mxu0 %v4524
        %v4987 = vpop.f32.mrf.mxu0
        %v4988 = vadd.f32 %v4506, %v4987
        %4989 = vmatmul.f32.gmra.mxu0 %v4527
        %v4990 = vpop.f32.mrf.mxu0
        %v4991 = vadd.f32 %v4506, %v4990
        %4992 = vmatmul.f32.gmra.mxu0 %v4530
        %v4993 = vpop.f32.mrf.mxu0
        %v4994 = vadd.f32 %v4506, %v4993
        %4995 = vmatmul.f32.gmra.mxu0 %v4533
        %v4996 = vpop.f32.mrf.mxu0
        %v4997 = vadd.f32 %v4506, %v4996
        %4998 = vdwg.mxu0
        %v4999 = vmax.f32 %v4553, 0.0
        %v5000 = vmax.f32 %v4582, 0.0
        %v5001 = vmax.f32 %v4611, 0.0
        %v5002 = vmax.f32 %v4640, 0.0
        %v5003 = vmax.f32 %v4669, 0.0
        %v5004 = vmax.f32 %v4698, 0.0
        %v5005 = vmax.f32 %v4727, 0.0
        %v5006 = vmax.f32 %v4756, 0.0
        %v5007 = vmax.f32 %v4785, 0.0
        %v5008 = vmax.f32 %v4814, 0.0
        %v5009 = vmax.f32 %v4843, 0.0
        %v5010 = vmax.f32 %v4872, 0.0
        %v5011 = vmax.f32 %v4901, 0.0
        %v5012 = vmax.f32 %v4930, 0.0
        %v5013 = vmax.f32 %v4959, 0.0
        %v5014 = vmax.f32 %v4988, 0.0
        %v5015 = vmax.f32 %v4556, 0.0
        %v5016 = vmax.f32 %v4585, 0.0
        %v5017 = vmax.f32 %v4614, 0.0
        %v5018 = vmax.f32 %v4643, 0.0
        %v5019 = vmax.f32 %v4672, 0.0
        %v5020 = vmax.f32 %v4701, 0.0
        %v5021 = vmax.f32 %v4730, 0.0
        %v5022 = vmax.f32 %v4759, 0.0
        %v5023 = vmax.f32 %v4788, 0.0
        %v5024 = vmax.f32 %v4817, 0.0
        %v5025 = vmax.f32 %v4846, 0.0
        %v5026 = vmax.f32 %v4875, 0.0
        %v5027 = vmax.f32 %v4904, 0.0
        %v5028 = vmax.f32 %v4933, 0.0
        %v5029 = vmax.f32 %v4962, 0.0
        %v5030 = vmax.f32 %v4991, 0.0
        %v5031 = vmax.f32 %v4559, 0.0
        %v5032 = vmax.f32 %v4588, 0.0
        %v5033 = vmax.f32 %v4617, 0.0
        %v5034 = vmax.f32 %v4646, 0.0
        %v5035 = vmax.f32 %v4675, 0.0
        %v5036 = vmax.f32 %v4704, 0.0
        %v5037 = vmax.f32 %v4733, 0.0
        %v5038 = vmax.f32 %v4762, 0.0
        %v5039 = vmax.f32 %v4791, 0.0
        %v5040 = vmax.f32 %v4820, 0.0
        %v5041 = vmax.f32 %v4849, 0.0
        %v5042 = vmax.f32 %v4878, 0.0
        %v5043 = vmax.f32 %v4907, 0.0
        %v5044 = vmax.f32 %v4936, 0.0
        %v5045 = vmax.f32 %v4965, 0.0
        %v5046 = vmax.f32 %v4994, 0.0
        %v5047 = vmax.f32 %v4562, 0.0
        %v5048 = vmax.f32 %v4591, 0.0
        %v5049 = vmax.f32 %v4620, 0.0
        %v5050 = vmax.f32 %v4649, 0.0
        %v5051 = vmax.f32 %v4678, 0.0
        %v5052 = vmax.f32 %v4707, 0.0
        %v5053 = vmax.f32 %v4736, 0.0
        %v5054 = vmax.f32 %v4765, 0.0
        %v5055 = vmax.f32 %v4794, 0.0
        %v5056 = vmax.f32 %v4823, 0.0
        %v5057 = vmax.f32 %v4852, 0.0
        %v5058 = vmax.f32 %v4881, 0.0
        %v5059 = vmax.f32 %v4910, 0.0
        %v5060 = vmax.f32 %v4939, 0.0
        %v5061 = vmax.f32 %v4968, 0.0
        %v5062 = vmax.f32 %v4997, 0.0
        %s5063 = scalar_lea.vmem %s12, 2048
        %v5064 = vld [vmem:[%s5063] sm:$0xff]
        %v5065 = vld [vmem:[%s5063 + $0x8] sm:$0xff]
        %v5066 = vld [vmem:[%s5063 + $0x10] sm:$0xff]
        %v5067 = vld [vmem:[%s5063 + $0x18] sm:$0xff]
        %v5068 = vld [vmem:[%s5063 + $0x20] sm:$0xff]
        %v5069 = vld [vmem:[%s5063 + $0x28] sm:$0xff]
        %v5070 = vld [vmem:[%s5063 + $0x30] sm:$0xff]
        %v5071 = vld [vmem:[%s5063 + $0x38] sm:$0xff]
        %v5072 = vld [vmem:[%s5063 + $0x40] sm:$0xff]
        %v5073 = vld [vmem:[%s5063 + $0x48] sm:$0xff]
        %v5074 = vld [vmem:[%s5063 + $0x50] sm:$0xff]
        %v5075 = vld [vmem:[%s5063 + $0x58] sm:$0xff]
        %v5076 = vld [vmem:[%s5063 + $0x60] sm:$0xff]
        %v5077 = vld [vmem:[%s5063 + $0x68] sm:$0xff]
        %v5078 = vld [vmem:[%s5063 + $0x70] sm:$0xff]
        %v5079 = vld [vmem:[%s5063 + $0x78] sm:$0xff]
        %v5080 = vld [vmem:[%s5063 + $0x80] sm:$0xff]
        %v5081 = vld [vmem:[%s5063 + $0x88] sm:$0xff]
        %v5082 = vld [vmem:[%s5063 + $0x90] sm:$0xff]
        %v5083 = vld [vmem:[%s5063 + $0x98] sm:$0xff]
        %v5084 = vld [vmem:[%s5063 + $0xa0] sm:$0xff]
        %v5085 = vld [vmem:[%s5063 + $0xa8] sm:$0xff]
        %v5086 = vld [vmem:[%s5063 + $0xb0] sm:$0xff]
        %v5087 = vld [vmem:[%s5063 + $0xb8] sm:$0xff]
        %v5088 = vld [vmem:[%s5063 + $0xc0] sm:$0xff]
        %v5089 = vld [vmem:[%s5063 + $0xc8] sm:$0xff]
        %v5090 = vld [vmem:[%s5063 + $0xd0] sm:$0xff]
        %v5091 = vld [vmem:[%s5063 + $0xd8] sm:$0xff]
        %v5092 = vld [vmem:[%s5063 + $0xe0] sm:$0xff]
        %v5093 = vld [vmem:[%s5063 + $0xe8] sm:$0xff]
        %v5094 = vld [vmem:[%s5063 + $0xf0] sm:$0xff]
        %v5095 = vld [vmem:[%s5063 + $0xf8] sm:$0xff]
        %v5096 = vld [vmem:[%s5063 + $0x100] sm:$0xff]
        %v5097 = vld [vmem:[%s5063 + $0x108] sm:$0xff]
        %v5098 = vld [vmem:[%s5063 + $0x110] sm:$0xff]
        %v5099 = vld [vmem:[%s5063 + $0x118] sm:$0xff]
        %v5100 = vld [vmem:[%s5063 + $0x120] sm:$0xff]
        %v5101 = vld [vmem:[%s5063 + $0x128] sm:$0xff]
        %v5102 = vld [vmem:[%s5063 + $0x130] sm:$0xff]
        %v5103 = vld [vmem:[%s5063 + $0x138] sm:$0xff]
        %v5104 = vld [vmem:[%s5063 + $0x140] sm:$0xff]
        %v5105 = vld [vmem:[%s5063 + $0x148] sm:$0xff]
        %v5106 = vld [vmem:[%s5063 + $0x150] sm:$0xff]
        %v5107 = vld [vmem:[%s5063 + $0x158] sm:$0xff]
        %v5108 = vld [vmem:[%s5063 + $0x160] sm:$0xff]
        %v5109 = vld [vmem:[%s5063 + $0x168] sm:$0xff]
        %v5110 = vld [vmem:[%s5063 + $0x170] sm:$0xff]
        %v5111 = vld [vmem:[%s5063 + $0x178] sm:$0xff]
        %v5112 = vld [vmem:[%s5063 + $0x180] sm:$0xff]
        %v5113 = vld [vmem:[%s5063 + $0x188] sm:$0xff]
        %v5114 = vld [vmem:[%s5063 + $0x190] sm:$0xff]
        %v5115 = vld [vmem:[%s5063 + $0x198] sm:$0xff]
        %v5116 = vld [vmem:[%s5063 + $0x1a0] sm:$0xff]
        %v5117 = vld [vmem:[%s5063 + $0x1a8] sm:$0xff]
        %v5118 = vld [vmem:[%s5063 + $0x1b0] sm:$0xff]
        %v5119 = vld [vmem:[%s5063 + $0x1b8] sm:$0xff]
        %v5120 = vld [vmem:[%s5063 + $0x1c0] sm:$0xff]
        %v5121 = vld [vmem:[%s5063 + $0x1c8] sm:$0xff]
        %v5122 = vld [vmem:[%s5063 + $0x1d0] sm:$0xff]
        %v5123 = vld [vmem:[%s5063 + $0x1d8] sm:$0xff]
        %v5124 = vld [vmem:[%s5063 + $0x1e0] sm:$0xff]
        %v5125 = vld [vmem:[%s5063 + $0x1e8] sm:$0xff]
        %v5126 = vld [vmem:[%s5063 + $0x1f0] sm:$0xff]
        %v5127 = vld [vmem:[%s5063 + $0x1f8] sm:$0xff]
        %v5128 = vld [vmem:[%s5063 + $0x200] sm:$0xff]
        %v5129 = vld [vmem:[%s5063 + $0x208] sm:$0xff]
        %v5130 = vld [vmem:[%s5063 + $0x210] sm:$0xff]
        %v5131 = vld [vmem:[%s5063 + $0x218] sm:$0xff]
        %v5132 = vld [vmem:[%s5063 + $0x220] sm:$0xff]
        %v5133 = vld [vmem:[%s5063 + $0x228] sm:$0xff]
        %v5134 = vld [vmem:[%s5063 + $0x230] sm:$0xff]
        %v5135 = vld [vmem:[%s5063 + $0x238] sm:$0xff]
        %v5136 = vld [vmem:[%s5063 + $0x240] sm:$0xff]
        %v5137 = vld [vmem:[%s5063 + $0x248] sm:$0xff]
        %v5138 = vld [vmem:[%s5063 + $0x250] sm:$0xff]
        %v5139 = vld [vmem:[%s5063 + $0x258] sm:$0xff]
        %v5140 = vld [vmem:[%s5063 + $0x260] sm:$0xff]
        %v5141 = vld [vmem:[%s5063 + $0x268] sm:$0xff]
        %v5142 = vld [vmem:[%s5063 + $0x270] sm:$0xff]
        %v5143 = vld [vmem:[%s5063 + $0x278] sm:$0xff]
        %v5144 = vld [vmem:[%s5063 + $0x280] sm:$0xff]
        %v5145 = vld [vmem:[%s5063 + $0x288] sm:$0xff]
        %v5146 = vld [vmem:[%s5063 + $0x290] sm:$0xff]
        %v5147 = vld [vmem:[%s5063 + $0x298] sm:$0xff]
        %v5148 = vld [vmem:[%s5063 + $0x2a0] sm:$0xff]
        %v5149 = vld [vmem:[%s5063 + $0x2a8] sm:$0xff]
        %v5150 = vld [vmem:[%s5063 + $0x2b0] sm:$0xff]
        %v5151 = vld [vmem:[%s5063 + $0x2b8] sm:$0xff]
        %v5152 = vld [vmem:[%s5063 + $0x2c0] sm:$0xff]
        %v5153 = vld [vmem:[%s5063 + $0x2c8] sm:$0xff]
        %v5154 = vld [vmem:[%s5063 + $0x2d0] sm:$0xff]
        %v5155 = vld [vmem:[%s5063 + $0x2d8] sm:$0xff]
        %v5156 = vld [vmem:[%s5063 + $0x2e0] sm:$0xff]
        %v5157 = vld [vmem:[%s5063 + $0x2e8] sm:$0xff]
        %v5158 = vld [vmem:[%s5063 + $0x2f0] sm:$0xff]
        %v5159 = vld [vmem:[%s5063 + $0x2f8] sm:$0xff]
        %v5160 = vld [vmem:[%s5063 + $0x300] sm:$0xff]
        %v5161 = vld [vmem:[%s5063 + $0x308] sm:$0xff]
        %v5162 = vld [vmem:[%s5063 + $0x310] sm:$0xff]
        %v5163 = vld [vmem:[%s5063 + $0x318] sm:$0xff]
        %v5164 = vld [vmem:[%s5063 + $0x320] sm:$0xff]
        %v5165 = vld [vmem:[%s5063 + $0x328] sm:$0xff]
        %v5166 = vld [vmem:[%s5063 + $0x330] sm:$0xff]
        %v5167 = vld [vmem:[%s5063 + $0x338] sm:$0xff]
        %v5168 = vld [vmem:[%s5063 + $0x340] sm:$0xff]
        %v5169 = vld [vmem:[%s5063 + $0x348] sm:$0xff]
        %v5170 = vld [vmem:[%s5063 + $0x350] sm:$0xff]
        %v5171 = vld [vmem:[%s5063 + $0x358] sm:$0xff]
        %v5172 = vld [vmem:[%s5063 + $0x360] sm:$0xff]
        %v5173 = vld [vmem:[%s5063 + $0x368] sm:$0xff]
        %v5174 = vld [vmem:[%s5063 + $0x370] sm:$0xff]
        %v5175 = vld [vmem:[%s5063 + $0x378] sm:$0xff]
        %v5176 = vld [vmem:[%s5063 + $0x380] sm:$0xff]
        %v5177 = vld [vmem:[%s5063 + $0x388] sm:$0xff]
        %v5178 = vld [vmem:[%s5063 + $0x390] sm:$0xff]
        %v5179 = vld [vmem:[%s5063 + $0x398] sm:$0xff]
        %v5180 = vld [vmem:[%s5063 + $0x3a0] sm:$0xff]
        %v5181 = vld [vmem:[%s5063 + $0x3a8] sm:$0xff]
        %v5182 = vld [vmem:[%s5063 + $0x3b0] sm:$0xff]
        %v5183 = vld [vmem:[%s5063 + $0x3b8] sm:$0xff]
        %v5184 = vld [vmem:[%s5063 + $0x3c0] sm:$0xff]
        %v5185 = vld [vmem:[%s5063 + $0x3c8] sm:$0xff]
        %v5186 = vld [vmem:[%s5063 + $0x3d0] sm:$0xff]
        %v5187 = vld [vmem:[%s5063 + $0x3d8] sm:$0xff]
        %v5188 = vld [vmem:[%s5063 + $0x3e0] sm:$0xff]
        %v5189 = vld [vmem:[%s5063 + $0x3e8] sm:$0xff]
        %v5190 = vld [vmem:[%s5063 + $0x3f0] sm:$0xff]
        %v5191 = vld [vmem:[%s5063 + $0x3f8] sm:$0xff]
        %v5192 = vld [vmem:[%s5063 + $0x400] sm:$0xff]
        %v5193 = vld [vmem:[%s5063 + $0x408] sm:$0xff]
        %v5194 = vld [vmem:[%s5063 + $0x410] sm:$0xff]
        %v5195 = vld [vmem:[%s5063 + $0x418] sm:$0xff]
        %v5196 = vld [vmem:[%s5063 + $0x420] sm:$0xff]
        %v5197 = vld [vmem:[%s5063 + $0x428] sm:$0xff]
        %v5198 = vld [vmem:[%s5063 + $0x430] sm:$0xff]
        %v5199 = vld [vmem:[%s5063 + $0x438] sm:$0xff]
        %v5200 = vld [vmem:[%s5063 + $0x440] sm:$0xff]
        %v5201 = vld [vmem:[%s5063 + $0x448] sm:$0xff]
        %v5202 = vld [vmem:[%s5063 + $0x450] sm:$0xff]
        %v5203 = vld [vmem:[%s5063 + $0x458] sm:$0xff]
        %v5204 = vld [vmem:[%s5063 + $0x460] sm:$0xff]
        %v5205 = vld [vmem:[%s5063 + $0x468] sm:$0xff]
        %v5206 = vld [vmem:[%s5063 + $0x470] sm:$0xff]
        %v5207 = vld [vmem:[%s5063 + $0x478] sm:$0xff]
        %v5208 = vld [vmem:[%s5063 + $0x480] sm:$0xff]
        %v5209 = vld [vmem:[%s5063 + $0x488] sm:$0xff]
        %v5210 = vld [vmem:[%s5063 + $0x490] sm:$0xff]
        %v5211 = vld [vmem:[%s5063 + $0x498] sm:$0xff]
        %v5212 = vld [vmem:[%s5063 + $0x4a0] sm:$0xff]
        %v5213 = vld [vmem:[%s5063 + $0x4a8] sm:$0xff]
        %v5214 = vld [vmem:[%s5063 + $0x4b0] sm:$0xff]
        %v5215 = vld [vmem:[%s5063 + $0x4b8] sm:$0xff]
        %v5216 = vld [vmem:[%s5063 + $0x4c0] sm:$0xff]
        %v5217 = vld [vmem:[%s5063 + $0x4c8] sm:$0xff]
        %v5218 = vld [vmem:[%s5063 + $0x4d0] sm:$0xff]
        %v5219 = vld [vmem:[%s5063 + $0x4d8] sm:$0xff]
        %v5220 = vld [vmem:[%s5063 + $0x4e0] sm:$0xff]
        %v5221 = vld [vmem:[%s5063 + $0x4e8] sm:$0xff]
        %v5222 = vld [vmem:[%s5063 + $0x4f0] sm:$0xff]
        %v5223 = vld [vmem:[%s5063 + $0x4f8] sm:$0xff]
        %v5224 = vld [vmem:[%s5063 + $0x500] sm:$0xff]
        %v5225 = vld [vmem:[%s5063 + $0x508] sm:$0xff]
        %v5226 = vld [vmem:[%s5063 + $0x510] sm:$0xff]
        %v5227 = vld [vmem:[%s5063 + $0x518] sm:$0xff]
        %v5228 = vld [vmem:[%s5063 + $0x520] sm:$0xff]
        %v5229 = vld [vmem:[%s5063 + $0x528] sm:$0xff]
        %v5230 = vld [vmem:[%s5063 + $0x530] sm:$0xff]
        %v5231 = vld [vmem:[%s5063 + $0x538] sm:$0xff]
        %v5232 = vld [vmem:[%s5063 + $0x540] sm:$0xff]
        %v5233 = vld [vmem:[%s5063 + $0x548] sm:$0xff]
        %v5234 = vld [vmem:[%s5063 + $0x550] sm:$0xff]
        %v5235 = vld [vmem:[%s5063 + $0x558] sm:$0xff]
        %v5236 = vld [vmem:[%s5063 + $0x560] sm:$0xff]
        %v5237 = vld [vmem:[%s5063 + $0x568] sm:$0xff]
        %v5238 = vld [vmem:[%s5063 + $0x570] sm:$0xff]
        %v5239 = vld [vmem:[%s5063 + $0x578] sm:$0xff]
        %v5240 = vld [vmem:[%s5063 + $0x580] sm:$0xff]
        %v5241 = vld [vmem:[%s5063 + $0x588] sm:$0xff]
        %v5242 = vld [vmem:[%s5063 + $0x590] sm:$0xff]
        %v5243 = vld [vmem:[%s5063 + $0x598] sm:$0xff]
        %v5244 = vld [vmem:[%s5063 + $0x5a0] sm:$0xff]
        %v5245 = vld [vmem:[%s5063 + $0x5a8] sm:$0xff]
        %v5246 = vld [vmem:[%s5063 + $0x5b0] sm:$0xff]
        %v5247 = vld [vmem:[%s5063 + $0x5b8] sm:$0xff]
        %v5248 = vld [vmem:[%s5063 + $0x5c0] sm:$0xff]
        %v5249 = vld [vmem:[%s5063 + $0x5c8] sm:$0xff]
        %v5250 = vld [vmem:[%s5063 + $0x5d0] sm:$0xff]
        %v5251 = vld [vmem:[%s5063 + $0x5d8] sm:$0xff]
        %v5252 = vld [vmem:[%s5063 + $0x5e0] sm:$0xff]
        %v5253 = vld [vmem:[%s5063 + $0x5e8] sm:$0xff]
        %v5254 = vld [vmem:[%s5063 + $0x5f0] sm:$0xff]
        %v5255 = vld [vmem:[%s5063 + $0x5f8] sm:$0xff]
        %v5256 = vld [vmem:[%s5063 + $0x600] sm:$0xff]
        %v5257 = vld [vmem:[%s5063 + $0x608] sm:$0xff]
        %v5258 = vld [vmem:[%s5063 + $0x610] sm:$0xff]
        %v5259 = vld [vmem:[%s5063 + $0x618] sm:$0xff]
        %v5260 = vld [vmem:[%s5063 + $0x620] sm:$0xff]
        %v5261 = vld [vmem:[%s5063 + $0x628] sm:$0xff]
        %v5262 = vld [vmem:[%s5063 + $0x630] sm:$0xff]
        %v5263 = vld [vmem:[%s5063 + $0x638] sm:$0xff]
        %v5264 = vld [vmem:[%s5063 + $0x640] sm:$0xff]
        %v5265 = vld [vmem:[%s5063 + $0x648] sm:$0xff]
        %v5266 = vld [vmem:[%s5063 + $0x650] sm:$0xff]
        %v5267 = vld [vmem:[%s5063 + $0x658] sm:$0xff]
        %v5268 = vld [vmem:[%s5063 + $0x660] sm:$0xff]
        %v5269 = vld [vmem:[%s5063 + $0x668] sm:$0xff]
        %v5270 = vld [vmem:[%s5063 + $0x670] sm:$0xff]
        %v5271 = vld [vmem:[%s5063 + $0x678] sm:$0xff]
        %v5272 = vld [vmem:[%s5063 + $0x680] sm:$0xff]
        %v5273 = vld [vmem:[%s5063 + $0x688] sm:$0xff]
        %v5274 = vld [vmem:[%s5063 + $0x690] sm:$0xff]
        %v5275 = vld [vmem:[%s5063 + $0x698] sm:$0xff]
        %v5276 = vld [vmem:[%s5063 + $0x6a0] sm:$0xff]
        %v5277 = vld [vmem:[%s5063 + $0x6a8] sm:$0xff]
        %v5278 = vld [vmem:[%s5063 + $0x6b0] sm:$0xff]
        %v5279 = vld [vmem:[%s5063 + $0x6b8] sm:$0xff]
        %v5280 = vld [vmem:[%s5063 + $0x6c0] sm:$0xff]
        %v5281 = vld [vmem:[%s5063 + $0x6c8] sm:$0xff]
        %v5282 = vld [vmem:[%s5063 + $0x6d0] sm:$0xff]
        %v5283 = vld [vmem:[%s5063 + $0x6d8] sm:$0xff]
        %v5284 = vld [vmem:[%s5063 + $0x6e0] sm:$0xff]
        %v5285 = vld [vmem:[%s5063 + $0x6e8] sm:$0xff]
        %v5286 = vld [vmem:[%s5063 + $0x6f0] sm:$0xff]
        %v5287 = vld [vmem:[%s5063 + $0x6f8] sm:$0xff]
        %v5288 = vld [vmem:[%s5063 + $0x700] sm:$0xff]
        %v5289 = vld [vmem:[%s5063 + $0x708] sm:$0xff]
        %v5290 = vld [vmem:[%s5063 + $0x710] sm:$0xff]
        %v5291 = vld [vmem:[%s5063 + $0x718] sm:$0xff]
        %v5292 = vld [vmem:[%s5063 + $0x720] sm:$0xff]
        %v5293 = vld [vmem:[%s5063 + $0x728] sm:$0xff]
        %v5294 = vld [vmem:[%s5063 + $0x730] sm:$0xff]
        %v5295 = vld [vmem:[%s5063 + $0x738] sm:$0xff]
        %v5296 = vld [vmem:[%s5063 + $0x740] sm:$0xff]
        %v5297 = vld [vmem:[%s5063 + $0x748] sm:$0xff]
        %v5298 = vld [vmem:[%s5063 + $0x750] sm:$0xff]
        %v5299 = vld [vmem:[%s5063 + $0x758] sm:$0xff]
        %v5300 = vld [vmem:[%s5063 + $0x760] sm:$0xff]
        %v5301 = vld [vmem:[%s5063 + $0x768] sm:$0xff]
        %v5302 = vld [vmem:[%s5063 + $0x770] sm:$0xff]
        %v5303 = vld [vmem:[%s5063 + $0x778] sm:$0xff]
        %v5304 = vld [vmem:[%s5063 + $0x780] sm:$0xff]
        %v5305 = vld [vmem:[%s5063 + $0x788] sm:$0xff]
        %v5306 = vld [vmem:[%s5063 + $0x790] sm:$0xff]
        %v5307 = vld [vmem:[%s5063 + $0x798] sm:$0xff]
        %v5308 = vld [vmem:[%s5063 + $0x7a0] sm:$0xff]
        %v5309 = vld [vmem:[%s5063 + $0x7a8] sm:$0xff]
        %v5310 = vld [vmem:[%s5063 + $0x7b0] sm:$0xff]
        %v5311 = vld [vmem:[%s5063 + $0x7b8] sm:$0xff]
        %v5312 = vld [vmem:[%s5063 + $0x7c0] sm:$0xff]
        %v5313 = vld [vmem:[%s5063 + $0x7c8] sm:$0xff]
        %v5314 = vld [vmem:[%s5063 + $0x7d0] sm:$0xff]
        %v5315 = vld [vmem:[%s5063 + $0x7d8] sm:$0xff]
        %v5316 = vld [vmem:[%s5063 + $0x7e0] sm:$0xff]
        %v5317 = vld [vmem:[%s5063 + $0x7e8] sm:$0xff]
        %v5318 = vld [vmem:[%s5063 + $0x7f0] sm:$0xff]
        %v5319 = vld [vmem:[%s5063 + $0x7f8] sm:$0xff]
        %s5320 = scalar_lea.vmem %s13, 1
        %v5321 = vld [vmem:[%s5320] sm:$0x1]
        %v5323 = vperm.slane %v5321, 0
        %5325 = vmatpush.msra.mxu0 %v5079
        %5326 = vmatpush.msra.mxu0 %v5078
        %5327 = vmatpush.msra.mxu0 %v5077
        %5328 = vmatpush.msra.mxu0 %v5076
        %5329 = vmatpush.msra.mxu0 %v5075
        %5330 = vmatpush.msra.mxu0 %v5074
        %5331 = vmatpush.msra.mxu0 %v5073
        %5332 = vmatpush.msra.mxu0 %v5072
        %5333 = vmatpush.msra.mxu0 %v5071
        %5334 = vmatpush.msra.mxu0 %v5070
        %5335 = vmatpush.msra.mxu0 %v5069
        %5336 = vmatpush.msra.mxu0 %v5068
        %5337 = vmatpush.msra.mxu0 %v5067
        %5338 = vmatpush.msra.mxu0 %v5066
        %5339 = vmatpush.msra.mxu0 %v5065
        %5340 = vmatpush.msra.mxu0 %v5064
        %5341 = vmatmul.f32.gmra.mxu0 %v4999
        %v5342 = vpop.f32.mrf.mxu0
        %v5343 = vadd.f32 %v5323, %v5342
        %5344 = vmatmul.f32.gmra.mxu0 %v5015
        %v5345 = vpop.f32.mrf.mxu0
        %v5346 = vadd.f32 %v5323, %v5345
        %5347 = vmatmul.f32.gmra.mxu0 %v5031
        %v5348 = vpop.f32.mrf.mxu0
        %v5349 = vadd.f32 %v5323, %v5348
        %5350 = vmatmul.f32.gmra.mxu0 %v5047
        %v5351 = vpop.f32.mrf.mxu0
        %v5352 = vadd.f32 %v5323, %v5351
        %5353 = vdwg.mxu0
        %5354 = vmatpush.msra.mxu0 %v5095
        %5355 = vmatpush.msra.mxu0 %v5094
        %5356 = vmatpush.msra.mxu0 %v5093
        %5357 = vmatpush.msra.mxu0 %v5092
        %5358 = vmatpush.msra.mxu0 %v5091
        %5359 = vmatpush.msra.mxu0 %v5090
        %5360 = vmatpush.msra.mxu0 %v5089
        %5361 = vmatpush.msra.mxu0 %v5088
        %5362 = vmatpush.msra.mxu0 %v5087
        %5363 = vmatpush.msra.mxu0 %v5086
        %5364 = vmatpush.msra.mxu0 %v5085
        %5365 = vmatpush.msra.mxu0 %v5084
        %5366 = vmatpush.msra.mxu0 %v5083
        %5367 = vmatpush.msra.mxu0 %v5082
        %5368 = vmatpush.msra.mxu0 %v5081
        %5369 = vmatpush.msra.mxu0 %v5080
        %5370 = vmatmul.f32.gmra.mxu0 %v5000
        %v5371 = vpop.f32.mrf.mxu0
        %v5372 = vadd.f32 %v5343, %v5371
        %5373 = vmatmul.f32.gmra.mxu0 %v5016
        %v5374 = vpop.f32.mrf.mxu0
        %v5375 = vadd.f32 %v5346, %v5374
        %5376 = vmatmul.f32.gmra.mxu0 %v5032
        %v5377 = vpop.f32.mrf.mxu0
        %v5378 = vadd.f32 %v5349, %v5377
        %5379 = vmatmul.f32.gmra.mxu0 %v5048
        %v5380 = vpop.f32.mrf.mxu0
        %v5381 = vadd.f32 %v5352, %v5380
        %5382 = vdwg.mxu0
        %5383 = vmatpush.msra.mxu0 %v5111
        %5384 = vmatpush.msra.mxu0 %v5110
        %5385 = vmatpush.msra.mxu0 %v5109
        %5386 = vmatpush.msra.mxu0 %v5108
        %5387 = vmatpush.msra.mxu0 %v5107
        %5388 = vmatpush.msra.mxu0 %v5106
        %5389 = vmatpush.msra.mxu0 %v5105
        %5390 = vmatpush.msra.mxu0 %v5104
        %5391 = vmatpush.msra.mxu0 %v5103
        %5392 = vmatpush.msra.mxu0 %v5102
        %5393 = vmatpush.msra.mxu0 %v5101
        %5394 = vmatpush.msra.mxu0 %v5100
        %5395 = vmatpush.msra.mxu0 %v5099
        %5396 = vmatpush.msra.mxu0 %v5098
        %5397 = vmatpush.msra.mxu0 %v5097
        %5398 = vmatpush.msra.mxu0 %v5096
        %5399 = vmatmul.f32.gmra.mxu0 %v5001
        %v5400 = vpop.f32.mrf.mxu0
        %v5401 = vadd.f32 %v5372, %v5400
        %5402 = vmatmul.f32.gmra.mxu0 %v5017
        %v5403 = vpop.f32.mrf.mxu0
        %v5404 = vadd.f32 %v5375, %v5403
        %5405 = vmatmul.f32.gmra.mxu0 %v5033
        %v5406 = vpop.f32.mrf.mxu0
        %v5407 = vadd.f32 %v5378, %v5406
        %5408 = vmatmul.f32.gmra.mxu0 %v5049
        %v5409 = vpop.f32.mrf.mxu0
        %v5410 = vadd.f32 %v5381, %v5409
        %5411 = vdwg.mxu0
        %5412 = vmatpush.msra.mxu0 %v5127
        %5413 = vmatpush.msra.mxu0 %v5126
        %5414 = vmatpush.msra.mxu0 %v5125
        %5415 = vmatpush.msra.mxu0 %v5124
        %5416 = vmatpush.msra.mxu0 %v5123
        %5417 = vmatpush.msra.mxu0 %v5122
        %5418 = vmatpush.msra.mxu0 %v5121
        %5419 = vmatpush.msra.mxu0 %v5120
        %5420 = vmatpush.msra.mxu0 %v5119
        %5421 = vmatpush.msra.mxu0 %v5118
        %5422 = vmatpush.msra.mxu0 %v5117
        %5423 = vmatpush.msra.mxu0 %v5116
        %5424 = vmatpush.msra.mxu0 %v5115
        %5425 = vmatpush.msra.mxu0 %v5114
        %5426 = vmatpush.msra.mxu0 %v5113
        %5427 = vmatpush.msra.mxu0 %v5112
        %5428 = vmatmul.f32.gmra.mxu0 %v5002
        %v5429 = vpop.f32.mrf.mxu0
        %v5430 = vadd.f32 %v5401, %v5429
        %5431 = vmatmul.f32.gmra.mxu0 %v5018
        %v5432 = vpop.f32.mrf.mxu0
        %v5433 = vadd.f32 %v5404, %v5432
        %5434 = vmatmul.f32.gmra.mxu0 %v5034
        %v5435 = vpop.f32.mrf.mxu0
        %v5436 = vadd.f32 %v5407, %v5435
        %5437 = vmatmul.f32.gmra.mxu0 %v5050
        %v5438 = vpop.f32.mrf.mxu0
        %v5439 = vadd.f32 %v5410, %v5438
        %5440 = vdwg.mxu0
        %5441 = vmatpush.msra.mxu0 %v5143
        %5442 = vmatpush.msra.mxu0 %v5142
        %5443 = vmatpush.msra.mxu0 %v5141
        %5444 = vmatpush.msra.mxu0 %v5140
        %5445 = vmatpush.msra.mxu0 %v5139
        %5446 = vmatpush.msra.mxu0 %v5138
        %5447 = vmatpush.msra.mxu0 %v5137
        %5448 = vmatpush.msra.mxu0 %v5136
        %5449 = vmatpush.msra.mxu0 %v5135
        %5450 = vmatpush.msra.mxu0 %v5134
        %5451 = vmatpush.msra.mxu0 %v5133
        %5452 = vmatpush.msra.mxu0 %v5132
        %5453 = vmatpush.msra.mxu0 %v5131
        %5454 = vmatpush.msra.mxu0 %v5130
        %5455 = vmatpush.msra.mxu0 %v5129
        %5456 = vmatpush.msra.mxu0 %v5128
        %5457 = vmatmul.f32.gmra.mxu0 %v5003
        %v5458 = vpop.f32.mrf.mxu0
        %v5459 = vadd.f32 %v5430, %v5458
        %5460 = vmatmul.f32.gmra.mxu0 %v5019
        %v5461 = vpop.f32.mrf.mxu0
        %v5462 = vadd.f32 %v5433, %v5461
        %5463 = vmatmul.f32.gmra.mxu0 %v5035
        %v5464 = vpop.f32.mrf.mxu0
        %v5465 = vadd.f32 %v5436, %v5464
        %5466 = vmatmul.f32.gmra.mxu0 %v5051
        %v5467 = vpop.f32.mrf.mxu0
        %v5468 = vadd.f32 %v5439, %v5467
        %5469 = vdwg.mxu0
        %5470 = vmatpush.msra.mxu0 %v5159
        %5471 = vmatpush.msra.mxu0 %v5158
        %5472 = vmatpush.msra.mxu0 %v5157
        %5473 = vmatpush.msra.mxu0 %v5156
        %5474 = vmatpush.msra.mxu0 %v5155
        %5475 = vmatpush.msra.mxu0 %v5154
        %5476 = vmatpush.msra.mxu0 %v5153
        %5477 = vmatpush.msra.mxu0 %v5152
        %5478 = vmatpush.msra.mxu0 %v5151
        %5479 = vmatpush.msra.mxu0 %v5150
        %5480 = vmatpush.msra.mxu0 %v5149
        %5481 = vmatpush.msra.mxu0 %v5148
        %5482 = vmatpush.msra.mxu0 %v5147
        %5483 = vmatpush.msra.mxu0 %v5146
        %5484 = vmatpush.msra.mxu0 %v5145
        %5485 = vmatpush.msra.mxu0 %v5144
        %5486 = vmatmul.f32.gmra.mxu0 %v5004
        %v5487 = vpop.f32.mrf.mxu0
        %v5488 = vadd.f32 %v5459, %v5487
        %5489 = vmatmul.f32.gmra.mxu0 %v5020
        %v5490 = vpop.f32.mrf.mxu0
        %v5491 = vadd.f32 %v5462, %v5490
        %5492 = vmatmul.f32.gmra.mxu0 %v5036
        %v5493 = vpop.f32.mrf.mxu0
        %v5494 = vadd.f32 %v5465, %v5493
        %5495 = vmatmul.f32.gmra.mxu0 %v5052
        %v5496 = vpop.f32.mrf.mxu0
        %v5497 = vadd.f32 %v5468, %v5496
        %5498 = vdwg.mxu0
        %5499 = vmatpush.msra.mxu0 %v5175
        %5500 = vmatpush.msra.mxu0 %v5174
        %5501 = vmatpush.msra.mxu0 %v5173
        %5502 = vmatpush.msra.mxu0 %v5172
        %5503 = vmatpush.msra.mxu0 %v5171
        %5504 = vmatpush.msra.mxu0 %v5170
        %5505 = vmatpush.msra.mxu0 %v5169
        %5506 = vmatpush.msra.mxu0 %v5168
        %5507 = vmatpush.msra.mxu0 %v5167
        %5508 = vmatpush.msra.mxu0 %v5166
        %5509 = vmatpush.msra.mxu0 %v5165
        %5510 = vmatpush.msra.mxu0 %v5164
        %5511 = vmatpush.msra.mxu0 %v5163
        %5512 = vmatpush.msra.mxu0 %v5162
        %5513 = vmatpush.msra.mxu0 %v5161
        %5514 = vmatpush.msra.mxu0 %v5160
        %5515 = vmatmul.f32.gmra.mxu0 %v5005
        %v5516 = vpop.f32.mrf.mxu0
        %v5517 = vadd.f32 %v5488, %v5516
        %5518 = vmatmul.f32.gmra.mxu0 %v5021
        %v5519 = vpop.f32.mrf.mxu0
        %v5520 = vadd.f32 %v5491, %v5519
        %5521 = vmatmul.f32.gmra.mxu0 %v5037
        %v5522 = vpop.f32.mrf.mxu0
        %v5523 = vadd.f32 %v5494, %v5522
        %5524 = vmatmul.f32.gmra.mxu0 %v5053
        %v5525 = vpop.f32.mrf.mxu0
        %v5526 = vadd.f32 %v5497, %v5525
        %5527 = vdwg.mxu0
        %5528 = vmatpush.msra.mxu0 %v5191
        %5529 = vmatpush.msra.mxu0 %v5190
        %5530 = vmatpush.msra.mxu0 %v5189
        %5531 = vmatpush.msra.mxu0 %v5188
        %5532 = vmatpush.msra.mxu0 %v5187
        %5533 = vmatpush.msra.mxu0 %v5186
        %5534 = vmatpush.msra.mxu0 %v5185
        %5535 = vmatpush.msra.mxu0 %v5184
        %5536 = vmatpush.msra.mxu0 %v5183
        %5537 = vmatpush.msra.mxu0 %v5182
        %5538 = vmatpush.msra.mxu0 %v5181
        %5539 = vmatpush.msra.mxu0 %v5180
        %5540 = vmatpush.msra.mxu0 %v5179
        %5541 = vmatpush.msra.mxu0 %v5178
        %5542 = vmatpush.msra.mxu0 %v5177
        %5543 = vmatpush.msra.mxu0 %v5176
        %5544 = vmatmul.f32.gmra.mxu0 %v5006
        %v5545 = vpop.f32.mrf.mxu0
        %v5546 = vadd.f32 %v5517, %v5545
        %5547 = vmatmul.f32.gmra.mxu0 %v5022
        %v5548 = vpop.f32.mrf.mxu0
        %v5549 = vadd.f32 %v5520, %v5548
        %5550 = vmatmul.f32.gmra.mxu0 %v5038
        %v5551 = vpop.f32.mrf.mxu0
        %v5552 = vadd.f32 %v5523, %v5551
        %5553 = vmatmul.f32.gmra.mxu0 %v5054
        %v5554 = vpop.f32.mrf.mxu0
        %v5555 = vadd.f32 %v5526, %v5554
        %5556 = vdwg.mxu0
        %5557 = vmatpush.msra.mxu0 %v5207
        %5558 = vmatpush.msra.mxu0 %v5206
        %5559 = vmatpush.msra.mxu0 %v5205
        %5560 = vmatpush.msra.mxu0 %v5204
        %5561 = vmatpush.msra.mxu0 %v5203
        %5562 = vmatpush.msra.mxu0 %v5202
        %5563 = vmatpush.msra.mxu0 %v5201
        %5564 = vmatpush.msra.mxu0 %v5200
        %5565 = vmatpush.msra.mxu0 %v5199
        %5566 = vmatpush.msra.mxu0 %v5198
        %5567 = vmatpush.msra.mxu0 %v5197
        %5568 = vmatpush.msra.mxu0 %v5196
        %5569 = vmatpush.msra.mxu0 %v5195
        %5570 = vmatpush.msra.mxu0 %v5194
        %5571 = vmatpush.msra.mxu0 %v5193
        %5572 = vmatpush.msra.mxu0 %v5192
        %5573 = vmatmul.f32.gmra.mxu0 %v5007
        %v5574 = vpop.f32.mrf.mxu0
        %v5575 = vadd.f32 %v5546, %v5574
        %5576 = vmatmul.f32.gmra.mxu0 %v5023
        %v5577 = vpop.f32.mrf.mxu0
        %v5578 = vadd.f32 %v5549, %v5577
        %5579 = vmatmul.f32.gmra.mxu0 %v5039
        %v5580 = vpop.f32.mrf.mxu0
        %v5581 = vadd.f32 %v5552, %v5580
        %5582 = vmatmul.f32.gmra.mxu0 %v5055
        %v5583 = vpop.f32.mrf.mxu0
        %v5584 = vadd.f32 %v5555, %v5583
        %5585 = vdwg.mxu0
        %5586 = vmatpush.msra.mxu0 %v5223
        %5587 = vmatpush.msra.mxu0 %v5222
        %5588 = vmatpush.msra.mxu0 %v5221
        %5589 = vmatpush.msra.mxu0 %v5220
        %5590 = vmatpush.msra.mxu0 %v5219
        %5591 = vmatpush.msra.mxu0 %v5218
        %5592 = vmatpush.msra.mxu0 %v5217
        %5593 = vmatpush.msra.mxu0 %v5216
        %5594 = vmatpush.msra.mxu0 %v5215
        %5595 = vmatpush.msra.mxu0 %v5214
        %5596 = vmatpush.msra.mxu0 %v5213
        %5597 = vmatpush.msra.mxu0 %v5212
        %5598 = vmatpush.msra.mxu0 %v5211
        %5599 = vmatpush.msra.mxu0 %v5210
        %5600 = vmatpush.msra.mxu0 %v5209
        %5601 = vmatpush.msra.mxu0 %v5208
        %5602 = vmatmul.f32.gmra.mxu0 %v5008
        %v5603 = vpop.f32.mrf.mxu0
        %v5604 = vadd.f32 %v5575, %v5603
        %5605 = vmatmul.f32.gmra.mxu0 %v5024
        %v5606 = vpop.f32.mrf.mxu0
        %v5607 = vadd.f32 %v5578, %v5606
        %5608 = vmatmul.f32.gmra.mxu0 %v5040
        %v5609 = vpop.f32.mrf.mxu0
        %v5610 = vadd.f32 %v5581, %v5609
        %5611 = vmatmul.f32.gmra.mxu0 %v5056
        %v5612 = vpop.f32.mrf.mxu0
        %v5613 = vadd.f32 %v5584, %v5612
        %5614 = vdwg.mxu0
        %5615 = vmatpush.msra.mxu0 %v5239
        %5616 = vmatpush.msra.mxu0 %v5238
        %5617 = vmatpush.msra.mxu0 %v5237
        %5618 = vmatpush.msra.mxu0 %v5236
        %5619 = vmatpush.msra.mxu0 %v5235
        %5620 = vmatpush.msra.mxu0 %v5234
        %5621 = vmatpush.msra.mxu0 %v5233
        %5622 = vmatpush.msra.mxu0 %v5232
        %5623 = vmatpush.msra.mxu0 %v5231
        %5624 = vmatpush.msra.mxu0 %v5230
        %5625 = vmatpush.msra.mxu0 %v5229
        %5626 = vmatpush.msra.mxu0 %v5228
        %5627 = vmatpush.msra.mxu0 %v5227
        %5628 = vmatpush.msra.mxu0 %v5226
        %5629 = vmatpush.msra.mxu0 %v5225
        %5630 = vmatpush.msra.mxu0 %v5224
        %5631 = vmatmul.f32.gmra.mxu0 %v5009
        %v5632 = vpop.f32.mrf.mxu0
        %v5633 = vadd.f32 %v5604, %v5632
        %5634 = vmatmul.f32.gmra.mxu0 %v5025
        %v5635 = vpop.f32.mrf.mxu0
        %v5636 = vadd.f32 %v5607, %v5635
        %5637 = vmatmul.f32.gmra.mxu0 %v5041
        %v5638 = vpop.f32.mrf.mxu0
        %v5639 = vadd.f32 %v5610, %v5638
        %5640 = vmatmul.f32.gmra.mxu0 %v5057
        %v5641 = vpop.f32.mrf.mxu0
        %v5642 = vadd.f32 %v5613, %v5641
        %5643 = vdwg.mxu0
        %5644 = vmatpush.msra.mxu0 %v5255
        %5645 = vmatpush.msra.mxu0 %v5254
        %5646 = vmatpush.msra.mxu0 %v5253
        %5647 = vmatpush.msra.mxu0 %v5252
        %5648 = vmatpush.msra.mxu0 %v5251
        %5649 = vmatpush.msra.mxu0 %v5250
        %5650 = vmatpush.msra.mxu0 %v5249
        %5651 = vmatpush.msra.mxu0 %v5248
        %5652 = vmatpush.msra.mxu0 %v5247
        %5653 = vmatpush.msra.mxu0 %v5246
        %5654 = vmatpush.msra.mxu0 %v5245
        %5655 = vmatpush.msra.mxu0 %v5244
        %5656 = vmatpush.msra.mxu0 %v5243
        %5657 = vmatpush.msra.mxu0 %v5242
        %5658 = vmatpush.msra.mxu0 %v5241
        %5659 = vmatpush.msra.mxu0 %v5240
        %5660 = vmatmul.f32.gmra.mxu0 %v5010
        %v5661 = vpop.f32.mrf.mxu0
        %v5662 = vadd.f32 %v5633, %v5661
        %5663 = vmatmul.f32.gmra.mxu0 %v5026
        %v5664 = vpop.f32.mrf.mxu0
        %v5665 = vadd.f32 %v5636, %v5664
        %5666 = vmatmul.f32.gmra.mxu0 %v5042
        %v5667 = vpop.f32.mrf.mxu0
        %v5668 = vadd.f32 %v5639, %v5667
        %5669 = vmatmul.f32.gmra.mxu0 %v5058
        %v5670 = vpop.f32.mrf.mxu0
        %v5671 = vadd.f32 %v5642, %v5670
        %5672 = vdwg.mxu0
        %5673 = vmatpush.msra.mxu0 %v5271
        %5674 = vmatpush.msra.mxu0 %v5270
        %5675 = vmatpush.msra.mxu0 %v5269
        %5676 = vmatpush.msra.mxu0 %v5268
        %5677 = vmatpush.msra.mxu0 %v5267
        %5678 = vmatpush.msra.mxu0 %v5266
        %5679 = vmatpush.msra.mxu0 %v5265
        %5680 = vmatpush.msra.mxu0 %v5264
        %5681 = vmatpush.msra.mxu0 %v5263
        %5682 = vmatpush.msra.mxu0 %v5262
        %5683 = vmatpush.msra.mxu0 %v5261
        %5684 = vmatpush.msra.mxu0 %v5260
        %5685 = vmatpush.msra.mxu0 %v5259
        %5686 = vmatpush.msra.mxu0 %v5258
        %5687 = vmatpush.msra.mxu0 %v5257
        %5688 = vmatpush.msra.mxu0 %v5256
        %5689 = vmatmul.f32.gmra.mxu0 %v5011
        %v5690 = vpop.f32.mrf.mxu0
        %v5691 = vadd.f32 %v5662, %v5690
        %5692 = vmatmul.f32.gmra.mxu0 %v5027
        %v5693 = vpop.f32.mrf.mxu0
        %v5694 = vadd.f32 %v5665, %v5693
        %5695 = vmatmul.f32.gmra.mxu0 %v5043
        %v5696 = vpop.f32.mrf.mxu0
        %v5697 = vadd.f32 %v5668, %v5696
        %5698 = vmatmul.f32.gmra.mxu0 %v5059
        %v5699 = vpop.f32.mrf.mxu0
        %v5700 = vadd.f32 %v5671, %v5699
        %5701 = vdwg.mxu0
        %5702 = vmatpush.msra.mxu0 %v5287
        %5703 = vmatpush.msra.mxu0 %v5286
        %5704 = vmatpush.msra.mxu0 %v5285
        %5705 = vmatpush.msra.mxu0 %v5284
        %5706 = vmatpush.msra.mxu0 %v5283
        %5707 = vmatpush.msra.mxu0 %v5282
        %5708 = vmatpush.msra.mxu0 %v5281
        %5709 = vmatpush.msra.mxu0 %v5280
        %5710 = vmatpush.msra.mxu0 %v5279
        %5711 = vmatpush.msra.mxu0 %v5278
        %5712 = vmatpush.msra.mxu0 %v5277
        %5713 = vmatpush.msra.mxu0 %v5276
        %5714 = vmatpush.msra.mxu0 %v5275
        %5715 = vmatpush.msra.mxu0 %v5274
        %5716 = vmatpush.msra.mxu0 %v5273
        %5717 = vmatpush.msra.mxu0 %v5272
        %5718 = vmatmul.f32.gmra.mxu0 %v5012
        %v5719 = vpop.f32.mrf.mxu0
        %v5720 = vadd.f32 %v5691, %v5719
        %5721 = vmatmul.f32.gmra.mxu0 %v5028
        %v5722 = vpop.f32.mrf.mxu0
        %v5723 = vadd.f32 %v5694, %v5722
        %5724 = vmatmul.f32.gmra.mxu0 %v5044
        %v5725 = vpop.f32.mrf.mxu0
        %v5726 = vadd.f32 %v5697, %v5725
        %5727 = vmatmul.f32.gmra.mxu0 %v5060
        %v5728 = vpop.f32.mrf.mxu0
        %v5729 = vadd.f32 %v5700, %v5728
        %5730 = vdwg.mxu0
        %5731 = vmatpush.msra.mxu0 %v5303
        %5732 = vmatpush.msra.mxu0 %v5302
        %5733 = vmatpush.msra.mxu0 %v5301
        %5734 = vmatpush.msra.mxu0 %v5300
        %5735 = vmatpush.msra.mxu0 %v5299
        %5736 = vmatpush.msra.mxu0 %v5298
        %5737 = vmatpush.msra.mxu0 %v5297
        %5738 = vmatpush.msra.mxu0 %v5296
        %5739 = vmatpush.msra.mxu0 %v5295
        %5740 = vmatpush.msra.mxu0 %v5294
        %5741 = vmatpush.msra.mxu0 %v5293
        %5742 = vmatpush.msra.mxu0 %v5292
        %5743 = vmatpush.msra.mxu0 %v5291
        %5744 = vmatpush.msra.mxu0 %v5290
        %5745 = vmatpush.msra.mxu0 %v5289
        %5746 = vmatpush.msra.mxu0 %v5288
        %5747 = vmatmul.f32.gmra.mxu0 %v5013
        %v5748 = vpop.f32.mrf.mxu0
        %v5749 = vadd.f32 %v5720, %v5748
        %5750 = vmatmul.f32.gmra.mxu0 %v5029
        %v5751 = vpop.f32.mrf.mxu0
        %v5752 = vadd.f32 %v5723, %v5751
        %5753 = vmatmul.f32.gmra.mxu0 %v5045
        %v5754 = vpop.f32.mrf.mxu0
        %v5755 = vadd.f32 %v5726, %v5754
        %5756 = vmatmul.f32.gmra.mxu0 %v5061
        %v5757 = vpop.f32.mrf.mxu0
        %v5758 = vadd.f32 %v5729, %v5757
        %5759 = vdwg.mxu0
        %5760 = vmatpush.msra.mxu0 %v5319
        %5761 = vmatpush.msra.mxu0 %v5318
        %5762 = vmatpush.msra.mxu0 %v5317
        %5763 = vmatpush.msra.mxu0 %v5316
        %5764 = vmatpush.msra.mxu0 %v5315
        %5765 = vmatpush.msra.mxu0 %v5314
        %5766 = vmatpush.msra.mxu0 %v5313
        %5767 = vmatpush.msra.mxu0 %v5312
        %5768 = vmatpush.msra.mxu0 %v5311
        %5769 = vmatpush.msra.mxu0 %v5310
        %5770 = vmatpush.msra.mxu0 %v5309
        %5771 = vmatpush.msra.mxu0 %v5308
        %5772 = vmatpush.msra.mxu0 %v5307
        %5773 = vmatpush.msra.mxu0 %v5306
        %5774 = vmatpush.msra.mxu0 %v5305
        %5775 = vmatpush.msra.mxu0 %v5304
        %5776 = vmatmul.f32.gmra.mxu0 %v5014
        %v5777 = vpop.f32.mrf.mxu0
        %v5778 = vadd.f32 %v5749, %v5777
        %5779 = vmatmul.f32.gmra.mxu0 %v5030
        %v5780 = vpop.f32.mrf.mxu0
        %v5781 = vadd.f32 %v5752, %v5780
        %5782 = vmatmul.f32.gmra.mxu0 %v5046
        %v5783 = vpop.f32.mrf.mxu0
        %v5784 = vadd.f32 %v5755, %v5783
        %5785 = vmatmul.f32.gmra.mxu0 %v5062
        %v5786 = vpop.f32.mrf.mxu0
        %v5787 = vadd.f32 %v5758, %v5786
        %5788 = vdwg.mxu0
        %v5789 = vadd.f32 %v4417, %v5778
        %v5790 = vadd.f32 %v4418, %v5781
        %v5791 = vadd.f32 %v4419, %v5784
        %v5792 = vadd.f32 %v4420, %v5787
        %s5793 = scalar_lea.vmem %s16, 1
        %v5794 = vld [vmem:[%s5793] sm:$0x1]
        %s5795 = scalar_lea.vmem %s17, 1
        %v5796 = vld [vmem:[%s5795] sm:$0x1]
        %v5797 = vsel %vm774, %v5789, 0.0
        %5798 = vadd.xlane.f32.xlu0 %v5797
        %v5799 = vpop.xlane.xlu0 %5798
        %v5800 = vsel %vm774, %v5790, 0.0
        %5801 = vadd.xlane.f32.xlu0 %v5800
        %v5802 = vpop.xlane.xlu0 %5801
        %v5803 = vsel %vm774, %v5791, 0.0
        %5804 = vadd.xlane.f32.xlu0 %v5803
        %v5805 = vpop.xlane.xlu0 %5804
        %v5806 = vsel %vm774, %v5792, 0.0
        %5807 = vadd.xlane.f32.xlu0 %v5806
        %v5808 = vpop.xlane.xlu0 %5807
        %v5809 = vmul.f32 %v5799, %v1926
        %v5810 = vmul.f32 %v5802, %v1926
        %v5811 = vmul.f32 %v5805, %v1926
        %v5812 = vmul.f32 %v5808, %v1926
        %v5813 = vsub.f32 %v5789, %v5809
        %v5814 = vsub.f32 %v5790, %v5810
        %v5815 = vsub.f32 %v5791, %v5811
        %v5816 = vsub.f32 %v5792, %v5812
        %v5817 = vmul.f32 %v5813, %v5813
        %v5818 = vmul.f32 %v5814, %v5814
        %v5819 = vmul.f32 %v5815, %v5815
        %v5820 = vmul.f32 %v5816, %v5816
        %v5821 = vsel %vm774, %v5817, 0.0
        %5822 = vadd.xlane.f32.xlu0 %v5821
        %v5823 = vpop.xlane.xlu0 %5822
        %v5824 = vsel %vm774, %v5818, 0.0
        %5825 = vadd.xlane.f32.xlu0 %v5824
        %v5826 = vpop.xlane.xlu0 %5825
        %v5827 = vsel %vm774, %v5819, 0.0
        %5828 = vadd.xlane.f32.xlu0 %v5827
        %v5829 = vpop.xlane.xlu0 %5828
        %v5830 = vsel %vm774, %v5820, 0.0
        %5831 = vadd.xlane.f32.xlu0 %v5830
        %v5832 = vpop.xlane.xlu0 %5831
        %v5833 = vmul.f32 %v5823, %v1926
        %v5834 = vmul.f32 %v5826, %v1926
        %v5835 = vmul.f32 %v5829, %v1926
        %v5836 = vmul.f32 %v5832, %v1926
        %v5837 = vadd.f32 %v5833, 1e-05
        %v5838 = vadd.f32 %v5834, 1e-05
        %v5839 = vadd.f32 %v5835, 1e-05
        %v5840 = vadd.f32 %v5836, 1e-05
        %v5841 = vrsqrt.pop %v5837
        %v5842 = vmul.f32 %v5841, %v5837
        %v5843 = vmul.f32 %v5842, %v5841
        %v5844 = vmul.f32 0.5, %v5843
        %v5845 = vsub.f32 1.5, %v5844
        %v5846 = vmul.f32 %v5841, %v5845
        %vm5847 = vweird.f32 %v5837
        %vm5848 = vweird.f32 %v5841
        %vm5849 = vmor %vm5847, %vm5848
        %v5850 = vsel %vm5849, %v5841, %v5846
        %v5851 = vrsqrt.pop %v5838
        %v5852 = vmul.f32 %v5851, %v5838
        %v5853 = vmul.f32 %v5852, %v5851
        %v5854 = vmul.f32 0.5, %v5853
        %v5855 = vsub.f32 1.5, %v5854
        %v5856 = vmul.f32 %v5851, %v5855
        %vm5857 = vweird.f32 %v5838
        %vm5858 = vweird.f32 %v5851
        %vm5859 = vmor %vm5857, %vm5858
        %v5860 = vsel %vm5859, %v5851, %v5856
        %v5861 = vrsqrt.pop %v5839
        %v5862 = vmul.f32 %v5861, %v5839
        %v5863 = vmul.f32 %v5862, %v5861
        %v5864 = vmul.f32 0.5, %v5863
        %v5865 = vsub.f32 1.5, %v5864
        %v5866 = vmul.f32 %v5861, %v5865
        %vm5867 = vweird.f32 %v5839
        %vm5868 = vweird.f32 %v5861
        %vm5869 = vmor %vm5867, %vm5868
        %v5870 = vsel %vm5869, %v5861, %v5866
        %v5871 = vrsqrt.pop %v5840
        %v5872 = vmul.f32 %v5871, %v5840
        %v5873 = vmul.f32 %v5872, %v5871
        %v5874 = vmul.f32 0.5, %v5873
        %v5875 = vsub.f32 1.5, %v5874
        %v5876 = vmul.f32 %v5871, %v5875
        %vm5877 = vweird.f32 %v5840
        %vm5878 = vweird.f32 %v5871
        %vm5879 = vmor %vm5877, %vm5878
        %v5880 = vsel %vm5879, %v5871, %v5876
        %v5881 = vmul.f32 %v5813, %v5850
        %v5882 = vmul.f32 %v5814, %v5860
        %v5883 = vmul.f32 %v5815, %v5870
        %v5884 = vmul.f32 %v5816, %v5880
        %v5886 = vperm.slane %v5794, 0
        %v5888 = vmul.f32 %v5881, %v5886
        %v5889 = vmul.f32 %v5882, %v5886
        %v5890 = vmul.f32 %v5883, %v5886
        %v5891 = vmul.f32 %v5884, %v5886
        %v5893 = vperm.slane %v5796, 0
        %v5895 = vadd.f32 %v5888, %v5893
        %v5896 = vadd.f32 %v5889, %v5893
        %v5897 = vadd.f32 %v5890, %v5893
        %v5898 = vadd.f32 %v5891, %v5893
        %v5899 = vmul.f32 %v5895, 1.442695
        %v5900 = vpow.pop %v5899
        %v5901 = vmul.f32 %v5896, 1.442695
        %v5902 = vpow.pop %v5901
        %v5903 = vmul.f32 %v5897, 1.442695
        %v5904 = vpow.pop %v5903
        %v5905 = vmul.f32 %v5898, 1.442695
        %v5906 = vpow.pop %v5905
        %v5907 = vadd.f32 %v5900, 1.0
        %v5908 = vadd.f32 %v5902, 1.0
        %v5909 = vadd.f32 %v5904, 1.0
        %v5910 = vadd.f32 %v5906, 1.0
        %v5911 = vmul.f32 %v5907, %v5907
        %v5912 = vmul.f32 %v5908, %v5908
        %v5913 = vmul.f32 %v5909, %v5909
        %v5914 = vmul.f32 %v5910, %v5910
        %v5915 = vadd.f32 %v5911, 1.0
        %v5916 = vadd.f32 %v5912, 1.0
        %v5917 = vadd.f32 %v5913, 1.0
        %v5918 = vadd.f32 %v5914, 1.0
        %v5919 = vrcp.pop %v5915
        %v5920 = vrcp.pop %v5916
        %v5921 = vrcp.pop %v5917
        %v5922 = vrcp.pop %v5918
        %v5923 = vmul.f32 %v5919, 2.0
        %v5924 = vmul.f32 %v5920, 2.0
        %v5925 = vmul.f32 %v5921, 2.0
        %v5926 = vmul.f32 %v5922, 2.0
        %v5927 = vsub.f32 1.0, %v5923
        %v5928 = vsub.f32 1.0, %v5924
        %v5929 = vsub.f32 1.0, %v5925
        %v5930 = vsub.f32 1.0, %v5926
        %v5931 = vmul.f32 %v5895, %v5927
        %v5932 = vmul.f32 %v5896, %v5928
        %v5933 = vmul.f32 %v5897, %v5929
        %v5934 = vmul.f32 %v5898, %v5930
        %v5935 = vmul.f32 %v1062, 0.2
        %v5936 = vmul.f32 %v1063, 0.2
        %v5937 = vmul.f32 %v1064, 0.2
        %v5938 = vmul.f32 %v1065, 0.2
        %v5939 = vadd.f32 %v5931, %v5935
        %v5940 = vadd.f32 %v5932, %v5936
        %v5941 = vadd.f32 %v5933, %v5937
        %v5942 = vadd.f32 %v5934, %v5938
        %v5943 = vld [vmem:[%s18] sm:$0xff]
        %v5944 = vld [vmem:[%s18 + $0x8] sm:$0xff]
        %v5945 = vld [vmem:[%s19] sm:$0xff]
        %v5946 = vld [vmem:[%s19 + $0x8] sm:$0xff]
        %5948 = vset.pattern.permute.xlu0 0
        %5949 = vperm.xlu0 %5948, %v5945
        %v5950 = vpop.permute.xlu0 %5949
        %5953 = vset.pattern.permute.xlu0 0
        %5954 = vperm.xlu0 %5953, %v5946
        %v5955 = vpop.permute.xlu0 %5954
        %v5958 = vsel %vm774, %v5943, 0
        %v5961 = vsel %vm774, %v5944, 0
        %5963 = vmatpush.msra.mxu0 0.0
        %5964 = vmatpush.msra.mxu0 0.0
        %5965 = vmatpush.msra.mxu0 0.0
        %5966 = vmatpush.msra.mxu0 0.0
        %5967 = vmatpush.msra.mxu0 0.0
        %5968 = vmatpush.msra.mxu0 0.0
        %5969 = vmatpush.msra.mxu0 0.0
        %5970 = vmatpush.msra.mxu0 0.0
        %5971 = vmatpush.msra.mxu0 0.0
        %5972 = vmatpush.msra.mxu0 0.0
        %5973 = vmatpush.msra.mxu0 0.0
        %5974 = vmatpush.msra.mxu0 0.0
        %5975 = vmatpush.msra.mxu0 %v5942
        %5976 = vmatpush.msra.mxu0 %v5941
        %5977 = vmatpush.msra.mxu0 %v5940
        %5978 = vmatpush.msra.mxu0 %v5939
        %5979 = vmatmul.f32.gmra.mxu0 %v5958
        %v5980 = vpop.f32.mrf.mxu0
        %v5981 = vadd.f32 %v5950, %v5980
        %5982 = vmatmul.f32.gmra.mxu0 %v5961
        %v5983 = vpop.f32.mrf.mxu0
        %v5984 = vadd.f32 %v5955, %v5983
        %5985 = vdwg.mxu0
        %v5986 = vmul.f32 %v5981, 1.442695
        %v5987 = vpow.pop %v5986
        %v5988 = vmul.f32 %v5984, 1.442695
        %v5989 = vpow.pop %v5988
        %v5990 = vadd.f32 %v5987, 1.0
        %v5991 = vadd.f32 %v5989, 1.0
        %v5992 = vmul.f32 %v5990, %v5990
        %v5993 = vmul.f32 %v5991, %v5991
        %v5994 = vadd.f32 %v5992, 1.0
        %v5995 = vadd.f32 %v5993, 1.0
        %v5996 = vrcp.pop %v5994
        %v5997 = vrcp.pop %v5995
        %v5998 = vmul.f32 %v5996, 2.0
        %v5999 = vmul.f32 %v5997, 2.0
        %v6000 = vsub.f32 1.0, %v5998
        %v6001 = vsub.f32 1.0, %v5999
        %v6002 = vmul.f32 %v5981, %v6000
        %v6003 = vmul.f32 %v5984, %v6001
        %v6004 = vld [vmem:[%s20] sm:$0xff]
        %v6005 = vld [vmem:[%s20 + $0x8] sm:$0xff]
        %v6006 = vld [vmem:[%s20 + $0x10] sm:$0xff]
        %v6007 = vld [vmem:[%s20 + $0x18] sm:$0xff]
        %v6008 = vld [vmem:[%s21] sm:$0x1]
        %v6010 = vperm.slane %v6008, 0
        %v6013 = vsel %vm774, %v6002, 0
        %v6016 = vsel %vm774, %v6003, 0
        %6018 = vmatpush.msra.mxu0 0.0
        %6019 = vmatpush.msra.mxu0 0.0
        %6020 = vmatpush.msra.mxu0 0.0
        %6021 = vmatpush.msra.mxu0 0.0
        %6022 = vmatpush.msra.mxu0 0.0
        %6023 = vmatpush.msra.mxu0 0.0
        %6024 = vmatpush.msra.mxu0 0.0
        %6025 = vmatpush.msra.mxu0 0.0
        %6026 = vmatpush.msra.mxu0 0.0
        %6027 = vmatpush.msra.mxu0 0.0
        %6028 = vmatpush.msra.mxu0 0.0
        %6029 = vmatpush.msra.mxu0 0.0
        %6030 = vmatpush.msra.mxu0 %v6007
        %6031 = vmatpush.msra.mxu0 %v6006
        %6032 = vmatpush.msra.mxu0 %v6005
        %6033 = vmatpush.msra.mxu0 %v6004
        %6034 = vmatmul.f32.gmra.mxu0 %v6013
        %v6035 = vpop.f32.mrf.mxu0
        %v6036 = vadd.f32 %v6010, %v6035
        %6037 = vmatmul.f32.gmra.mxu0 %v6016
        %v6038 = vpop.f32.mrf.mxu0
        %v6039 = vadd.f32 %v6010, %v6038
        %6040 = vdwg.mxu0
        %6041 = vst.msk [vmem:[%s676] sm:$0xff] %vm692, %v6036
        %6042 = vst.msk [vmem:[%s676 + $0x8] sm:$0xff] %vm692, %v6039
        %s6043 = sand.u32 %s511, 1
        %s6044 = scalar_lea.sflag [#allocation3], %s6043
        %s6045 = sand.u32 %s511, 1
        %s6046 = smul.addr %s6045, 16
        %s6047 = scalar_lea.vmem [#allocation2], %s6046
        // Predicated region
        $region109: #{cryptor_forward.1} parent=107 // pred_check
          %p6048 = pneg %p521
        $region110: #{cryptor_forward.1} parent=107 // pred_check_branch
          %6050 = sbr.rel (%p6048) target = $region112
        $region111: #{cryptor_forward.1} parent=107 // pred_region
          %6052 = vsyncadd %s6044, 0
          %s6053 = smul.addr %s36, 2
          %s6054 = smul.addr %s6053, 8
          %s6055 = scalar_lea.hbm %s22, %s6054
          %s6056 = sshll.u32 %s6047, 4
          %s6057 = int_to_ptr.vmem [resolvable:$true] %s6056
          %s6058 = sshll.u32 %s6055, 4
          %s6059 = int_to_ptr.hbm [resolvable:$true] %s6058
          %6064 = dma.vmem_to_hbm [thread:$0]  %s6057, 256, %s6059, %s6044, 128, 128, 8
        $region112: #{cryptor_forward.1} parent=107 // pred_fallthru
          _
      $region108: #{cryptor_forward.1} parent=5 // pred_fallthru
        _
      %p6065 = scmp.le.s32.totalorder 2, %s31
      // Predicated region
      $region113: #{cryptor_forward.1} parent=5 // pred_check
        %p6066 = pneg %p6065
      $region114: #{cryptor_forward.1} parent=5 // pred_check_branch
        %6068 = sbr.rel (%p6066) target = $region116
      $region115: #{cryptor_forward.1} parent=5 // pred_region
        %s6069 = ssub.s32 %s31, 2
        // Predicated region
        $region117: #{cryptor_forward.1} parent=115 // pred_check
          %p6070 = pneg %p527
        $region118: #{cryptor_forward.1} parent=115 // pred_check_branch
          %6072 = sbr.rel (%p6070) target = $region120
        $region119: #{cryptor_forward.1} parent=115 // pred_region
          %s6073 = sand.u32 %s512, 1
          %s6074 = scalar_lea.sflag [#allocation3], %s6073
          %s6075 = sand.u32 %s512, 1
          %s6076 = smul.addr %s6075, 16
          %s6077 = scalar_lea.vmem [#allocation2], %s6076
          %6079 = dma.done %s6074, 256
        $region120: #{cryptor_forward.1} parent=115 // pred_fallthru
          _
      $region116: #{cryptor_forward.1} parent=5 // pred_fallthru
        _
    $region6: #{cryptor_forward.1} parent=1 // loop_footer
      %s35 = sadd.s32 1, %s31
    $region7: #{cryptor_forward.1} parent=1 // loop_footer_branch
      %30 = sbr.rel target = $region3
    $region8: #{cryptor_forward.1} parent=1 // loop_exit
      _
    %6080 = vsyncpa [#allocation3], 1
    %s6081 = scalar_lea.sflag [#allocation3], 1
    %6082 = vsyncpa %s6081, 1

</llo_original>
